<compile_context>
chip_gen: v7x
topology: tpu7x:2x2x1
jax: 0.10.0
libtpu: 0.0.40
codegen_flags: <defaults>
</compile_context>

<pallas_src>
import math

import jax
import jax.numpy as jnp
import numpy as np
from jax.experimental import pallas as pl
from jax.experimental.pallas import tpu as pltpu

PAD = 4      # (kernel_size - 1) // 2 for the 9-tap conv
KTAPS = 9


def _spatial_scan_kernel(x_ref, wd_ref, bd_ref, wu_ref, bu_ref,
                         wr_ref, br_ref, wl_ref, bl_ref, out_ref, vbuf):
    """All four directional scans for one batch group.

    x_ref   : (G, H, W, C) f32   input activations (NHWC)
    w*_ref  : (9*C, C)     bf16  im2col-packed weights, row = tap*C + c_in, col = c_out
    b*_ref  : (1, C)       f32   biases
    out_ref : (G, W, H, C) f32   output (H/W swapped: owned by the horizontal phase)
    vbuf    : (H, G, W, C) f32   VMEM state for the vertical phase
    """
    G, H, W, C = x_ref.shape
    Mv, Mh = G * W, G * H

    # Hoisted loop invariants: within-row position (for the zero-padding masks) and
    # materialized bias tiles (JAX does not CSE broadcast_in_dim inside loops).
    pos_v = jax.lax.broadcasted_iota(jnp.int32, (Mv, C), 0) % W
    pos_h = jax.lax.broadcasted_iota(jnp.int32, (Mh, C), 0) % H
    bd_t = jnp.broadcast_to(bd_ref[...], (Mv, C))
    bu_t = jnp.broadcast_to(bu_ref[...], (Mv, C))
    br_t = jnp.broadcast_to(br_ref[...], (Mh, C))
    bl_t = jnp.broadcast_to(bl_ref[...], (Mh, C))

    def conv_relu(prev, w_ref, b_tile, pos, s_len):
        # prev: (G, s_len, C) f32.  Width-9 zero-padded conv along s_len with channel
        # mixing, computed as a single (G*s_len, 9C) x (9C, C) bf16 MXU dot, f32 acc.
        g, s, c = prev.shape
        m = g * s
        p = prev.reshape(m, c)
        taps = []
        for k in range(KTAPS):
            d = k - PAD
            t = p if d == 0 else pltpu.roll(p, shift=(-d) % m, axis=0)
            if d < 0:                       # zero-fill where s + d < 0 (also kills wrap)
                t = jnp.where(pos >= -d, t, 0.0)
            elif d > 0:                     # zero-fill where s + d >= s_len
                t = jnp.where(pos < s_len - d, t, 0.0)
            taps.append(t)
        win = jnp.concatenate(taps, axis=-1).astype(jnp.bfloat16)      # (m, 9C)
        acc = jnp.dot(win, w_ref[...], preferred_element_type=jnp.float32)
        return jnp.maximum(acc + b_tile, 0.0).reshape(prev.shape)

    # ---------------- vertical phase: scan over H, conv along W ----------------
    row0 = x_ref[:, 0]
    vbuf[0] = row0

    def down_step(i, prev):                 # rows 1 .. H-1
        cur = x_ref[:, i] + conv_relu(prev, wd_ref, bd_t, pos_v, W)
        vbuf[i] = cur
        return cur

    last_row = jax.lax.fori_loop(1, H, down_step, row0)

    def up_step(step, prev):                # rows H-2 .. 1
        i = H - 2 - step
        cur = vbuf[i] + conv_relu(prev, wu_ref, bu_t, pos_v, W)
        vbuf[i] = cur
        return cur

    jax.lax.fori_loop(0, H - 2, up_step, last_row)

    # ------------- in-VMEM (H, W) transpose into the output layout -------------
    for i in range(H):                      # static unroll; no HBM round trip
        out_ref[:, :, i, :] = vbuf[i]

    # --------------- horizontal phase: scan over W, conv along H ---------------
    col0 = out_ref[:, 0]

    def right_step(j, prev):                # cols 1 .. W-1
        cur = out_ref[:, j] + conv_relu(prev, wr_ref, br_t, pos_h, H)
        out_ref[:, j] = cur
        return cur

    last_col = jax.lax.fori_loop(1, W, right_step, col0)

    def left_step(step, prev):              # cols W-2 .. 1
        j = W - 2 - step
        cur = out_ref[:, j] + conv_relu(prev, wl_ref, bl_t, pos_h, H)
        out_ref[:, j] = cur
        return cur

    jax.lax.fori_loop(0, W - 2, left_step, last_col)


def _default_num_groups(n):
    # Single-TC chips (v5e/v6e): a full batch fold (1 group) is strictly better.
    # On 2-TC chips (v7x / megacore) a 2-way "parallel" split uses both cores.
    try:
        cores = int(getattr(jax.devices()[0], "num_cores", 1) or 1)
    except Exception:
        cores = 1
    g = 2 if cores >= 2 else 1
    if n % g != 0:
        g = 1
    return g


def spatial_conv_forward(x_nchw, params, num_groups=None):
    """Full SpatialConv.forward (down, up, right, left). x_nchw: (N, C, H, W) f32."""
    N, C, H, W = x_nchw.shape
    if num_groups is None:
        num_groups = _default_num_groups(N)
    if N % num_groups != 0:
        num_groups = 1
    G = N // num_groups

    x = jnp.transpose(x_nchw, (0, 2, 3, 1)).astype(jnp.float32)        # (N, H, W, C)

    x_spec = pl.BlockSpec((G, H, W, C), lambda n: (n, 0, 0, 0))
    o_spec = pl.BlockSpec((G, W, H, C), lambda n: (n, 0, 0, 0))
    w_spec = pl.BlockSpec((KTAPS * C, C), lambda n: (0, 0))
    b_spec = pl.BlockSpec((1, C), lambda n: (0, 0))

    # TODO(synk): for production feature-map sizes, tile W across the grid with a
    # PAD-wide halo (and/or raise vmem_limit_bytes) so the per-program block fits
    # v7x's 64 MiB VMEM; at these shapes everything fits comfortably.
    y = pl.pallas_call(
        _spatial_scan_kernel,
        out_shape=jax.ShapeDtypeStruct((N, W, H, C), jnp.float32),
        grid=(num_groups,),
        in_specs=[x_spec,
                  w_spec, b_spec,   # down
                  w_spec, b_spec,   # up
                  w_spec, b_spec,   # right
                  w_spec, b_spec],  # left
        out_specs=o_spec,
        scratch_shapes=[pltpu.VMEM((H, G, W, C), jnp.float32)],
        compiler_params=pltpu.CompilerParams(dimension_semantics=("parallel",)),
    )(x,
      params["w_d"], params["b_d"], params["w_u"], params["b_u"],
      params["w_r"], params["b_r"], params["w_l"], params["b_l"])

    return jnp.transpose(y, (0, 3, 2, 1))                              # (N, C, H, W)


def pack_params(wd, bd, wu, bu, wr, br, wl, bl):
    """PyTorch Conv2d weights (Co, Ci, kh, kw) -> im2col (9*Ci, Co) bf16 + (1, C) biases."""
    C = wd.shape[0]

    def pack_w(w3):          # (Co, Ci, 9) -> (9*Ci, Co), row = k*Ci + ci
        return jnp.transpose(w3, (2, 1, 0)).reshape(KTAPS * C, C).astype(jnp.bfloat16)

    def pack_b(b):
        return b.reshape(1, C).astype(jnp.float32)

    return {
        "w_d": pack_w(wd[:, :, 0, :]), "b_d": pack_b(bd),
        "w_u": pack_w(wu[:, :, 0, :]), "b_u": pack_b(bu),
        "w_r": pack_w(wr[:, :, :, 0]), "b_r": pack_b(br),
        "w_l": pack_w(wl[:, :, :, 0]), "b_l": pack_b(bl),
    }


# ----------------------------------------------------------------------------
# Pure-NumPy float64 reference (NCHW, PyTorch Conv2d weight layout) for validation.
# ----------------------------------------------------------------------------
def ref_spatial_conv_np(x, wd, bd, wu, bu, wr, br, wl, bl):
    x = np.asarray(x, np.float64)
    wd, wu, wr, wl = (np.asarray(a, np.float64) for a in (wd, wu, wr, wl))
    bd, bu, br, bl = (np.asarray(a, np.float64) for a in (bd, bu, br, bl))
    N, C, H, W = x.shape

    def conv_1x9(row, w, b):     # row (N, C, W); w (Co, Ci, 1, 9)
        rp = np.pad(row, ((0, 0), (0, 0), (PAD, PAD)))
        out = np.broadcast_to(b[None, :, None], (N, C, W)).copy()
        for k in range(KTAPS):
            out = out + np.einsum("oi,niw->now", w[:, :, 0, k], rp[:, :, k:k + W])
        return out

    def conv_9x1(col, w, b):     # col (N, C, H); w (Co, Ci, 9, 1)
        cp = np.pad(col, ((0, 0), (0, 0), (PAD, PAD)))
        out = np.broadcast_to(b[None, :, None], (N, C, H)).copy()
        for k in range(KTAPS):
            out = out + np.einsum("oi,nih->noh", w[:, :, k, 0], cp[:, :, k:k + H])
        return out

    out = x.copy()
    for i in range(1, H):
        out[:, :, i, :] += np.maximum(conv_1x9(out[:, :, i - 1, :], wd, bd), 0.0)
    for i in range(H - 2, 0, -1):
        out[:, :, i, :] += np.maximum(conv_1x9(out[:, :, i + 1, :], wu, bu), 0.0)
    for i in range(1, W):
        out[:, :, :, i] += np.maximum(conv_9x1(out[:, :, :, i - 1], wr, br), 0.0)
    for i in range(W - 2, 0, -1):
        out[:, :, :, i] += np.maximum(conv_9x1(out[:, :, :, i + 1], wl, bl), 0.0)
    return out


if __name__ == "__main__":
    # C = 128 is the module's default num_channels; keeps the lane dimension dense.
    N, C, H, W = 2, 128, 16, 16

    key = jax.random.PRNGKey(0)
    kx, *kp = jax.random.split(key, 9)
    x = jax.random.normal(kx, (N, C, H, W), jnp.float32)

    # Deterministic parameter init mirroring the module's __init__.
    wbound = math.sqrt(2.0 / (C * 9 * 5))            # _adjust_initializations
    bbound = 1.0 / math.sqrt(C * 9)                  # PyTorch default bias init range
    wd = jax.random.uniform(kp[0], (C, C, 1, 9), jnp.float32, -wbound, wbound)
    wu = jax.random.uniform(kp[1], (C, C, 1, 9), jnp.float32, -wbound, wbound)
    wr = jax.random.uniform(kp[2], (C, C, 9, 1), jnp.float32, -wbound, wbound)
    wl = jax.random.uniform(kp[3], (C, C, 9, 1), jnp.float32, -wbound, wbound)
    bd = jax.random.uniform(kp[4], (C,), jnp.float32, -bbound, bbound)
    bu = jax.random.uniform(kp[5], (C,), jnp.float32, -bbound, bbound)
    br = jax.random.uniform(kp[6], (C,), jnp.float32, -bbound, bbound)
    bl = jax.random.uniform(kp[7], (C,), jnp.float32, -bbound, bbound)

    params = pack_params(wd, bd, wu, bu, wr, br, wl, bl)

    fwd = jax.jit(spatial_conv_forward)
    out = jax.block_until_ready(fwd(x, params))

    ref = ref_spatial_conv_np(np.asarray(x), np.asarray(wd), np.asarray(bd),
                              np.asarray(wu), np.asarray(bu), np.asarray(wr),
                              np.asarray(br), np.asarray(wl), np.asarray(bl))

    assert out.shape == (N, C, H, W) and out.dtype == jnp.float32
    # Kernel uses bf16 dot operands (f32 accumulate) over a ~2*(H+W)-step recurrence;
    # 2e-2 tolerance covers the compounded bf16 rounding against the f64 reference.
    np.testing.assert_allclose(np.asarray(out), ref.astype(np.float32),
                               rtol=2e-2, atol=2e-2)
    print("KERNEL_OK")
</pallas_src>

<mosaic_0001>
module attributes {stable_mosaic.version = 11 : i64} {
  func.func @_spatial_scan_kernel(%arg0: i32, %arg1: memref<2x16x16x128xf32, #tpu.memory_space<vmem>>, %arg2: memref<1152x128xbf16, #tpu.memory_space<vmem>>, %arg3: memref<1x128xf32, #tpu.memory_space<vmem>>, %arg4: memref<1152x128xbf16, #tpu.memory_space<vmem>>, %arg5: memref<1x128xf32, #tpu.memory_space<vmem>>, %arg6: memref<1152x128xbf16, #tpu.memory_space<vmem>>, %arg7: memref<1x128xf32, #tpu.memory_space<vmem>>, %arg8: memref<1152x128xbf16, #tpu.memory_space<vmem>>, %arg9: memref<1x128xf32, #tpu.memory_space<vmem>>, %arg10: memref<2x16x16x128xf32, #tpu.memory_space<vmem>>, %arg11: memref<16x2x16x128xf32, #tpu.memory_space<vmem>>) attributes {dimension_semantics = [#tpu.dimension_semantics<parallel>], iteration_bounds = array<i64: 1>, scalar_prefetch = 0 : i64, scratch_operands = 1 : i64, tpu.core_type = #tpu.core_type<tc>, window_params = [{transform_indices = @transform_0, window_bounds = array<i64: 2, 16, 16, 128>}, {pipeline_mode = #tpu.pipeline_mode<synchronous>, transform_indices = @transform_1, window_bounds = array<i64: 1152, 128>}, {pipeline_mode = #tpu.pipeline_mode<synchronous>, transform_indices = @transform_2, window_bounds = array<i64: 1, 128>}, {pipeline_mode = #tpu.pipeline_mode<synchronous>, transform_indices = @transform_3, window_bounds = array<i64: 1152, 128>}, {pipeline_mode = #tpu.pipeline_mode<synchronous>, transform_indices = @transform_4, window_bounds = array<i64: 1, 128>}, {pipeline_mode = #tpu.pipeline_mode<synchronous>, transform_indices = @transform_5, window_bounds = array<i64: 1152, 128>}, {pipeline_mode = #tpu.pipeline_mode<synchronous>, transform_indices = @transform_6, window_bounds = array<i64: 1, 128>}, {pipeline_mode = #tpu.pipeline_mode<synchronous>, transform_indices = @transform_7, window_bounds = array<i64: 1152, 128>}, {pipeline_mode = #tpu.pipeline_mode<synchronous>, transform_indices = @transform_8, window_bounds = array<i64: 1, 128>}, {transform_indices = @transform_9, window_bounds = array<i64: 2, 16, 16, 128>}]} {
    %0 = tpu.iota {dimensions = array<i32: 0>} : vector<32x128xi32>
    %c16_i32 = arith.constant 16 : i32
    %c0_i32 = arith.constant 0 : i32
    %1 = arith.cmpi eq, %c16_i32, %c0_i32 : i32
    %c1_i32 = arith.constant 1 : i32
    %2 = arith.select %1, %c1_i32, %c16_i32 : i32
    %3 = vector.broadcast %2 : i32 to vector<32x128xi32>
    %4 = arith.remsi %0, %3 : vector<32x128xi32>
    %c0_i32_0 = arith.constant 0 : i32
    %5 = vector.broadcast %c0_i32_0 : i32 to vector<32x128xi32>
    %6 = arith.cmpi ne, %4, %5 : vector<32x128xi32>
    %c0_i32_1 = arith.constant 0 : i32
    %7 = vector.broadcast %c0_i32_1 : i32 to vector<32x128xi32>
    %8 = arith.cmpi slt, %4, %7 : vector<32x128xi32>
    %c0_i32_2 = arith.constant 0 : i32
    %9 = arith.cmpi slt, %2, %c0_i32_2 : i32
    %10 = vector.broadcast %9 : i1 to vector<32x128xi1>
    %11 = vector.broadcast %10 : vector<32x128xi1> to vector<32x128xi1>
    %12 = arith.xori %8, %11 : vector<32x128xi1>
    %13 = arith.andi %12, %6 : vector<32x128xi1>
    %14 = vector.broadcast %2 : i32 to vector<32x128xi32>
    %15 = arith.addi %4, %14 : vector<32x128xi32>
    %16 = arith.select %13, %15, %4 : vector<32x128xi1>, vector<32x128xi32>
    %17 = tpu.iota {dimensions = array<i32: 0>} : vector<32x128xi32>
    %c16_i32_3 = arith.constant 16 : i32
    %c0_i32_4 = arith.constant 0 : i32
    %18 = arith.cmpi eq, %c16_i32_3, %c0_i32_4 : i32
    %c1_i32_5 = arith.constant 1 : i32
    %19 = arith.select %18, %c1_i32_5, %c16_i32_3 : i32
    %20 = vector.broadcast %19 : i32 to vector<32x128xi32>
    %21 = arith.remsi %17, %20 : vector<32x128xi32>
    %c0_i32_6 = arith.constant 0 : i32
    %22 = vector.broadcast %c0_i32_6 : i32 to vector<32x128xi32>
    %23 = arith.cmpi ne, %21, %22 : vector<32x128xi32>
    %c0_i32_7 = arith.constant 0 : i32
    %24 = vector.broadcast %c0_i32_7 : i32 to vector<32x128xi32>
    %25 = arith.cmpi slt, %21, %24 : vector<32x128xi32>
    %c0_i32_8 = arith.constant 0 : i32
    %26 = arith.cmpi slt, %19, %c0_i32_8 : i32
    %27 = vector.broadcast %26 : i1 to vector<32x128xi1>
    %28 = vector.broadcast %27 : vector<32x128xi1> to vector<32x128xi1>
    %29 = arith.xori %25, %28 : vector<32x128xi1>
    %30 = arith.andi %29, %23 : vector<32x128xi1>
    %31 = vector.broadcast %19 : i32 to vector<32x128xi32>
    %32 = arith.addi %21, %31 : vector<32x128xi32>
    %33 = arith.select %30, %32, %21 : vector<32x128xi1>, vector<32x128xi32>
    %c0 = arith.constant 0 : index
    %c0_9 = arith.constant 0 : index
    %34 = vector.load %arg3[%c0, %c0_9] : memref<1x128xf32, #tpu.memory_space<vmem>>, vector<1x128xf32>
    %35 = vector.shape_cast %34 : vector<1x128xf32> to vector<1x128xf32>
    %36 = vector.broadcast %35 : vector<1x128xf32> to vector<32x128xf32>
    %c0_10 = arith.constant 0 : index
    %c0_11 = arith.constant 0 : index
    %37 = vector.load %arg5[%c0_10, %c0_11] : memref<1x128xf32, #tpu.memory_space<vmem>>, vector<1x128xf32>
    %38 = vector.shape_cast %37 : vector<1x128xf32> to vector<1x128xf32>
    %39 = vector.broadcast %38 : vector<1x128xf32> to vector<32x128xf32>
    %c0_12 = arith.constant 0 : index
    %c0_13 = arith.constant 0 : index
    %40 = vector.load %arg7[%c0_12, %c0_13] : memref<1x128xf32, #tpu.memory_space<vmem>>, vector<1x128xf32>
    %41 = vector.shape_cast %40 : vector<1x128xf32> to vector<1x128xf32>
    %42 = vector.broadcast %41 : vector<1x128xf32> to vector<32x128xf32>
    %c0_14 = arith.constant 0 : index
    %c0_15 = arith.constant 0 : index
    %43 = vector.load %arg9[%c0_14, %c0_15] : memref<1x128xf32, #tpu.memory_space<vmem>>, vector<1x128xf32>
    %44 = vector.shape_cast %43 : vector<1x128xf32> to vector<1x128xf32>
    %45 = vector.broadcast %44 : vector<1x128xf32> to vector<32x128xf32>
    %c0_16 = arith.constant 0 : index
    %c0_17 = arith.constant 0 : index
    %c0_18 = arith.constant 0 : index
    %c0_19 = arith.constant 0 : index
    %46 = vector.load %arg1[%c0_16, %c0_17, %c0_18, %c0_19] : memref<2x16x16x128xf32, #tpu.memory_space<vmem>>, vector<2x1x16x128xf32>
    %47 = vector.shape_cast %46 : vector<2x1x16x128xf32> to vector<2x16x128xf32>
    %c0_20 = arith.constant 0 : index
    %c0_21 = arith.constant 0 : index
    %c0_22 = arith.constant 0 : index
    %c0_23 = arith.constant 0 : index
    %48 = vector.load %arg11[%c0_20, %c0_21, %c0_22, %c0_23] : memref<16x2x16x128xf32, #tpu.memory_space<vmem>>, vector<1x2x16x128xf32>
    %49 = vector.shape_cast %48 : vector<1x2x16x128xf32> to vector<2x16x128xf32>
    %50 = vector.shape_cast %47 : vector<2x16x128xf32> to vector<1x2x16x128xf32>
    tpu.vector_store %arg11[%c0_20, %c0_21, %c0_22, %c0_23], %50 {strides = array<i32>} : memref<16x2x16x128xf32, #tpu.memory_space<vmem>>, vector<1x2x16x128xf32>,
    %c1_i32_24 = arith.constant 1 : i32
    %c15_i32 = arith.constant 15 : i32
    %51 = arith.addi %c1_i32_24, %c15_i32 : i32
    %c1_i32_25 = arith.constant 1 : i32
    %52 = scf.for %arg12 = %c1_i32_24 to %51 step %c1_i32_25 iter_args(%arg13 = %47) -> (vector<2x16x128xf32>)  : i32 {
      %c0_155 = arith.constant 0 : index
      %141 = arith.index_cast %arg12 : i32 to index
      %c0_156 = arith.constant 0 : index
      %c0_157 = arith.constant 0 : index
      %142 = vector.load %arg1[%c0_155, %141, %c0_156, %c0_157] : memref<2x16x16x128xf32, #tpu.memory_space<vmem>>, vector<2x1x16x128xf32>
      %143 = vector.shape_cast %142 : vector<2x1x16x128xf32> to vector<2x16x128xf32>
      %144 = vector.shape_cast %arg13 : vector<2x16x128xf32> to vector<32x128xf32>
      %c4_i32 = arith.constant 4 : i32
      %145 = tpu.dynamic_rotate %144 by %c4_i32 dim 0 : vector<32x128xf32>, i32 -> vector<32x128xf32>
      %c4_i32_158 = arith.constant 4 : i32
      %146 = vector.broadcast %c4_i32_158 : i32 to vector<32x128xi32>
      %147 = arith.cmpi sge, %16, %146 : vector<32x128xi32>
      %cst = arith.constant 0.000000e+00 : f32
      %148 = vector.broadcast %cst : f32 to vector<32x128xf32>
      %149 = arith.select %147, %145, %148 : vector<32x128xi1>, vector<32x128xf32>
      %c3_i32 = arith.constant 3 : i32
      %150 = tpu.dynamic_rotate %144 by %c3_i32 dim 0 : vector<32x128xf32>, i32 -> vector<32x128xf32>
      %c3_i32_159 = arith.constant 3 : i32
      %151 = vector.broadcast %c3_i32_159 : i32 to vector<32x128xi32>
      %152 = arith.cmpi sge, %16, %151 : vector<32x128xi32>
      %cst_160 = arith.constant 0.000000e+00 : f32
      %153 = vector.broadcast %cst_160 : f32 to vector<32x128xf32>
      %154 = arith.select %152, %150, %153 : vector<32x128xi1>, vector<32x128xf32>
      %c2_i32 = arith.constant 2 : i32
      %155 = tpu.dynamic_rotate %144 by %c2_i32 dim 0 : vector<32x128xf32>, i32 -> vector<32x128xf32>
      %c2_i32_161 = arith.constant 2 : i32
      %156 = vector.broadcast %c2_i32_161 : i32 to vector<32x128xi32>
      %157 = arith.cmpi sge, %16, %156 : vector<32x128xi32>
      %cst_162 = arith.constant 0.000000e+00 : f32
      %158 = vector.broadcast %cst_162 : f32 to vector<32x128xf32>
      %159 = arith.select %157, %155, %158 : vector<32x128xi1>, vector<32x128xf32>
      %c1_i32_163 = arith.constant 1 : i32
      %160 = tpu.dynamic_rotate %144 by %c1_i32_163 dim 0 : vector<32x128xf32>, i32 -> vector<32x128xf32>
      %c1_i32_164 = arith.constant 1 : i32
      %161 = vector.broadcast %c1_i32_164 : i32 to vector<32x128xi32>
      %162 = arith.cmpi sge, %16, %161 : vector<32x128xi32>
      %cst_165 = arith.constant 0.000000e+00 : f32
      %163 = vector.broadcast %cst_165 : f32 to vector<32x128xf32>
      %164 = arith.select %162, %160, %163 : vector<32x128xi1>, vector<32x128xf32>
      %c31_i32 = arith.constant 31 : i32
      %165 = tpu.dynamic_rotate %144 by %c31_i32 dim 0 : vector<32x128xf32>, i32 -> vector<32x128xf32>
      %c15_i32_166 = arith.constant 15 : i32
      %166 = vector.broadcast %c15_i32_166 : i32 to vector<32x128xi32>
      %167 = arith.cmpi slt, %16, %166 : vector<32x128xi32>
      %cst_167 = arith.constant 0.000000e+00 : f32
      %168 = vector.broadcast %cst_167 : f32 to vector<32x128xf32>
      %169 = arith.select %167, %165, %168 : vector<32x128xi1>, vector<32x128xf32>
      %c30_i32 = arith.constant 30 : i32
      %170 = tpu.dynamic_rotate %144 by %c30_i32 dim 0 : vector<32x128xf32>, i32 -> vector<32x128xf32>
      %c14_i32_168 = arith.constant 14 : i32
      %171 = vector.broadcast %c14_i32_168 : i32 to vector<32x128xi32>
      %172 = arith.cmpi slt, %16, %171 : vector<32x128xi32>
      %cst_169 = arith.constant 0.000000e+00 : f32
      %173 = vector.broadcast %cst_169 : f32 to vector<32x128xf32>
      %174 = arith.select %172, %170, %173 : vector<32x128xi1>, vector<32x128xf32>
      %c29_i32 = arith.constant 29 : i32
      %175 = tpu.dynamic_rotate %144 by %c29_i32 dim 0 : vector<32x128xf32>, i32 -> vector<32x128xf32>
      %c13_i32 = arith.constant 13 : i32
      %176 = vector.broadcast %c13_i32 : i32 to vector<32x128xi32>
      %177 = arith.cmpi slt, %16, %176 : vector<32x128xi32>
      %cst_170 = arith.constant 0.000000e+00 : f32
      %178 = vector.broadcast %cst_170 : f32 to vector<32x128xf32>
      %179 = arith.select %177, %175, %178 : vector<32x128xi1>, vector<32x128xf32>
      %c28_i32 = arith.constant 28 : i32
      %180 = tpu.dynamic_rotate %144 by %c28_i32 dim 0 : vector<32x128xf32>, i32 -> vector<32x128xf32>
      %c12_i32 = arith.constant 12 : i32
      %181 = vector.broadcast %c12_i32 : i32 to vector<32x128xi32>
      %182 = arith.cmpi slt, %16, %181 : vector<32x128xi32>
      %cst_171 = arith.constant 0.000000e+00 : f32
      %183 = vector.broadcast %cst_171 : f32 to vector<32x128xf32>
      %184 = arith.select %182, %180, %183 : vector<32x128xi1>, vector<32x128xf32>
      %185 = tpu.concatenate %149, %154, %159, %164, %144, %169, %174, %179, %184 in 1 : vector<32x128xf32>, vector<32x128xf32>, vector<32x128xf32>, vector<32x128xf32>, vector<32x128xf32>, vector<32x128xf32>, vector<32x128xf32>, vector<32x128xf32>, vector<32x128xf32> -> vector<32x1152xf32>
      %186 = arith.truncf %185 : vector<32x1152xf32> to vector<32x1152xbf16>
      %c0_172 = arith.constant 0 : index
      %c0_173 = arith.constant 0 : index
      %187 = vector.load %arg2[%c0_172, %c0_173] : memref<1152x128xbf16, #tpu.memory_space<vmem>>, vector<1152x128xbf16>
      %cst_174 = arith.constant dense<0.000000e+00> : vector<32x128xf32>
      %188 = tpu.matmul %186, %187, %cst_174 {dimension_numbers = #tpu.dot_dimension_numbers<[1], [0], [0], [1], [0, 0, 1, 1], [], []>} : vector<32x1152xbf16>, vector<1152x128xbf16>, vector<32x128xf32> -> vector<32x128xf32>
      %189 = arith.addf %188, %36 : vector<32x128xf32>
      %cst_175 = arith.constant 0.000000e+00 : f32
      %190 = vector.broadcast %cst_175 : f32 to vector<32x128xf32>
      %191 = arith.maximumf %189, %190 : vector<32x128xf32>
      %192 = vector.shape_cast %191 : vector<32x128xf32> to vector<2x16x128xf32>
      %193 = arith.addf %143, %192 : vector<2x16x128xf32>
      %194 = arith.index_cast %arg12 : i32 to index
      %c0_176 = arith.constant 0 : index
      %c0_177 = arith.constant 0 : index
      %c0_178 = arith.constant 0 : index
      %195 = vector.load %arg11[%194, %c0_176, %c0_177, %c0_178] : memref<16x2x16x128xf32, #tpu.memory_space<vmem>>, vector<1x2x16x128xf32>
      %196 = vector.shape_cast %195 : vector<1x2x16x128xf32> to vector<2x16x128xf32>
      %197 = vector.shape_cast %193 : vector<2x16x128xf32> to vector<1x2x16x128xf32>
      tpu.vector_store %arg11[%194, %c0_176, %c0_177, %c0_178], %197 {strides = array<i32>} : memref<16x2x16x128xf32, #tpu.memory_space<vmem>>, vector<1x2x16x128xf32>,
      scf.yield %193 : vector<2x16x128xf32>
    }
    %c15_i32_26 = arith.constant 15 : i32
    %c0_i32_27 = arith.constant 0 : i32
    %c14_i32 = arith.constant 14 : i32
    %53 = arith.addi %c0_i32_27, %c14_i32 : i32
    %c1_i32_28 = arith.constant 1 : i32
    %54 = scf.for %arg12 = %c0_i32_27 to %53 step %c1_i32_28 iter_args(%arg13 = %52) -> (vector<2x16x128xf32>)  : i32 {
      %c14_i32_155 = arith.constant 14 : i32
      %141 = arith.subi %c14_i32_155, %arg12 : i32
      %142 = arith.index_cast %141 : i32 to index
      %c0_156 = arith.constant 0 : index
      %c0_157 = arith.constant 0 : index
      %c0_158 = arith.constant 0 : index
      %143 = vector.load %arg11[%142, %c0_156, %c0_157, %c0_158] : memref<16x2x16x128xf32, #tpu.memory_space<vmem>>, vector<1x2x16x128xf32>
      %144 = vector.shape_cast %143 : vector<1x2x16x128xf32> to vector<2x16x128xf32>
      %145 = vector.shape_cast %arg13 : vector<2x16x128xf32> to vector<32x128xf32>
      %c4_i32 = arith.constant 4 : i32
      %146 = tpu.dynamic_rotate %145 by %c4_i32 dim 0 : vector<32x128xf32>, i32 -> vector<32x128xf32>
      %c4_i32_159 = arith.constant 4 : i32
      %147 = vector.broadcast %c4_i32_159 : i32 to vector<32x128xi32>
      %148 = arith.cmpi sge, %16, %147 : vector<32x128xi32>
      %cst = arith.constant 0.000000e+00 : f32
      %149 = vector.broadcast %cst : f32 to vector<32x128xf32>
      %150 = arith.select %148, %146, %149 : vector<32x128xi1>, vector<32x128xf32>
      %c3_i32 = arith.constant 3 : i32
      %151 = tpu.dynamic_rotate %145 by %c3_i32 dim 0 : vector<32x128xf32>, i32 -> vector<32x128xf32>
      %c3_i32_160 = arith.constant 3 : i32
      %152 = vector.broadcast %c3_i32_160 : i32 to vector<32x128xi32>
      %153 = arith.cmpi sge, %16, %152 : vector<32x128xi32>
      %cst_161 = arith.constant 0.000000e+00 : f32
      %154 = vector.broadcast %cst_161 : f32 to vector<32x128xf32>
      %155 = arith.select %153, %151, %154 : vector<32x128xi1>, vector<32x128xf32>
      %c2_i32 = arith.constant 2 : i32
      %156 = tpu.dynamic_rotate %145 by %c2_i32 dim 0 : vector<32x128xf32>, i32 -> vector<32x128xf32>
      %c2_i32_162 = arith.constant 2 : i32
      %157 = vector.broadcast %c2_i32_162 : i32 to vector<32x128xi32>
      %158 = arith.cmpi sge, %16, %157 : vector<32x128xi32>
      %cst_163 = arith.constant 0.000000e+00 : f32
      %159 = vector.broadcast %cst_163 : f32 to vector<32x128xf32>
      %160 = arith.select %158, %156, %159 : vector<32x128xi1>, vector<32x128xf32>
      %c1_i32_164 = arith.constant 1 : i32
      %161 = tpu.dynamic_rotate %145 by %c1_i32_164 dim 0 : vector<32x128xf32>, i32 -> vector<32x128xf32>
      %c1_i32_165 = arith.constant 1 : i32
      %162 = vector.broadcast %c1_i32_165 : i32 to vector<32x128xi32>
      %163 = arith.cmpi sge, %16, %162 : vector<32x128xi32>
      %cst_166 = arith.constant 0.000000e+00 : f32
      %164 = vector.broadcast %cst_166 : f32 to vector<32x128xf32>
      %165 = arith.select %163, %161, %164 : vector<32x128xi1>, vector<32x128xf32>
      %c31_i32 = arith.constant 31 : i32
      %166 = tpu.dynamic_rotate %145 by %c31_i32 dim 0 : vector<32x128xf32>, i32 -> vector<32x128xf32>
      %c15_i32_167 = arith.constant 15 : i32
      %167 = vector.broadcast %c15_i32_167 : i32 to vector<32x128xi32>
      %168 = arith.cmpi slt, %16, %167 : vector<32x128xi32>
      %cst_168 = arith.constant 0.000000e+00 : f32
      %169 = vector.broadcast %cst_168 : f32 to vector<32x128xf32>
      %170 = arith.select %168, %166, %169 : vector<32x128xi1>, vector<32x128xf32>
      %c30_i32 = arith.constant 30 : i32
      %171 = tpu.dynamic_rotate %145 by %c30_i32 dim 0 : vector<32x128xf32>, i32 -> vector<32x128xf32>
      %c14_i32_169 = arith.constant 14 : i32
      %172 = vector.broadcast %c14_i32_169 : i32 to vector<32x128xi32>
      %173 = arith.cmpi slt, %16, %172 : vector<32x128xi32>
      %cst_170 = arith.constant 0.000000e+00 : f32
      %174 = vector.broadcast %cst_170 : f32 to vector<32x128xf32>
      %175 = arith.select %173, %171, %174 : vector<32x128xi1>, vector<32x128xf32>
      %c29_i32 = arith.constant 29 : i32
      %176 = tpu.dynamic_rotate %145 by %c29_i32 dim 0 : vector<32x128xf32>, i32 -> vector<32x128xf32>
      %c13_i32 = arith.constant 13 : i32
      %177 = vector.broadcast %c13_i32 : i32 to vector<32x128xi32>
      %178 = arith.cmpi slt, %16, %177 : vector<32x128xi32>
      %cst_171 = arith.constant 0.000000e+00 : f32
      %179 = vector.broadcast %cst_171 : f32 to vector<32x128xf32>
      %180 = arith.select %178, %176, %179 : vector<32x128xi1>, vector<32x128xf32>
      %c28_i32 = arith.constant 28 : i32
      %181 = tpu.dynamic_rotate %145 by %c28_i32 dim 0 : vector<32x128xf32>, i32 -> vector<32x128xf32>
      %c12_i32 = arith.constant 12 : i32
      %182 = vector.broadcast %c12_i32 : i32 to vector<32x128xi32>
      %183 = arith.cmpi slt, %16, %182 : vector<32x128xi32>
      %cst_172 = arith.constant 0.000000e+00 : f32
      %184 = vector.broadcast %cst_172 : f32 to vector<32x128xf32>
      %185 = arith.select %183, %181, %184 : vector<32x128xi1>, vector<32x128xf32>
      %186 = tpu.concatenate %150, %155, %160, %165, %145, %170, %175, %180, %185 in 1 : vector<32x128xf32>, vector<32x128xf32>, vector<32x128xf32>, vector<32x128xf32>, vector<32x128xf32>, vector<32x128xf32>, vector<32x128xf32>, vector<32x128xf32>, vector<32x128xf32> -> vector<32x1152xf32>
      %187 = arith.truncf %186 : vector<32x1152xf32> to vector<32x1152xbf16>
      %c0_173 = arith.constant 0 : index
      %c0_174 = arith.constant 0 : index
      %188 = vector.load %arg4[%c0_173, %c0_174] : memref<1152x128xbf16, #tpu.memory_space<vmem>>, vector<1152x128xbf16>
      %cst_175 = arith.constant dense<0.000000e+00> : vector<32x128xf32>
      %189 = tpu.matmul %187, %188, %cst_175 {dimension_numbers = #tpu.dot_dimension_numbers<[1], [0], [0], [1], [0, 0, 1, 1], [], []>} : vector<32x1152xbf16>, vector<1152x128xbf16>, vector<32x128xf32> -> vector<32x128xf32>
      %190 = arith.addf %189, %39 : vector<32x128xf32>
      %cst_176 = arith.constant 0.000000e+00 : f32
      %191 = vector.broadcast %cst_176 : f32 to vector<32x128xf32>
      %192 = arith.maximumf %190, %191 : vector<32x128xf32>
      %193 = vector.shape_cast %192 : vector<32x128xf32> to vector<2x16x128xf32>
      %194 = arith.addf %144, %193 : vector<2x16x128xf32>
      %195 = arith.index_cast %141 : i32 to index
      %c0_177 = arith.constant 0 : index
      %c0_178 = arith.constant 0 : index
      %c0_179 = arith.constant 0 : index
      %196 = vector.load %arg11[%195, %c0_177, %c0_178, %c0_179] : memref<16x2x16x128xf32, #tpu.memory_space<vmem>>, vector<1x2x16x128xf32>
      %197 = vector.shape_cast %196 : vector<1x2x16x128xf32> to vector<2x16x128xf32>
      %198 = vector.shape_cast %194 : vector<2x16x128xf32> to vector<1x2x16x128xf32>
      tpu.vector_store %arg11[%195, %c0_177, %c0_178, %c0_179], %198 {strides = array<i32>} : memref<16x2x16x128xf32, #tpu.memory_space<vmem>>, vector<1x2x16x128xf32>,
      scf.yield %194 : vector<2x16x128xf32>
    }
    %c14_i32_29 = arith.constant 14 : i32
    %c0_30 = arith.constant 0 : index
    %c0_31 = arith.constant 0 : index
    %c0_32 = arith.constant 0 : index
    %c0_33 = arith.constant 0 : index
    %55 = vector.load %arg11[%c0_30, %c0_31, %c0_32, %c0_33] : memref<16x2x16x128xf32, #tpu.memory_space<vmem>>, vector<1x2x16x128xf32>
    %56 = vector.shape_cast %55 : vector<1x2x16x128xf32> to vector<2x16x128xf32>
    %c0_34 = arith.constant 0 : index
    %c0_35 = arith.constant 0 : index
    %c0_36 = arith.constant 0 : index
    %c0_37 = arith.constant 0 : index
    %57 = vector.load %arg10[%c0_34, %c0_35, %c0_36, %c0_37] : memref<2x16x16x128xf32, #tpu.memory_space<vmem>>, vector<2x16x1x128xf32>
    %58 = vector.shape_cast %57 : vector<2x16x1x128xf32> to vector<2x16x128xf32>
    %59 = vector.shape_cast %56 : vector<2x16x128xf32> to vector<2x16x1x128xf32>
    tpu.vector_store %arg10[%c0_34, %c0_35, %c0_36, %c0_37], %59 {strides = array<i32>} : memref<2x16x16x128xf32, #tpu.memory_space<vmem>>, vector<2x16x1x128xf32>,
    %c1 = arith.constant 1 : index
    %c0_38 = arith.constant 0 : index
    %c0_39 = arith.constant 0 : index
    %c0_40 = arith.constant 0 : index
    %60 = vector.load %arg11[%c1, %c0_38, %c0_39, %c0_40] : memref<16x2x16x128xf32, #tpu.memory_space<vmem>>, vector<1x2x16x128xf32>
    %61 = vector.shape_cast %60 : vector<1x2x16x128xf32> to vector<2x16x128xf32>
    %c0_41 = arith.constant 0 : index
    %c0_42 = arith.constant 0 : index
    %c1_43 = arith.constant 1 : index
    %c0_44 = arith.constant 0 : index
    %62 = vector.load %arg10[%c0_41, %c0_42, %c1_43, %c0_44] : memref<2x16x16x128xf32, #tpu.memory_space<vmem>>, vector<2x16x1x128xf32>
    %63 = vector.shape_cast %62 : vector<2x16x1x128xf32> to vector<2x16x128xf32>
    %64 = vector.shape_cast %61 : vector<2x16x128xf32> to vector<2x16x1x128xf32>
    tpu.vector_store %arg10[%c0_41, %c0_42, %c1_43, %c0_44], %64 {strides = array<i32>} : memref<2x16x16x128xf32, #tpu.memory_space<vmem>>, vector<2x16x1x128xf32>,
    %c2 = arith.constant 2 : index
    %c0_45 = arith.constant 0 : index
    %c0_46 = arith.constant 0 : index
    %c0_47 = arith.constant 0 : index
    %65 = vector.load %arg11[%c2, %c0_45, %c0_46, %c0_47] : memref<16x2x16x128xf32, #tpu.memory_space<vmem>>, vector<1x2x16x128xf32>
    %66 = vector.shape_cast %65 : vector<1x2x16x128xf32> to vector<2x16x128xf32>
    %c0_48 = arith.constant 0 : index
    %c0_49 = arith.constant 0 : index
    %c2_50 = arith.constant 2 : index
    %c0_51 = arith.constant 0 : index
    %67 = vector.load %arg10[%c0_48, %c0_49, %c2_50, %c0_51] : memref<2x16x16x128xf32, #tpu.memory_space<vmem>>, vector<2x16x1x128xf32>
    %68 = vector.shape_cast %67 : vector<2x16x1x128xf32> to vector<2x16x128xf32>
    %69 = vector.shape_cast %66 : vector<2x16x128xf32> to vector<2x16x1x128xf32>
    tpu.vector_store %arg10[%c0_48, %c0_49, %c2_50, %c0_51], %69 {strides = array<i32>} : memref<2x16x16x128xf32, #tpu.memory_space<vmem>>, vector<2x16x1x128xf32>,
    %c3 = arith.constant 3 : index
    %c0_52 = arith.constant 0 : index
    %c0_53 = arith.constant 0 : index
    %c0_54 = arith.constant 0 : index
    %70 = vector.load %arg11[%c3, %c0_52, %c0_53, %c0_54] : memref<16x2x16x128xf32, #tpu.memory_space<vmem>>, vector<1x2x16x128xf32>
    %71 = vector.shape_cast %70 : vector<1x2x16x128xf32> to vector<2x16x128xf32>
    %c0_55 = arith.constant 0 : index
    %c0_56 = arith.constant 0 : index
    %c3_57 = arith.constant 3 : index
    %c0_58 = arith.constant 0 : index
    %72 = vector.load %arg10[%c0_55, %c0_56, %c3_57, %c0_58] : memref<2x16x16x128xf32, #tpu.memory_space<vmem>>, vector<2x16x1x128xf32>
    %73 = vector.shape_cast %72 : vector<2x16x1x128xf32> to vector<2x16x128xf32>
    %74 = vector.shape_cast %71 : vector<2x16x128xf32> to vector<2x16x1x128xf32>
    tpu.vector_store %arg10[%c0_55, %c0_56, %c3_57, %c0_58], %74 {strides = array<i32>} : memref<2x16x16x128xf32, #tpu.memory_space<vmem>>, vector<2x16x1x128xf32>,
    %c4 = arith.constant 4 : index
    %c0_59 = arith.constant 0 : index
    %c0_60 = arith.constant 0 : index
    %c0_61 = arith.constant 0 : index
    %75 = vector.load %arg11[%c4, %c0_59, %c0_60, %c0_61] : memref<16x2x16x128xf32, #tpu.memory_space<vmem>>, vector<1x2x16x128xf32>
    %76 = vector.shape_cast %75 : vector<1x2x16x128xf32> to vector<2x16x128xf32>
    %c0_62 = arith.constant 0 : index
    %c0_63 = arith.constant 0 : index
    %c4_64 = arith.constant 4 : index
    %c0_65 = arith.constant 0 : index
    %77 = vector.load %arg10[%c0_62, %c0_63, %c4_64, %c0_65] : memref<2x16x16x128xf32, #tpu.memory_space<vmem>>, vector<2x16x1x128xf32>
    %78 = vector.shape_cast %77 : vector<2x16x1x128xf32> to vector<2x16x128xf32>
    %79 = vector.shape_cast %76 : vector<2x16x128xf32> to vector<2x16x1x128xf32>
    tpu.vector_store %arg10[%c0_62, %c0_63, %c4_64, %c0_65], %79 {strides = array<i32>} : memref<2x16x16x128xf32, #tpu.memory_space<vmem>>, vector<2x16x1x128xf32>,
    %c5 = arith.constant 5 : index
    %c0_66 = arith.constant 0 : index
    %c0_67 = arith.constant 0 : index
    %c0_68 = arith.constant 0 : index
    %80 = vector.load %arg11[%c5, %c0_66, %c0_67, %c0_68] : memref<16x2x16x128xf32, #tpu.memory_space<vmem>>, vector<1x2x16x128xf32>
    %81 = vector.shape_cast %80 : vector<1x2x16x128xf32> to vector<2x16x128xf32>
    %c0_69 = arith.constant 0 : index
    %c0_70 = arith.constant 0 : index
    %c5_71 = arith.constant 5 : index
    %c0_72 = arith.constant 0 : index
    %82 = vector.load %arg10[%c0_69, %c0_70, %c5_71, %c0_72] : memref<2x16x16x128xf32, #tpu.memory_space<vmem>>, vector<2x16x1x128xf32>
    %83 = vector.shape_cast %82 : vector<2x16x1x128xf32> to vector<2x16x128xf32>
    %84 = vector.shape_cast %81 : vector<2x16x128xf32> to vector<2x16x1x128xf32>
    tpu.vector_store %arg10[%c0_69, %c0_70, %c5_71, %c0_72], %84 {strides = array<i32>} : memref<2x16x16x128xf32, #tpu.memory_space<vmem>>, vector<2x16x1x128xf32>,
    %c6 = arith.constant 6 : index
    %c0_73 = arith.constant 0 : index
    %c0_74 = arith.constant 0 : index
    %c0_75 = arith.constant 0 : index
    %85 = vector.load %arg11[%c6, %c0_73, %c0_74, %c0_75] : memref<16x2x16x128xf32, #tpu.memory_space<vmem>>, vector<1x2x16x128xf32>
    %86 = vector.shape_cast %85 : vector<1x2x16x128xf32> to vector<2x16x128xf32>
    %c0_76 = arith.constant 0 : index
    %c0_77 = arith.constant 0 : index
    %c6_78 = arith.constant 6 : index
    %c0_79 = arith.constant 0 : index
    %87 = vector.load %arg10[%c0_76, %c0_77, %c6_78, %c0_79] : memref<2x16x16x128xf32, #tpu.memory_space<vmem>>, vector<2x16x1x128xf32>
    %88 = vector.shape_cast %87 : vector<2x16x1x128xf32> to vector<2x16x128xf32>
    %89 = vector.shape_cast %86 : vector<2x16x128xf32> to vector<2x16x1x128xf32>
    tpu.vector_store %arg10[%c0_76, %c0_77, %c6_78, %c0_79], %89 {strides = array<i32>} : memref<2x16x16x128xf32, #tpu.memory_space<vmem>>, vector<2x16x1x128xf32>,
    %c7 = arith.constant 7 : index
    %c0_80 = arith.constant 0 : index
    %c0_81 = arith.constant 0 : index
    %c0_82 = arith.constant 0 : index
    %90 = vector.load %arg11[%c7, %c0_80, %c0_81, %c0_82] : memref<16x2x16x128xf32, #tpu.memory_space<vmem>>, vector<1x2x16x128xf32>
    %91 = vector.shape_cast %90 : vector<1x2x16x128xf32> to vector<2x16x128xf32>
    %c0_83 = arith.constant 0 : index
    %c0_84 = arith.constant 0 : index
    %c7_85 = arith.constant 7 : index
    %c0_86 = arith.constant 0 : index
    %92 = vector.load %arg10[%c0_83, %c0_84, %c7_85, %c0_86] : memref<2x16x16x128xf32, #tpu.memory_space<vmem>>, vector<2x16x1x128xf32>
    %93 = vector.shape_cast %92 : vector<2x16x1x128xf32> to vector<2x16x128xf32>
    %94 = vector.shape_cast %91 : vector<2x16x128xf32> to vector<2x16x1x128xf32>
    tpu.vector_store %arg10[%c0_83, %c0_84, %c7_85, %c0_86], %94 {strides = array<i32>} : memref<2x16x16x128xf32, #tpu.memory_space<vmem>>, vector<2x16x1x128xf32>,
    %c8 = arith.constant 8 : index
    %c0_87 = arith.constant 0 : index
    %c0_88 = arith.constant 0 : index
    %c0_89 = arith.constant 0 : index
    %95 = vector.load %arg11[%c8, %c0_87, %c0_88, %c0_89] : memref<16x2x16x128xf32, #tpu.memory_space<vmem>>, vector<1x2x16x128xf32>
    %96 = vector.shape_cast %95 : vector<1x2x16x128xf32> to vector<2x16x128xf32>
    %c0_90 = arith.constant 0 : index
    %c0_91 = arith.constant 0 : index
    %c8_92 = arith.constant 8 : index
    %c0_93 = arith.constant 0 : index
    %97 = vector.load %arg10[%c0_90, %c0_91, %c8_92, %c0_93] : memref<2x16x16x128xf32, #tpu.memory_space<vmem>>, vector<2x16x1x128xf32>
    %98 = vector.shape_cast %97 : vector<2x16x1x128xf32> to vector<2x16x128xf32>
    %99 = vector.shape_cast %96 : vector<2x16x128xf32> to vector<2x16x1x128xf32>
    tpu.vector_store %arg10[%c0_90, %c0_91, %c8_92, %c0_93], %99 {strides = array<i32>} : memref<2x16x16x128xf32, #tpu.memory_space<vmem>>, vector<2x16x1x128xf32>,
    %c9 = arith.constant 9 : index
    %c0_94 = arith.constant 0 : index
    %c0_95 = arith.constant 0 : index
    %c0_96 = arith.constant 0 : index
    %100 = vector.load %arg11[%c9, %c0_94, %c0_95, %c0_96] : memref<16x2x16x128xf32, #tpu.memory_space<vmem>>, vector<1x2x16x128xf32>
    %101 = vector.shape_cast %100 : vector<1x2x16x128xf32> to vector<2x16x128xf32>
    %c0_97 = arith.constant 0 : index
    %c0_98 = arith.constant 0 : index
    %c9_99 = arith.constant 9 : index
    %c0_100 = arith.constant 0 : index
    %102 = vector.load %arg10[%c0_97, %c0_98, %c9_99, %c0_100] : memref<2x16x16x128xf32, #tpu.memory_space<vmem>>, vector<2x16x1x128xf32>
    %103 = vector.shape_cast %102 : vector<2x16x1x128xf32> to vector<2x16x128xf32>
    %104 = vector.shape_cast %101 : vector<2x16x128xf32> to vector<2x16x1x128xf32>
    tpu.vector_store %arg10[%c0_97, %c0_98, %c9_99, %c0_100], %104 {strides = array<i32>} : memref<2x16x16x128xf32, #tpu.memory_space<vmem>>, vector<2x16x1x128xf32>,
    %c10 = arith.constant 10 : index
    %c0_101 = arith.constant 0 : index
    %c0_102 = arith.constant 0 : index
    %c0_103 = arith.constant 0 : index
    %105 = vector.load %arg11[%c10, %c0_101, %c0_102, %c0_103] : memref<16x2x16x128xf32, #tpu.memory_space<vmem>>, vector<1x2x16x128xf32>
    %106 = vector.shape_cast %105 : vector<1x2x16x128xf32> to vector<2x16x128xf32>
    %c0_104 = arith.constant 0 : index
    %c0_105 = arith.constant 0 : index
    %c10_106 = arith.constant 10 : index
    %c0_107 = arith.constant 0 : index
    %107 = vector.load %arg10[%c0_104, %c0_105, %c10_106, %c0_107] : memref<2x16x16x128xf32, #tpu.memory_space<vmem>>, vector<2x16x1x128xf32>
    %108 = vector.shape_cast %107 : vector<2x16x1x128xf32> to vector<2x16x128xf32>
    %109 = vector.shape_cast %106 : vector<2x16x128xf32> to vector<2x16x1x128xf32>
    tpu.vector_store %arg10[%c0_104, %c0_105, %c10_106, %c0_107], %109 {strides = array<i32>} : memref<2x16x16x128xf32, #tpu.memory_space<vmem>>, vector<2x16x1x128xf32>,
    %c11 = arith.constant 11 : index
    %c0_108 = arith.constant 0 : index
    %c0_109 = arith.constant 0 : index
    %c0_110 = arith.constant 0 : index
    %110 = vector.load %arg11[%c11, %c0_108, %c0_109, %c0_110] : memref<16x2x16x128xf32, #tpu.memory_space<vmem>>, vector<1x2x16x128xf32>
    %111 = vector.shape_cast %110 : vector<1x2x16x128xf32> to vector<2x16x128xf32>
    %c0_111 = arith.constant 0 : index
    %c0_112 = arith.constant 0 : index
    %c11_113 = arith.constant 11 : index
    %c0_114 = arith.constant 0 : index
    %112 = vector.load %arg10[%c0_111, %c0_112, %c11_113, %c0_114] : memref<2x16x16x128xf32, #tpu.memory_space<vmem>>, vector<2x16x1x128xf32>
    %113 = vector.shape_cast %112 : vector<2x16x1x128xf32> to vector<2x16x128xf32>
    %114 = vector.shape_cast %111 : vector<2x16x128xf32> to vector<2x16x1x128xf32>
    tpu.vector_store %arg10[%c0_111, %c0_112, %c11_113, %c0_114], %114 {strides = array<i32>} : memref<2x16x16x128xf32, #tpu.memory_space<vmem>>, vector<2x16x1x128xf32>,
    %c12 = arith.constant 12 : index
    %c0_115 = arith.constant 0 : index
    %c0_116 = arith.constant 0 : index
    %c0_117 = arith.constant 0 : index
    %115 = vector.load %arg11[%c12, %c0_115, %c0_116, %c0_117] : memref<16x2x16x128xf32, #tpu.memory_space<vmem>>, vector<1x2x16x128xf32>
    %116 = vector.shape_cast %115 : vector<1x2x16x128xf32> to vector<2x16x128xf32>
    %c0_118 = arith.constant 0 : index
    %c0_119 = arith.constant 0 : index
    %c12_120 = arith.constant 12 : index
    %c0_121 = arith.constant 0 : index
    %117 = vector.load %arg10[%c0_118, %c0_119, %c12_120, %c0_121] : memref<2x16x16x128xf32, #tpu.memory_space<vmem>>, vector<2x16x1x128xf32>
    %118 = vector.shape_cast %117 : vector<2x16x1x128xf32> to vector<2x16x128xf32>
    %119 = vector.shape_cast %116 : vector<2x16x128xf32> to vector<2x16x1x128xf32>
    tpu.vector_store %arg10[%c0_118, %c0_119, %c12_120, %c0_121], %119 {strides = array<i32>} : memref<2x16x16x128xf32, #tpu.memory_space<vmem>>, vector<2x16x1x128xf32>,
    %c13 = arith.constant 13 : index
    %c0_122 = arith.constant 0 : index
    %c0_123 = arith.constant 0 : index
    %c0_124 = arith.constant 0 : index
    %120 = vector.load %arg11[%c13, %c0_122, %c0_123, %c0_124] : memref<16x2x16x128xf32, #tpu.memory_space<vmem>>, vector<1x2x16x128xf32>
    %121 = vector.shape_cast %120 : vector<1x2x16x128xf32> to vector<2x16x128xf32>
    %c0_125 = arith.constant 0 : index
    %c0_126 = arith.constant 0 : index
    %c13_127 = arith.constant 13 : index
    %c0_128 = arith.constant 0 : index
    %122 = vector.load %arg10[%c0_125, %c0_126, %c13_127, %c0_128] : memref<2x16x16x128xf32, #tpu.memory_space<vmem>>, vector<2x16x1x128xf32>
    %123 = vector.shape_cast %122 : vector<2x16x1x128xf32> to vector<2x16x128xf32>
    %124 = vector.shape_cast %121 : vector<2x16x128xf32> to vector<2x16x1x128xf32>
    tpu.vector_store %arg10[%c0_125, %c0_126, %c13_127, %c0_128], %124 {strides = array<i32>} : memref<2x16x16x128xf32, #tpu.memory_space<vmem>>, vector<2x16x1x128xf32>,
    %c14 = arith.constant 14 : index
    %c0_129 = arith.constant 0 : index
    %c0_130 = arith.constant 0 : index
    %c0_131 = arith.constant 0 : index
    %125 = vector.load %arg11[%c14, %c0_129, %c0_130, %c0_131] : memref<16x2x16x128xf32, #tpu.memory_space<vmem>>, vector<1x2x16x128xf32>
    %126 = vector.shape_cast %125 : vector<1x2x16x128xf32> to vector<2x16x128xf32>
    %c0_132 = arith.constant 0 : index
    %c0_133 = arith.constant 0 : index
    %c14_134 = arith.constant 14 : index
    %c0_135 = arith.constant 0 : index
    %127 = vector.load %arg10[%c0_132, %c0_133, %c14_134, %c0_135] : memref<2x16x16x128xf32, #tpu.memory_space<vmem>>, vector<2x16x1x128xf32>
    %128 = vector.shape_cast %127 : vector<2x16x1x128xf32> to vector<2x16x128xf32>
    %129 = vector.shape_cast %126 : vector<2x16x128xf32> to vector<2x16x1x128xf32>
    tpu.vector_store %arg10[%c0_132, %c0_133, %c14_134, %c0_135], %129 {strides = array<i32>} : memref<2x16x16x128xf32, #tpu.memory_space<vmem>>, vector<2x16x1x128xf32>,
    %c15 = arith.constant 15 : index
    %c0_136 = arith.constant 0 : index
    %c0_137 = arith.constant 0 : index
    %c0_138 = arith.constant 0 : index
    %130 = vector.load %arg11[%c15, %c0_136, %c0_137, %c0_138] : memref<16x2x16x128xf32, #tpu.memory_space<vmem>>, vector<1x2x16x128xf32>
    %131 = vector.shape_cast %130 : vector<1x2x16x128xf32> to vector<2x16x128xf32>
    %c0_139 = arith.constant 0 : index
    %c0_140 = arith.constant 0 : index
    %c15_141 = arith.constant 15 : index
    %c0_142 = arith.constant 0 : index
    %132 = vector.load %arg10[%c0_139, %c0_140, %c15_141, %c0_142] : memref<2x16x16x128xf32, #tpu.memory_space<vmem>>, vector<2x16x1x128xf32>
    %133 = vector.shape_cast %132 : vector<2x16x1x128xf32> to vector<2x16x128xf32>
    %134 = vector.shape_cast %131 : vector<2x16x128xf32> to vector<2x16x1x128xf32>
    tpu.vector_store %arg10[%c0_139, %c0_140, %c15_141, %c0_142], %134 {strides = array<i32>} : memref<2x16x16x128xf32, #tpu.memory_space<vmem>>, vector<2x16x1x128xf32>,
    %c0_143 = arith.constant 0 : index
    %c0_144 = arith.constant 0 : index
    %c0_145 = arith.constant 0 : index
    %c0_146 = arith.constant 0 : index
    %135 = vector.load %arg10[%c0_143, %c0_144, %c0_145, %c0_146] : memref<2x16x16x128xf32, #tpu.memory_space<vmem>>, vector<2x1x16x128xf32>
    %136 = vector.shape_cast %135 : vector<2x1x16x128xf32> to vector<2x16x128xf32>
    %c1_i32_147 = arith.constant 1 : i32
    %c15_i32_148 = arith.constant 15 : i32
    %137 = arith.addi %c1_i32_147, %c15_i32_148 : i32
    %c1_i32_149 = arith.constant 1 : i32
    %138 = scf.for %arg12 = %c1_i32_147 to %137 step %c1_i32_149 iter_args(%arg13 = %136) -> (vector<2x16x128xf32>)  : i32 {
      %c0_155 = arith.constant 0 : index
      %141 = arith.index_cast %arg12 : i32 to index
      %c0_156 = arith.constant 0 : index
      %c0_157 = arith.constant 0 : index
      %142 = vector.load %arg10[%c0_155, %141, %c0_156, %c0_157] : memref<2x16x16x128xf32, #tpu.memory_space<vmem>>, vector<2x1x16x128xf32>
      %143 = vector.shape_cast %142 : vector<2x1x16x128xf32> to vector<2x16x128xf32>
      %144 = vector.shape_cast %arg13 : vector<2x16x128xf32> to vector<32x128xf32>
      %c4_i32 = arith.constant 4 : i32
      %145 = tpu.dynamic_rotate %144 by %c4_i32 dim 0 : vector<32x128xf32>, i32 -> vector<32x128xf32>
      %c4_i32_158 = arith.constant 4 : i32
      %146 = vector.broadcast %c4_i32_158 : i32 to vector<32x128xi32>
      %147 = arith.cmpi sge, %33, %146 : vector<32x128xi32>
      %cst = arith.constant 0.000000e+00 : f32
      %148 = vector.broadcast %cst : f32 to vector<32x128xf32>
      %149 = arith.select %147, %145, %148 : vector<32x128xi1>, vector<32x128xf32>
      %c3_i32 = arith.constant 3 : i32
      %150 = tpu.dynamic_rotate %144 by %c3_i32 dim 0 : vector<32x128xf32>, i32 -> vector<32x128xf32>
      %c3_i32_159 = arith.constant 3 : i32
      %151 = vector.broadcast %c3_i32_159 : i32 to vector<32x128xi32>
      %152 = arith.cmpi sge, %33, %151 : vector<32x128xi32>
      %cst_160 = arith.constant 0.000000e+00 : f32
      %153 = vector.broadcast %cst_160 : f32 to vector<32x128xf32>
      %154 = arith.select %152, %150, %153 : vector<32x128xi1>, vector<32x128xf32>
      %c2_i32 = arith.constant 2 : i32
      %155 = tpu.dynamic_rotate %144 by %c2_i32 dim 0 : vector<32x128xf32>, i32 -> vector<32x128xf32>
      %c2_i32_161 = arith.constant 2 : i32
      %156 = vector.broadcast %c2_i32_161 : i32 to vector<32x128xi32>
      %157 = arith.cmpi sge, %33, %156 : vector<32x128xi32>
      %cst_162 = arith.constant 0.000000e+00 : f32
      %158 = vector.broadcast %cst_162 : f32 to vector<32x128xf32>
      %159 = arith.select %157, %155, %158 : vector<32x128xi1>, vector<32x128xf32>
      %c1_i32_163 = arith.constant 1 : i32
      %160 = tpu.dynamic_rotate %144 by %c1_i32_163 dim 0 : vector<32x128xf32>, i32 -> vector<32x128xf32>
      %c1_i32_164 = arith.constant 1 : i32
      %161 = vector.broadcast %c1_i32_164 : i32 to vector<32x128xi32>
      %162 = arith.cmpi sge, %33, %161 : vector<32x128xi32>
      %cst_165 = arith.constant 0.000000e+00 : f32
      %163 = vector.broadcast %cst_165 : f32 to vector<32x128xf32>
      %164 = arith.select %162, %160, %163 : vector<32x128xi1>, vector<32x128xf32>
      %c31_i32 = arith.constant 31 : i32
      %165 = tpu.dynamic_rotate %144 by %c31_i32 dim 0 : vector<32x128xf32>, i32 -> vector<32x128xf32>
      %c15_i32_166 = arith.constant 15 : i32
      %166 = vector.broadcast %c15_i32_166 : i32 to vector<32x128xi32>
      %167 = arith.cmpi slt, %33, %166 : vector<32x128xi32>
      %cst_167 = arith.constant 0.000000e+00 : f32
      %168 = vector.broadcast %cst_167 : f32 to vector<32x128xf32>
      %169 = arith.select %167, %165, %168 : vector<32x128xi1>, vector<32x128xf32>
      %c30_i32 = arith.constant 30 : i32
      %170 = tpu.dynamic_rotate %144 by %c30_i32 dim 0 : vector<32x128xf32>, i32 -> vector<32x128xf32>
      %c14_i32_168 = arith.constant 14 : i32
      %171 = vector.broadcast %c14_i32_168 : i32 to vector<32x128xi32>
      %172 = arith.cmpi slt, %33, %171 : vector<32x128xi32>
      %cst_169 = arith.constant 0.000000e+00 : f32
      %173 = vector.broadcast %cst_169 : f32 to vector<32x128xf32>
      %174 = arith.select %172, %170, %173 : vector<32x128xi1>, vector<32x128xf32>
      %c29_i32 = arith.constant 29 : i32
      %175 = tpu.dynamic_rotate %144 by %c29_i32 dim 0 : vector<32x128xf32>, i32 -> vector<32x128xf32>
      %c13_i32 = arith.constant 13 : i32
      %176 = vector.broadcast %c13_i32 : i32 to vector<32x128xi32>
      %177 = arith.cmpi slt, %33, %176 : vector<32x128xi32>
      %cst_170 = arith.constant 0.000000e+00 : f32
      %178 = vector.broadcast %cst_170 : f32 to vector<32x128xf32>
      %179 = arith.select %177, %175, %178 : vector<32x128xi1>, vector<32x128xf32>
      %c28_i32 = arith.constant 28 : i32
      %180 = tpu.dynamic_rotate %144 by %c28_i32 dim 0 : vector<32x128xf32>, i32 -> vector<32x128xf32>
      %c12_i32 = arith.constant 12 : i32
      %181 = vector.broadcast %c12_i32 : i32 to vector<32x128xi32>
      %182 = arith.cmpi slt, %33, %181 : vector<32x128xi32>
      %cst_171 = arith.constant 0.000000e+00 : f32
      %183 = vector.broadcast %cst_171 : f32 to vector<32x128xf32>
      %184 = arith.select %182, %180, %183 : vector<32x128xi1>, vector<32x128xf32>
      %185 = tpu.concatenate %149, %154, %159, %164, %144, %169, %174, %179, %184 in 1 : vector<32x128xf32>, vector<32x128xf32>, vector<32x128xf32>, vector<32x128xf32>, vector<32x128xf32>, vector<32x128xf32>, vector<32x128xf32>, vector<32x128xf32>, vector<32x128xf32> -> vector<32x1152xf32>
      %186 = arith.truncf %185 : vector<32x1152xf32> to vector<32x1152xbf16>
      %c0_172 = arith.constant 0 : index
      %c0_173 = arith.constant 0 : index
      %187 = vector.load %arg6[%c0_172, %c0_173] : memref<1152x128xbf16, #tpu.memory_space<vmem>>, vector<1152x128xbf16>
      %cst_174 = arith.constant dense<0.000000e+00> : vector<32x128xf32>
      %188 = tpu.matmul %186, %187, %cst_174 {dimension_numbers = #tpu.dot_dimension_numbers<[1], [0], [0], [1], [0, 0, 1, 1], [], []>} : vector<32x1152xbf16>, vector<1152x128xbf16>, vector<32x128xf32> -> vector<32x128xf32>
      %189 = arith.addf %188, %42 : vector<32x128xf32>
      %cst_175 = arith.constant 0.000000e+00 : f32
      %190 = vector.broadcast %cst_175 : f32 to vector<32x128xf32>
      %191 = arith.maximumf %189, %190 : vector<32x128xf32>
      %192 = vector.shape_cast %191 : vector<32x128xf32> to vector<2x16x128xf32>
      %193 = arith.addf %143, %192 : vector<2x16x128xf32>
      %c0_176 = arith.constant 0 : index
      %194 = arith.index_cast %arg12 : i32 to index
      %c0_177 = arith.constant 0 : index
      %c0_178 = arith.constant 0 : index
      %195 = vector.load %arg10[%c0_176, %194, %c0_177, %c0_178] : memref<2x16x16x128xf32, #tpu.memory_space<vmem>>, vector<2x1x16x128xf32>
      %196 = vector.shape_cast %195 : vector<2x1x16x128xf32> to vector<2x16x128xf32>
      %197 = vector.shape_cast %193 : vector<2x16x128xf32> to vector<2x1x16x128xf32>
      tpu.vector_store %arg10[%c0_176, %194, %c0_177, %c0_178], %197 {strides = array<i32>} : memref<2x16x16x128xf32, #tpu.memory_space<vmem>>, vector<2x1x16x128xf32>,
      scf.yield %193 : vector<2x16x128xf32>
    }
    %c15_i32_150 = arith.constant 15 : i32
    %c0_i32_151 = arith.constant 0 : i32
    %c14_i32_152 = arith.constant 14 : i32
    %139 = arith.addi %c0_i32_151, %c14_i32_152 : i32
    %c1_i32_153 = arith.constant 1 : i32
    %140 = scf.for %arg12 = %c0_i32_151 to %139 step %c1_i32_153 iter_args(%arg13 = %138) -> (vector<2x16x128xf32>)  : i32 {
      %c14_i32_155 = arith.constant 14 : i32
      %141 = arith.subi %c14_i32_155, %arg12 : i32
      %c0_156 = arith.constant 0 : index
      %142 = arith.index_cast %141 : i32 to index
      %c0_157 = arith.constant 0 : index
      %c0_158 = arith.constant 0 : index
      %143 = vector.load %arg10[%c0_156, %142, %c0_157, %c0_158] : memref<2x16x16x128xf32, #tpu.memory_space<vmem>>, vector<2x1x16x128xf32>
      %144 = vector.shape_cast %143 : vector<2x1x16x128xf32> to vector<2x16x128xf32>
      %145 = vector.shape_cast %arg13 : vector<2x16x128xf32> to vector<32x128xf32>
      %c4_i32 = arith.constant 4 : i32
      %146 = tpu.dynamic_rotate %145 by %c4_i32 dim 0 : vector<32x128xf32>, i32 -> vector<32x128xf32>
      %c4_i32_159 = arith.constant 4 : i32
      %147 = vector.broadcast %c4_i32_159 : i32 to vector<32x128xi32>
      %148 = arith.cmpi sge, %33, %147 : vector<32x128xi32>
      %cst = arith.constant 0.000000e+00 : f32
      %149 = vector.broadcast %cst : f32 to vector<32x128xf32>
      %150 = arith.select %148, %146, %149 : vector<32x128xi1>, vector<32x128xf32>
      %c3_i32 = arith.constant 3 : i32
      %151 = tpu.dynamic_rotate %145 by %c3_i32 dim 0 : vector<32x128xf32>, i32 -> vector<32x128xf32>
      %c3_i32_160 = arith.constant 3 : i32
      %152 = vector.broadcast %c3_i32_160 : i32 to vector<32x128xi32>
      %153 = arith.cmpi sge, %33, %152 : vector<32x128xi32>
      %cst_161 = arith.constant 0.000000e+00 : f32
      %154 = vector.broadcast %cst_161 : f32 to vector<32x128xf32>
      %155 = arith.select %153, %151, %154 : vector<32x128xi1>, vector<32x128xf32>
      %c2_i32 = arith.constant 2 : i32
      %156 = tpu.dynamic_rotate %145 by %c2_i32 dim 0 : vector<32x128xf32>, i32 -> vector<32x128xf32>
      %c2_i32_162 = arith.constant 2 : i32
      %157 = vector.broadcast %c2_i32_162 : i32 to vector<32x128xi32>
      %158 = arith.cmpi sge, %33, %157 : vector<32x128xi32>
      %cst_163 = arith.constant 0.000000e+00 : f32
      %159 = vector.broadcast %cst_163 : f32 to vector<32x128xf32>
      %160 = arith.select %158, %156, %159 : vector<32x128xi1>, vector<32x128xf32>
      %c1_i32_164 = arith.constant 1 : i32
      %161 = tpu.dynamic_rotate %145 by %c1_i32_164 dim 0 : vector<32x128xf32>, i32 -> vector<32x128xf32>
      %c1_i32_165 = arith.constant 1 : i32
      %162 = vector.broadcast %c1_i32_165 : i32 to vector<32x128xi32>
      %163 = arith.cmpi sge, %33, %162 : vector<32x128xi32>
      %cst_166 = arith.constant 0.000000e+00 : f32
      %164 = vector.broadcast %cst_166 : f32 to vector<32x128xf32>
      %165 = arith.select %163, %161, %164 : vector<32x128xi1>, vector<32x128xf32>
      %c31_i32 = arith.constant 31 : i32
      %166 = tpu.dynamic_rotate %145 by %c31_i32 dim 0 : vector<32x128xf32>, i32 -> vector<32x128xf32>
      %c15_i32_167 = arith.constant 15 : i32
      %167 = vector.broadcast %c15_i32_167 : i32 to vector<32x128xi32>
      %168 = arith.cmpi slt, %33, %167 : vector<32x128xi32>
      %cst_168 = arith.constant 0.000000e+00 : f32
      %169 = vector.broadcast %cst_168 : f32 to vector<32x128xf32>
      %170 = arith.select %168, %166, %169 : vector<32x128xi1>, vector<32x128xf32>
      %c30_i32 = arith.constant 30 : i32
      %171 = tpu.dynamic_rotate %145 by %c30_i32 dim 0 : vector<32x128xf32>, i32 -> vector<32x128xf32>
      %c14_i32_169 = arith.constant 14 : i32
      %172 = vector.broadcast %c14_i32_169 : i32 to vector<32x128xi32>
      %173 = arith.cmpi slt, %33, %172 : vector<32x128xi32>
      %cst_170 = arith.constant 0.000000e+00 : f32
      %174 = vector.broadcast %cst_170 : f32 to vector<32x128xf32>
      %175 = arith.select %173, %171, %174 : vector<32x128xi1>, vector<32x128xf32>
      %c29_i32 = arith.constant 29 : i32
      %176 = tpu.dynamic_rotate %145 by %c29_i32 dim 0 : vector<32x128xf32>, i32 -> vector<32x128xf32>
      %c13_i32 = arith.constant 13 : i32
      %177 = vector.broadcast %c13_i32 : i32 to vector<32x128xi32>
      %178 = arith.cmpi slt, %33, %177 : vector<32x128xi32>
      %cst_171 = arith.constant 0.000000e+00 : f32
      %179 = vector.broadcast %cst_171 : f32 to vector<32x128xf32>
      %180 = arith.select %178, %176, %179 : vector<32x128xi1>, vector<32x128xf32>
      %c28_i32 = arith.constant 28 : i32
      %181 = tpu.dynamic_rotate %145 by %c28_i32 dim 0 : vector<32x128xf32>, i32 -> vector<32x128xf32>
      %c12_i32 = arith.constant 12 : i32
      %182 = vector.broadcast %c12_i32 : i32 to vector<32x128xi32>
      %183 = arith.cmpi slt, %33, %182 : vector<32x128xi32>
      %cst_172 = arith.constant 0.000000e+00 : f32
      %184 = vector.broadcast %cst_172 : f32 to vector<32x128xf32>
      %185 = arith.select %183, %181, %184 : vector<32x128xi1>, vector<32x128xf32>
      %186 = tpu.concatenate %150, %155, %160, %165, %145, %170, %175, %180, %185 in 1 : vector<32x128xf32>, vector<32x128xf32>, vector<32x128xf32>, vector<32x128xf32>, vector<32x128xf32>, vector<32x128xf32>, vector<32x128xf32>, vector<32x128xf32>, vector<32x128xf32> -> vector<32x1152xf32>
      %187 = arith.truncf %186 : vector<32x1152xf32> to vector<32x1152xbf16>
      %c0_173 = arith.constant 0 : index
      %c0_174 = arith.constant 0 : index
      %188 = vector.load %arg8[%c0_173, %c0_174] : memref<1152x128xbf16, #tpu.memory_space<vmem>>, vector<1152x128xbf16>
      %cst_175 = arith.constant dense<0.000000e+00> : vector<32x128xf32>
      %189 = tpu.matmul %187, %188, %cst_175 {dimension_numbers = #tpu.dot_dimension_numbers<[1], [0], [0], [1], [0, 0, 1, 1], [], []>} : vector<32x1152xbf16>, vector<1152x128xbf16>, vector<32x128xf32> -> vector<32x128xf32>
      %190 = arith.addf %189, %45 : vector<32x128xf32>
      %cst_176 = arith.constant 0.000000e+00 : f32
      %191 = vector.broadcast %cst_176 : f32 to vector<32x128xf32>
      %192 = arith.maximumf %190, %191 : vector<32x128xf32>
      %193 = vector.shape_cast %192 : vector<32x128xf32> to vector<2x16x128xf32>
      %194 = arith.addf %144, %193 : vector<2x16x128xf32>
      %c0_177 = arith.constant 0 : index
      %195 = arith.index_cast %141 : i32 to index
      %c0_178 = arith.constant 0 : index
      %c0_179 = arith.constant 0 : index
      %196 = vector.load %arg10[%c0_177, %195, %c0_178, %c0_179] : memref<2x16x16x128xf32, #tpu.memory_space<vmem>>, vector<2x1x16x128xf32>
      %197 = vector.shape_cast %196 : vector<2x1x16x128xf32> to vector<2x16x128xf32>
      %198 = vector.shape_cast %194 : vector<2x16x128xf32> to vector<2x1x16x128xf32>
      tpu.vector_store %arg10[%c0_177, %195, %c0_178, %c0_179], %198 {strides = array<i32>} : memref<2x16x16x128xf32, #tpu.memory_space<vmem>>, vector<2x1x16x128xf32>,
      scf.yield %194 : vector<2x16x128xf32>
    }
    %c14_i32_154 = arith.constant 14 : i32
    return
  }
  func.func @transform_0(%arg0: i32) -> (i32, i32, i32, i32) {
    %c0_i32 = arith.constant 0 : i32
    %c0_i32_0 = arith.constant 0 : i32
    %c0_i32_1 = arith.constant 0 : i32
    %c0_i32_2 = arith.constant 0 : i32
    return %arg0, %c0_i32, %c0_i32_0, %c0_i32_1 : i32, i32, i32, i32
  }
  func.func @transform_1(%arg0: i32) -> (i32, i32) {
    %c0_i32 = arith.constant 0 : i32
    %c0_i32_0 = arith.constant 0 : i32
    %c0_i32_1 = arith.constant 0 : i32
    return %c0_i32, %c0_i32_0 : i32, i32
  }
  func.func @transform_2(%arg0: i32) -> (i32, i32) {
    %c0_i32 = arith.constant 0 : i32
    %c0_i32_0 = arith.constant 0 : i32
    %c0_i32_1 = arith.constant 0 : i32
    return %c0_i32, %c0_i32_0 : i32, i32
  }
  func.func @transform_3(%arg0: i32) -> (i32, i32) {
    %c0_i32 = arith.constant 0 : i32
    %c0_i32_0 = arith.constant 0 : i32
    %c0_i32_1 = arith.constant 0 : i32
    return %c0_i32, %c0_i32_0 : i32, i32
  }
  func.func @transform_4(%arg0: i32) -> (i32, i32) {
    %c0_i32 = arith.constant 0 : i32
    %c0_i32_0 = arith.constant 0 : i32
    %c0_i32_1 = arith.constant 0 : i32
    return %c0_i32, %c0_i32_0 : i32, i32
  }
  func.func @transform_5(%arg0: i32) -> (i32, i32) {
    %c0_i32 = arith.constant 0 : i32
    %c0_i32_0 = arith.constant 0 : i32
    %c0_i32_1 = arith.constant 0 : i32
    return %c0_i32, %c0_i32_0 : i32, i32
  }
  func.func @transform_6(%arg0: i32) -> (i32, i32) {
    %c0_i32 = arith.constant 0 : i32
    %c0_i32_0 = arith.constant 0 : i32
    %c0_i32_1 = arith.constant 0 : i32
    return %c0_i32, %c0_i32_0 : i32, i32
  }
  func.func @transform_7(%arg0: i32) -> (i32, i32) {
    %c0_i32 = arith.constant 0 : i32
    %c0_i32_0 = arith.constant 0 : i32
    %c0_i32_1 = arith.constant 0 : i32
    return %c0_i32, %c0_i32_0 : i32, i32
  }
  func.func @transform_8(%arg0: i32) -> (i32, i32) {
    %c0_i32 = arith.constant 0 : i32
    %c0_i32_0 = arith.constant 0 : i32
    %c0_i32_1 = arith.constant 0 : i32
    return %c0_i32, %c0_i32_0 : i32, i32
  }
  func.func @transform_9(%arg0: i32) -> (i32, i32, i32, i32) {
    %c0_i32 = arith.constant 0 : i32
    %c0_i32_0 = arith.constant 0 : i32
    %c0_i32_1 = arith.constant 0 : i32
    %c0_i32_2 = arith.constant 0 : i32
    return %arg0, %c0_i32, %c0_i32_0, %c0_i32_1 : i32, i32, i32, i32
  }
}

</mosaic_0001>

<llo_original>
// kernel: spatial_conv_forward.1
$region0: #{spatial_conv_forward.1}
  #allocation0 [shape = 'u32[]', space=smem, size = 0x4, offset = 0x4, fixed_abs, tag = 'smem constant byte address 0x4 - core index']
  #allocation1 [shape = 'u32[144,128]{1,0:T(1,128)}', space=vmem, size = 0x12000, scoped, tag = 'internal scratch']
  #allocation2 [shape = 'f32[16,2,16,128]{3,2,1,0:T(8,128)}', space=vmem, size = 0x40000, scoped, tag = 'scratch operand']
  %s0 = inlined_call_operand.hbm [shape: f32[2,16,16,128], index: 0, kind: input, shape index: {}]
  %s1 = inlined_call_operand.hbm [shape: bf16[1152,128], index: 1, kind: input, shape index: {}]
  %s2 = inlined_call_operand.vmem [shape: f32[1,128], index: 2, kind: input, shape index: {}]
  %s3 = inlined_call_operand.hbm [shape: bf16[1152,128], index: 3, kind: input, shape index: {}]
  %s4 = inlined_call_operand.vmem [shape: f32[1,128], index: 4, kind: input, shape index: {}]
  %s5 = inlined_call_operand.hbm [shape: bf16[1152,128], index: 5, kind: input, shape index: {}]
  %s6 = inlined_call_operand.vmem [shape: f32[1,128], index: 6, kind: input, shape index: {}]
  %s7 = inlined_call_operand.hbm [shape: bf16[1152,128], index: 7, kind: input, shape index: {}]
  %s8 = inlined_call_operand.vmem [shape: f32[1,128], index: 8, kind: input, shape index: {}]
  %s9 = inlined_call_operand.vmem [shape: f32[2,16,16,128], index: 9, kind: output, shape index: {}]
  %s10 = sld [smem:[#allocation0]]
  $region94: #{spatial_conv_forward.1} parent=0
    _
  %s12 = ssub.s32 1, %s10
  %s13 = scalar_select 0, %s12, %s10
  $region1: #{spatial_conv_forward.1} parent=0
    #allocation3 [shape = 'u8[262144]{0}', space=vmem, size = 0x40000, scoped, tag = 'input window, operand 0, single buffered']
    #allocation4 [shape = 's32[1]{0}', space=sflag, size = 0x4, scoped, tag = 'scoped memory for spatial_conv_forward.1']
    #allocation5 [shape = 'u8[294912]{0}', space=vmem, size = 0x48000, scoped, tag = 'input window, operand 1, single buffered']
    #allocation6 [shape = 's32[1]{0}', space=sflag, size = 0x4, scoped, tag = 'scoped memory for spatial_conv_forward.1']
    #allocation7 [shape = 'u8[294912]{0}', space=vmem, size = 0x48000, scoped, tag = 'input window, operand 3, single buffered']
    #allocation8 [shape = 'u8[294912]{0}', space=vmem, size = 0x48000, scoped, tag = 'input window, operand 5, single buffered']
    #allocation9 [shape = 's32[1]{0}', space=sflag, size = 0x4, scoped, tag = 'scoped memory for spatial_conv_forward.1']
    #allocation10 [shape = 'u8[294912]{0}', space=vmem, size = 0x48000, scoped, tag = 'input window, operand 7, single buffered']
    %14 = vsyncpa [#allocation4], 0
    %15 = vsyncpa [#allocation6], 0
    %16 = vsyncpa [#allocation9], 0
    // Predicated region
    $region2: #{spatial_conv_forward.1} parent=1 // pred_check
      _
    $region3: #{spatial_conv_forward.1} parent=1 // pred_check_branch
      %18 = sbr.rel (0) target = $region5
    $region4: #{spatial_conv_forward.1} parent=1 // pred_region
      %s20 = ssub.s32 8192, 8192
      %21 = vsyncadd [#allocation4], %s20
      %s22 = sshll.u32 [#allocation3], 4
      %s23 = int_to_ptr.vmem [resolvable:$true] %s22
      %28 = dma.hbm_to_vmem [thread:$0]  %s0, 8192, %s23, [#allocation4], 128, 128, 8
    $region5: #{spatial_conv_forward.1} parent=1 // pred_fallthru
      _
    // Predicated region
    $region6: #{spatial_conv_forward.1} parent=1 // pred_check
      _
    $region7: #{spatial_conv_forward.1} parent=1 // pred_check_branch
      %30 = sbr.rel (0) target = $region9
    $region8: #{spatial_conv_forward.1} parent=1 // pred_region
      %s32 = ssub.s32 9216, 9216
      %33 = vsyncadd [#allocation6], %s32
      %s34 = sshll.u32 [#allocation5], 4
      %s35 = int_to_ptr.vmem [resolvable:$true] %s34
      %40 = dma.hbm_to_vmem [thread:$0]  %s1, 9216, %s35, [#allocation6], 64, 64, 4
    $region9: #{spatial_conv_forward.1} parent=1 // pred_fallthru
      _
    // Predicated region
    $region10: #{spatial_conv_forward.1} parent=1 // pred_check
      _
    $region11: #{spatial_conv_forward.1} parent=1 // pred_check_branch
      %42 = sbr.rel (0) target = $region13
    $region12: #{spatial_conv_forward.1} parent=1 // pred_region
      _
    $region13: #{spatial_conv_forward.1} parent=1 // pred_fallthru
      _
    // Predicated region
    $region14: #{spatial_conv_forward.1} parent=1 // pred_check
      _
    $region15: #{spatial_conv_forward.1} parent=1 // pred_check_branch
      %44 = sbr.rel (0) target = $region17
    $region16: #{spatial_conv_forward.1} parent=1 // pred_region
      %s46 = ssub.s32 9216, 9216
      %47 = vsyncadd [#allocation6], %s46
      %s48 = sshll.u32 [#allocation7], 4
      %s49 = int_to_ptr.vmem [resolvable:$true] %s48
      %54 = dma.hbm_to_vmem [thread:$0]  %s3, 9216, %s49, [#allocation6], 64, 64, 4
    $region17: #{spatial_conv_forward.1} parent=1 // pred_fallthru
      _
    // Predicated region
    $region18: #{spatial_conv_forward.1} parent=1 // pred_check
      _
    $region19: #{spatial_conv_forward.1} parent=1 // pred_check_branch
      %56 = sbr.rel (0) target = $region21
    $region20: #{spatial_conv_forward.1} parent=1 // pred_region
      _
    $region21: #{spatial_conv_forward.1} parent=1 // pred_fallthru
      _
    // Predicated region
    $region22: #{spatial_conv_forward.1} parent=1 // pred_check
      _
    $region23: #{spatial_conv_forward.1} parent=1 // pred_check_branch
      %58 = sbr.rel (0) target = $region25
    $region24: #{spatial_conv_forward.1} parent=1 // pred_region
      %s60 = ssub.s32 9216, 9216
      %61 = vsyncadd [#allocation9], %s60
      %s62 = sshll.u32 [#allocation8], 4
      %s63 = int_to_ptr.vmem [resolvable:$true] %s62
      %68 = dma.hbm_to_vmem [thread:$0]  %s5, 9216, %s63, [#allocation9], 64, 64, 4
    $region25: #{spatial_conv_forward.1} parent=1 // pred_fallthru
      _
    // Predicated region
    $region26: #{spatial_conv_forward.1} parent=1 // pred_check
      _
    $region27: #{spatial_conv_forward.1} parent=1 // pred_check_branch
      %70 = sbr.rel (0) target = $region29
    $region28: #{spatial_conv_forward.1} parent=1 // pred_region
      _
    $region29: #{spatial_conv_forward.1} parent=1 // pred_fallthru
      _
    // Predicated region
    $region30: #{spatial_conv_forward.1} parent=1 // pred_check
      _
    $region31: #{spatial_conv_forward.1} parent=1 // pred_check_branch
      %72 = sbr.rel (0) target = $region33
    $region32: #{spatial_conv_forward.1} parent=1 // pred_region
      %s74 = ssub.s32 9216, 9216
      %75 = vsyncadd [#allocation9], %s74
      %s76 = sshll.u32 [#allocation10], 4
      %s77 = int_to_ptr.vmem [resolvable:$true] %s76
      %82 = dma.hbm_to_vmem [thread:$0]  %s7, 9216, %s77, [#allocation9], 64, 64, 4
    $region33: #{spatial_conv_forward.1} parent=1 // pred_fallthru
      _
    // Predicated region
    $region34: #{spatial_conv_forward.1} parent=1 // pred_check
      _
    $region35: #{spatial_conv_forward.1} parent=1 // pred_check_branch
      %84 = sbr.rel (0) target = $region37
    $region36: #{spatial_conv_forward.1} parent=1 // pred_region
      _
    $region37: #{spatial_conv_forward.1} parent=1 // pred_fallthru
      _
    // Predicated region
    $region38: #{spatial_conv_forward.1} parent=1 // pred_check
      _
    $region39: #{spatial_conv_forward.1} parent=1 // pred_check_branch
      %86 = sbr.rel (0) target = $region41
    $region40: #{spatial_conv_forward.1} parent=1 // pred_region
      %87 = dma.done [#allocation4], 8192
    $region41: #{spatial_conv_forward.1} parent=1 // pred_fallthru
      _
    // Predicated region
    $region42: #{spatial_conv_forward.1} parent=1 // pred_check
      _
    $region43: #{spatial_conv_forward.1} parent=1 // pred_check_branch
      %89 = sbr.rel (0) target = $region45
    $region44: #{spatial_conv_forward.1} parent=1 // pred_region
      %90 = dma.done [#allocation6], 9216
    $region45: #{spatial_conv_forward.1} parent=1 // pred_fallthru
      _
    // Predicated region
    $region46: #{spatial_conv_forward.1} parent=1 // pred_check
      _
    $region47: #{spatial_conv_forward.1} parent=1 // pred_check_branch
      %92 = sbr.rel (0) target = $region49
    $region48: #{spatial_conv_forward.1} parent=1 // pred_region
      %93 = dma.done [#allocation6], 9216
    $region49: #{spatial_conv_forward.1} parent=1 // pred_fallthru
      _
    // Predicated region
    $region50: #{spatial_conv_forward.1} parent=1 // pred_check
      _
    $region51: #{spatial_conv_forward.1} parent=1 // pred_check_branch
      %95 = sbr.rel (0) target = $region53
    $region52: #{spatial_conv_forward.1} parent=1 // pred_region
      %96 = dma.done [#allocation9], 9216
    $region53: #{spatial_conv_forward.1} parent=1 // pred_fallthru
      _
    // Predicated region
    $region54: #{spatial_conv_forward.1} parent=1 // pred_check
      _
    $region55: #{spatial_conv_forward.1} parent=1 // pred_check_branch
      %98 = sbr.rel (0) target = $region57
    $region56: #{spatial_conv_forward.1} parent=1 // pred_region
      %99 = dma.done [#allocation9], 9216
    $region57: #{spatial_conv_forward.1} parent=1 // pred_fallthru
      _
    %v101 = vlaneseq
    %v102 = vshrl.u32 %v101, 7
    %v103 = vadd.s32 %v102, 8
    %v104 = vadd.s32 %v102, 16
    %v105 = vadd.s32 %v102, 24
    %vm106 = vcmp.lt.s32.totalorder %v102, 0
    %v107 = vsub.s32 0, %v102
    %v108 = vsel %vm106, %v107, %v102
    %v109 = vshrl.u32 %v108, 4
    %v110 = vand.u32 %v108, 15
    %v111 = vsub.s32 0, %v110
    %v112 = vsel %vm106, %v111, %v110
    %vm113 = vcmp.lt.s32.totalorder %v103, 0
    %v114 = vsub.s32 0, %v103
    %v115 = vsel %vm113, %v114, %v103
    %v116 = vshrl.u32 %v115, 4
    %v117 = vand.u32 %v115, 15
    %v118 = vsub.s32 0, %v117
    %v119 = vsel %vm113, %v118, %v117
    %vm120 = vcmp.lt.s32.totalorder %v104, 0
    %v121 = vsub.s32 0, %v104
    %v122 = vsel %vm120, %v121, %v104
    %v123 = vshrl.u32 %v122, 4
    %v124 = vand.u32 %v122, 15
    %v125 = vsub.s32 0, %v124
    %v126 = vsel %vm120, %v125, %v124
    %vm127 = vcmp.lt.s32.totalorder %v105, 0
    %v128 = vsub.s32 0, %v105
    %v129 = vsel %vm127, %v128, %v105
    %v130 = vshrl.u32 %v129, 4
    %v131 = vand.u32 %v129, 15
    %v132 = vsub.s32 0, %v131
    %v133 = vsel %vm127, %v132, %v131
    %vm134 = vcmp.ne.s32.totalorder %v112, 0
    %vm135 = vcmp.ne.s32.totalorder %v119, 0
    %vm136 = vcmp.ne.s32.totalorder %v126, 0
    %vm137 = vcmp.ne.s32.totalorder %v133, 0
    %vm138 = vcmp.lt.s32.totalorder %v112, 0
    %vm139 = vcmp.lt.s32.totalorder %v119, 0
    %vm140 = vcmp.lt.s32.totalorder %v126, 0
    %vm141 = vcmp.lt.s32.totalorder %v133, 0
    %vm142 = vmand %vm138, %vm134
    %vm143 = vmand %vm139, %vm135
    %vm144 = vmand %vm140, %vm136
    %vm145 = vmand %vm141, %vm137
    %v146 = vadd.s32 %v112, 16
    %v147 = vadd.s32 %v119, 16
    %v148 = vadd.s32 %v126, 16
    %v149 = vadd.s32 %v133, 16
    %v150 = vsel %vm142, %v146, %v112
    %v151 = vsel %vm143, %v147, %v119
    %v152 = vsel %vm144, %v148, %v126
    %v153 = vsel %vm145, %v149, %v133
    %v154 = vld [vmem:[%s2] sm:$0x1]
    %v156 = vlaneseq
    %v157 = vshrl.u32 %v156, 7
    %v158 = vsub.s32 0, %v157
    %v159 = vrot.slane %v154, %v158
    %v161 = vld [vmem:[%s4] sm:$0x1]
    %v163 = vlaneseq
    %v164 = vshrl.u32 %v163, 7
    %v165 = vsub.s32 0, %v164
    %v166 = vrot.slane %v161, %v165
    %v168 = vld [vmem:[%s6] sm:$0x1]
    %v170 = vlaneseq
    %v171 = vshrl.u32 %v170, 7
    %v172 = vsub.s32 0, %v171
    %v173 = vrot.slane %v168, %v172
    %v175 = vld [vmem:[%s8] sm:$0x1]
    %v177 = vlaneseq
    %v178 = vshrl.u32 %v177, 7
    %v179 = vsub.s32 0, %v178
    %v180 = vrot.slane %v175, %v179
    %v182 = vld [vmem:[#allocation3] sm:$0xff]
    %v183 = vld [vmem:[#allocation3 + $0x8] sm:$0xff]
    %v184 = vld [vmem:[#allocation3 + $0x100] sm:$0xff]
    %v185 = vld [vmem:[#allocation3 + $0x108] sm:$0xff]
    %186 = vst [vmem:[#allocation2] sm:$0xff] %v182
    %187 = vst [vmem:[#allocation2 + $0x8] sm:$0xff] %v183
    %188 = vst [vmem:[#allocation2 + $0x10] sm:$0xff] %v184
    %189 = vst [vmem:[#allocation2 + $0x18] sm:$0xff] %v185
    loop: start=1, step=1, limit=16
    $region58: #{spatial_conv_forward.1} parent=1 // loop_pre_header
      _
    $region59: #{spatial_conv_forward.1} parent=1 // loop_header
      %s191 = sphi 1, %s195
      %p192 = scmp.ge.s32.totalorder %s191, 16
      %v196 = vphi %v182, %v1176
      %v197 = vphi %v183, %v1177
      %v198 = vphi %v184, %v1178
      %v199 = vphi %v185, %v1179
    $region60: #{spatial_conv_forward.1} parent=1 // loop_header_branch
      %194 = sbr.rel (%p192) target = $region64
    $region61: #{spatial_conv_forward.1} parent=1 // loop_body
      %s200 = smul.u32 %s191, 16
      %s201 = scalar_lea.vmem [#allocation3], %s200
      %v202 = vld [vmem:[%s201] sm:$0xff]
      %v203 = vld [vmem:[%s201 + $0x8] sm:$0xff]
      %v204 = vld [vmem:[%s201 + $0x100] sm:$0xff]
      %v205 = vld [vmem:[%s201 + $0x108] sm:$0xff]
      %v206 = vrot.slane %v196, 4
      %v207 = vrot.slane %v197, 4
      %v208 = vrot.slane %v198, 4
      %v209 = vrot.slane %v199, 4
      %vm210 = vcmp.lt.s32.totalorder %v102, 4
      %v211 = vsel %vm210, %v208, %v209
      %v212 = vsel %vm210, %v207, %v208
      %v213 = vsel %vm210, %v206, %v207
      %v214 = vsel %vm210, %v209, %v206
      %vm215 = vcmp.ge.s32.totalorder %v150, 4
      %vm216 = vcmp.ge.s32.totalorder %v151, 4
      %vm217 = vcmp.ge.s32.totalorder %v152, 4
      %vm218 = vcmp.ge.s32.totalorder %v153, 4
      %v219 = vsel %vm215, %v214, 0.0
      %v220 = vsel %vm216, %v213, 0.0
      %v221 = vsel %vm217, %v212, 0.0
      %v222 = vsel %vm218, %v211, 0.0
      %v223 = vrot.slane %v196, 5
      %v224 = vrot.slane %v197, 5
      %v225 = vrot.slane %v198, 5
      %v226 = vrot.slane %v199, 5
      %vm227 = vcmp.lt.s32.totalorder %v102, 3
      %v228 = vsel %vm227, %v225, %v226
      %v229 = vsel %vm227, %v224, %v225
      %v230 = vsel %vm227, %v223, %v224
      %v231 = vsel %vm227, %v226, %v223
      %vm232 = vcmp.ge.s32.totalorder %v150, 3
      %vm233 = vcmp.ge.s32.totalorder %v151, 3
      %vm234 = vcmp.ge.s32.totalorder %v152, 3
      %vm235 = vcmp.ge.s32.totalorder %v153, 3
      %v236 = vsel %vm232, %v231, 0.0
      %v237 = vsel %vm233, %v230, 0.0
      %v238 = vsel %vm234, %v229, 0.0
      %v239 = vsel %vm235, %v228, 0.0
      %v240 = vrot.slane %v196, 6
      %v241 = vrot.slane %v197, 6
      %v242 = vrot.slane %v198, 6
      %v243 = vrot.slane %v199, 6
      %vm244 = vcmp.lt.s32.totalorder %v102, 2
      %v245 = vsel %vm244, %v242, %v243
      %v246 = vsel %vm244, %v241, %v242
      %v247 = vsel %vm244, %v240, %v241
      %v248 = vsel %vm244, %v243, %v240
      %vm249 = vcmp.ge.s32.totalorder %v150, 2
      %vm250 = vcmp.ge.s32.totalorder %v151, 2
      %vm251 = vcmp.ge.s32.totalorder %v152, 2
      %vm252 = vcmp.ge.s32.totalorder %v153, 2
      %v253 = vsel %vm249, %v248, 0.0
      %v254 = vsel %vm250, %v247, 0.0
      %v255 = vsel %vm251, %v246, 0.0
      %v256 = vsel %vm252, %v245, 0.0
      %v257 = vrot.slane %v196, 7
      %v258 = vrot.slane %v197, 7
      %v259 = vrot.slane %v198, 7
      %v260 = vrot.slane %v199, 7
      %vm261 = vcmp.lt.s32.totalorder %v102, 1
      %v262 = vsel %vm261, %v259, %v260
      %v263 = vsel %vm261, %v258, %v259
      %v264 = vsel %vm261, %v257, %v258
      %v265 = vsel %vm261, %v260, %v257
      %vm266 = vcmp.ge.s32.totalorder %v150, 1
      %vm267 = vcmp.ge.s32.totalorder %v151, 1
      %vm268 = vcmp.ge.s32.totalorder %v152, 1
      %vm269 = vcmp.ge.s32.totalorder %v153, 1
      %v270 = vsel %vm266, %v265, 0.0
      %v271 = vsel %vm267, %v264, 0.0
      %v272 = vsel %vm268, %v263, 0.0
      %v273 = vsel %vm269, %v262, 0.0
      %v274 = vrot.slane %v196, 1
      %v275 = vrot.slane %v197, 1
      %v276 = vrot.slane %v198, 1
      %v277 = vrot.slane %v199, 1
      %vm278 = vcmp.lt.s32.totalorder %v102, 7
      %v279 = vsel %vm278, %v276, %v277
      %v280 = vsel %vm278, %v275, %v276
      %v281 = vsel %vm278, %v274, %v275
      %v282 = vsel %vm278, %v277, %v274
      %vm283 = vcmp.lt.s32.totalorder %v150, 15
      %vm284 = vcmp.lt.s32.totalorder %v151, 15
      %vm285 = vcmp.lt.s32.totalorder %v152, 15
      %vm286 = vcmp.lt.s32.totalorder %v153, 15
      %v287 = vsel %vm283, %v281, 0.0
      %v288 = vsel %vm284, %v280, 0.0
      %v289 = vsel %vm285, %v279, 0.0
      %v290 = vsel %vm286, %v282, 0.0
      %v291 = vrot.slane %v196, 2
      %v292 = vrot.slane %v197, 2
      %v293 = vrot.slane %v198, 2
      %v294 = vrot.slane %v199, 2
      %vm295 = vcmp.lt.s32.totalorder %v102, 6
      %v296 = vsel %vm295, %v293, %v294
      %v297 = vsel %vm295, %v292, %v293
      %v298 = vsel %vm295, %v291, %v292
      %v299 = vsel %vm295, %v294, %v291
      %vm300 = vcmp.lt.s32.totalorder %v150, 14
      %vm301 = vcmp.lt.s32.totalorder %v151, 14
      %vm302 = vcmp.lt.s32.totalorder %v152, 14
      %vm303 = vcmp.lt.s32.totalorder %v153, 14
      %v304 = vsel %vm300, %v298, 0.0
      %v305 = vsel %vm301, %v297, 0.0
      %v306 = vsel %vm302, %v296, 0.0
      %v307 = vsel %vm303, %v299, 0.0
      %v308 = vrot.slane %v196, 3
      %v309 = vrot.slane %v197, 3
      %v310 = vrot.slane %v198, 3
      %v311 = vrot.slane %v199, 3
      %vm312 = vcmp.lt.s32.totalorder %v102, 5
      %v313 = vsel %vm312, %v310, %v311
      %v314 = vsel %vm312, %v309, %v310
      %v315 = vsel %vm312, %v308, %v309
      %v316 = vsel %vm312, %v311, %v308
      %vm317 = vcmp.lt.s32.totalorder %v150, 13
      %vm318 = vcmp.lt.s32.totalorder %v151, 13
      %vm319 = vcmp.lt.s32.totalorder %v152, 13
      %vm320 = vcmp.lt.s32.totalorder %v153, 13
      %v321 = vsel %vm317, %v315, 0.0
      %v322 = vsel %vm318, %v314, 0.0
      %v323 = vsel %vm319, %v313, 0.0
      %v324 = vsel %vm320, %v316, 0.0
      %vm325 = vcmp.lt.s32.totalorder %v150, 12
      %vm326 = vcmp.lt.s32.totalorder %v151, 12
      %vm327 = vcmp.lt.s32.totalorder %v152, 12
      %vm328 = vcmp.lt.s32.totalorder %v153, 12
      %v329 = vsel %vm325, %v213, 0.0
      %v330 = vsel %vm326, %v212, 0.0
      %v331 = vsel %vm327, %v211, 0.0
      %v332 = vsel %vm328, %v214, 0.0
      %v333 = vpack.c.bf16 %v220, %v219
      %v334 = vpack.c.bf16 %v237, %v236
      %v335 = vpack.c.bf16 %v254, %v253
      %v336 = vpack.c.bf16 %v271, %v270
      %v337 = vpack.c.bf16 %v197, %v196
      %v338 = vpack.c.bf16 %v288, %v287
      %v339 = vpack.c.bf16 %v305, %v304
      %v340 = vpack.c.bf16 %v322, %v321
      %v341 = vpack.c.bf16 %v330, %v329
      %v342 = vpack.c.bf16 %v222, %v221
      %v343 = vpack.c.bf16 %v239, %v238
      %v344 = vpack.c.bf16 %v256, %v255
      %v345 = vpack.c.bf16 %v273, %v272
      %v346 = vpack.c.bf16 %v199, %v198
      %v347 = vpack.c.bf16 %v290, %v289
      %v348 = vpack.c.bf16 %v307, %v306
      %v349 = vpack.c.bf16 %v324, %v323
      %v350 = vpack.c.bf16 %v332, %v331
      %v351 = vld [vmem:[#allocation5] sm:$0xf]
      %v352 = vld [vmem:[#allocation5 + $0x4] sm:$0xf]
      %v353 = vld [vmem:[#allocation5 + $0x8] sm:$0xf]
      %v354 = vld [vmem:[#allocation5 + $0xc] sm:$0xf]
      %v355 = vld [vmem:[#allocation5 + $0x10] sm:$0xf]
      %v356 = vld [vmem:[#allocation5 + $0x14] sm:$0xf]
      %v357 = vld [vmem:[#allocation5 + $0x18] sm:$0xf]
      %v358 = vld [vmem:[#allocation5 + $0x1c] sm:$0xf]
      %v359 = vld [vmem:[#allocation5 + $0x20] sm:$0xf]
      %v360 = vld [vmem:[#allocation5 + $0x24] sm:$0xf]
      %v361 = vld [vmem:[#allocation5 + $0x28] sm:$0xf]
      %v362 = vld [vmem:[#allocation5 + $0x2c] sm:$0xf]
      %v363 = vld [vmem:[#allocation5 + $0x30] sm:$0xf]
      %v364 = vld [vmem:[#allocation5 + $0x34] sm:$0xf]
      %v365 = vld [vmem:[#allocation5 + $0x38] sm:$0xf]
      %v366 = vld [vmem:[#allocation5 + $0x3c] sm:$0xf]
      %v367 = vld [vmem:[#allocation5 + $0x40] sm:$0xf]
      %v368 = vld [vmem:[#allocation5 + $0x44] sm:$0xf]
      %v369 = vld [vmem:[#allocation5 + $0x48] sm:$0xf]
      %v370 = vld [vmem:[#allocation5 + $0x4c] sm:$0xf]
      %v371 = vld [vmem:[#allocation5 + $0x50] sm:$0xf]
      %v372 = vld [vmem:[#allocation5 + $0x54] sm:$0xf]
      %v373 = vld [vmem:[#allocation5 + $0x58] sm:$0xf]
      %v374 = vld [vmem:[#allocation5 + $0x5c] sm:$0xf]
      %v375 = vld [vmem:[#allocation5 + $0x60] sm:$0xf]
      %v376 = vld [vmem:[#allocation5 + $0x64] sm:$0xf]
      %v377 = vld [vmem:[#allocation5 + $0x68] sm:$0xf]
      %v378 = vld [vmem:[#allocation5 + $0x6c] sm:$0xf]
      %v379 = vld [vmem:[#allocation5 + $0x70] sm:$0xf]
      %v380 = vld [vmem:[#allocation5 + $0x74] sm:$0xf]
      %v381 = vld [vmem:[#allocation5 + $0x78] sm:$0xf]
      %v382 = vld [vmem:[#allocation5 + $0x7c] sm:$0xf]
      %v383 = vld [vmem:[#allocation5 + $0x80] sm:$0xf]
      %v384 = vld [vmem:[#allocation5 + $0x84] sm:$0xf]
      %v385 = vld [vmem:[#allocation5 + $0x88] sm:$0xf]
      %v386 = vld [vmem:[#allocation5 + $0x8c] sm:$0xf]
      %v387 = vld [vmem:[#allocation5 + $0x90] sm:$0xf]
      %v388 = vld [vmem:[#allocation5 + $0x94] sm:$0xf]
      %v389 = vld [vmem:[#allocation5 + $0x98] sm:$0xf]
      %v390 = vld [vmem:[#allocation5 + $0x9c] sm:$0xf]
      %v391 = vld [vmem:[#allocation5 + $0xa0] sm:$0xf]
      %v392 = vld [vmem:[#allocation5 + $0xa4] sm:$0xf]
      %v393 = vld [vmem:[#allocation5 + $0xa8] sm:$0xf]
      %v394 = vld [vmem:[#allocation5 + $0xac] sm:$0xf]
      %v395 = vld [vmem:[#allocation5 + $0xb0] sm:$0xf]
      %v396 = vld [vmem:[#allocation5 + $0xb4] sm:$0xf]
      %v397 = vld [vmem:[#allocation5 + $0xb8] sm:$0xf]
      %v398 = vld [vmem:[#allocation5 + $0xbc] sm:$0xf]
      %v399 = vld [vmem:[#allocation5 + $0xc0] sm:$0xf]
      %v400 = vld [vmem:[#allocation5 + $0xc4] sm:$0xf]
      %v401 = vld [vmem:[#allocation5 + $0xc8] sm:$0xf]
      %v402 = vld [vmem:[#allocation5 + $0xcc] sm:$0xf]
      %v403 = vld [vmem:[#allocation5 + $0xd0] sm:$0xf]
      %v404 = vld [vmem:[#allocation5 + $0xd4] sm:$0xf]
      %v405 = vld [vmem:[#allocation5 + $0xd8] sm:$0xf]
      %v406 = vld [vmem:[#allocation5 + $0xdc] sm:$0xf]
      %v407 = vld [vmem:[#allocation5 + $0xe0] sm:$0xf]
      %v408 = vld [vmem:[#allocation5 + $0xe4] sm:$0xf]
      %v409 = vld [vmem:[#allocation5 + $0xe8] sm:$0xf]
      %v410 = vld [vmem:[#allocation5 + $0xec] sm:$0xf]
      %v411 = vld [vmem:[#allocation5 + $0xf0] sm:$0xf]
      %v412 = vld [vmem:[#allocation5 + $0xf4] sm:$0xf]
      %v413 = vld [vmem:[#allocation5 + $0xf8] sm:$0xf]
      %v414 = vld [vmem:[#allocation5 + $0xfc] sm:$0xf]
      %v415 = vld [vmem:[#allocation5 + $0x100] sm:$0xf]
      %v416 = vld [vmem:[#allocation5 + $0x104] sm:$0xf]
      %v417 = vld [vmem:[#allocation5 + $0x108] sm:$0xf]
      %v418 = vld [vmem:[#allocation5 + $0x10c] sm:$0xf]
      %v419 = vld [vmem:[#allocation5 + $0x110] sm:$0xf]
      %v420 = vld [vmem:[#allocation5 + $0x114] sm:$0xf]
      %v421 = vld [vmem:[#allocation5 + $0x118] sm:$0xf]
      %v422 = vld [vmem:[#allocation5 + $0x11c] sm:$0xf]
      %v423 = vld [vmem:[#allocation5 + $0x120] sm:$0xf]
      %v424 = vld [vmem:[#allocation5 + $0x124] sm:$0xf]
      %v425 = vld [vmem:[#allocation5 + $0x128] sm:$0xf]
      %v426 = vld [vmem:[#allocation5 + $0x12c] sm:$0xf]
      %v427 = vld [vmem:[#allocation5 + $0x130] sm:$0xf]
      %v428 = vld [vmem:[#allocation5 + $0x134] sm:$0xf]
      %v429 = vld [vmem:[#allocation5 + $0x138] sm:$0xf]
      %v430 = vld [vmem:[#allocation5 + $0x13c] sm:$0xf]
      %v431 = vld [vmem:[#allocation5 + $0x140] sm:$0xf]
      %v432 = vld [vmem:[#allocation5 + $0x144] sm:$0xf]
      %v433 = vld [vmem:[#allocation5 + $0x148] sm:$0xf]
      %v434 = vld [vmem:[#allocation5 + $0x14c] sm:$0xf]
      %v435 = vld [vmem:[#allocation5 + $0x150] sm:$0xf]
      %v436 = vld [vmem:[#allocation5 + $0x154] sm:$0xf]
      %v437 = vld [vmem:[#allocation5 + $0x158] sm:$0xf]
      %v438 = vld [vmem:[#allocation5 + $0x15c] sm:$0xf]
      %v439 = vld [vmem:[#allocation5 + $0x160] sm:$0xf]
      %v440 = vld [vmem:[#allocation5 + $0x164] sm:$0xf]
      %v441 = vld [vmem:[#allocation5 + $0x168] sm:$0xf]
      %v442 = vld [vmem:[#allocation5 + $0x16c] sm:$0xf]
      %v443 = vld [vmem:[#allocation5 + $0x170] sm:$0xf]
      %v444 = vld [vmem:[#allocation5 + $0x174] sm:$0xf]
      %v445 = vld [vmem:[#allocation5 + $0x178] sm:$0xf]
      %v446 = vld [vmem:[#allocation5 + $0x17c] sm:$0xf]
      %v447 = vld [vmem:[#allocation5 + $0x180] sm:$0xf]
      %v448 = vld [vmem:[#allocation5 + $0x184] sm:$0xf]
      %v449 = vld [vmem:[#allocation5 + $0x188] sm:$0xf]
      %v450 = vld [vmem:[#allocation5 + $0x18c] sm:$0xf]
      %v451 = vld [vmem:[#allocation5 + $0x190] sm:$0xf]
      %v452 = vld [vmem:[#allocation5 + $0x194] sm:$0xf]
      %v453 = vld [vmem:[#allocation5 + $0x198] sm:$0xf]
      %v454 = vld [vmem:[#allocation5 + $0x19c] sm:$0xf]
      %v455 = vld [vmem:[#allocation5 + $0x1a0] sm:$0xf]
      %v456 = vld [vmem:[#allocation5 + $0x1a4] sm:$0xf]
      %v457 = vld [vmem:[#allocation5 + $0x1a8] sm:$0xf]
      %v458 = vld [vmem:[#allocation5 + $0x1ac] sm:$0xf]
      %v459 = vld [vmem:[#allocation5 + $0x1b0] sm:$0xf]
      %v460 = vld [vmem:[#allocation5 + $0x1b4] sm:$0xf]
      %v461 = vld [vmem:[#allocation5 + $0x1b8] sm:$0xf]
      %v462 = vld [vmem:[#allocation5 + $0x1bc] sm:$0xf]
      %v463 = vld [vmem:[#allocation5 + $0x1c0] sm:$0xf]
      %v464 = vld [vmem:[#allocation5 + $0x1c4] sm:$0xf]
      %v465 = vld [vmem:[#allocation5 + $0x1c8] sm:$0xf]
      %v466 = vld [vmem:[#allocation5 + $0x1cc] sm:$0xf]
      %v467 = vld [vmem:[#allocation5 + $0x1d0] sm:$0xf]
      %v468 = vld [vmem:[#allocation5 + $0x1d4] sm:$0xf]
      %v469 = vld [vmem:[#allocation5 + $0x1d8] sm:$0xf]
      %v470 = vld [vmem:[#allocation5 + $0x1dc] sm:$0xf]
      %v471 = vld [vmem:[#allocation5 + $0x1e0] sm:$0xf]
      %v472 = vld [vmem:[#allocation5 + $0x1e4] sm:$0xf]
      %v473 = vld [vmem:[#allocation5 + $0x1e8] sm:$0xf]
      %v474 = vld [vmem:[#allocation5 + $0x1ec] sm:$0xf]
      %v475 = vld [vmem:[#allocation5 + $0x1f0] sm:$0xf]
      %v476 = vld [vmem:[#allocation5 + $0x1f4] sm:$0xf]
      %v477 = vld [vmem:[#allocation5 + $0x1f8] sm:$0xf]
      %v478 = vld [vmem:[#allocation5 + $0x1fc] sm:$0xf]
      %v479 = vld [vmem:[#allocation5 + $0x200] sm:$0xf]
      %v480 = vld [vmem:[#allocation5 + $0x204] sm:$0xf]
      %v481 = vld [vmem:[#allocation5 + $0x208] sm:$0xf]
      %v482 = vld [vmem:[#allocation5 + $0x20c] sm:$0xf]
      %v483 = vld [vmem:[#allocation5 + $0x210] sm:$0xf]
      %v484 = vld [vmem:[#allocation5 + $0x214] sm:$0xf]
      %v485 = vld [vmem:[#allocation5 + $0x218] sm:$0xf]
      %v486 = vld [vmem:[#allocation5 + $0x21c] sm:$0xf]
      %v487 = vld [vmem:[#allocation5 + $0x220] sm:$0xf]
      %v488 = vld [vmem:[#allocation5 + $0x224] sm:$0xf]
      %v489 = vld [vmem:[#allocation5 + $0x228] sm:$0xf]
      %v490 = vld [vmem:[#allocation5 + $0x22c] sm:$0xf]
      %v491 = vld [vmem:[#allocation5 + $0x230] sm:$0xf]
      %v492 = vld [vmem:[#allocation5 + $0x234] sm:$0xf]
      %v493 = vld [vmem:[#allocation5 + $0x238] sm:$0xf]
      %v494 = vld [vmem:[#allocation5 + $0x23c] sm:$0xf]
      %v639 = vunpack.c.l.b16 %v351
      %v640 = vunpack.c.l.b16 %v352
      %v641 = vunpack.c.l.b16 %v353
      %v642 = vunpack.c.l.b16 %v354
      %v643 = vunpack.c.l.b16 %v355
      %v644 = vunpack.c.l.b16 %v356
      %v645 = vunpack.c.l.b16 %v357
      %v646 = vunpack.c.l.b16 %v358
      %v647 = vunpack.c.l.b16 %v359
      %v648 = vunpack.c.l.b16 %v360
      %v649 = vunpack.c.l.b16 %v361
      %v650 = vunpack.c.l.b16 %v362
      %v651 = vunpack.c.l.b16 %v363
      %v652 = vunpack.c.l.b16 %v364
      %v653 = vunpack.c.l.b16 %v365
      %v654 = vunpack.c.l.b16 %v366
      %v655 = vunpack.c.l.b16 %v367
      %v656 = vunpack.c.l.b16 %v368
      %v657 = vunpack.c.l.b16 %v369
      %v658 = vunpack.c.l.b16 %v370
      %v659 = vunpack.c.l.b16 %v371
      %v660 = vunpack.c.l.b16 %v372
      %v661 = vunpack.c.l.b16 %v373
      %v662 = vunpack.c.l.b16 %v374
      %v663 = vunpack.c.l.b16 %v375
      %v664 = vunpack.c.l.b16 %v376
      %v665 = vunpack.c.l.b16 %v377
      %v666 = vunpack.c.l.b16 %v378
      %v667 = vunpack.c.l.b16 %v379
      %v668 = vunpack.c.l.b16 %v380
      %v669 = vunpack.c.l.b16 %v381
      %v670 = vunpack.c.l.b16 %v382
      %v671 = vunpack.c.l.b16 %v383
      %v672 = vunpack.c.l.b16 %v384
      %v673 = vunpack.c.l.b16 %v385
      %v674 = vunpack.c.l.b16 %v386
      %v675 = vunpack.c.l.b16 %v387
      %v676 = vunpack.c.l.b16 %v388
      %v677 = vunpack.c.l.b16 %v389
      %v678 = vunpack.c.l.b16 %v390
      %v679 = vunpack.c.l.b16 %v391
      %v680 = vunpack.c.l.b16 %v392
      %v681 = vunpack.c.l.b16 %v393
      %v682 = vunpack.c.l.b16 %v394
      %v683 = vunpack.c.l.b16 %v395
      %v684 = vunpack.c.l.b16 %v396
      %v685 = vunpack.c.l.b16 %v397
      %v686 = vunpack.c.l.b16 %v398
      %v687 = vunpack.c.l.b16 %v399
      %v688 = vunpack.c.l.b16 %v400
      %v689 = vunpack.c.l.b16 %v401
      %v690 = vunpack.c.l.b16 %v402
      %v691 = vunpack.c.l.b16 %v403
      %v692 = vunpack.c.l.b16 %v404
      %v693 = vunpack.c.l.b16 %v405
      %v694 = vunpack.c.l.b16 %v406
      %v695 = vunpack.c.l.b16 %v407
      %v696 = vunpack.c.l.b16 %v408
      %v697 = vunpack.c.l.b16 %v409
      %v698 = vunpack.c.l.b16 %v410
      %v699 = vunpack.c.l.b16 %v411
      %v700 = vunpack.c.l.b16 %v412
      %v701 = vunpack.c.l.b16 %v413
      %v702 = vunpack.c.l.b16 %v414
      %v703 = vunpack.c.l.b16 %v415
      %v704 = vunpack.c.l.b16 %v416
      %v705 = vunpack.c.l.b16 %v417
      %v706 = vunpack.c.l.b16 %v418
      %v707 = vunpack.c.l.b16 %v419
      %v708 = vunpack.c.l.b16 %v420
      %v709 = vunpack.c.l.b16 %v421
      %v710 = vunpack.c.l.b16 %v422
      %v711 = vunpack.c.l.b16 %v423
      %v712 = vunpack.c.l.b16 %v424
      %v713 = vunpack.c.l.b16 %v425
      %v714 = vunpack.c.l.b16 %v426
      %v715 = vunpack.c.l.b16 %v427
      %v716 = vunpack.c.l.b16 %v428
      %v717 = vunpack.c.l.b16 %v429
      %v718 = vunpack.c.l.b16 %v430
      %v719 = vunpack.c.l.b16 %v431
      %v720 = vunpack.c.l.b16 %v432
      %v721 = vunpack.c.l.b16 %v433
      %v722 = vunpack.c.l.b16 %v434
      %v723 = vunpack.c.l.b16 %v435
      %v724 = vunpack.c.l.b16 %v436
      %v725 = vunpack.c.l.b16 %v437
      %v726 = vunpack.c.l.b16 %v438
      %v727 = vunpack.c.l.b16 %v439
      %v728 = vunpack.c.l.b16 %v440
      %v729 = vunpack.c.l.b16 %v441
      %v730 = vunpack.c.l.b16 %v442
      %v731 = vunpack.c.l.b16 %v443
      %v732 = vunpack.c.l.b16 %v444
      %v733 = vunpack.c.l.b16 %v445
      %v734 = vunpack.c.l.b16 %v446
      %v735 = vunpack.c.l.b16 %v447
      %v736 = vunpack.c.l.b16 %v448
      %v737 = vunpack.c.l.b16 %v449
      %v738 = vunpack.c.l.b16 %v450
      %v739 = vunpack.c.l.b16 %v451
      %v740 = vunpack.c.l.b16 %v452
      %v741 = vunpack.c.l.b16 %v453
      %v742 = vunpack.c.l.b16 %v454
      %v743 = vunpack.c.l.b16 %v455
      %v744 = vunpack.c.l.b16 %v456
      %v745 = vunpack.c.l.b16 %v457
      %v746 = vunpack.c.l.b16 %v458
      %v747 = vunpack.c.l.b16 %v459
      %v748 = vunpack.c.l.b16 %v460
      %v749 = vunpack.c.l.b16 %v461
      %v750 = vunpack.c.l.b16 %v462
      %v751 = vunpack.c.l.b16 %v463
      %v752 = vunpack.c.l.b16 %v464
      %v753 = vunpack.c.l.b16 %v465
      %v754 = vunpack.c.l.b16 %v466
      %v755 = vunpack.c.l.b16 %v467
      %v756 = vunpack.c.l.b16 %v468
      %v757 = vunpack.c.l.b16 %v469
      %v758 = vunpack.c.l.b16 %v470
      %v759 = vunpack.c.l.b16 %v471
      %v760 = vunpack.c.l.b16 %v472
      %v761 = vunpack.c.l.b16 %v473
      %v762 = vunpack.c.l.b16 %v474
      %v763 = vunpack.c.l.b16 %v475
      %v764 = vunpack.c.l.b16 %v476
      %v765 = vunpack.c.l.b16 %v477
      %v766 = vunpack.c.l.b16 %v478
      %v767 = vunpack.c.l.b16 %v479
      %v768 = vunpack.c.l.b16 %v480
      %v769 = vunpack.c.l.b16 %v481
      %v770 = vunpack.c.l.b16 %v482
      %v771 = vunpack.c.l.b16 %v483
      %v772 = vunpack.c.l.b16 %v484
      %v773 = vunpack.c.l.b16 %v485
      %v774 = vunpack.c.l.b16 %v486
      %v775 = vunpack.c.l.b16 %v487
      %v776 = vunpack.c.l.b16 %v488
      %v777 = vunpack.c.l.b16 %v489
      %v778 = vunpack.c.l.b16 %v490
      %v779 = vunpack.c.l.b16 %v491
      %v780 = vunpack.c.l.b16 %v492
      %v781 = vunpack.c.l.b16 %v493
      %v782 = vunpack.c.l.b16 %v494
      %v783 = vpack.c.b16 %v640, %v639
      %v784 = vpack.c.b16 %v642, %v641
      %v785 = vpack.c.b16 %v644, %v643
      %v786 = vpack.c.b16 %v646, %v645
      %v787 = vpack.c.b16 %v648, %v647
      %v788 = vpack.c.b16 %v650, %v649
      %v789 = vpack.c.b16 %v652, %v651
      %v790 = vpack.c.b16 %v654, %v653
      %v791 = vpack.c.b16 %v656, %v655
      %v792 = vpack.c.b16 %v658, %v657
      %v793 = vpack.c.b16 %v660, %v659
      %v794 = vpack.c.b16 %v662, %v661
      %v795 = vpack.c.b16 %v664, %v663
      %v796 = vpack.c.b16 %v666, %v665
      %v797 = vpack.c.b16 %v668, %v667
      %v798 = vpack.c.b16 %v670, %v669
      %v799 = vpack.c.b16 %v672, %v671
      %v800 = vpack.c.b16 %v674, %v673
      %v801 = vpack.c.b16 %v676, %v675
      %v802 = vpack.c.b16 %v678, %v677
      %v803 = vpack.c.b16 %v680, %v679
      %v804 = vpack.c.b16 %v682, %v681
      %v805 = vpack.c.b16 %v684, %v683
      %v806 = vpack.c.b16 %v686, %v685
      %v807 = vpack.c.b16 %v688, %v687
      %v808 = vpack.c.b16 %v690, %v689
      %v809 = vpack.c.b16 %v692, %v691
      %v810 = vpack.c.b16 %v694, %v693
      %v811 = vpack.c.b16 %v696, %v695
      %v812 = vpack.c.b16 %v698, %v697
      %v813 = vpack.c.b16 %v700, %v699
      %v814 = vpack.c.b16 %v702, %v701
      %v815 = vpack.c.b16 %v704, %v703
      %v816 = vpack.c.b16 %v706, %v705
      %v817 = vpack.c.b16 %v708, %v707
      %v818 = vpack.c.b16 %v710, %v709
      %v819 = vpack.c.b16 %v712, %v711
      %v820 = vpack.c.b16 %v714, %v713
      %v821 = vpack.c.b16 %v716, %v715
      %v822 = vpack.c.b16 %v718, %v717
      %v823 = vpack.c.b16 %v720, %v719
      %v824 = vpack.c.b16 %v722, %v721
      %v825 = vpack.c.b16 %v724, %v723
      %v826 = vpack.c.b16 %v726, %v725
      %v827 = vpack.c.b16 %v728, %v727
      %v828 = vpack.c.b16 %v730, %v729
      %v829 = vpack.c.b16 %v732, %v731
      %v830 = vpack.c.b16 %v734, %v733
      %v831 = vpack.c.b16 %v736, %v735
      %v832 = vpack.c.b16 %v738, %v737
      %v833 = vpack.c.b16 %v740, %v739
      %v834 = vpack.c.b16 %v742, %v741
      %v835 = vpack.c.b16 %v744, %v743
      %v836 = vpack.c.b16 %v746, %v745
      %v837 = vpack.c.b16 %v748, %v747
      %v838 = vpack.c.b16 %v750, %v749
      %v839 = vpack.c.b16 %v752, %v751
      %v840 = vpack.c.b16 %v754, %v753
      %v841 = vpack.c.b16 %v756, %v755
      %v842 = vpack.c.b16 %v758, %v757
      %v843 = vpack.c.b16 %v760, %v759
      %v844 = vpack.c.b16 %v762, %v761
      %v845 = vpack.c.b16 %v764, %v763
      %v846 = vpack.c.b16 %v766, %v765
      %v847 = vpack.c.b16 %v768, %v767
      %v848 = vpack.c.b16 %v770, %v769
      %v849 = vpack.c.b16 %v772, %v771
      %v850 = vpack.c.b16 %v774, %v773
      %v851 = vpack.c.b16 %v776, %v775
      %v852 = vpack.c.b16 %v778, %v777
      %v853 = vpack.c.b16 %v780, %v779
      %v854 = vpack.c.b16 %v782, %v781
      %927 = vmatprep.subr.bf16.mxu0 0
      %928 = vmatpush1.bf16.msra.mxu0 %v783
      %929 = vmatprep.subr.bf16.mxu0 0
      %930 = vmatpush1.bf16.msra.mxu0 %v784
      %931 = vmatprep.subr.bf16.mxu0 0
      %932 = vmatpush1.bf16.msra.mxu0 %v785
      %933 = vmatprep.subr.bf16.mxu0 0
      %934 = vmatpush1.bf16.msra.mxu0 %v786
      %935 = vmatprep.subr.bf16.mxu0 0
      %936 = vmatpush1.bf16.msra.mxu0 %v787
      %937 = vmatprep.subr.bf16.mxu0 0
      %938 = vmatpush1.bf16.msra.mxu0 %v788
      %939 = vmatprep.subr.bf16.mxu0 0
      %940 = vmatpush1.bf16.msra.mxu0 %v789
      %941 = vmatprep.subr.bf16.mxu0 0
      %942 = vmatpush1.bf16.msra.mxu0 %v790
      %943 = vmatprep.subr.bf16.mxu0 0
      %944 = vmatpush1.bf16.msra.mxu0 %v791
      %945 = vmatprep.subr.bf16.mxu0 0
      %946 = vmatpush1.bf16.msra.mxu0 %v792
      %947 = vmatprep.subr.bf16.mxu0 0
      %948 = vmatpush1.bf16.msra.mxu0 %v793
      %949 = vmatprep.subr.bf16.mxu0 0
      %950 = vmatpush1.bf16.msra.mxu0 %v794
      %951 = vmatprep.subr.bf16.mxu0 0
      %952 = vmatpush1.bf16.msra.mxu0 %v795
      %953 = vmatprep.subr.bf16.mxu0 0
      %954 = vmatpush1.bf16.msra.mxu0 %v796
      %955 = vmatprep.subr.bf16.mxu0 0
      %956 = vmatpush1.bf16.msra.mxu0 %v797
      %957 = vmatprep.subr.bf16.mxu0 0
      %958 = vmatpush1.bf16.msra.mxu0 %v798
      %959 = vmatprep.mubr.bf16.mxu0 %v334
      %960 = vmatmul.mubr.bf16.gmra.mrb[0].mxu0 %v333
      %v961 = vpop.f32.mrb[0].mxu0
      %v962 = vadd.f32 %v159, %v961
      %v963 = vpop.f32.mrb[0].mxu0
      %v964 = vpop.f32.mrb[0].mxu0
      %v965 = vadd.f32 %v159, %v964
      %v966 = vpop.f32.mrb[0].mxu0
      %967 = vmatprep.mubr.bf16.mxu0 %v343
      %968 = vmatmul.mubr.bf16.gmra.mrb[0].mxu0 %v342
      %v969 = vpop.f32.mrb[0].mxu0
      %v970 = vadd.f32 %v159, %v969
      %v971 = vpop.f32.mrb[0].mxu0
      %v972 = vpop.f32.mrb[0].mxu0
      %v973 = vadd.f32 %v159, %v972
      %v974 = vpop.f32.mrb[0].mxu0
      %975 = vdwg.mxu0
      %976 = vmatprep.subr.bf16.mxu0 0
      %977 = vmatpush1.bf16.msra.mxu0 %v799
      %978 = vmatprep.subr.bf16.mxu0 0
      %979 = vmatpush1.bf16.msra.mxu0 %v800
      %980 = vmatprep.subr.bf16.mxu0 0
      %981 = vmatpush1.bf16.msra.mxu0 %v801
      %982 = vmatprep.subr.bf16.mxu0 0
      %983 = vmatpush1.bf16.msra.mxu0 %v802
      %984 = vmatprep.subr.bf16.mxu0 0
      %985 = vmatpush1.bf16.msra.mxu0 %v803
      %986 = vmatprep.subr.bf16.mxu0 0
      %987 = vmatpush1.bf16.msra.mxu0 %v804
      %988 = vmatprep.subr.bf16.mxu0 0
      %989 = vmatpush1.bf16.msra.mxu0 %v805
      %990 = vmatprep.subr.bf16.mxu0 0
      %991 = vmatpush1.bf16.msra.mxu0 %v806
      %992 = vmatprep.subr.bf16.mxu0 0
      %993 = vmatpush1.bf16.msra.mxu0 %v807
      %994 = vmatprep.subr.bf16.mxu0 0
      %995 = vmatpush1.bf16.msra.mxu0 %v808
      %996 = vmatprep.subr.bf16.mxu0 0
      %997 = vmatpush1.bf16.msra.mxu0 %v809
      %998 = vmatprep.subr.bf16.mxu0 0
      %999 = vmatpush1.bf16.msra.mxu0 %v810
      %1000 = vmatprep.subr.bf16.mxu0 0
      %1001 = vmatpush1.bf16.msra.mxu0 %v811
      %1002 = vmatprep.subr.bf16.mxu0 0
      %1003 = vmatpush1.bf16.msra.mxu0 %v812
      %1004 = vmatprep.subr.bf16.mxu0 0
      %1005 = vmatpush1.bf16.msra.mxu0 %v813
      %1006 = vmatprep.subr.bf16.mxu0 0
      %1007 = vmatpush1.bf16.msra.mxu0 %v814
      %1008 = vmatprep.mubr.bf16.mxu0 %v336
      %1009 = vmatmul.mubr.bf16.gmra.mrb[0].mxu0 %v335
      %v1010 = vpop.f32.mrb[0].mxu0
      %v1011 = vadd.f32 %v962, %v1010
      %v1012 = vpop.f32.mrb[0].mxu0
      %v1013 = vpop.f32.mrb[0].mxu0
      %v1014 = vadd.f32 %v965, %v1013
      %v1015 = vpop.f32.mrb[0].mxu0
      %1016 = vmatprep.mubr.bf16.mxu0 %v345
      %1017 = vmatmul.mubr.bf16.gmra.mrb[0].mxu0 %v344
      %v1018 = vpop.f32.mrb[0].mxu0
      %v1019 = vadd.f32 %v970, %v1018
      %v1020 = vpop.f32.mrb[0].mxu0
      %v1021 = vpop.f32.mrb[0].mxu0
      %v1022 = vadd.f32 %v973, %v1021
      %v1023 = vpop.f32.mrb[0].mxu0
      %1024 = vdwg.mxu0
      %1025 = vmatprep.subr.bf16.mxu0 0
      %1026 = vmatpush1.bf16.msra.mxu0 %v815
      %1027 = vmatprep.subr.bf16.mxu0 0
      %1028 = vmatpush1.bf16.msra.mxu0 %v816
      %1029 = vmatprep.subr.bf16.mxu0 0
      %1030 = vmatpush1.bf16.msra.mxu0 %v817
      %1031 = vmatprep.subr.bf16.mxu0 0
      %1032 = vmatpush1.bf16.msra.mxu0 %v818
      %1033 = vmatprep.subr.bf16.mxu0 0
      %1034 = vmatpush1.bf16.msra.mxu0 %v819
      %1035 = vmatprep.subr.bf16.mxu0 0
      %1036 = vmatpush1.bf16.msra.mxu0 %v820
      %1037 = vmatprep.subr.bf16.mxu0 0
      %1038 = vmatpush1.bf16.msra.mxu0 %v821
      %1039 = vmatprep.subr.bf16.mxu0 0
      %1040 = vmatpush1.bf16.msra.mxu0 %v822
      %1041 = vmatprep.subr.bf16.mxu0 0
      %1042 = vmatpush1.bf16.msra.mxu0 %v823
      %1043 = vmatprep.subr.bf16.mxu0 0
      %1044 = vmatpush1.bf16.msra.mxu0 %v824
      %1045 = vmatprep.subr.bf16.mxu0 0
      %1046 = vmatpush1.bf16.msra.mxu0 %v825
      %1047 = vmatprep.subr.bf16.mxu0 0
      %1048 = vmatpush1.bf16.msra.mxu0 %v826
      %1049 = vmatprep.subr.bf16.mxu0 0
      %1050 = vmatpush1.bf16.msra.mxu0 %v827
      %1051 = vmatprep.subr.bf16.mxu0 0
      %1052 = vmatpush1.bf16.msra.mxu0 %v828
      %1053 = vmatprep.subr.bf16.mxu0 0
      %1054 = vmatpush1.bf16.msra.mxu0 %v829
      %1055 = vmatprep.subr.bf16.mxu0 0
      %1056 = vmatpush1.bf16.msra.mxu0 %v830
      %1057 = vmatprep.mubr.bf16.mxu0 %v338
      %1058 = vmatmul.mubr.bf16.gmra.mrb[0].mxu0 %v337
      %v1059 = vpop.f32.mrb[0].mxu0
      %v1060 = vadd.f32 %v1011, %v1059
      %v1061 = vpop.f32.mrb[0].mxu0
      %v1062 = vpop.f32.mrb[0].mxu0
      %v1063 = vadd.f32 %v1014, %v1062
      %v1064 = vpop.f32.mrb[0].mxu0
      %1065 = vmatprep.mubr.bf16.mxu0 %v347
      %1066 = vmatmul.mubr.bf16.gmra.mrb[0].mxu0 %v346
      %v1067 = vpop.f32.mrb[0].mxu0
      %v1068 = vadd.f32 %v1019, %v1067
      %v1069 = vpop.f32.mrb[0].mxu0
      %v1070 = vpop.f32.mrb[0].mxu0
      %v1071 = vadd.f32 %v1022, %v1070
      %v1072 = vpop.f32.mrb[0].mxu0
      %1073 = vdwg.mxu0
      %1074 = vmatprep.subr.bf16.mxu0 0
      %1075 = vmatpush1.bf16.msra.mxu0 %v831
      %1076 = vmatprep.subr.bf16.mxu0 0
      %1077 = vmatpush1.bf16.msra.mxu0 %v832
      %1078 = vmatprep.subr.bf16.mxu0 0
      %1079 = vmatpush1.bf16.msra.mxu0 %v833
      %1080 = vmatprep.subr.bf16.mxu0 0
      %1081 = vmatpush1.bf16.msra.mxu0 %v834
      %1082 = vmatprep.subr.bf16.mxu0 0
      %1083 = vmatpush1.bf16.msra.mxu0 %v835
      %1084 = vmatprep.subr.bf16.mxu0 0
      %1085 = vmatpush1.bf16.msra.mxu0 %v836
      %1086 = vmatprep.subr.bf16.mxu0 0
      %1087 = vmatpush1.bf16.msra.mxu0 %v837
      %1088 = vmatprep.subr.bf16.mxu0 0
      %1089 = vmatpush1.bf16.msra.mxu0 %v838
      %1090 = vmatprep.subr.bf16.mxu0 0
      %1091 = vmatpush1.bf16.msra.mxu0 %v839
      %1092 = vmatprep.subr.bf16.mxu0 0
      %1093 = vmatpush1.bf16.msra.mxu0 %v840
      %1094 = vmatprep.subr.bf16.mxu0 0
      %1095 = vmatpush1.bf16.msra.mxu0 %v841
      %1096 = vmatprep.subr.bf16.mxu0 0
      %1097 = vmatpush1.bf16.msra.mxu0 %v842
      %1098 = vmatprep.subr.bf16.mxu0 0
      %1099 = vmatpush1.bf16.msra.mxu0 %v843
      %1100 = vmatprep.subr.bf16.mxu0 0
      %1101 = vmatpush1.bf16.msra.mxu0 %v844
      %1102 = vmatprep.subr.bf16.mxu0 0
      %1103 = vmatpush1.bf16.msra.mxu0 %v845
      %1104 = vmatprep.subr.bf16.mxu0 0
      %1105 = vmatpush1.bf16.msra.mxu0 %v846
      %1106 = vmatprep.mubr.bf16.mxu0 %v340
      %1107 = vmatmul.mubr.bf16.gmra.mrb[0].mxu0 %v339
      %v1108 = vpop.f32.mrb[0].mxu0
      %v1109 = vadd.f32 %v1060, %v1108
      %v1110 = vpop.f32.mrb[0].mxu0
      %v1111 = vpop.f32.mrb[0].mxu0
      %v1112 = vadd.f32 %v1063, %v1111
      %v1113 = vpop.f32.mrb[0].mxu0
      %1114 = vmatprep.mubr.bf16.mxu0 %v349
      %1115 = vmatmul.mubr.bf16.gmra.mrb[0].mxu0 %v348
      %v1116 = vpop.f32.mrb[0].mxu0
      %v1117 = vadd.f32 %v1068, %v1116
      %v1118 = vpop.f32.mrb[0].mxu0
      %v1119 = vpop.f32.mrb[0].mxu0
      %v1120 = vadd.f32 %v1071, %v1119
      %v1121 = vpop.f32.mrb[0].mxu0
      %1122 = vdwg.mxu0
      %1123 = vmatprep.subr.bf16.mxu0 0
      %1124 = vmatpush1.bf16.msra.mxu0 %v847
      %1125 = vmatprep.subr.bf16.mxu0 0
      %1126 = vmatpush1.bf16.msra.mxu0 %v848
      %1127 = vmatprep.subr.bf16.mxu0 0
      %1128 = vmatpush1.bf16.msra.mxu0 %v849
      %1129 = vmatprep.subr.bf16.mxu0 0
      %1130 = vmatpush1.bf16.msra.mxu0 %v850
      %1131 = vmatprep.subr.bf16.mxu0 0
      %1132 = vmatpush1.bf16.msra.mxu0 %v851
      %1133 = vmatprep.subr.bf16.mxu0 0
      %1134 = vmatpush1.bf16.msra.mxu0 %v852
      %1135 = vmatprep.subr.bf16.mxu0 0
      %1136 = vmatpush1.bf16.msra.mxu0 %v853
      %1137 = vmatprep.subr.bf16.mxu0 0
      %1138 = vmatpush1.bf16.msra.mxu0 %v854
      %1139 = vmatprep.subr.bf16.mxu0 0
      %1140 = vmatpush1.bf16.msra.mxu0 0
      %1141 = vmatprep.subr.bf16.mxu0 0
      %1142 = vmatpush1.bf16.msra.mxu0 0
      %1143 = vmatprep.subr.bf16.mxu0 0
      %1144 = vmatpush1.bf16.msra.mxu0 0
      %1145 = vmatprep.subr.bf16.mxu0 0
      %1146 = vmatpush1.bf16.msra.mxu0 0
      %1147 = vmatprep.subr.bf16.mxu0 0
      %1148 = vmatpush1.bf16.msra.mxu0 0
      %1149 = vmatprep.subr.bf16.mxu0 0
      %1150 = vmatpush1.bf16.msra.mxu0 0
      %1151 = vmatprep.subr.bf16.mxu0 0
      %1152 = vmatpush1.bf16.msra.mxu0 0
      %1153 = vmatprep.subr.bf16.mxu0 0
      %1154 = vmatpush1.bf16.msra.mxu0 0
      %1155 = vmatprep.mubr.bf16.mxu0 0
      %1156 = vmatmul.mubr.bf16.gmra.mrb[0].mxu0 %v341
      %v1157 = vpop.f32.mrb[0].mxu0
      %v1158 = vadd.f32 %v1109, %v1157
      %v1159 = vpop.f32.mrb[0].mxu0
      %v1160 = vpop.f32.mrb[0].mxu0
      %v1161 = vadd.f32 %v1112, %v1160
      %v1162 = vpop.f32.mrb[0].mxu0
      %1163 = vmatprep.mubr.bf16.mxu0 0
      %1164 = vmatmul.mubr.bf16.gmra.mrb[0].mxu0 %v350
      %v1165 = vpop.f32.mrb[0].mxu0
      %v1166 = vadd.f32 %v1117, %v1165
      %v1167 = vpop.f32.mrb[0].mxu0
      %v1168 = vpop.f32.mrb[0].mxu0
      %v1169 = vadd.f32 %v1120, %v1168
      %v1170 = vpop.f32.mrb[0].mxu0
      %1171 = vdwg.mxu0
      %v1172 = vmax.f32 %v1158, 0.0
      %v1173 = vmax.f32 %v1161, 0.0
      %v1174 = vmax.f32 %v1166, 0.0
      %v1175 = vmax.f32 %v1169, 0.0
      %v1176 = vadd.f32 %v202, %v1172
      %v1177 = vadd.f32 %v203, %v1173
      %v1178 = vadd.f32 %v204, %v1174
      %v1179 = vadd.f32 %v205, %v1175
      %s1180 = smul.u32 %s191, 32
      %s1181 = scalar_lea.vmem [#allocation2], %s1180
      %1182 = vst [vmem:[%s1181] sm:$0xff] %v1176
      %1183 = vst [vmem:[%s1181 + $0x8] sm:$0xff] %v1177
      %1184 = vst [vmem:[%s1181 + $0x10] sm:$0xff] %v1178
      %1185 = vst [vmem:[%s1181 + $0x18] sm:$0xff] %v1179
    $region62: #{spatial_conv_forward.1} parent=1 // loop_footer
      %s195 = sadd.s32 1, %s191
    $region63: #{spatial_conv_forward.1} parent=1 // loop_footer_branch
      %190 = sbr.rel target = $region59
    $region64: #{spatial_conv_forward.1} parent=1 // loop_exit
      _
    loop: start=0, step=1, limit=14
    $region65: #{spatial_conv_forward.1} parent=1 // loop_pre_header
      _
    $region66: #{spatial_conv_forward.1} parent=1 // loop_header
      %s1187 = sphi 0, %s1191
      %p1188 = scmp.ge.s32.totalorder %s1187, 14
      %v1192 = vphi %v196, %v2173
      %v1193 = vphi %v197, %v2174
      %v1194 = vphi %v198, %v2175
      %v1195 = vphi %v199, %v2176
    $region67: #{spatial_conv_forward.1} parent=1 // loop_header_branch
      %1190 = sbr.rel (%p1188) target = $region71
    $region68: #{spatial_conv_forward.1} parent=1 // loop_body
      %s1196 = ssub.s32 14, %s1187
      %s1197 = smul.u32 %s1196, 32
      %s1198 = scalar_lea.vmem [#allocation2], %s1197
      %v1199 = vld [vmem:[%s1198] sm:$0xff]
      %v1200 = vld [vmem:[%s1198 + $0x8] sm:$0xff]
      %v1201 = vld [vmem:[%s1198 + $0x10] sm:$0xff]
      %v1202 = vld [vmem:[%s1198 + $0x18] sm:$0xff]
      %v1203 = vrot.slane %v1192, 4
      %v1204 = vrot.slane %v1193, 4
      %v1205 = vrot.slane %v1194, 4
      %v1206 = vrot.slane %v1195, 4
      %vm1207 = vcmp.lt.s32.totalorder %v102, 4
      %v1208 = vsel %vm1207, %v1205, %v1206
      %v1209 = vsel %vm1207, %v1204, %v1205
      %v1210 = vsel %vm1207, %v1203, %v1204
      %v1211 = vsel %vm1207, %v1206, %v1203
      %vm1212 = vcmp.ge.s32.totalorder %v150, 4
      %vm1213 = vcmp.ge.s32.totalorder %v151, 4
      %vm1214 = vcmp.ge.s32.totalorder %v152, 4
      %vm1215 = vcmp.ge.s32.totalorder %v153, 4
      %v1216 = vsel %vm1212, %v1211, 0.0
      %v1217 = vsel %vm1213, %v1210, 0.0
      %v1218 = vsel %vm1214, %v1209, 0.0
      %v1219 = vsel %vm1215, %v1208, 0.0
      %v1220 = vrot.slane %v1192, 5
      %v1221 = vrot.slane %v1193, 5
      %v1222 = vrot.slane %v1194, 5
      %v1223 = vrot.slane %v1195, 5
      %vm1224 = vcmp.lt.s32.totalorder %v102, 3
      %v1225 = vsel %vm1224, %v1222, %v1223
      %v1226 = vsel %vm1224, %v1221, %v1222
      %v1227 = vsel %vm1224, %v1220, %v1221
      %v1228 = vsel %vm1224, %v1223, %v1220
      %vm1229 = vcmp.ge.s32.totalorder %v150, 3
      %vm1230 = vcmp.ge.s32.totalorder %v151, 3
      %vm1231 = vcmp.ge.s32.totalorder %v152, 3
      %vm1232 = vcmp.ge.s32.totalorder %v153, 3
      %v1233 = vsel %vm1229, %v1228, 0.0
      %v1234 = vsel %vm1230, %v1227, 0.0
      %v1235 = vsel %vm1231, %v1226, 0.0
      %v1236 = vsel %vm1232, %v1225, 0.0
      %v1237 = vrot.slane %v1192, 6
      %v1238 = vrot.slane %v1193, 6
      %v1239 = vrot.slane %v1194, 6
      %v1240 = vrot.slane %v1195, 6
      %vm1241 = vcmp.lt.s32.totalorder %v102, 2
      %v1242 = vsel %vm1241, %v1239, %v1240
      %v1243 = vsel %vm1241, %v1238, %v1239
      %v1244 = vsel %vm1241, %v1237, %v1238
      %v1245 = vsel %vm1241, %v1240, %v1237
      %vm1246 = vcmp.ge.s32.totalorder %v150, 2
      %vm1247 = vcmp.ge.s32.totalorder %v151, 2
      %vm1248 = vcmp.ge.s32.totalorder %v152, 2
      %vm1249 = vcmp.ge.s32.totalorder %v153, 2
      %v1250 = vsel %vm1246, %v1245, 0.0
      %v1251 = vsel %vm1247, %v1244, 0.0
      %v1252 = vsel %vm1248, %v1243, 0.0
      %v1253 = vsel %vm1249, %v1242, 0.0
      %v1254 = vrot.slane %v1192, 7
      %v1255 = vrot.slane %v1193, 7
      %v1256 = vrot.slane %v1194, 7
      %v1257 = vrot.slane %v1195, 7
      %vm1258 = vcmp.lt.s32.totalorder %v102, 1
      %v1259 = vsel %vm1258, %v1256, %v1257
      %v1260 = vsel %vm1258, %v1255, %v1256
      %v1261 = vsel %vm1258, %v1254, %v1255
      %v1262 = vsel %vm1258, %v1257, %v1254
      %vm1263 = vcmp.ge.s32.totalorder %v150, 1
      %vm1264 = vcmp.ge.s32.totalorder %v151, 1
      %vm1265 = vcmp.ge.s32.totalorder %v152, 1
      %vm1266 = vcmp.ge.s32.totalorder %v153, 1
      %v1267 = vsel %vm1263, %v1262, 0.0
      %v1268 = vsel %vm1264, %v1261, 0.0
      %v1269 = vsel %vm1265, %v1260, 0.0
      %v1270 = vsel %vm1266, %v1259, 0.0
      %v1271 = vrot.slane %v1192, 1
      %v1272 = vrot.slane %v1193, 1
      %v1273 = vrot.slane %v1194, 1
      %v1274 = vrot.slane %v1195, 1
      %vm1275 = vcmp.lt.s32.totalorder %v102, 7
      %v1276 = vsel %vm1275, %v1273, %v1274
      %v1277 = vsel %vm1275, %v1272, %v1273
      %v1278 = vsel %vm1275, %v1271, %v1272
      %v1279 = vsel %vm1275, %v1274, %v1271
      %vm1280 = vcmp.lt.s32.totalorder %v150, 15
      %vm1281 = vcmp.lt.s32.totalorder %v151, 15
      %vm1282 = vcmp.lt.s32.totalorder %v152, 15
      %vm1283 = vcmp.lt.s32.totalorder %v153, 15
      %v1284 = vsel %vm1280, %v1278, 0.0
      %v1285 = vsel %vm1281, %v1277, 0.0
      %v1286 = vsel %vm1282, %v1276, 0.0
      %v1287 = vsel %vm1283, %v1279, 0.0
      %v1288 = vrot.slane %v1192, 2
      %v1289 = vrot.slane %v1193, 2
      %v1290 = vrot.slane %v1194, 2
      %v1291 = vrot.slane %v1195, 2
      %vm1292 = vcmp.lt.s32.totalorder %v102, 6
      %v1293 = vsel %vm1292, %v1290, %v1291
      %v1294 = vsel %vm1292, %v1289, %v1290
      %v1295 = vsel %vm1292, %v1288, %v1289
      %v1296 = vsel %vm1292, %v1291, %v1288
      %vm1297 = vcmp.lt.s32.totalorder %v150, 14
      %vm1298 = vcmp.lt.s32.totalorder %v151, 14
      %vm1299 = vcmp.lt.s32.totalorder %v152, 14
      %vm1300 = vcmp.lt.s32.totalorder %v153, 14
      %v1301 = vsel %vm1297, %v1295, 0.0
      %v1302 = vsel %vm1298, %v1294, 0.0
      %v1303 = vsel %vm1299, %v1293, 0.0
      %v1304 = vsel %vm1300, %v1296, 0.0
      %v1305 = vrot.slane %v1192, 3
      %v1306 = vrot.slane %v1193, 3
      %v1307 = vrot.slane %v1194, 3
      %v1308 = vrot.slane %v1195, 3
      %vm1309 = vcmp.lt.s32.totalorder %v102, 5
      %v1310 = vsel %vm1309, %v1307, %v1308
      %v1311 = vsel %vm1309, %v1306, %v1307
      %v1312 = vsel %vm1309, %v1305, %v1306
      %v1313 = vsel %vm1309, %v1308, %v1305
      %vm1314 = vcmp.lt.s32.totalorder %v150, 13
      %vm1315 = vcmp.lt.s32.totalorder %v151, 13
      %vm1316 = vcmp.lt.s32.totalorder %v152, 13
      %vm1317 = vcmp.lt.s32.totalorder %v153, 13
      %v1318 = vsel %vm1314, %v1312, 0.0
      %v1319 = vsel %vm1315, %v1311, 0.0
      %v1320 = vsel %vm1316, %v1310, 0.0
      %v1321 = vsel %vm1317, %v1313, 0.0
      %vm1322 = vcmp.lt.s32.totalorder %v150, 12
      %vm1323 = vcmp.lt.s32.totalorder %v151, 12
      %vm1324 = vcmp.lt.s32.totalorder %v152, 12
      %vm1325 = vcmp.lt.s32.totalorder %v153, 12
      %v1326 = vsel %vm1322, %v1210, 0.0
      %v1327 = vsel %vm1323, %v1209, 0.0
      %v1328 = vsel %vm1324, %v1208, 0.0
      %v1329 = vsel %vm1325, %v1211, 0.0
      %v1330 = vpack.c.bf16 %v1217, %v1216
      %v1331 = vpack.c.bf16 %v1234, %v1233
      %v1332 = vpack.c.bf16 %v1251, %v1250
      %v1333 = vpack.c.bf16 %v1268, %v1267
      %v1334 = vpack.c.bf16 %v1193, %v1192
      %v1335 = vpack.c.bf16 %v1285, %v1284
      %v1336 = vpack.c.bf16 %v1302, %v1301
      %v1337 = vpack.c.bf16 %v1319, %v1318
      %v1338 = vpack.c.bf16 %v1327, %v1326
      %v1339 = vpack.c.bf16 %v1219, %v1218
      %v1340 = vpack.c.bf16 %v1236, %v1235
      %v1341 = vpack.c.bf16 %v1253, %v1252
      %v1342 = vpack.c.bf16 %v1270, %v1269
      %v1343 = vpack.c.bf16 %v1195, %v1194
      %v1344 = vpack.c.bf16 %v1287, %v1286
      %v1345 = vpack.c.bf16 %v1304, %v1303
      %v1346 = vpack.c.bf16 %v1321, %v1320
      %v1347 = vpack.c.bf16 %v1329, %v1328
      %v1348 = vld [vmem:[#allocation7] sm:$0xf]
      %v1349 = vld [vmem:[#allocation7 + $0x4] sm:$0xf]
      %v1350 = vld [vmem:[#allocation7 + $0x8] sm:$0xf]
      %v1351 = vld [vmem:[#allocation7 + $0xc] sm:$0xf]
      %v1352 = vld [vmem:[#allocation7 + $0x10] sm:$0xf]
      %v1353 = vld [vmem:[#allocation7 + $0x14] sm:$0xf]
      %v1354 = vld [vmem:[#allocation7 + $0x18] sm:$0xf]
      %v1355 = vld [vmem:[#allocation7 + $0x1c] sm:$0xf]
      %v1356 = vld [vmem:[#allocation7 + $0x20] sm:$0xf]
      %v1357 = vld [vmem:[#allocation7 + $0x24] sm:$0xf]
      %v1358 = vld [vmem:[#allocation7 + $0x28] sm:$0xf]
      %v1359 = vld [vmem:[#allocation7 + $0x2c] sm:$0xf]
      %v1360 = vld [vmem:[#allocation7 + $0x30] sm:$0xf]
      %v1361 = vld [vmem:[#allocation7 + $0x34] sm:$0xf]
      %v1362 = vld [vmem:[#allocation7 + $0x38] sm:$0xf]
      %v1363 = vld [vmem:[#allocation7 + $0x3c] sm:$0xf]
      %v1364 = vld [vmem:[#allocation7 + $0x40] sm:$0xf]
      %v1365 = vld [vmem:[#allocation7 + $0x44] sm:$0xf]
      %v1366 = vld [vmem:[#allocation7 + $0x48] sm:$0xf]
      %v1367 = vld [vmem:[#allocation7 + $0x4c] sm:$0xf]
      %v1368 = vld [vmem:[#allocation7 + $0x50] sm:$0xf]
      %v1369 = vld [vmem:[#allocation7 + $0x54] sm:$0xf]
      %v1370 = vld [vmem:[#allocation7 + $0x58] sm:$0xf]
      %v1371 = vld [vmem:[#allocation7 + $0x5c] sm:$0xf]
      %v1372 = vld [vmem:[#allocation7 + $0x60] sm:$0xf]
      %v1373 = vld [vmem:[#allocation7 + $0x64] sm:$0xf]
      %v1374 = vld [vmem:[#allocation7 + $0x68] sm:$0xf]
      %v1375 = vld [vmem:[#allocation7 + $0x6c] sm:$0xf]
      %v1376 = vld [vmem:[#allocation7 + $0x70] sm:$0xf]
      %v1377 = vld [vmem:[#allocation7 + $0x74] sm:$0xf]
      %v1378 = vld [vmem:[#allocation7 + $0x78] sm:$0xf]
      %v1379 = vld [vmem:[#allocation7 + $0x7c] sm:$0xf]
      %v1380 = vld [vmem:[#allocation7 + $0x80] sm:$0xf]
      %v1381 = vld [vmem:[#allocation7 + $0x84] sm:$0xf]
      %v1382 = vld [vmem:[#allocation7 + $0x88] sm:$0xf]
      %v1383 = vld [vmem:[#allocation7 + $0x8c] sm:$0xf]
      %v1384 = vld [vmem:[#allocation7 + $0x90] sm:$0xf]
      %v1385 = vld [vmem:[#allocation7 + $0x94] sm:$0xf]
      %v1386 = vld [vmem:[#allocation7 + $0x98] sm:$0xf]
      %v1387 = vld [vmem:[#allocation7 + $0x9c] sm:$0xf]
      %v1388 = vld [vmem:[#allocation7 + $0xa0] sm:$0xf]
      %v1389 = vld [vmem:[#allocation7 + $0xa4] sm:$0xf]
      %v1390 = vld [vmem:[#allocation7 + $0xa8] sm:$0xf]
      %v1391 = vld [vmem:[#allocation7 + $0xac] sm:$0xf]
      %v1392 = vld [vmem:[#allocation7 + $0xb0] sm:$0xf]
      %v1393 = vld [vmem:[#allocation7 + $0xb4] sm:$0xf]
      %v1394 = vld [vmem:[#allocation7 + $0xb8] sm:$0xf]
      %v1395 = vld [vmem:[#allocation7 + $0xbc] sm:$0xf]
      %v1396 = vld [vmem:[#allocation7 + $0xc0] sm:$0xf]
      %v1397 = vld [vmem:[#allocation7 + $0xc4] sm:$0xf]
      %v1398 = vld [vmem:[#allocation7 + $0xc8] sm:$0xf]
      %v1399 = vld [vmem:[#allocation7 + $0xcc] sm:$0xf]
      %v1400 = vld [vmem:[#allocation7 + $0xd0] sm:$0xf]
      %v1401 = vld [vmem:[#allocation7 + $0xd4] sm:$0xf]
      %v1402 = vld [vmem:[#allocation7 + $0xd8] sm:$0xf]
      %v1403 = vld [vmem:[#allocation7 + $0xdc] sm:$0xf]
      %v1404 = vld [vmem:[#allocation7 + $0xe0] sm:$0xf]
      %v1405 = vld [vmem:[#allocation7 + $0xe4] sm:$0xf]
      %v1406 = vld [vmem:[#allocation7 + $0xe8] sm:$0xf]
      %v1407 = vld [vmem:[#allocation7 + $0xec] sm:$0xf]
      %v1408 = vld [vmem:[#allocation7 + $0xf0] sm:$0xf]
      %v1409 = vld [vmem:[#allocation7 + $0xf4] sm:$0xf]
      %v1410 = vld [vmem:[#allocation7 + $0xf8] sm:$0xf]
      %v1411 = vld [vmem:[#allocation7 + $0xfc] sm:$0xf]
      %v1412 = vld [vmem:[#allocation7 + $0x100] sm:$0xf]
      %v1413 = vld [vmem:[#allocation7 + $0x104] sm:$0xf]
      %v1414 = vld [vmem:[#allocation7 + $0x108] sm:$0xf]
      %v1415 = vld [vmem:[#allocation7 + $0x10c] sm:$0xf]
      %v1416 = vld [vmem:[#allocation7 + $0x110] sm:$0xf]
      %v1417 = vld [vmem:[#allocation7 + $0x114] sm:$0xf]
      %v1418 = vld [vmem:[#allocation7 + $0x118] sm:$0xf]
      %v1419 = vld [vmem:[#allocation7 + $0x11c] sm:$0xf]
      %v1420 = vld [vmem:[#allocation7 + $0x120] sm:$0xf]
      %v1421 = vld [vmem:[#allocation7 + $0x124] sm:$0xf]
      %v1422 = vld [vmem:[#allocation7 + $0x128] sm:$0xf]
      %v1423 = vld [vmem:[#allocation7 + $0x12c] sm:$0xf]
      %v1424 = vld [vmem:[#allocation7 + $0x130] sm:$0xf]
      %v1425 = vld [vmem:[#allocation7 + $0x134] sm:$0xf]
      %v1426 = vld [vmem:[#allocation7 + $0x138] sm:$0xf]
      %v1427 = vld [vmem:[#allocation7 + $0x13c] sm:$0xf]
      %v1428 = vld [vmem:[#allocation7 + $0x140] sm:$0xf]
      %v1429 = vld [vmem:[#allocation7 + $0x144] sm:$0xf]
      %v1430 = vld [vmem:[#allocation7 + $0x148] sm:$0xf]
      %v1431 = vld [vmem:[#allocation7 + $0x14c] sm:$0xf]
      %v1432 = vld [vmem:[#allocation7 + $0x150] sm:$0xf]
      %v1433 = vld [vmem:[#allocation7 + $0x154] sm:$0xf]
      %v1434 = vld [vmem:[#allocation7 + $0x158] sm:$0xf]
      %v1435 = vld [vmem:[#allocation7 + $0x15c] sm:$0xf]
      %v1436 = vld [vmem:[#allocation7 + $0x160] sm:$0xf]
      %v1437 = vld [vmem:[#allocation7 + $0x164] sm:$0xf]
      %v1438 = vld [vmem:[#allocation7 + $0x168] sm:$0xf]
      %v1439 = vld [vmem:[#allocation7 + $0x16c] sm:$0xf]
      %v1440 = vld [vmem:[#allocation7 + $0x170] sm:$0xf]
      %v1441 = vld [vmem:[#allocation7 + $0x174] sm:$0xf]
      %v1442 = vld [vmem:[#allocation7 + $0x178] sm:$0xf]
      %v1443 = vld [vmem:[#allocation7 + $0x17c] sm:$0xf]
      %v1444 = vld [vmem:[#allocation7 + $0x180] sm:$0xf]
      %v1445 = vld [vmem:[#allocation7 + $0x184] sm:$0xf]
      %v1446 = vld [vmem:[#allocation7 + $0x188] sm:$0xf]
      %v1447 = vld [vmem:[#allocation7 + $0x18c] sm:$0xf]
      %v1448 = vld [vmem:[#allocation7 + $0x190] sm:$0xf]
      %v1449 = vld [vmem:[#allocation7 + $0x194] sm:$0xf]
      %v1450 = vld [vmem:[#allocation7 + $0x198] sm:$0xf]
      %v1451 = vld [vmem:[#allocation7 + $0x19c] sm:$0xf]
      %v1452 = vld [vmem:[#allocation7 + $0x1a0] sm:$0xf]
      %v1453 = vld [vmem:[#allocation7 + $0x1a4] sm:$0xf]
      %v1454 = vld [vmem:[#allocation7 + $0x1a8] sm:$0xf]
      %v1455 = vld [vmem:[#allocation7 + $0x1ac] sm:$0xf]
      %v1456 = vld [vmem:[#allocation7 + $0x1b0] sm:$0xf]
      %v1457 = vld [vmem:[#allocation7 + $0x1b4] sm:$0xf]
      %v1458 = vld [vmem:[#allocation7 + $0x1b8] sm:$0xf]
      %v1459 = vld [vmem:[#allocation7 + $0x1bc] sm:$0xf]
      %v1460 = vld [vmem:[#allocation7 + $0x1c0] sm:$0xf]
      %v1461 = vld [vmem:[#allocation7 + $0x1c4] sm:$0xf]
      %v1462 = vld [vmem:[#allocation7 + $0x1c8] sm:$0xf]
      %v1463 = vld [vmem:[#allocation7 + $0x1cc] sm:$0xf]
      %v1464 = vld [vmem:[#allocation7 + $0x1d0] sm:$0xf]
      %v1465 = vld [vmem:[#allocation7 + $0x1d4] sm:$0xf]
      %v1466 = vld [vmem:[#allocation7 + $0x1d8] sm:$0xf]
      %v1467 = vld [vmem:[#allocation7 + $0x1dc] sm:$0xf]
      %v1468 = vld [vmem:[#allocation7 + $0x1e0] sm:$0xf]
      %v1469 = vld [vmem:[#allocation7 + $0x1e4] sm:$0xf]
      %v1470 = vld [vmem:[#allocation7 + $0x1e8] sm:$0xf]
      %v1471 = vld [vmem:[#allocation7 + $0x1ec] sm:$0xf]
      %v1472 = vld [vmem:[#allocation7 + $0x1f0] sm:$0xf]
      %v1473 = vld [vmem:[#allocation7 + $0x1f4] sm:$0xf]
      %v1474 = vld [vmem:[#allocation7 + $0x1f8] sm:$0xf]
      %v1475 = vld [vmem:[#allocation7 + $0x1fc] sm:$0xf]
      %v1476 = vld [vmem:[#allocation7 + $0x200] sm:$0xf]
      %v1477 = vld [vmem:[#allocation7 + $0x204] sm:$0xf]
      %v1478 = vld [vmem:[#allocation7 + $0x208] sm:$0xf]
      %v1479 = vld [vmem:[#allocation7 + $0x20c] sm:$0xf]
      %v1480 = vld [vmem:[#allocation7 + $0x210] sm:$0xf]
      %v1481 = vld [vmem:[#allocation7 + $0x214] sm:$0xf]
      %v1482 = vld [vmem:[#allocation7 + $0x218] sm:$0xf]
      %v1483 = vld [vmem:[#allocation7 + $0x21c] sm:$0xf]
      %v1484 = vld [vmem:[#allocation7 + $0x220] sm:$0xf]
      %v1485 = vld [vmem:[#allocation7 + $0x224] sm:$0xf]
      %v1486 = vld [vmem:[#allocation7 + $0x228] sm:$0xf]
      %v1487 = vld [vmem:[#allocation7 + $0x22c] sm:$0xf]
      %v1488 = vld [vmem:[#allocation7 + $0x230] sm:$0xf]
      %v1489 = vld [vmem:[#allocation7 + $0x234] sm:$0xf]
      %v1490 = vld [vmem:[#allocation7 + $0x238] sm:$0xf]
      %v1491 = vld [vmem:[#allocation7 + $0x23c] sm:$0xf]
      %v1636 = vunpack.c.l.b16 %v1348
      %v1637 = vunpack.c.l.b16 %v1349
      %v1638 = vunpack.c.l.b16 %v1350
      %v1639 = vunpack.c.l.b16 %v1351
      %v1640 = vunpack.c.l.b16 %v1352
      %v1641 = vunpack.c.l.b16 %v1353
      %v1642 = vunpack.c.l.b16 %v1354
      %v1643 = vunpack.c.l.b16 %v1355
      %v1644 = vunpack.c.l.b16 %v1356
      %v1645 = vunpack.c.l.b16 %v1357
      %v1646 = vunpack.c.l.b16 %v1358
      %v1647 = vunpack.c.l.b16 %v1359
      %v1648 = vunpack.c.l.b16 %v1360
      %v1649 = vunpack.c.l.b16 %v1361
      %v1650 = vunpack.c.l.b16 %v1362
      %v1651 = vunpack.c.l.b16 %v1363
      %v1652 = vunpack.c.l.b16 %v1364
      %v1653 = vunpack.c.l.b16 %v1365
      %v1654 = vunpack.c.l.b16 %v1366
      %v1655 = vunpack.c.l.b16 %v1367
      %v1656 = vunpack.c.l.b16 %v1368
      %v1657 = vunpack.c.l.b16 %v1369
      %v1658 = vunpack.c.l.b16 %v1370
      %v1659 = vunpack.c.l.b16 %v1371
      %v1660 = vunpack.c.l.b16 %v1372
      %v1661 = vunpack.c.l.b16 %v1373
      %v1662 = vunpack.c.l.b16 %v1374
      %v1663 = vunpack.c.l.b16 %v1375
      %v1664 = vunpack.c.l.b16 %v1376
      %v1665 = vunpack.c.l.b16 %v1377
      %v1666 = vunpack.c.l.b16 %v1378
      %v1667 = vunpack.c.l.b16 %v1379
      %v1668 = vunpack.c.l.b16 %v1380
      %v1669 = vunpack.c.l.b16 %v1381
      %v1670 = vunpack.c.l.b16 %v1382
      %v1671 = vunpack.c.l.b16 %v1383
      %v1672 = vunpack.c.l.b16 %v1384
      %v1673 = vunpack.c.l.b16 %v1385
      %v1674 = vunpack.c.l.b16 %v1386
      %v1675 = vunpack.c.l.b16 %v1387
      %v1676 = vunpack.c.l.b16 %v1388
      %v1677 = vunpack.c.l.b16 %v1389
      %v1678 = vunpack.c.l.b16 %v1390
      %v1679 = vunpack.c.l.b16 %v1391
      %v1680 = vunpack.c.l.b16 %v1392
      %v1681 = vunpack.c.l.b16 %v1393
      %v1682 = vunpack.c.l.b16 %v1394
      %v1683 = vunpack.c.l.b16 %v1395
      %v1684 = vunpack.c.l.b16 %v1396
      %v1685 = vunpack.c.l.b16 %v1397
      %v1686 = vunpack.c.l.b16 %v1398
      %v1687 = vunpack.c.l.b16 %v1399
      %v1688 = vunpack.c.l.b16 %v1400
      %v1689 = vunpack.c.l.b16 %v1401
      %v1690 = vunpack.c.l.b16 %v1402
      %v1691 = vunpack.c.l.b16 %v1403
      %v1692 = vunpack.c.l.b16 %v1404
      %v1693 = vunpack.c.l.b16 %v1405
      %v1694 = vunpack.c.l.b16 %v1406
      %v1695 = vunpack.c.l.b16 %v1407
      %v1696 = vunpack.c.l.b16 %v1408
      %v1697 = vunpack.c.l.b16 %v1409
      %v1698 = vunpack.c.l.b16 %v1410
      %v1699 = vunpack.c.l.b16 %v1411
      %v1700 = vunpack.c.l.b16 %v1412
      %v1701 = vunpack.c.l.b16 %v1413
      %v1702 = vunpack.c.l.b16 %v1414
      %v1703 = vunpack.c.l.b16 %v1415
      %v1704 = vunpack.c.l.b16 %v1416
      %v1705 = vunpack.c.l.b16 %v1417
      %v1706 = vunpack.c.l.b16 %v1418
      %v1707 = vunpack.c.l.b16 %v1419
      %v1708 = vunpack.c.l.b16 %v1420
      %v1709 = vunpack.c.l.b16 %v1421
      %v1710 = vunpack.c.l.b16 %v1422
      %v1711 = vunpack.c.l.b16 %v1423
      %v1712 = vunpack.c.l.b16 %v1424
      %v1713 = vunpack.c.l.b16 %v1425
      %v1714 = vunpack.c.l.b16 %v1426
      %v1715 = vunpack.c.l.b16 %v1427
      %v1716 = vunpack.c.l.b16 %v1428
      %v1717 = vunpack.c.l.b16 %v1429
      %v1718 = vunpack.c.l.b16 %v1430
      %v1719 = vunpack.c.l.b16 %v1431
      %v1720 = vunpack.c.l.b16 %v1432
      %v1721 = vunpack.c.l.b16 %v1433
      %v1722 = vunpack.c.l.b16 %v1434
      %v1723 = vunpack.c.l.b16 %v1435
      %v1724 = vunpack.c.l.b16 %v1436
      %v1725 = vunpack.c.l.b16 %v1437
      %v1726 = vunpack.c.l.b16 %v1438
      %v1727 = vunpack.c.l.b16 %v1439
      %v1728 = vunpack.c.l.b16 %v1440
      %v1729 = vunpack.c.l.b16 %v1441
      %v1730 = vunpack.c.l.b16 %v1442
      %v1731 = vunpack.c.l.b16 %v1443
      %v1732 = vunpack.c.l.b16 %v1444
      %v1733 = vunpack.c.l.b16 %v1445
      %v1734 = vunpack.c.l.b16 %v1446
      %v1735 = vunpack.c.l.b16 %v1447
      %v1736 = vunpack.c.l.b16 %v1448
      %v1737 = vunpack.c.l.b16 %v1449
      %v1738 = vunpack.c.l.b16 %v1450
      %v1739 = vunpack.c.l.b16 %v1451
      %v1740 = vunpack.c.l.b16 %v1452
      %v1741 = vunpack.c.l.b16 %v1453
      %v1742 = vunpack.c.l.b16 %v1454
      %v1743 = vunpack.c.l.b16 %v1455
      %v1744 = vunpack.c.l.b16 %v1456
      %v1745 = vunpack.c.l.b16 %v1457
      %v1746 = vunpack.c.l.b16 %v1458
      %v1747 = vunpack.c.l.b16 %v1459
      %v1748 = vunpack.c.l.b16 %v1460
      %v1749 = vunpack.c.l.b16 %v1461
      %v1750 = vunpack.c.l.b16 %v1462
      %v1751 = vunpack.c.l.b16 %v1463
      %v1752 = vunpack.c.l.b16 %v1464
      %v1753 = vunpack.c.l.b16 %v1465
      %v1754 = vunpack.c.l.b16 %v1466
      %v1755 = vunpack.c.l.b16 %v1467
      %v1756 = vunpack.c.l.b16 %v1468
      %v1757 = vunpack.c.l.b16 %v1469
      %v1758 = vunpack.c.l.b16 %v1470
      %v1759 = vunpack.c.l.b16 %v1471
      %v1760 = vunpack.c.l.b16 %v1472
      %v1761 = vunpack.c.l.b16 %v1473
      %v1762 = vunpack.c.l.b16 %v1474
      %v1763 = vunpack.c.l.b16 %v1475
      %v1764 = vunpack.c.l.b16 %v1476
      %v1765 = vunpack.c.l.b16 %v1477
      %v1766 = vunpack.c.l.b16 %v1478
      %v1767 = vunpack.c.l.b16 %v1479
      %v1768 = vunpack.c.l.b16 %v1480
      %v1769 = vunpack.c.l.b16 %v1481
      %v1770 = vunpack.c.l.b16 %v1482
      %v1771 = vunpack.c.l.b16 %v1483
      %v1772 = vunpack.c.l.b16 %v1484
      %v1773 = vunpack.c.l.b16 %v1485
      %v1774 = vunpack.c.l.b16 %v1486
      %v1775 = vunpack.c.l.b16 %v1487
      %v1776 = vunpack.c.l.b16 %v1488
      %v1777 = vunpack.c.l.b16 %v1489
      %v1778 = vunpack.c.l.b16 %v1490
      %v1779 = vunpack.c.l.b16 %v1491
      %v1780 = vpack.c.b16 %v1637, %v1636
      %v1781 = vpack.c.b16 %v1639, %v1638
      %v1782 = vpack.c.b16 %v1641, %v1640
      %v1783 = vpack.c.b16 %v1643, %v1642
      %v1784 = vpack.c.b16 %v1645, %v1644
      %v1785 = vpack.c.b16 %v1647, %v1646
      %v1786 = vpack.c.b16 %v1649, %v1648
      %v1787 = vpack.c.b16 %v1651, %v1650
      %v1788 = vpack.c.b16 %v1653, %v1652
      %v1789 = vpack.c.b16 %v1655, %v1654
      %v1790 = vpack.c.b16 %v1657, %v1656
      %v1791 = vpack.c.b16 %v1659, %v1658
      %v1792 = vpack.c.b16 %v1661, %v1660
      %v1793 = vpack.c.b16 %v1663, %v1662
      %v1794 = vpack.c.b16 %v1665, %v1664
      %v1795 = vpack.c.b16 %v1667, %v1666
      %v1796 = vpack.c.b16 %v1669, %v1668
      %v1797 = vpack.c.b16 %v1671, %v1670
      %v1798 = vpack.c.b16 %v1673, %v1672
      %v1799 = vpack.c.b16 %v1675, %v1674
      %v1800 = vpack.c.b16 %v1677, %v1676
      %v1801 = vpack.c.b16 %v1679, %v1678
      %v1802 = vpack.c.b16 %v1681, %v1680
      %v1803 = vpack.c.b16 %v1683, %v1682
      %v1804 = vpack.c.b16 %v1685, %v1684
      %v1805 = vpack.c.b16 %v1687, %v1686
      %v1806 = vpack.c.b16 %v1689, %v1688
      %v1807 = vpack.c.b16 %v1691, %v1690
      %v1808 = vpack.c.b16 %v1693, %v1692
      %v1809 = vpack.c.b16 %v1695, %v1694
      %v1810 = vpack.c.b16 %v1697, %v1696
      %v1811 = vpack.c.b16 %v1699, %v1698
      %v1812 = vpack.c.b16 %v1701, %v1700
      %v1813 = vpack.c.b16 %v1703, %v1702
      %v1814 = vpack.c.b16 %v1705, %v1704
      %v1815 = vpack.c.b16 %v1707, %v1706
      %v1816 = vpack.c.b16 %v1709, %v1708
      %v1817 = vpack.c.b16 %v1711, %v1710
      %v1818 = vpack.c.b16 %v1713, %v1712
      %v1819 = vpack.c.b16 %v1715, %v1714
      %v1820 = vpack.c.b16 %v1717, %v1716
      %v1821 = vpack.c.b16 %v1719, %v1718
      %v1822 = vpack.c.b16 %v1721, %v1720
      %v1823 = vpack.c.b16 %v1723, %v1722
      %v1824 = vpack.c.b16 %v1725, %v1724
      %v1825 = vpack.c.b16 %v1727, %v1726
      %v1826 = vpack.c.b16 %v1729, %v1728
      %v1827 = vpack.c.b16 %v1731, %v1730
      %v1828 = vpack.c.b16 %v1733, %v1732
      %v1829 = vpack.c.b16 %v1735, %v1734
      %v1830 = vpack.c.b16 %v1737, %v1736
      %v1831 = vpack.c.b16 %v1739, %v1738
      %v1832 = vpack.c.b16 %v1741, %v1740
      %v1833 = vpack.c.b16 %v1743, %v1742
      %v1834 = vpack.c.b16 %v1745, %v1744
      %v1835 = vpack.c.b16 %v1747, %v1746
      %v1836 = vpack.c.b16 %v1749, %v1748
      %v1837 = vpack.c.b16 %v1751, %v1750
      %v1838 = vpack.c.b16 %v1753, %v1752
      %v1839 = vpack.c.b16 %v1755, %v1754
      %v1840 = vpack.c.b16 %v1757, %v1756
      %v1841 = vpack.c.b16 %v1759, %v1758
      %v1842 = vpack.c.b16 %v1761, %v1760
      %v1843 = vpack.c.b16 %v1763, %v1762
      %v1844 = vpack.c.b16 %v1765, %v1764
      %v1845 = vpack.c.b16 %v1767, %v1766
      %v1846 = vpack.c.b16 %v1769, %v1768
      %v1847 = vpack.c.b16 %v1771, %v1770
      %v1848 = vpack.c.b16 %v1773, %v1772
      %v1849 = vpack.c.b16 %v1775, %v1774
      %v1850 = vpack.c.b16 %v1777, %v1776
      %v1851 = vpack.c.b16 %v1779, %v1778
      %1924 = vmatprep.subr.bf16.mxu0 0
      %1925 = vmatpush1.bf16.msra.mxu0 %v1780
      %1926 = vmatprep.subr.bf16.mxu0 0
      %1927 = vmatpush1.bf16.msra.mxu0 %v1781
      %1928 = vmatprep.subr.bf16.mxu0 0
      %1929 = vmatpush1.bf16.msra.mxu0 %v1782
      %1930 = vmatprep.subr.bf16.mxu0 0
      %1931 = vmatpush1.bf16.msra.mxu0 %v1783
      %1932 = vmatprep.subr.bf16.mxu0 0
      %1933 = vmatpush1.bf16.msra.mxu0 %v1784
      %1934 = vmatprep.subr.bf16.mxu0 0
      %1935 = vmatpush1.bf16.msra.mxu0 %v1785
      %1936 = vmatprep.subr.bf16.mxu0 0
      %1937 = vmatpush1.bf16.msra.mxu0 %v1786
      %1938 = vmatprep.subr.bf16.mxu0 0
      %1939 = vmatpush1.bf16.msra.mxu0 %v1787
      %1940 = vmatprep.subr.bf16.mxu0 0
      %1941 = vmatpush1.bf16.msra.mxu0 %v1788
      %1942 = vmatprep.subr.bf16.mxu0 0
      %1943 = vmatpush1.bf16.msra.mxu0 %v1789
      %1944 = vmatprep.subr.bf16.mxu0 0
      %1945 = vmatpush1.bf16.msra.mxu0 %v1790
      %1946 = vmatprep.subr.bf16.mxu0 0
      %1947 = vmatpush1.bf16.msra.mxu0 %v1791
      %1948 = vmatprep.subr.bf16.mxu0 0
      %1949 = vmatpush1.bf16.msra.mxu0 %v1792
      %1950 = vmatprep.subr.bf16.mxu0 0
      %1951 = vmatpush1.bf16.msra.mxu0 %v1793
      %1952 = vmatprep.subr.bf16.mxu0 0
      %1953 = vmatpush1.bf16.msra.mxu0 %v1794
      %1954 = vmatprep.subr.bf16.mxu0 0
      %1955 = vmatpush1.bf16.msra.mxu0 %v1795
      %1956 = vmatprep.mubr.bf16.mxu0 %v1331
      %1957 = vmatmul.mubr.bf16.gmra.mrb[0].mxu0 %v1330
      %v1958 = vpop.f32.mrb[0].mxu0
      %v1959 = vadd.f32 %v166, %v1958
      %v1960 = vpop.f32.mrb[0].mxu0
      %v1961 = vpop.f32.mrb[0].mxu0
      %v1962 = vadd.f32 %v166, %v1961
      %v1963 = vpop.f32.mrb[0].mxu0
      %1964 = vmatprep.mubr.bf16.mxu0 %v1340
      %1965 = vmatmul.mubr.bf16.gmra.mrb[0].mxu0 %v1339
      %v1966 = vpop.f32.mrb[0].mxu0
      %v1967 = vadd.f32 %v166, %v1966
      %v1968 = vpop.f32.mrb[0].mxu0
      %v1969 = vpop.f32.mrb[0].mxu0
      %v1970 = vadd.f32 %v166, %v1969
      %v1971 = vpop.f32.mrb[0].mxu0
      %1972 = vdwg.mxu0
      %1973 = vmatprep.subr.bf16.mxu0 0
      %1974 = vmatpush1.bf16.msra.mxu0 %v1796
      %1975 = vmatprep.subr.bf16.mxu0 0
      %1976 = vmatpush1.bf16.msra.mxu0 %v1797
      %1977 = vmatprep.subr.bf16.mxu0 0
      %1978 = vmatpush1.bf16.msra.mxu0 %v1798
      %1979 = vmatprep.subr.bf16.mxu0 0
      %1980 = vmatpush1.bf16.msra.mxu0 %v1799
      %1981 = vmatprep.subr.bf16.mxu0 0
      %1982 = vmatpush1.bf16.msra.mxu0 %v1800
      %1983 = vmatprep.subr.bf16.mxu0 0
      %1984 = vmatpush1.bf16.msra.mxu0 %v1801
      %1985 = vmatprep.subr.bf16.mxu0 0
      %1986 = vmatpush1.bf16.msra.mxu0 %v1802
      %1987 = vmatprep.subr.bf16.mxu0 0
      %1988 = vmatpush1.bf16.msra.mxu0 %v1803
      %1989 = vmatprep.subr.bf16.mxu0 0
      %1990 = vmatpush1.bf16.msra.mxu0 %v1804
      %1991 = vmatprep.subr.bf16.mxu0 0
      %1992 = vmatpush1.bf16.msra.mxu0 %v1805
      %1993 = vmatprep.subr.bf16.mxu0 0
      %1994 = vmatpush1.bf16.msra.mxu0 %v1806
      %1995 = vmatprep.subr.bf16.mxu0 0
      %1996 = vmatpush1.bf16.msra.mxu0 %v1807
      %1997 = vmatprep.subr.bf16.mxu0 0
      %1998 = vmatpush1.bf16.msra.mxu0 %v1808
      %1999 = vmatprep.subr.bf16.mxu0 0
      %2000 = vmatpush1.bf16.msra.mxu0 %v1809
      %2001 = vmatprep.subr.bf16.mxu0 0
      %2002 = vmatpush1.bf16.msra.mxu0 %v1810
      %2003 = vmatprep.subr.bf16.mxu0 0
      %2004 = vmatpush1.bf16.msra.mxu0 %v1811
      %2005 = vmatprep.mubr.bf16.mxu0 %v1333
      %2006 = vmatmul.mubr.bf16.gmra.mrb[0].mxu0 %v1332
      %v2007 = vpop.f32.mrb[0].mxu0
      %v2008 = vadd.f32 %v1959, %v2007
      %v2009 = vpop.f32.mrb[0].mxu0
      %v2010 = vpop.f32.mrb[0].mxu0
      %v2011 = vadd.f32 %v1962, %v2010
      %v2012 = vpop.f32.mrb[0].mxu0
      %2013 = vmatprep.mubr.bf16.mxu0 %v1342
      %2014 = vmatmul.mubr.bf16.gmra.mrb[0].mxu0 %v1341
      %v2015 = vpop.f32.mrb[0].mxu0
      %v2016 = vadd.f32 %v1967, %v2015
      %v2017 = vpop.f32.mrb[0].mxu0
      %v2018 = vpop.f32.mrb[0].mxu0
      %v2019 = vadd.f32 %v1970, %v2018
      %v2020 = vpop.f32.mrb[0].mxu0
      %2021 = vdwg.mxu0
      %2022 = vmatprep.subr.bf16.mxu0 0
      %2023 = vmatpush1.bf16.msra.mxu0 %v1812
      %2024 = vmatprep.subr.bf16.mxu0 0
      %2025 = vmatpush1.bf16.msra.mxu0 %v1813
      %2026 = vmatprep.subr.bf16.mxu0 0
      %2027 = vmatpush1.bf16.msra.mxu0 %v1814
      %2028 = vmatprep.subr.bf16.mxu0 0
      %2029 = vmatpush1.bf16.msra.mxu0 %v1815
      %2030 = vmatprep.subr.bf16.mxu0 0
      %2031 = vmatpush1.bf16.msra.mxu0 %v1816
      %2032 = vmatprep.subr.bf16.mxu0 0
      %2033 = vmatpush1.bf16.msra.mxu0 %v1817
      %2034 = vmatprep.subr.bf16.mxu0 0
      %2035 = vmatpush1.bf16.msra.mxu0 %v1818
      %2036 = vmatprep.subr.bf16.mxu0 0
      %2037 = vmatpush1.bf16.msra.mxu0 %v1819
      %2038 = vmatprep.subr.bf16.mxu0 0
      %2039 = vmatpush1.bf16.msra.mxu0 %v1820
      %2040 = vmatprep.subr.bf16.mxu0 0
      %2041 = vmatpush1.bf16.msra.mxu0 %v1821
      %2042 = vmatprep.subr.bf16.mxu0 0
      %2043 = vmatpush1.bf16.msra.mxu0 %v1822
      %2044 = vmatprep.subr.bf16.mxu0 0
      %2045 = vmatpush1.bf16.msra.mxu0 %v1823
      %2046 = vmatprep.subr.bf16.mxu0 0
      %2047 = vmatpush1.bf16.msra.mxu0 %v1824
      %2048 = vmatprep.subr.bf16.mxu0 0
      %2049 = vmatpush1.bf16.msra.mxu0 %v1825
      %2050 = vmatprep.subr.bf16.mxu0 0
      %2051 = vmatpush1.bf16.msra.mxu0 %v1826
      %2052 = vmatprep.subr.bf16.mxu0 0
      %2053 = vmatpush1.bf16.msra.mxu0 %v1827
      %2054 = vmatprep.mubr.bf16.mxu0 %v1335
      %2055 = vmatmul.mubr.bf16.gmra.mrb[0].mxu0 %v1334
      %v2056 = vpop.f32.mrb[0].mxu0
      %v2057 = vadd.f32 %v2008, %v2056
      %v2058 = vpop.f32.mrb[0].mxu0
      %v2059 = vpop.f32.mrb[0].mxu0
      %v2060 = vadd.f32 %v2011, %v2059
      %v2061 = vpop.f32.mrb[0].mxu0
      %2062 = vmatprep.mubr.bf16.mxu0 %v1344
      %2063 = vmatmul.mubr.bf16.gmra.mrb[0].mxu0 %v1343
      %v2064 = vpop.f32.mrb[0].mxu0
      %v2065 = vadd.f32 %v2016, %v2064
      %v2066 = vpop.f32.mrb[0].mxu0
      %v2067 = vpop.f32.mrb[0].mxu0
      %v2068 = vadd.f32 %v2019, %v2067
      %v2069 = vpop.f32.mrb[0].mxu0
      %2070 = vdwg.mxu0
      %2071 = vmatprep.subr.bf16.mxu0 0
      %2072 = vmatpush1.bf16.msra.mxu0 %v1828
      %2073 = vmatprep.subr.bf16.mxu0 0
      %2074 = vmatpush1.bf16.msra.mxu0 %v1829
      %2075 = vmatprep.subr.bf16.mxu0 0
      %2076 = vmatpush1.bf16.msra.mxu0 %v1830
      %2077 = vmatprep.subr.bf16.mxu0 0
      %2078 = vmatpush1.bf16.msra.mxu0 %v1831
      %2079 = vmatprep.subr.bf16.mxu0 0
      %2080 = vmatpush1.bf16.msra.mxu0 %v1832
      %2081 = vmatprep.subr.bf16.mxu0 0
      %2082 = vmatpush1.bf16.msra.mxu0 %v1833
      %2083 = vmatprep.subr.bf16.mxu0 0
      %2084 = vmatpush1.bf16.msra.mxu0 %v1834
      %2085 = vmatprep.subr.bf16.mxu0 0
      %2086 = vmatpush1.bf16.msra.mxu0 %v1835
      %2087 = vmatprep.subr.bf16.mxu0 0
      %2088 = vmatpush1.bf16.msra.mxu0 %v1836
      %2089 = vmatprep.subr.bf16.mxu0 0
      %2090 = vmatpush1.bf16.msra.mxu0 %v1837
      %2091 = vmatprep.subr.bf16.mxu0 0
      %2092 = vmatpush1.bf16.msra.mxu0 %v1838
      %2093 = vmatprep.subr.bf16.mxu0 0
      %2094 = vmatpush1.bf16.msra.mxu0 %v1839
      %2095 = vmatprep.subr.bf16.mxu0 0
      %2096 = vmatpush1.bf16.msra.mxu0 %v1840
      %2097 = vmatprep.subr.bf16.mxu0 0
      %2098 = vmatpush1.bf16.msra.mxu0 %v1841
      %2099 = vmatprep.subr.bf16.mxu0 0
      %2100 = vmatpush1.bf16.msra.mxu0 %v1842
      %2101 = vmatprep.subr.bf16.mxu0 0
      %2102 = vmatpush1.bf16.msra.mxu0 %v1843
      %2103 = vmatprep.mubr.bf16.mxu0 %v1337
      %2104 = vmatmul.mubr.bf16.gmra.mrb[0].mxu0 %v1336
      %v2105 = vpop.f32.mrb[0].mxu0
      %v2106 = vadd.f32 %v2057, %v2105
      %v2107 = vpop.f32.mrb[0].mxu0
      %v2108 = vpop.f32.mrb[0].mxu0
      %v2109 = vadd.f32 %v2060, %v2108
      %v2110 = vpop.f32.mrb[0].mxu0
      %2111 = vmatprep.mubr.bf16.mxu0 %v1346
      %2112 = vmatmul.mubr.bf16.gmra.mrb[0].mxu0 %v1345
      %v2113 = vpop.f32.mrb[0].mxu0
      %v2114 = vadd.f32 %v2065, %v2113
      %v2115 = vpop.f32.mrb[0].mxu0
      %v2116 = vpop.f32.mrb[0].mxu0
      %v2117 = vadd.f32 %v2068, %v2116
      %v2118 = vpop.f32.mrb[0].mxu0
      %2119 = vdwg.mxu0
      %2120 = vmatprep.subr.bf16.mxu0 0
      %2121 = vmatpush1.bf16.msra.mxu0 %v1844
      %2122 = vmatprep.subr.bf16.mxu0 0
      %2123 = vmatpush1.bf16.msra.mxu0 %v1845
      %2124 = vmatprep.subr.bf16.mxu0 0
      %2125 = vmatpush1.bf16.msra.mxu0 %v1846
      %2126 = vmatprep.subr.bf16.mxu0 0
      %2127 = vmatpush1.bf16.msra.mxu0 %v1847
      %2128 = vmatprep.subr.bf16.mxu0 0
      %2129 = vmatpush1.bf16.msra.mxu0 %v1848
      %2130 = vmatprep.subr.bf16.mxu0 0
      %2131 = vmatpush1.bf16.msra.mxu0 %v1849
      %2132 = vmatprep.subr.bf16.mxu0 0
      %2133 = vmatpush1.bf16.msra.mxu0 %v1850
      %2134 = vmatprep.subr.bf16.mxu0 0
      %2135 = vmatpush1.bf16.msra.mxu0 %v1851
      %2136 = vmatprep.subr.bf16.mxu0 0
      %2137 = vmatpush1.bf16.msra.mxu0 0
      %2138 = vmatprep.subr.bf16.mxu0 0
      %2139 = vmatpush1.bf16.msra.mxu0 0
      %2140 = vmatprep.subr.bf16.mxu0 0
      %2141 = vmatpush1.bf16.msra.mxu0 0
      %2142 = vmatprep.subr.bf16.mxu0 0
      %2143 = vmatpush1.bf16.msra.mxu0 0
      %2144 = vmatprep.subr.bf16.mxu0 0
      %2145 = vmatpush1.bf16.msra.mxu0 0
      %2146 = vmatprep.subr.bf16.mxu0 0
      %2147 = vmatpush1.bf16.msra.mxu0 0
      %2148 = vmatprep.subr.bf16.mxu0 0
      %2149 = vmatpush1.bf16.msra.mxu0 0
      %2150 = vmatprep.subr.bf16.mxu0 0
      %2151 = vmatpush1.bf16.msra.mxu0 0
      %2152 = vmatprep.mubr.bf16.mxu0 0
      %2153 = vmatmul.mubr.bf16.gmra.mrb[0].mxu0 %v1338
      %v2154 = vpop.f32.mrb[0].mxu0
      %v2155 = vadd.f32 %v2106, %v2154
      %v2156 = vpop.f32.mrb[0].mxu0
      %v2157 = vpop.f32.mrb[0].mxu0
      %v2158 = vadd.f32 %v2109, %v2157
      %v2159 = vpop.f32.mrb[0].mxu0
      %2160 = vmatprep.mubr.bf16.mxu0 0
      %2161 = vmatmul.mubr.bf16.gmra.mrb[0].mxu0 %v1347
      %v2162 = vpop.f32.mrb[0].mxu0
      %v2163 = vadd.f32 %v2114, %v2162
      %v2164 = vpop.f32.mrb[0].mxu0
      %v2165 = vpop.f32.mrb[0].mxu0
      %v2166 = vadd.f32 %v2117, %v2165
      %v2167 = vpop.f32.mrb[0].mxu0
      %2168 = vdwg.mxu0
      %v2169 = vmax.f32 %v2155, 0.0
      %v2170 = vmax.f32 %v2158, 0.0
      %v2171 = vmax.f32 %v2163, 0.0
      %v2172 = vmax.f32 %v2166, 0.0
      %v2173 = vadd.f32 %v1199, %v2169
      %v2174 = vadd.f32 %v1200, %v2170
      %v2175 = vadd.f32 %v1201, %v2171
      %v2176 = vadd.f32 %v1202, %v2172
      %2177 = vst [vmem:[%s1198] sm:$0xff] %v2173
      %2178 = vst [vmem:[%s1198 + $0x8] sm:$0xff] %v2174
      %2179 = vst [vmem:[%s1198 + $0x10] sm:$0xff] %v2175
      %2180 = vst [vmem:[%s1198 + $0x18] sm:$0xff] %v2176
    $region69: #{spatial_conv_forward.1} parent=1 // loop_footer
      %s1191 = sadd.s32 1, %s1187
    $region70: #{spatial_conv_forward.1} parent=1 // loop_footer_branch
      %1186 = sbr.rel target = $region66
    $region71: #{spatial_conv_forward.1} parent=1 // loop_exit
      _
    %v2181 = vld [vmem:[#allocation2] sm:$0xff]
    %v2182 = vld [vmem:[#allocation2 + $0x8] sm:$0xff]
    %v2183 = vld [vmem:[#allocation2 + $0x10] sm:$0xff]
    %v2184 = vld [vmem:[#allocation2 + $0x18] sm:$0xff]
    %v2189 = vcombine.high %v2181, %v2181
    %v2191 = vunpack.c.l.s4 1966171168
    %v2192 = vunpack.c.0.s8 %v2191
    %v2193 = vlaneseq
    %v2194 = vshrl.u32 %v2193, 7
    %v2195 = vsub.s32 %v2192, %v2194
    %v2196 = vrot.slane %v2181, %v2195
    %v2198 = vunpack.c.l.s4 1966171168
    %v2199 = vunpack.c.0.s8 %v2198
    %v2200 = vlaneseq
    %v2201 = vshrl.u32 %v2200, 7
    %v2202 = vsub.s32 %v2199, %v2201
    %v2203 = vrot.slane %v2189, %v2202
    %v2204 = vcombine.high %v2196, %v2196
    %v2205 = vcombine.high %v2203, %v2203
    %v2207 = vunpack.c.l.s4 1966171168
    %v2208 = vunpack.c.0.s8 %v2207
    %v2209 = vlaneseq
    %v2210 = vshrl.u32 %v2209, 7
    %v2211 = vsub.s32 %v2208, %v2210
    %v2212 = vrot.slane %v2196, %v2211
    %v2214 = vunpack.c.l.s4 1966171168
    %v2215 = vunpack.c.0.s8 %v2214
    %v2216 = vlaneseq
    %v2217 = vshrl.u32 %v2216, 7
    %v2218 = vsub.s32 %v2215, %v2217
    %v2219 = vrot.slane %v2203, %v2218
    %v2221 = vunpack.c.l.s4 1966171168
    %v2222 = vunpack.c.0.s8 %v2221
    %v2223 = vlaneseq
    %v2224 = vshrl.u32 %v2223, 7
    %v2225 = vsub.s32 %v2222, %v2224
    %v2226 = vrot.slane %v2204, %v2225
    %v2228 = vunpack.c.l.s4 1966171168
    %v2229 = vunpack.c.0.s8 %v2228
    %v2230 = vlaneseq
    %v2231 = vshrl.u32 %v2230, 7
    %v2232 = vsub.s32 %v2229, %v2231
    %v2233 = vrot.slane %v2205, %v2232
    %v2234 = vcombine.high %v2212, %v2212
    %v2235 = vcombine.high %v2219, %v2219
    %v2236 = vcombine.high %v2226, %v2226
    %v2237 = vcombine.high %v2233, %v2233
    %v2238 = vcombine.high %v2182, %v2182
    %v2240 = vunpack.c.l.s4 1966171168
    %v2241 = vunpack.c.0.s8 %v2240
    %v2242 = vlaneseq
    %v2243 = vshrl.u32 %v2242, 7
    %v2244 = vsub.s32 %v2241, %v2243
    %v2245 = vrot.slane %v2182, %v2244
    %v2247 = vunpack.c.l.s4 1966171168
    %v2248 = vunpack.c.0.s8 %v2247
    %v2249 = vlaneseq
    %v2250 = vshrl.u32 %v2249, 7
    %v2251 = vsub.s32 %v2248, %v2250
    %v2252 = vrot.slane %v2238, %v2251
    %v2253 = vcombine.high %v2245, %v2245
    %v2254 = vcombine.high %v2252, %v2252
    %v2256 = vunpack.c.l.s4 1966171168
    %v2257 = vunpack.c.0.s8 %v2256
    %v2258 = vlaneseq
    %v2259 = vshrl.u32 %v2258, 7
    %v2260 = vsub.s32 %v2257, %v2259
    %v2261 = vrot.slane %v2245, %v2260
    %v2263 = vunpack.c.l.s4 1966171168
    %v2264 = vunpack.c.0.s8 %v2263
    %v2265 = vlaneseq
    %v2266 = vshrl.u32 %v2265, 7
    %v2267 = vsub.s32 %v2264, %v2266
    %v2268 = vrot.slane %v2252, %v2267
    %v2270 = vunpack.c.l.s4 1966171168
    %v2271 = vunpack.c.0.s8 %v2270
    %v2272 = vlaneseq
    %v2273 = vshrl.u32 %v2272, 7
    %v2274 = vsub.s32 %v2271, %v2273
    %v2275 = vrot.slane %v2253, %v2274
    %v2277 = vunpack.c.l.s4 1966171168
    %v2278 = vunpack.c.0.s8 %v2277
    %v2279 = vlaneseq
    %v2280 = vshrl.u32 %v2279, 7
    %v2281 = vsub.s32 %v2278, %v2280
    %v2282 = vrot.slane %v2254, %v2281
    %v2283 = vcombine.high %v2261, %v2261
    %v2284 = vcombine.high %v2268, %v2268
    %v2285 = vcombine.high %v2275, %v2275
    %v2286 = vcombine.high %v2282, %v2282
    %v2287 = vcombine.high %v2183, %v2183
    %v2289 = vunpack.c.l.s4 1966171168
    %v2290 = vunpack.c.0.s8 %v2289
    %v2291 = vlaneseq
    %v2292 = vshrl.u32 %v2291, 7
    %v2293 = vsub.s32 %v2290, %v2292
    %v2294 = vrot.slane %v2183, %v2293
    %v2296 = vunpack.c.l.s4 1966171168
    %v2297 = vunpack.c.0.s8 %v2296
    %v2298 = vlaneseq
    %v2299 = vshrl.u32 %v2298, 7
    %v2300 = vsub.s32 %v2297, %v2299
    %v2301 = vrot.slane %v2287, %v2300
    %v2302 = vcombine.high %v2294, %v2294
    %v2303 = vcombine.high %v2301, %v2301
    %v2305 = vunpack.c.l.s4 1966171168
    %v2306 = vunpack.c.0.s8 %v2305
    %v2307 = vlaneseq
    %v2308 = vshrl.u32 %v2307, 7
    %v2309 = vsub.s32 %v2306, %v2308
    %v2310 = vrot.slane %v2294, %v2309
    %v2312 = vunpack.c.l.s4 1966171168
    %v2313 = vunpack.c.0.s8 %v2312
    %v2314 = vlaneseq
    %v2315 = vshrl.u32 %v2314, 7
    %v2316 = vsub.s32 %v2313, %v2315
    %v2317 = vrot.slane %v2301, %v2316
    %v2319 = vunpack.c.l.s4 1966171168
    %v2320 = vunpack.c.0.s8 %v2319
    %v2321 = vlaneseq
    %v2322 = vshrl.u32 %v2321, 7
    %v2323 = vsub.s32 %v2320, %v2322
    %v2324 = vrot.slane %v2302, %v2323
    %v2326 = vunpack.c.l.s4 1966171168
    %v2327 = vunpack.c.0.s8 %v2326
    %v2328 = vlaneseq
    %v2329 = vshrl.u32 %v2328, 7
    %v2330 = vsub.s32 %v2327, %v2329
    %v2331 = vrot.slane %v2303, %v2330
    %v2332 = vcombine.high %v2310, %v2310
    %v2333 = vcombine.high %v2317, %v2317
    %v2334 = vcombine.high %v2324, %v2324
    %v2335 = vcombine.high %v2331, %v2331
    %v2336 = vcombine.high %v2184, %v2184
    %v2338 = vunpack.c.l.s4 1966171168
    %v2339 = vunpack.c.0.s8 %v2338
    %v2340 = vlaneseq
    %v2341 = vshrl.u32 %v2340, 7
    %v2342 = vsub.s32 %v2339, %v2341
    %v2343 = vrot.slane %v2184, %v2342
    %v2345 = vunpack.c.l.s4 1966171168
    %v2346 = vunpack.c.0.s8 %v2345
    %v2347 = vlaneseq
    %v2348 = vshrl.u32 %v2347, 7
    %v2349 = vsub.s32 %v2346, %v2348
    %v2350 = vrot.slane %v2336, %v2349
    %v2351 = vcombine.high %v2343, %v2343
    %v2352 = vcombine.high %v2350, %v2350
    %v2354 = vunpack.c.l.s4 1966171168
    %v2355 = vunpack.c.0.s8 %v2354
    %v2356 = vlaneseq
    %v2357 = vshrl.u32 %v2356, 7
    %v2358 = vsub.s32 %v2355, %v2357
    %v2359 = vrot.slane %v2343, %v2358
    %v2361 = vunpack.c.l.s4 1966171168
    %v2362 = vunpack.c.0.s8 %v2361
    %v2363 = vlaneseq
    %v2364 = vshrl.u32 %v2363, 7
    %v2365 = vsub.s32 %v2362, %v2364
    %v2366 = vrot.slane %v2350, %v2365
    %v2368 = vunpack.c.l.s4 1966171168
    %v2369 = vunpack.c.0.s8 %v2368
    %v2370 = vlaneseq
    %v2371 = vshrl.u32 %v2370, 7
    %v2372 = vsub.s32 %v2369, %v2371
    %v2373 = vrot.slane %v2351, %v2372
    %v2375 = vunpack.c.l.s4 1966171168
    %v2376 = vunpack.c.0.s8 %v2375
    %v2377 = vlaneseq
    %v2378 = vshrl.u32 %v2377, 7
    %v2379 = vsub.s32 %v2376, %v2378
    %v2380 = vrot.slane %v2352, %v2379
    %v2381 = vcombine.high %v2359, %v2359
    %v2382 = vcombine.high %v2366, %v2366
    %v2383 = vcombine.high %v2373, %v2373
    %v2384 = vcombine.high %v2380, %v2380
    %2417 = vst [vmem:[%s9] sm:$0x1] %v2212
    %2418 = vst [vmem:[%s9 + $0x10] sm:$0x1] %v2226
    %2419 = vst [vmem:[%s9 + $0x20] sm:$0x1] %v2234
    %2420 = vst [vmem:[%s9 + $0x30] sm:$0x1] %v2236
    %2421 = vst [vmem:[%s9 + $0x40] sm:$0x1] %v2219
    %2422 = vst [vmem:[%s9 + $0x50] sm:$0x1] %v2233
    %2423 = vst [vmem:[%s9 + $0x60] sm:$0x1] %v2235
    %2424 = vst [vmem:[%s9 + $0x70] sm:$0x1] %v2237
    %2425 = vst [vmem:[%s9 + $0x80] sm:$0x1] %v2261
    %2426 = vst [vmem:[%s9 + $0x90] sm:$0x1] %v2275
    %2427 = vst [vmem:[%s9 + $0xa0] sm:$0x1] %v2283
    %2428 = vst [vmem:[%s9 + $0xb0] sm:$0x1] %v2285
    %2429 = vst [vmem:[%s9 + $0xc0] sm:$0x1] %v2268
    %2430 = vst [vmem:[%s9 + $0xd0] sm:$0x1] %v2282
    %2431 = vst [vmem:[%s9 + $0xe0] sm:$0x1] %v2284
    %2432 = vst [vmem:[%s9 + $0xf0] sm:$0x1] %v2286
    %2433 = vst [vmem:[%s9 + $0x100] sm:$0x1] %v2310
    %2434 = vst [vmem:[%s9 + $0x110] sm:$0x1] %v2324
    %2435 = vst [vmem:[%s9 + $0x120] sm:$0x1] %v2332
    %2436 = vst [vmem:[%s9 + $0x130] sm:$0x1] %v2334
    %2437 = vst [vmem:[%s9 + $0x140] sm:$0x1] %v2317
    %2438 = vst [vmem:[%s9 + $0x150] sm:$0x1] %v2331
    %2439 = vst [vmem:[%s9 + $0x160] sm:$0x1] %v2333
    %2440 = vst [vmem:[%s9 + $0x170] sm:$0x1] %v2335
    %2441 = vst [vmem:[%s9 + $0x180] sm:$0x1] %v2359
    %2442 = vst [vmem:[%s9 + $0x190] sm:$0x1] %v2373
    %2443 = vst [vmem:[%s9 + $0x1a0] sm:$0x1] %v2381
    %2444 = vst [vmem:[%s9 + $0x1b0] sm:$0x1] %v2383
    %2445 = vst [vmem:[%s9 + $0x1c0] sm:$0x1] %v2366
    %2446 = vst [vmem:[%s9 + $0x1d0] sm:$0x1] %v2380
    %2447 = vst [vmem:[%s9 + $0x1e0] sm:$0x1] %v2382
    %2448 = vst [vmem:[%s9 + $0x1f0] sm:$0x1] %v2384
    %s2449 = scalar_lea.vmem [#allocation2], 32
    %v2450 = vld [vmem:[%s2449] sm:$0xff]
    %v2451 = vld [vmem:[%s2449 + $0x8] sm:$0xff]
    %v2452 = vld [vmem:[%s2449 + $0x10] sm:$0xff]
    %v2453 = vld [vmem:[%s2449 + $0x18] sm:$0xff]
    %v2458 = vcombine.high %v2450, %v2450
    %v2460 = vunpack.c.l.s4 1966171168
    %v2461 = vunpack.c.0.s8 %v2460
    %v2462 = vlaneseq
    %v2463 = vshrl.u32 %v2462, 7
    %v2464 = vsub.s32 %v2461, %v2463
    %v2465 = vrot.slane %v2450, %v2464
    %v2467 = vunpack.c.l.s4 1966171168
    %v2468 = vunpack.c.0.s8 %v2467
    %v2469 = vlaneseq
    %v2470 = vshrl.u32 %v2469, 7
    %v2471 = vsub.s32 %v2468, %v2470
    %v2472 = vrot.slane %v2458, %v2471
    %v2473 = vcombine.high %v2465, %v2465
    %v2474 = vcombine.high %v2472, %v2472
    %v2476 = vunpack.c.l.s4 1966171168
    %v2477 = vunpack.c.0.s8 %v2476
    %v2478 = vlaneseq
    %v2479 = vshrl.u32 %v2478, 7
    %v2480 = vsub.s32 %v2477, %v2479
    %v2481 = vrot.slane %v2465, %v2480
    %v2483 = vunpack.c.l.s4 1966171168
    %v2484 = vunpack.c.0.s8 %v2483
    %v2485 = vlaneseq
    %v2486 = vshrl.u32 %v2485, 7
    %v2487 = vsub.s32 %v2484, %v2486
    %v2488 = vrot.slane %v2472, %v2487
    %v2490 = vunpack.c.l.s4 1966171168
    %v2491 = vunpack.c.0.s8 %v2490
    %v2492 = vlaneseq
    %v2493 = vshrl.u32 %v2492, 7
    %v2494 = vsub.s32 %v2491, %v2493
    %v2495 = vrot.slane %v2473, %v2494
    %v2497 = vunpack.c.l.s4 1966171168
    %v2498 = vunpack.c.0.s8 %v2497
    %v2499 = vlaneseq
    %v2500 = vshrl.u32 %v2499, 7
    %v2501 = vsub.s32 %v2498, %v2500
    %v2502 = vrot.slane %v2474, %v2501
    %v2503 = vcombine.high %v2481, %v2481
    %v2504 = vcombine.high %v2488, %v2488
    %v2505 = vcombine.high %v2495, %v2495
    %v2506 = vcombine.high %v2502, %v2502
    %v2507 = vcombine.high %v2451, %v2451
    %v2509 = vunpack.c.l.s4 1966171168
    %v2510 = vunpack.c.0.s8 %v2509
    %v2511 = vlaneseq
    %v2512 = vshrl.u32 %v2511, 7
    %v2513 = vsub.s32 %v2510, %v2512
    %v2514 = vrot.slane %v2451, %v2513
    %v2516 = vunpack.c.l.s4 1966171168
    %v2517 = vunpack.c.0.s8 %v2516
    %v2518 = vlaneseq
    %v2519 = vshrl.u32 %v2518, 7
    %v2520 = vsub.s32 %v2517, %v2519
    %v2521 = vrot.slane %v2507, %v2520
    %v2522 = vcombine.high %v2514, %v2514
    %v2523 = vcombine.high %v2521, %v2521
    %v2525 = vunpack.c.l.s4 1966171168
    %v2526 = vunpack.c.0.s8 %v2525
    %v2527 = vlaneseq
    %v2528 = vshrl.u32 %v2527, 7
    %v2529 = vsub.s32 %v2526, %v2528
    %v2530 = vrot.slane %v2514, %v2529
    %v2532 = vunpack.c.l.s4 1966171168
    %v2533 = vunpack.c.0.s8 %v2532
    %v2534 = vlaneseq
    %v2535 = vshrl.u32 %v2534, 7
    %v2536 = vsub.s32 %v2533, %v2535
    %v2537 = vrot.slane %v2521, %v2536
    %v2539 = vunpack.c.l.s4 1966171168
    %v2540 = vunpack.c.0.s8 %v2539
    %v2541 = vlaneseq
    %v2542 = vshrl.u32 %v2541, 7
    %v2543 = vsub.s32 %v2540, %v2542
    %v2544 = vrot.slane %v2522, %v2543
    %v2546 = vunpack.c.l.s4 1966171168
    %v2547 = vunpack.c.0.s8 %v2546
    %v2548 = vlaneseq
    %v2549 = vshrl.u32 %v2548, 7
    %v2550 = vsub.s32 %v2547, %v2549
    %v2551 = vrot.slane %v2523, %v2550
    %v2552 = vcombine.high %v2530, %v2530
    %v2553 = vcombine.high %v2537, %v2537
    %v2554 = vcombine.high %v2544, %v2544
    %v2555 = vcombine.high %v2551, %v2551
    %v2556 = vcombine.high %v2452, %v2452
    %v2558 = vunpack.c.l.s4 1966171168
    %v2559 = vunpack.c.0.s8 %v2558
    %v2560 = vlaneseq
    %v2561 = vshrl.u32 %v2560, 7
    %v2562 = vsub.s32 %v2559, %v2561
    %v2563 = vrot.slane %v2452, %v2562
    %v2565 = vunpack.c.l.s4 1966171168
    %v2566 = vunpack.c.0.s8 %v2565
    %v2567 = vlaneseq
    %v2568 = vshrl.u32 %v2567, 7
    %v2569 = vsub.s32 %v2566, %v2568
    %v2570 = vrot.slane %v2556, %v2569
    %v2571 = vcombine.high %v2563, %v2563
    %v2572 = vcombine.high %v2570, %v2570
    %v2574 = vunpack.c.l.s4 1966171168
    %v2575 = vunpack.c.0.s8 %v2574
    %v2576 = vlaneseq
    %v2577 = vshrl.u32 %v2576, 7
    %v2578 = vsub.s32 %v2575, %v2577
    %v2579 = vrot.slane %v2563, %v2578
    %v2581 = vunpack.c.l.s4 1966171168
    %v2582 = vunpack.c.0.s8 %v2581
    %v2583 = vlaneseq
    %v2584 = vshrl.u32 %v2583, 7
    %v2585 = vsub.s32 %v2582, %v2584
    %v2586 = vrot.slane %v2570, %v2585
    %v2588 = vunpack.c.l.s4 1966171168
    %v2589 = vunpack.c.0.s8 %v2588
    %v2590 = vlaneseq
    %v2591 = vshrl.u32 %v2590, 7
    %v2592 = vsub.s32 %v2589, %v2591
    %v2593 = vrot.slane %v2571, %v2592
    %v2595 = vunpack.c.l.s4 1966171168
    %v2596 = vunpack.c.0.s8 %v2595
    %v2597 = vlaneseq
    %v2598 = vshrl.u32 %v2597, 7
    %v2599 = vsub.s32 %v2596, %v2598
    %v2600 = vrot.slane %v2572, %v2599
    %v2601 = vcombine.high %v2579, %v2579
    %v2602 = vcombine.high %v2586, %v2586
    %v2603 = vcombine.high %v2593, %v2593
    %v2604 = vcombine.high %v2600, %v2600
    %v2605 = vcombine.high %v2453, %v2453
    %v2607 = vunpack.c.l.s4 1966171168
    %v2608 = vunpack.c.0.s8 %v2607
    %v2609 = vlaneseq
    %v2610 = vshrl.u32 %v2609, 7
    %v2611 = vsub.s32 %v2608, %v2610
    %v2612 = vrot.slane %v2453, %v2611
    %v2614 = vunpack.c.l.s4 1966171168
    %v2615 = vunpack.c.0.s8 %v2614
    %v2616 = vlaneseq
    %v2617 = vshrl.u32 %v2616, 7
    %v2618 = vsub.s32 %v2615, %v2617
    %v2619 = vrot.slane %v2605, %v2618
    %v2620 = vcombine.high %v2612, %v2612
    %v2621 = vcombine.high %v2619, %v2619
    %v2623 = vunpack.c.l.s4 1966171168
    %v2624 = vunpack.c.0.s8 %v2623
    %v2625 = vlaneseq
    %v2626 = vshrl.u32 %v2625, 7
    %v2627 = vsub.s32 %v2624, %v2626
    %v2628 = vrot.slane %v2612, %v2627
    %v2630 = vunpack.c.l.s4 1966171168
    %v2631 = vunpack.c.0.s8 %v2630
    %v2632 = vlaneseq
    %v2633 = vshrl.u32 %v2632, 7
    %v2634 = vsub.s32 %v2631, %v2633
    %v2635 = vrot.slane %v2619, %v2634
    %v2637 = vunpack.c.l.s4 1966171168
    %v2638 = vunpack.c.0.s8 %v2637
    %v2639 = vlaneseq
    %v2640 = vshrl.u32 %v2639, 7
    %v2641 = vsub.s32 %v2638, %v2640
    %v2642 = vrot.slane %v2620, %v2641
    %v2644 = vunpack.c.l.s4 1966171168
    %v2645 = vunpack.c.0.s8 %v2644
    %v2646 = vlaneseq
    %v2647 = vshrl.u32 %v2646, 7
    %v2648 = vsub.s32 %v2645, %v2647
    %v2649 = vrot.slane %v2621, %v2648
    %v2650 = vcombine.high %v2628, %v2628
    %v2651 = vcombine.high %v2635, %v2635
    %v2652 = vcombine.high %v2642, %v2642
    %v2653 = vcombine.high %v2649, %v2649
    %2686 = vst [vmem:[%s9 + $0x1] sm:$0x1] %v2481
    %2687 = vst [vmem:[%s9 + $0x11] sm:$0x1] %v2495
    %2688 = vst [vmem:[%s9 + $0x21] sm:$0x1] %v2503
    %2689 = vst [vmem:[%s9 + $0x31] sm:$0x1] %v2505
    %2690 = vst [vmem:[%s9 + $0x41] sm:$0x1] %v2488
    %2691 = vst [vmem:[%s9 + $0x51] sm:$0x1] %v2502
    %2692 = vst [vmem:[%s9 + $0x61] sm:$0x1] %v2504
    %2693 = vst [vmem:[%s9 + $0x71] sm:$0x1] %v2506
    %2694 = vst [vmem:[%s9 + $0x81] sm:$0x1] %v2530
    %2695 = vst [vmem:[%s9 + $0x91] sm:$0x1] %v2544
    %2696 = vst [vmem:[%s9 + $0xa1] sm:$0x1] %v2552
    %2697 = vst [vmem:[%s9 + $0xb1] sm:$0x1] %v2554
    %2698 = vst [vmem:[%s9 + $0xc1] sm:$0x1] %v2537
    %2699 = vst [vmem:[%s9 + $0xd1] sm:$0x1] %v2551
    %2700 = vst [vmem:[%s9 + $0xe1] sm:$0x1] %v2553
    %2701 = vst [vmem:[%s9 + $0xf1] sm:$0x1] %v2555
    %2702 = vst [vmem:[%s9 + $0x101] sm:$0x1] %v2579
    %2703 = vst [vmem:[%s9 + $0x111] sm:$0x1] %v2593
    %2704 = vst [vmem:[%s9 + $0x121] sm:$0x1] %v2601
    %2705 = vst [vmem:[%s9 + $0x131] sm:$0x1] %v2603
    %2706 = vst [vmem:[%s9 + $0x141] sm:$0x1] %v2586
    %2707 = vst [vmem:[%s9 + $0x151] sm:$0x1] %v2600
    %2708 = vst [vmem:[%s9 + $0x161] sm:$0x1] %v2602
    %2709 = vst [vmem:[%s9 + $0x171] sm:$0x1] %v2604
    %2710 = vst [vmem:[%s9 + $0x181] sm:$0x1] %v2628
    %2711 = vst [vmem:[%s9 + $0x191] sm:$0x1] %v2642
    %2712 = vst [vmem:[%s9 + $0x1a1] sm:$0x1] %v2650
    %2713 = vst [vmem:[%s9 + $0x1b1] sm:$0x1] %v2652
    %2714 = vst [vmem:[%s9 + $0x1c1] sm:$0x1] %v2635
    %2715 = vst [vmem:[%s9 + $0x1d1] sm:$0x1] %v2649
    %2716 = vst [vmem:[%s9 + $0x1e1] sm:$0x1] %v2651
    %2717 = vst [vmem:[%s9 + $0x1f1] sm:$0x1] %v2653
    %s2718 = scalar_lea.vmem [#allocation2], 64
    %v2719 = vld [vmem:[%s2718] sm:$0xff]
    %v2720 = vld [vmem:[%s2718 + $0x8] sm:$0xff]
    %v2721 = vld [vmem:[%s2718 + $0x10] sm:$0xff]
    %v2722 = vld [vmem:[%s2718 + $0x18] sm:$0xff]
    %v2727 = vcombine.high %v2719, %v2719
    %v2729 = vunpack.c.l.s4 1966171168
    %v2730 = vunpack.c.0.s8 %v2729
    %v2731 = vlaneseq
    %v2732 = vshrl.u32 %v2731, 7
    %v2733 = vsub.s32 %v2730, %v2732
    %v2734 = vrot.slane %v2719, %v2733
    %v2736 = vunpack.c.l.s4 1966171168
    %v2737 = vunpack.c.0.s8 %v2736
    %v2738 = vlaneseq
    %v2739 = vshrl.u32 %v2738, 7
    %v2740 = vsub.s32 %v2737, %v2739
    %v2741 = vrot.slane %v2727, %v2740
    %v2742 = vcombine.high %v2734, %v2734
    %v2743 = vcombine.high %v2741, %v2741
    %v2745 = vunpack.c.l.s4 1966171168
    %v2746 = vunpack.c.0.s8 %v2745
    %v2747 = vlaneseq
    %v2748 = vshrl.u32 %v2747, 7
    %v2749 = vsub.s32 %v2746, %v2748
    %v2750 = vrot.slane %v2734, %v2749
    %v2752 = vunpack.c.l.s4 1966171168
    %v2753 = vunpack.c.0.s8 %v2752
    %v2754 = vlaneseq
    %v2755 = vshrl.u32 %v2754, 7
    %v2756 = vsub.s32 %v2753, %v2755
    %v2757 = vrot.slane %v2741, %v2756
    %v2759 = vunpack.c.l.s4 1966171168
    %v2760 = vunpack.c.0.s8 %v2759
    %v2761 = vlaneseq
    %v2762 = vshrl.u32 %v2761, 7
    %v2763 = vsub.s32 %v2760, %v2762
    %v2764 = vrot.slane %v2742, %v2763
    %v2766 = vunpack.c.l.s4 1966171168
    %v2767 = vunpack.c.0.s8 %v2766
    %v2768 = vlaneseq
    %v2769 = vshrl.u32 %v2768, 7
    %v2770 = vsub.s32 %v2767, %v2769
    %v2771 = vrot.slane %v2743, %v2770
    %v2772 = vcombine.high %v2750, %v2750
    %v2773 = vcombine.high %v2757, %v2757
    %v2774 = vcombine.high %v2764, %v2764
    %v2775 = vcombine.high %v2771, %v2771
    %v2776 = vcombine.high %v2720, %v2720
    %v2778 = vunpack.c.l.s4 1966171168
    %v2779 = vunpack.c.0.s8 %v2778
    %v2780 = vlaneseq
    %v2781 = vshrl.u32 %v2780, 7
    %v2782 = vsub.s32 %v2779, %v2781
    %v2783 = vrot.slane %v2720, %v2782
    %v2785 = vunpack.c.l.s4 1966171168
    %v2786 = vunpack.c.0.s8 %v2785
    %v2787 = vlaneseq
    %v2788 = vshrl.u32 %v2787, 7
    %v2789 = vsub.s32 %v2786, %v2788
    %v2790 = vrot.slane %v2776, %v2789
    %v2791 = vcombine.high %v2783, %v2783
    %v2792 = vcombine.high %v2790, %v2790
    %v2794 = vunpack.c.l.s4 1966171168
    %v2795 = vunpack.c.0.s8 %v2794
    %v2796 = vlaneseq
    %v2797 = vshrl.u32 %v2796, 7
    %v2798 = vsub.s32 %v2795, %v2797
    %v2799 = vrot.slane %v2783, %v2798
    %v2801 = vunpack.c.l.s4 1966171168
    %v2802 = vunpack.c.0.s8 %v2801
    %v2803 = vlaneseq
    %v2804 = vshrl.u32 %v2803, 7
    %v2805 = vsub.s32 %v2802, %v2804
    %v2806 = vrot.slane %v2790, %v2805
    %v2808 = vunpack.c.l.s4 1966171168
    %v2809 = vunpack.c.0.s8 %v2808
    %v2810 = vlaneseq
    %v2811 = vshrl.u32 %v2810, 7
    %v2812 = vsub.s32 %v2809, %v2811
    %v2813 = vrot.slane %v2791, %v2812
    %v2815 = vunpack.c.l.s4 1966171168
    %v2816 = vunpack.c.0.s8 %v2815
    %v2817 = vlaneseq
    %v2818 = vshrl.u32 %v2817, 7
    %v2819 = vsub.s32 %v2816, %v2818
    %v2820 = vrot.slane %v2792, %v2819
    %v2821 = vcombine.high %v2799, %v2799
    %v2822 = vcombine.high %v2806, %v2806
    %v2823 = vcombine.high %v2813, %v2813
    %v2824 = vcombine.high %v2820, %v2820
    %v2825 = vcombine.high %v2721, %v2721
    %v2827 = vunpack.c.l.s4 1966171168
    %v2828 = vunpack.c.0.s8 %v2827
    %v2829 = vlaneseq
    %v2830 = vshrl.u32 %v2829, 7
    %v2831 = vsub.s32 %v2828, %v2830
    %v2832 = vrot.slane %v2721, %v2831
    %v2834 = vunpack.c.l.s4 1966171168
    %v2835 = vunpack.c.0.s8 %v2834
    %v2836 = vlaneseq
    %v2837 = vshrl.u32 %v2836, 7
    %v2838 = vsub.s32 %v2835, %v2837
    %v2839 = vrot.slane %v2825, %v2838
    %v2840 = vcombine.high %v2832, %v2832
    %v2841 = vcombine.high %v2839, %v2839
    %v2843 = vunpack.c.l.s4 1966171168
    %v2844 = vunpack.c.0.s8 %v2843
    %v2845 = vlaneseq
    %v2846 = vshrl.u32 %v2845, 7
    %v2847 = vsub.s32 %v2844, %v2846
    %v2848 = vrot.slane %v2832, %v2847
    %v2850 = vunpack.c.l.s4 1966171168
    %v2851 = vunpack.c.0.s8 %v2850
    %v2852 = vlaneseq
    %v2853 = vshrl.u32 %v2852, 7
    %v2854 = vsub.s32 %v2851, %v2853
    %v2855 = vrot.slane %v2839, %v2854
    %v2857 = vunpack.c.l.s4 1966171168
    %v2858 = vunpack.c.0.s8 %v2857
    %v2859 = vlaneseq
    %v2860 = vshrl.u32 %v2859, 7
    %v2861 = vsub.s32 %v2858, %v2860
    %v2862 = vrot.slane %v2840, %v2861
    %v2864 = vunpack.c.l.s4 1966171168
    %v2865 = vunpack.c.0.s8 %v2864
    %v2866 = vlaneseq
    %v2867 = vshrl.u32 %v2866, 7
    %v2868 = vsub.s32 %v2865, %v2867
    %v2869 = vrot.slane %v2841, %v2868
    %v2870 = vcombine.high %v2848, %v2848
    %v2871 = vcombine.high %v2855, %v2855
    %v2872 = vcombine.high %v2862, %v2862
    %v2873 = vcombine.high %v2869, %v2869
    %v2874 = vcombine.high %v2722, %v2722
    %v2876 = vunpack.c.l.s4 1966171168
    %v2877 = vunpack.c.0.s8 %v2876
    %v2878 = vlaneseq
    %v2879 = vshrl.u32 %v2878, 7
    %v2880 = vsub.s32 %v2877, %v2879
    %v2881 = vrot.slane %v2722, %v2880
    %v2883 = vunpack.c.l.s4 1966171168
    %v2884 = vunpack.c.0.s8 %v2883
    %v2885 = vlaneseq
    %v2886 = vshrl.u32 %v2885, 7
    %v2887 = vsub.s32 %v2884, %v2886
    %v2888 = vrot.slane %v2874, %v2887
    %v2889 = vcombine.high %v2881, %v2881
    %v2890 = vcombine.high %v2888, %v2888
    %v2892 = vunpack.c.l.s4 1966171168
    %v2893 = vunpack.c.0.s8 %v2892
    %v2894 = vlaneseq
    %v2895 = vshrl.u32 %v2894, 7
    %v2896 = vsub.s32 %v2893, %v2895
    %v2897 = vrot.slane %v2881, %v2896
    %v2899 = vunpack.c.l.s4 1966171168
    %v2900 = vunpack.c.0.s8 %v2899
    %v2901 = vlaneseq
    %v2902 = vshrl.u32 %v2901, 7
    %v2903 = vsub.s32 %v2900, %v2902
    %v2904 = vrot.slane %v2888, %v2903
    %v2906 = vunpack.c.l.s4 1966171168
    %v2907 = vunpack.c.0.s8 %v2906
    %v2908 = vlaneseq
    %v2909 = vshrl.u32 %v2908, 7
    %v2910 = vsub.s32 %v2907, %v2909
    %v2911 = vrot.slane %v2889, %v2910
    %v2913 = vunpack.c.l.s4 1966171168
    %v2914 = vunpack.c.0.s8 %v2913
    %v2915 = vlaneseq
    %v2916 = vshrl.u32 %v2915, 7
    %v2917 = vsub.s32 %v2914, %v2916
    %v2918 = vrot.slane %v2890, %v2917
    %v2919 = vcombine.high %v2897, %v2897
    %v2920 = vcombine.high %v2904, %v2904
    %v2921 = vcombine.high %v2911, %v2911
    %v2922 = vcombine.high %v2918, %v2918
    %2955 = vst [vmem:[%s9 + $0x2] sm:$0x1] %v2750
    %2956 = vst [vmem:[%s9 + $0x12] sm:$0x1] %v2764
    %2957 = vst [vmem:[%s9 + $0x22] sm:$0x1] %v2772
    %2958 = vst [vmem:[%s9 + $0x32] sm:$0x1] %v2774
    %2959 = vst [vmem:[%s9 + $0x42] sm:$0x1] %v2757
    %2960 = vst [vmem:[%s9 + $0x52] sm:$0x1] %v2771
    %2961 = vst [vmem:[%s9 + $0x62] sm:$0x1] %v2773
    %2962 = vst [vmem:[%s9 + $0x72] sm:$0x1] %v2775
    %2963 = vst [vmem:[%s9 + $0x82] sm:$0x1] %v2799
    %2964 = vst [vmem:[%s9 + $0x92] sm:$0x1] %v2813
    %2965 = vst [vmem:[%s9 + $0xa2] sm:$0x1] %v2821
    %2966 = vst [vmem:[%s9 + $0xb2] sm:$0x1] %v2823
    %2967 = vst [vmem:[%s9 + $0xc2] sm:$0x1] %v2806
    %2968 = vst [vmem:[%s9 + $0xd2] sm:$0x1] %v2820
    %2969 = vst [vmem:[%s9 + $0xe2] sm:$0x1] %v2822
    %2970 = vst [vmem:[%s9 + $0xf2] sm:$0x1] %v2824
    %2971 = vst [vmem:[%s9 + $0x102] sm:$0x1] %v2848
    %2972 = vst [vmem:[%s9 + $0x112] sm:$0x1] %v2862
    %2973 = vst [vmem:[%s9 + $0x122] sm:$0x1] %v2870
    %2974 = vst [vmem:[%s9 + $0x132] sm:$0x1] %v2872
    %2975 = vst [vmem:[%s9 + $0x142] sm:$0x1] %v2855
    %2976 = vst [vmem:[%s9 + $0x152] sm:$0x1] %v2869
    %2977 = vst [vmem:[%s9 + $0x162] sm:$0x1] %v2871
    %2978 = vst [vmem:[%s9 + $0x172] sm:$0x1] %v2873
    %2979 = vst [vmem:[%s9 + $0x182] sm:$0x1] %v2897
    %2980 = vst [vmem:[%s9 + $0x192] sm:$0x1] %v2911
    %2981 = vst [vmem:[%s9 + $0x1a2] sm:$0x1] %v2919
    %2982 = vst [vmem:[%s9 + $0x1b2] sm:$0x1] %v2921
    %2983 = vst [vmem:[%s9 + $0x1c2] sm:$0x1] %v2904
    %2984 = vst [vmem:[%s9 + $0x1d2] sm:$0x1] %v2918
    %2985 = vst [vmem:[%s9 + $0x1e2] sm:$0x1] %v2920
    %2986 = vst [vmem:[%s9 + $0x1f2] sm:$0x1] %v2922
    %s2987 = scalar_lea.vmem [#allocation2], 96
    %v2988 = vld [vmem:[%s2987] sm:$0xff]
    %v2989 = vld [vmem:[%s2987 + $0x8] sm:$0xff]
    %v2990 = vld [vmem:[%s2987 + $0x10] sm:$0xff]
    %v2991 = vld [vmem:[%s2987 + $0x18] sm:$0xff]
    %v2996 = vcombine.high %v2988, %v2988
    %v2998 = vunpack.c.l.s4 1966171168
    %v2999 = vunpack.c.0.s8 %v2998
    %v3000 = vlaneseq
    %v3001 = vshrl.u32 %v3000, 7
    %v3002 = vsub.s32 %v2999, %v3001
    %v3003 = vrot.slane %v2988, %v3002
    %v3005 = vunpack.c.l.s4 1966171168
    %v3006 = vunpack.c.0.s8 %v3005
    %v3007 = vlaneseq
    %v3008 = vshrl.u32 %v3007, 7
    %v3009 = vsub.s32 %v3006, %v3008
    %v3010 = vrot.slane %v2996, %v3009
    %v3011 = vcombine.high %v3003, %v3003
    %v3012 = vcombine.high %v3010, %v3010
    %v3014 = vunpack.c.l.s4 1966171168
    %v3015 = vunpack.c.0.s8 %v3014
    %v3016 = vlaneseq
    %v3017 = vshrl.u32 %v3016, 7
    %v3018 = vsub.s32 %v3015, %v3017
    %v3019 = vrot.slane %v3003, %v3018
    %v3021 = vunpack.c.l.s4 1966171168
    %v3022 = vunpack.c.0.s8 %v3021
    %v3023 = vlaneseq
    %v3024 = vshrl.u32 %v3023, 7
    %v3025 = vsub.s32 %v3022, %v3024
    %v3026 = vrot.slane %v3010, %v3025
    %v3028 = vunpack.c.l.s4 1966171168
    %v3029 = vunpack.c.0.s8 %v3028
    %v3030 = vlaneseq
    %v3031 = vshrl.u32 %v3030, 7
    %v3032 = vsub.s32 %v3029, %v3031
    %v3033 = vrot.slane %v3011, %v3032
    %v3035 = vunpack.c.l.s4 1966171168
    %v3036 = vunpack.c.0.s8 %v3035
    %v3037 = vlaneseq
    %v3038 = vshrl.u32 %v3037, 7
    %v3039 = vsub.s32 %v3036, %v3038
    %v3040 = vrot.slane %v3012, %v3039
    %v3041 = vcombine.high %v3019, %v3019
    %v3042 = vcombine.high %v3026, %v3026
    %v3043 = vcombine.high %v3033, %v3033
    %v3044 = vcombine.high %v3040, %v3040
    %v3045 = vcombine.high %v2989, %v2989
    %v3047 = vunpack.c.l.s4 1966171168
    %v3048 = vunpack.c.0.s8 %v3047
    %v3049 = vlaneseq
    %v3050 = vshrl.u32 %v3049, 7
    %v3051 = vsub.s32 %v3048, %v3050
    %v3052 = vrot.slane %v2989, %v3051
    %v3054 = vunpack.c.l.s4 1966171168
    %v3055 = vunpack.c.0.s8 %v3054
    %v3056 = vlaneseq
    %v3057 = vshrl.u32 %v3056, 7
    %v3058 = vsub.s32 %v3055, %v3057
    %v3059 = vrot.slane %v3045, %v3058
    %v3060 = vcombine.high %v3052, %v3052
    %v3061 = vcombine.high %v3059, %v3059
    %v3063 = vunpack.c.l.s4 1966171168
    %v3064 = vunpack.c.0.s8 %v3063
    %v3065 = vlaneseq
    %v3066 = vshrl.u32 %v3065, 7
    %v3067 = vsub.s32 %v3064, %v3066
    %v3068 = vrot.slane %v3052, %v3067
    %v3070 = vunpack.c.l.s4 1966171168
    %v3071 = vunpack.c.0.s8 %v3070
    %v3072 = vlaneseq
    %v3073 = vshrl.u32 %v3072, 7
    %v3074 = vsub.s32 %v3071, %v3073
    %v3075 = vrot.slane %v3059, %v3074
    %v3077 = vunpack.c.l.s4 1966171168
    %v3078 = vunpack.c.0.s8 %v3077
    %v3079 = vlaneseq
    %v3080 = vshrl.u32 %v3079, 7
    %v3081 = vsub.s32 %v3078, %v3080
    %v3082 = vrot.slane %v3060, %v3081
    %v3084 = vunpack.c.l.s4 1966171168
    %v3085 = vunpack.c.0.s8 %v3084
    %v3086 = vlaneseq
    %v3087 = vshrl.u32 %v3086, 7
    %v3088 = vsub.s32 %v3085, %v3087
    %v3089 = vrot.slane %v3061, %v3088
    %v3090 = vcombine.high %v3068, %v3068
    %v3091 = vcombine.high %v3075, %v3075
    %v3092 = vcombine.high %v3082, %v3082
    %v3093 = vcombine.high %v3089, %v3089
    %v3094 = vcombine.high %v2990, %v2990
    %v3096 = vunpack.c.l.s4 1966171168
    %v3097 = vunpack.c.0.s8 %v3096
    %v3098 = vlaneseq
    %v3099 = vshrl.u32 %v3098, 7
    %v3100 = vsub.s32 %v3097, %v3099
    %v3101 = vrot.slane %v2990, %v3100
    %v3103 = vunpack.c.l.s4 1966171168
    %v3104 = vunpack.c.0.s8 %v3103
    %v3105 = vlaneseq
    %v3106 = vshrl.u32 %v3105, 7
    %v3107 = vsub.s32 %v3104, %v3106
    %v3108 = vrot.slane %v3094, %v3107
    %v3109 = vcombine.high %v3101, %v3101
    %v3110 = vcombine.high %v3108, %v3108
    %v3112 = vunpack.c.l.s4 1966171168
    %v3113 = vunpack.c.0.s8 %v3112
    %v3114 = vlaneseq
    %v3115 = vshrl.u32 %v3114, 7
    %v3116 = vsub.s32 %v3113, %v3115
    %v3117 = vrot.slane %v3101, %v3116
    %v3119 = vunpack.c.l.s4 1966171168
    %v3120 = vunpack.c.0.s8 %v3119
    %v3121 = vlaneseq
    %v3122 = vshrl.u32 %v3121, 7
    %v3123 = vsub.s32 %v3120, %v3122
    %v3124 = vrot.slane %v3108, %v3123
    %v3126 = vunpack.c.l.s4 1966171168
    %v3127 = vunpack.c.0.s8 %v3126
    %v3128 = vlaneseq
    %v3129 = vshrl.u32 %v3128, 7
    %v3130 = vsub.s32 %v3127, %v3129
    %v3131 = vrot.slane %v3109, %v3130
    %v3133 = vunpack.c.l.s4 1966171168
    %v3134 = vunpack.c.0.s8 %v3133
    %v3135 = vlaneseq
    %v3136 = vshrl.u32 %v3135, 7
    %v3137 = vsub.s32 %v3134, %v3136
    %v3138 = vrot.slane %v3110, %v3137
    %v3139 = vcombine.high %v3117, %v3117
    %v3140 = vcombine.high %v3124, %v3124
    %v3141 = vcombine.high %v3131, %v3131
    %v3142 = vcombine.high %v3138, %v3138
    %v3143 = vcombine.high %v2991, %v2991
    %v3145 = vunpack.c.l.s4 1966171168
    %v3146 = vunpack.c.0.s8 %v3145
    %v3147 = vlaneseq
    %v3148 = vshrl.u32 %v3147, 7
    %v3149 = vsub.s32 %v3146, %v3148
    %v3150 = vrot.slane %v2991, %v3149
    %v3152 = vunpack.c.l.s4 1966171168
    %v3153 = vunpack.c.0.s8 %v3152
    %v3154 = vlaneseq
    %v3155 = vshrl.u32 %v3154, 7
    %v3156 = vsub.s32 %v3153, %v3155
    %v3157 = vrot.slane %v3143, %v3156
    %v3158 = vcombine.high %v3150, %v3150
    %v3159 = vcombine.high %v3157, %v3157
    %v3161 = vunpack.c.l.s4 1966171168
    %v3162 = vunpack.c.0.s8 %v3161
    %v3163 = vlaneseq
    %v3164 = vshrl.u32 %v3163, 7
    %v3165 = vsub.s32 %v3162, %v3164
    %v3166 = vrot.slane %v3150, %v3165
    %v3168 = vunpack.c.l.s4 1966171168
    %v3169 = vunpack.c.0.s8 %v3168
    %v3170 = vlaneseq
    %v3171 = vshrl.u32 %v3170, 7
    %v3172 = vsub.s32 %v3169, %v3171
    %v3173 = vrot.slane %v3157, %v3172
    %v3175 = vunpack.c.l.s4 1966171168
    %v3176 = vunpack.c.0.s8 %v3175
    %v3177 = vlaneseq
    %v3178 = vshrl.u32 %v3177, 7
    %v3179 = vsub.s32 %v3176, %v3178
    %v3180 = vrot.slane %v3158, %v3179
    %v3182 = vunpack.c.l.s4 1966171168
    %v3183 = vunpack.c.0.s8 %v3182
    %v3184 = vlaneseq
    %v3185 = vshrl.u32 %v3184, 7
    %v3186 = vsub.s32 %v3183, %v3185
    %v3187 = vrot.slane %v3159, %v3186
    %v3188 = vcombine.high %v3166, %v3166
    %v3189 = vcombine.high %v3173, %v3173
    %v3190 = vcombine.high %v3180, %v3180
    %v3191 = vcombine.high %v3187, %v3187
    %3224 = vst [vmem:[%s9 + $0x3] sm:$0x1] %v3019
    %3225 = vst [vmem:[%s9 + $0x13] sm:$0x1] %v3033
    %3226 = vst [vmem:[%s9 + $0x23] sm:$0x1] %v3041
    %3227 = vst [vmem:[%s9 + $0x33] sm:$0x1] %v3043
    %3228 = vst [vmem:[%s9 + $0x43] sm:$0x1] %v3026
    %3229 = vst [vmem:[%s9 + $0x53] sm:$0x1] %v3040
    %3230 = vst [vmem:[%s9 + $0x63] sm:$0x1] %v3042
    %3231 = vst [vmem:[%s9 + $0x73] sm:$0x1] %v3044
    %3232 = vst [vmem:[%s9 + $0x83] sm:$0x1] %v3068
    %3233 = vst [vmem:[%s9 + $0x93] sm:$0x1] %v3082
    %3234 = vst [vmem:[%s9 + $0xa3] sm:$0x1] %v3090
    %3235 = vst [vmem:[%s9 + $0xb3] sm:$0x1] %v3092
    %3236 = vst [vmem:[%s9 + $0xc3] sm:$0x1] %v3075
    %3237 = vst [vmem:[%s9 + $0xd3] sm:$0x1] %v3089
    %3238 = vst [vmem:[%s9 + $0xe3] sm:$0x1] %v3091
    %3239 = vst [vmem:[%s9 + $0xf3] sm:$0x1] %v3093
    %3240 = vst [vmem:[%s9 + $0x103] sm:$0x1] %v3117
    %3241 = vst [vmem:[%s9 + $0x113] sm:$0x1] %v3131
    %3242 = vst [vmem:[%s9 + $0x123] sm:$0x1] %v3139
    %3243 = vst [vmem:[%s9 + $0x133] sm:$0x1] %v3141
    %3244 = vst [vmem:[%s9 + $0x143] sm:$0x1] %v3124
    %3245 = vst [vmem:[%s9 + $0x153] sm:$0x1] %v3138
    %3246 = vst [vmem:[%s9 + $0x163] sm:$0x1] %v3140
    %3247 = vst [vmem:[%s9 + $0x173] sm:$0x1] %v3142
    %3248 = vst [vmem:[%s9 + $0x183] sm:$0x1] %v3166
    %3249 = vst [vmem:[%s9 + $0x193] sm:$0x1] %v3180
    %3250 = vst [vmem:[%s9 + $0x1a3] sm:$0x1] %v3188
    %3251 = vst [vmem:[%s9 + $0x1b3] sm:$0x1] %v3190
    %3252 = vst [vmem:[%s9 + $0x1c3] sm:$0x1] %v3173
    %3253 = vst [vmem:[%s9 + $0x1d3] sm:$0x1] %v3187
    %3254 = vst [vmem:[%s9 + $0x1e3] sm:$0x1] %v3189
    %3255 = vst [vmem:[%s9 + $0x1f3] sm:$0x1] %v3191
    %s3256 = scalar_lea.vmem [#allocation2], 128
    %v3257 = vld [vmem:[%s3256] sm:$0xff]
    %v3258 = vld [vmem:[%s3256 + $0x8] sm:$0xff]
    %v3259 = vld [vmem:[%s3256 + $0x10] sm:$0xff]
    %v3260 = vld [vmem:[%s3256 + $0x18] sm:$0xff]
    %v3265 = vcombine.high %v3257, %v3257
    %v3267 = vunpack.c.l.s4 1966171168
    %v3268 = vunpack.c.0.s8 %v3267
    %v3269 = vlaneseq
    %v3270 = vshrl.u32 %v3269, 7
    %v3271 = vsub.s32 %v3268, %v3270
    %v3272 = vrot.slane %v3257, %v3271
    %v3274 = vunpack.c.l.s4 1966171168
    %v3275 = vunpack.c.0.s8 %v3274
    %v3276 = vlaneseq
    %v3277 = vshrl.u32 %v3276, 7
    %v3278 = vsub.s32 %v3275, %v3277
    %v3279 = vrot.slane %v3265, %v3278
    %v3280 = vcombine.high %v3272, %v3272
    %v3281 = vcombine.high %v3279, %v3279
    %v3283 = vunpack.c.l.s4 1966171168
    %v3284 = vunpack.c.0.s8 %v3283
    %v3285 = vlaneseq
    %v3286 = vshrl.u32 %v3285, 7
    %v3287 = vsub.s32 %v3284, %v3286
    %v3288 = vrot.slane %v3272, %v3287
    %v3290 = vunpack.c.l.s4 1966171168
    %v3291 = vunpack.c.0.s8 %v3290
    %v3292 = vlaneseq
    %v3293 = vshrl.u32 %v3292, 7
    %v3294 = vsub.s32 %v3291, %v3293
    %v3295 = vrot.slane %v3279, %v3294
    %v3297 = vunpack.c.l.s4 1966171168
    %v3298 = vunpack.c.0.s8 %v3297
    %v3299 = vlaneseq
    %v3300 = vshrl.u32 %v3299, 7
    %v3301 = vsub.s32 %v3298, %v3300
    %v3302 = vrot.slane %v3280, %v3301
    %v3304 = vunpack.c.l.s4 1966171168
    %v3305 = vunpack.c.0.s8 %v3304
    %v3306 = vlaneseq
    %v3307 = vshrl.u32 %v3306, 7
    %v3308 = vsub.s32 %v3305, %v3307
    %v3309 = vrot.slane %v3281, %v3308
    %v3310 = vcombine.high %v3288, %v3288
    %v3311 = vcombine.high %v3295, %v3295
    %v3312 = vcombine.high %v3302, %v3302
    %v3313 = vcombine.high %v3309, %v3309
    %v3314 = vcombine.high %v3258, %v3258
    %v3316 = vunpack.c.l.s4 1966171168
    %v3317 = vunpack.c.0.s8 %v3316
    %v3318 = vlaneseq
    %v3319 = vshrl.u32 %v3318, 7
    %v3320 = vsub.s32 %v3317, %v3319
    %v3321 = vrot.slane %v3258, %v3320
    %v3323 = vunpack.c.l.s4 1966171168
    %v3324 = vunpack.c.0.s8 %v3323
    %v3325 = vlaneseq
    %v3326 = vshrl.u32 %v3325, 7
    %v3327 = vsub.s32 %v3324, %v3326
    %v3328 = vrot.slane %v3314, %v3327
    %v3329 = vcombine.high %v3321, %v3321
    %v3330 = vcombine.high %v3328, %v3328
    %v3332 = vunpack.c.l.s4 1966171168
    %v3333 = vunpack.c.0.s8 %v3332
    %v3334 = vlaneseq
    %v3335 = vshrl.u32 %v3334, 7
    %v3336 = vsub.s32 %v3333, %v3335
    %v3337 = vrot.slane %v3321, %v3336
    %v3339 = vunpack.c.l.s4 1966171168
    %v3340 = vunpack.c.0.s8 %v3339
    %v3341 = vlaneseq
    %v3342 = vshrl.u32 %v3341, 7
    %v3343 = vsub.s32 %v3340, %v3342
    %v3344 = vrot.slane %v3328, %v3343
    %v3346 = vunpack.c.l.s4 1966171168
    %v3347 = vunpack.c.0.s8 %v3346
    %v3348 = vlaneseq
    %v3349 = vshrl.u32 %v3348, 7
    %v3350 = vsub.s32 %v3347, %v3349
    %v3351 = vrot.slane %v3329, %v3350
    %v3353 = vunpack.c.l.s4 1966171168
    %v3354 = vunpack.c.0.s8 %v3353
    %v3355 = vlaneseq
    %v3356 = vshrl.u32 %v3355, 7
    %v3357 = vsub.s32 %v3354, %v3356
    %v3358 = vrot.slane %v3330, %v3357
    %v3359 = vcombine.high %v3337, %v3337
    %v3360 = vcombine.high %v3344, %v3344
    %v3361 = vcombine.high %v3351, %v3351
    %v3362 = vcombine.high %v3358, %v3358
    %v3363 = vcombine.high %v3259, %v3259
    %v3365 = vunpack.c.l.s4 1966171168
    %v3366 = vunpack.c.0.s8 %v3365
    %v3367 = vlaneseq
    %v3368 = vshrl.u32 %v3367, 7
    %v3369 = vsub.s32 %v3366, %v3368
    %v3370 = vrot.slane %v3259, %v3369
    %v3372 = vunpack.c.l.s4 1966171168
    %v3373 = vunpack.c.0.s8 %v3372
    %v3374 = vlaneseq
    %v3375 = vshrl.u32 %v3374, 7
    %v3376 = vsub.s32 %v3373, %v3375
    %v3377 = vrot.slane %v3363, %v3376
    %v3378 = vcombine.high %v3370, %v3370
    %v3379 = vcombine.high %v3377, %v3377
    %v3381 = vunpack.c.l.s4 1966171168
    %v3382 = vunpack.c.0.s8 %v3381
    %v3383 = vlaneseq
    %v3384 = vshrl.u32 %v3383, 7
    %v3385 = vsub.s32 %v3382, %v3384
    %v3386 = vrot.slane %v3370, %v3385
    %v3388 = vunpack.c.l.s4 1966171168
    %v3389 = vunpack.c.0.s8 %v3388
    %v3390 = vlaneseq
    %v3391 = vshrl.u32 %v3390, 7
    %v3392 = vsub.s32 %v3389, %v3391
    %v3393 = vrot.slane %v3377, %v3392
    %v3395 = vunpack.c.l.s4 1966171168
    %v3396 = vunpack.c.0.s8 %v3395
    %v3397 = vlaneseq
    %v3398 = vshrl.u32 %v3397, 7
    %v3399 = vsub.s32 %v3396, %v3398
    %v3400 = vrot.slane %v3378, %v3399
    %v3402 = vunpack.c.l.s4 1966171168
    %v3403 = vunpack.c.0.s8 %v3402
    %v3404 = vlaneseq
    %v3405 = vshrl.u32 %v3404, 7
    %v3406 = vsub.s32 %v3403, %v3405
    %v3407 = vrot.slane %v3379, %v3406
    %v3408 = vcombine.high %v3386, %v3386
    %v3409 = vcombine.high %v3393, %v3393
    %v3410 = vcombine.high %v3400, %v3400
    %v3411 = vcombine.high %v3407, %v3407
    %v3412 = vcombine.high %v3260, %v3260
    %v3414 = vunpack.c.l.s4 1966171168
    %v3415 = vunpack.c.0.s8 %v3414
    %v3416 = vlaneseq
    %v3417 = vshrl.u32 %v3416, 7
    %v3418 = vsub.s32 %v3415, %v3417
    %v3419 = vrot.slane %v3260, %v3418
    %v3421 = vunpack.c.l.s4 1966171168
    %v3422 = vunpack.c.0.s8 %v3421
    %v3423 = vlaneseq
    %v3424 = vshrl.u32 %v3423, 7
    %v3425 = vsub.s32 %v3422, %v3424
    %v3426 = vrot.slane %v3412, %v3425
    %v3427 = vcombine.high %v3419, %v3419
    %v3428 = vcombine.high %v3426, %v3426
    %v3430 = vunpack.c.l.s4 1966171168
    %v3431 = vunpack.c.0.s8 %v3430
    %v3432 = vlaneseq
    %v3433 = vshrl.u32 %v3432, 7
    %v3434 = vsub.s32 %v3431, %v3433
    %v3435 = vrot.slane %v3419, %v3434
    %v3437 = vunpack.c.l.s4 1966171168
    %v3438 = vunpack.c.0.s8 %v3437
    %v3439 = vlaneseq
    %v3440 = vshrl.u32 %v3439, 7
    %v3441 = vsub.s32 %v3438, %v3440
    %v3442 = vrot.slane %v3426, %v3441
    %v3444 = vunpack.c.l.s4 1966171168
    %v3445 = vunpack.c.0.s8 %v3444
    %v3446 = vlaneseq
    %v3447 = vshrl.u32 %v3446, 7
    %v3448 = vsub.s32 %v3445, %v3447
    %v3449 = vrot.slane %v3427, %v3448
    %v3451 = vunpack.c.l.s4 1966171168
    %v3452 = vunpack.c.0.s8 %v3451
    %v3453 = vlaneseq
    %v3454 = vshrl.u32 %v3453, 7
    %v3455 = vsub.s32 %v3452, %v3454
    %v3456 = vrot.slane %v3428, %v3455
    %v3457 = vcombine.high %v3435, %v3435
    %v3458 = vcombine.high %v3442, %v3442
    %v3459 = vcombine.high %v3449, %v3449
    %v3460 = vcombine.high %v3456, %v3456
    %3493 = vst [vmem:[%s9 + $0x4] sm:$0x1] %v3288
    %3494 = vst [vmem:[%s9 + $0x14] sm:$0x1] %v3302
    %3495 = vst [vmem:[%s9 + $0x24] sm:$0x1] %v3310
    %3496 = vst [vmem:[%s9 + $0x34] sm:$0x1] %v3312
    %3497 = vst [vmem:[%s9 + $0x44] sm:$0x1] %v3295
    %3498 = vst [vmem:[%s9 + $0x54] sm:$0x1] %v3309
    %3499 = vst [vmem:[%s9 + $0x64] sm:$0x1] %v3311
    %3500 = vst [vmem:[%s9 + $0x74] sm:$0x1] %v3313
    %3501 = vst [vmem:[%s9 + $0x84] sm:$0x1] %v3337
    %3502 = vst [vmem:[%s9 + $0x94] sm:$0x1] %v3351
    %3503 = vst [vmem:[%s9 + $0xa4] sm:$0x1] %v3359
    %3504 = vst [vmem:[%s9 + $0xb4] sm:$0x1] %v3361
    %3505 = vst [vmem:[%s9 + $0xc4] sm:$0x1] %v3344
    %3506 = vst [vmem:[%s9 + $0xd4] sm:$0x1] %v3358
    %3507 = vst [vmem:[%s9 + $0xe4] sm:$0x1] %v3360
    %3508 = vst [vmem:[%s9 + $0xf4] sm:$0x1] %v3362
    %3509 = vst [vmem:[%s9 + $0x104] sm:$0x1] %v3386
    %3510 = vst [vmem:[%s9 + $0x114] sm:$0x1] %v3400
    %3511 = vst [vmem:[%s9 + $0x124] sm:$0x1] %v3408
    %3512 = vst [vmem:[%s9 + $0x134] sm:$0x1] %v3410
    %3513 = vst [vmem:[%s9 + $0x144] sm:$0x1] %v3393
    %3514 = vst [vmem:[%s9 + $0x154] sm:$0x1] %v3407
    %3515 = vst [vmem:[%s9 + $0x164] sm:$0x1] %v3409
    %3516 = vst [vmem:[%s9 + $0x174] sm:$0x1] %v3411
    %3517 = vst [vmem:[%s9 + $0x184] sm:$0x1] %v3435
    %3518 = vst [vmem:[%s9 + $0x194] sm:$0x1] %v3449
    %3519 = vst [vmem:[%s9 + $0x1a4] sm:$0x1] %v3457
    %3520 = vst [vmem:[%s9 + $0x1b4] sm:$0x1] %v3459
    %3521 = vst [vmem:[%s9 + $0x1c4] sm:$0x1] %v3442
    %3522 = vst [vmem:[%s9 + $0x1d4] sm:$0x1] %v3456
    %3523 = vst [vmem:[%s9 + $0x1e4] sm:$0x1] %v3458
    %3524 = vst [vmem:[%s9 + $0x1f4] sm:$0x1] %v3460
    %s3525 = scalar_lea.vmem [#allocation2], 160
    %v3526 = vld [vmem:[%s3525] sm:$0xff]
    %v3527 = vld [vmem:[%s3525 + $0x8] sm:$0xff]
    %v3528 = vld [vmem:[%s3525 + $0x10] sm:$0xff]
    %v3529 = vld [vmem:[%s3525 + $0x18] sm:$0xff]
    %v3534 = vcombine.high %v3526, %v3526
    %v3536 = vunpack.c.l.s4 1966171168
    %v3537 = vunpack.c.0.s8 %v3536
    %v3538 = vlaneseq
    %v3539 = vshrl.u32 %v3538, 7
    %v3540 = vsub.s32 %v3537, %v3539
    %v3541 = vrot.slane %v3526, %v3540
    %v3543 = vunpack.c.l.s4 1966171168
    %v3544 = vunpack.c.0.s8 %v3543
    %v3545 = vlaneseq
    %v3546 = vshrl.u32 %v3545, 7
    %v3547 = vsub.s32 %v3544, %v3546
    %v3548 = vrot.slane %v3534, %v3547
    %v3549 = vcombine.high %v3541, %v3541
    %v3550 = vcombine.high %v3548, %v3548
    %v3552 = vunpack.c.l.s4 1966171168
    %v3553 = vunpack.c.0.s8 %v3552
    %v3554 = vlaneseq
    %v3555 = vshrl.u32 %v3554, 7
    %v3556 = vsub.s32 %v3553, %v3555
    %v3557 = vrot.slane %v3541, %v3556
    %v3559 = vunpack.c.l.s4 1966171168
    %v3560 = vunpack.c.0.s8 %v3559
    %v3561 = vlaneseq
    %v3562 = vshrl.u32 %v3561, 7
    %v3563 = vsub.s32 %v3560, %v3562
    %v3564 = vrot.slane %v3548, %v3563
    %v3566 = vunpack.c.l.s4 1966171168
    %v3567 = vunpack.c.0.s8 %v3566
    %v3568 = vlaneseq
    %v3569 = vshrl.u32 %v3568, 7
    %v3570 = vsub.s32 %v3567, %v3569
    %v3571 = vrot.slane %v3549, %v3570
    %v3573 = vunpack.c.l.s4 1966171168
    %v3574 = vunpack.c.0.s8 %v3573
    %v3575 = vlaneseq
    %v3576 = vshrl.u32 %v3575, 7
    %v3577 = vsub.s32 %v3574, %v3576
    %v3578 = vrot.slane %v3550, %v3577
    %v3579 = vcombine.high %v3557, %v3557
    %v3580 = vcombine.high %v3564, %v3564
    %v3581 = vcombine.high %v3571, %v3571
    %v3582 = vcombine.high %v3578, %v3578
    %v3583 = vcombine.high %v3527, %v3527
    %v3585 = vunpack.c.l.s4 1966171168
    %v3586 = vunpack.c.0.s8 %v3585
    %v3587 = vlaneseq
    %v3588 = vshrl.u32 %v3587, 7
    %v3589 = vsub.s32 %v3586, %v3588
    %v3590 = vrot.slane %v3527, %v3589
    %v3592 = vunpack.c.l.s4 1966171168
    %v3593 = vunpack.c.0.s8 %v3592
    %v3594 = vlaneseq
    %v3595 = vshrl.u32 %v3594, 7
    %v3596 = vsub.s32 %v3593, %v3595
    %v3597 = vrot.slane %v3583, %v3596
    %v3598 = vcombine.high %v3590, %v3590
    %v3599 = vcombine.high %v3597, %v3597
    %v3601 = vunpack.c.l.s4 1966171168
    %v3602 = vunpack.c.0.s8 %v3601
    %v3603 = vlaneseq
    %v3604 = vshrl.u32 %v3603, 7
    %v3605 = vsub.s32 %v3602, %v3604
    %v3606 = vrot.slane %v3590, %v3605
    %v3608 = vunpack.c.l.s4 1966171168
    %v3609 = vunpack.c.0.s8 %v3608
    %v3610 = vlaneseq
    %v3611 = vshrl.u32 %v3610, 7
    %v3612 = vsub.s32 %v3609, %v3611
    %v3613 = vrot.slane %v3597, %v3612
    %v3615 = vunpack.c.l.s4 1966171168
    %v3616 = vunpack.c.0.s8 %v3615
    %v3617 = vlaneseq
    %v3618 = vshrl.u32 %v3617, 7
    %v3619 = vsub.s32 %v3616, %v3618
    %v3620 = vrot.slane %v3598, %v3619
    %v3622 = vunpack.c.l.s4 1966171168
    %v3623 = vunpack.c.0.s8 %v3622
    %v3624 = vlaneseq
    %v3625 = vshrl.u32 %v3624, 7
    %v3626 = vsub.s32 %v3623, %v3625
    %v3627 = vrot.slane %v3599, %v3626
    %v3628 = vcombine.high %v3606, %v3606
    %v3629 = vcombine.high %v3613, %v3613
    %v3630 = vcombine.high %v3620, %v3620
    %v3631 = vcombine.high %v3627, %v3627
    %v3632 = vcombine.high %v3528, %v3528
    %v3634 = vunpack.c.l.s4 1966171168
    %v3635 = vunpack.c.0.s8 %v3634
    %v3636 = vlaneseq
    %v3637 = vshrl.u32 %v3636, 7
    %v3638 = vsub.s32 %v3635, %v3637
    %v3639 = vrot.slane %v3528, %v3638
    %v3641 = vunpack.c.l.s4 1966171168
    %v3642 = vunpack.c.0.s8 %v3641
    %v3643 = vlaneseq
    %v3644 = vshrl.u32 %v3643, 7
    %v3645 = vsub.s32 %v3642, %v3644
    %v3646 = vrot.slane %v3632, %v3645
    %v3647 = vcombine.high %v3639, %v3639
    %v3648 = vcombine.high %v3646, %v3646
    %v3650 = vunpack.c.l.s4 1966171168
    %v3651 = vunpack.c.0.s8 %v3650
    %v3652 = vlaneseq
    %v3653 = vshrl.u32 %v3652, 7
    %v3654 = vsub.s32 %v3651, %v3653
    %v3655 = vrot.slane %v3639, %v3654
    %v3657 = vunpack.c.l.s4 1966171168
    %v3658 = vunpack.c.0.s8 %v3657
    %v3659 = vlaneseq
    %v3660 = vshrl.u32 %v3659, 7
    %v3661 = vsub.s32 %v3658, %v3660
    %v3662 = vrot.slane %v3646, %v3661
    %v3664 = vunpack.c.l.s4 1966171168
    %v3665 = vunpack.c.0.s8 %v3664
    %v3666 = vlaneseq
    %v3667 = vshrl.u32 %v3666, 7
    %v3668 = vsub.s32 %v3665, %v3667
    %v3669 = vrot.slane %v3647, %v3668
    %v3671 = vunpack.c.l.s4 1966171168
    %v3672 = vunpack.c.0.s8 %v3671
    %v3673 = vlaneseq
    %v3674 = vshrl.u32 %v3673, 7
    %v3675 = vsub.s32 %v3672, %v3674
    %v3676 = vrot.slane %v3648, %v3675
    %v3677 = vcombine.high %v3655, %v3655
    %v3678 = vcombine.high %v3662, %v3662
    %v3679 = vcombine.high %v3669, %v3669
    %v3680 = vcombine.high %v3676, %v3676
    %v3681 = vcombine.high %v3529, %v3529
    %v3683 = vunpack.c.l.s4 1966171168
    %v3684 = vunpack.c.0.s8 %v3683
    %v3685 = vlaneseq
    %v3686 = vshrl.u32 %v3685, 7
    %v3687 = vsub.s32 %v3684, %v3686
    %v3688 = vrot.slane %v3529, %v3687
    %v3690 = vunpack.c.l.s4 1966171168
    %v3691 = vunpack.c.0.s8 %v3690
    %v3692 = vlaneseq
    %v3693 = vshrl.u32 %v3692, 7
    %v3694 = vsub.s32 %v3691, %v3693
    %v3695 = vrot.slane %v3681, %v3694
    %v3696 = vcombine.high %v3688, %v3688
    %v3697 = vcombine.high %v3695, %v3695
    %v3699 = vunpack.c.l.s4 1966171168
    %v3700 = vunpack.c.0.s8 %v3699
    %v3701 = vlaneseq
    %v3702 = vshrl.u32 %v3701, 7
    %v3703 = vsub.s32 %v3700, %v3702
    %v3704 = vrot.slane %v3688, %v3703
    %v3706 = vunpack.c.l.s4 1966171168
    %v3707 = vunpack.c.0.s8 %v3706
    %v3708 = vlaneseq
    %v3709 = vshrl.u32 %v3708, 7
    %v3710 = vsub.s32 %v3707, %v3709
    %v3711 = vrot.slane %v3695, %v3710
    %v3713 = vunpack.c.l.s4 1966171168
    %v3714 = vunpack.c.0.s8 %v3713
    %v3715 = vlaneseq
    %v3716 = vshrl.u32 %v3715, 7
    %v3717 = vsub.s32 %v3714, %v3716
    %v3718 = vrot.slane %v3696, %v3717
    %v3720 = vunpack.c.l.s4 1966171168
    %v3721 = vunpack.c.0.s8 %v3720
    %v3722 = vlaneseq
    %v3723 = vshrl.u32 %v3722, 7
    %v3724 = vsub.s32 %v3721, %v3723
    %v3725 = vrot.slane %v3697, %v3724
    %v3726 = vcombine.high %v3704, %v3704
    %v3727 = vcombine.high %v3711, %v3711
    %v3728 = vcombine.high %v3718, %v3718
    %v3729 = vcombine.high %v3725, %v3725
    %3762 = vst [vmem:[%s9 + $0x5] sm:$0x1] %v3557
    %3763 = vst [vmem:[%s9 + $0x15] sm:$0x1] %v3571
    %3764 = vst [vmem:[%s9 + $0x25] sm:$0x1] %v3579
    %3765 = vst [vmem:[%s9 + $0x35] sm:$0x1] %v3581
    %3766 = vst [vmem:[%s9 + $0x45] sm:$0x1] %v3564
    %3767 = vst [vmem:[%s9 + $0x55] sm:$0x1] %v3578
    %3768 = vst [vmem:[%s9 + $0x65] sm:$0x1] %v3580
    %3769 = vst [vmem:[%s9 + $0x75] sm:$0x1] %v3582
    %3770 = vst [vmem:[%s9 + $0x85] sm:$0x1] %v3606
    %3771 = vst [vmem:[%s9 + $0x95] sm:$0x1] %v3620
    %3772 = vst [vmem:[%s9 + $0xa5] sm:$0x1] %v3628
    %3773 = vst [vmem:[%s9 + $0xb5] sm:$0x1] %v3630
    %3774 = vst [vmem:[%s9 + $0xc5] sm:$0x1] %v3613
    %3775 = vst [vmem:[%s9 + $0xd5] sm:$0x1] %v3627
    %3776 = vst [vmem:[%s9 + $0xe5] sm:$0x1] %v3629
    %3777 = vst [vmem:[%s9 + $0xf5] sm:$0x1] %v3631
    %3778 = vst [vmem:[%s9 + $0x105] sm:$0x1] %v3655
    %3779 = vst [vmem:[%s9 + $0x115] sm:$0x1] %v3669
    %3780 = vst [vmem:[%s9 + $0x125] sm:$0x1] %v3677
    %3781 = vst [vmem:[%s9 + $0x135] sm:$0x1] %v3679
    %3782 = vst [vmem:[%s9 + $0x145] sm:$0x1] %v3662
    %3783 = vst [vmem:[%s9 + $0x155] sm:$0x1] %v3676
    %3784 = vst [vmem:[%s9 + $0x165] sm:$0x1] %v3678
    %3785 = vst [vmem:[%s9 + $0x175] sm:$0x1] %v3680
    %3786 = vst [vmem:[%s9 + $0x185] sm:$0x1] %v3704
    %3787 = vst [vmem:[%s9 + $0x195] sm:$0x1] %v3718
    %3788 = vst [vmem:[%s9 + $0x1a5] sm:$0x1] %v3726
    %3789 = vst [vmem:[%s9 + $0x1b5] sm:$0x1] %v3728
    %3790 = vst [vmem:[%s9 + $0x1c5] sm:$0x1] %v3711
    %3791 = vst [vmem:[%s9 + $0x1d5] sm:$0x1] %v3725
    %3792 = vst [vmem:[%s9 + $0x1e5] sm:$0x1] %v3727
    %3793 = vst [vmem:[%s9 + $0x1f5] sm:$0x1] %v3729
    %s3794 = scalar_lea.vmem [#allocation2], 192
    %v3795 = vld [vmem:[%s3794] sm:$0xff]
    %v3796 = vld [vmem:[%s3794 + $0x8] sm:$0xff]
    %v3797 = vld [vmem:[%s3794 + $0x10] sm:$0xff]
    %v3798 = vld [vmem:[%s3794 + $0x18] sm:$0xff]
    %v3803 = vcombine.high %v3795, %v3795
    %v3805 = vunpack.c.l.s4 1966171168
    %v3806 = vunpack.c.0.s8 %v3805
    %v3807 = vlaneseq
    %v3808 = vshrl.u32 %v3807, 7
    %v3809 = vsub.s32 %v3806, %v3808
    %v3810 = vrot.slane %v3795, %v3809
    %v3812 = vunpack.c.l.s4 1966171168
    %v3813 = vunpack.c.0.s8 %v3812
    %v3814 = vlaneseq
    %v3815 = vshrl.u32 %v3814, 7
    %v3816 = vsub.s32 %v3813, %v3815
    %v3817 = vrot.slane %v3803, %v3816
    %v3818 = vcombine.high %v3810, %v3810
    %v3819 = vcombine.high %v3817, %v3817
    %v3821 = vunpack.c.l.s4 1966171168
    %v3822 = vunpack.c.0.s8 %v3821
    %v3823 = vlaneseq
    %v3824 = vshrl.u32 %v3823, 7
    %v3825 = vsub.s32 %v3822, %v3824
    %v3826 = vrot.slane %v3810, %v3825
    %v3828 = vunpack.c.l.s4 1966171168
    %v3829 = vunpack.c.0.s8 %v3828
    %v3830 = vlaneseq
    %v3831 = vshrl.u32 %v3830, 7
    %v3832 = vsub.s32 %v3829, %v3831
    %v3833 = vrot.slane %v3817, %v3832
    %v3835 = vunpack.c.l.s4 1966171168
    %v3836 = vunpack.c.0.s8 %v3835
    %v3837 = vlaneseq
    %v3838 = vshrl.u32 %v3837, 7
    %v3839 = vsub.s32 %v3836, %v3838
    %v3840 = vrot.slane %v3818, %v3839
    %v3842 = vunpack.c.l.s4 1966171168
    %v3843 = vunpack.c.0.s8 %v3842
    %v3844 = vlaneseq
    %v3845 = vshrl.u32 %v3844, 7
    %v3846 = vsub.s32 %v3843, %v3845
    %v3847 = vrot.slane %v3819, %v3846
    %v3848 = vcombine.high %v3826, %v3826
    %v3849 = vcombine.high %v3833, %v3833
    %v3850 = vcombine.high %v3840, %v3840
    %v3851 = vcombine.high %v3847, %v3847
    %v3852 = vcombine.high %v3796, %v3796
    %v3854 = vunpack.c.l.s4 1966171168
    %v3855 = vunpack.c.0.s8 %v3854
    %v3856 = vlaneseq
    %v3857 = vshrl.u32 %v3856, 7
    %v3858 = vsub.s32 %v3855, %v3857
    %v3859 = vrot.slane %v3796, %v3858
    %v3861 = vunpack.c.l.s4 1966171168
    %v3862 = vunpack.c.0.s8 %v3861
    %v3863 = vlaneseq
    %v3864 = vshrl.u32 %v3863, 7
    %v3865 = vsub.s32 %v3862, %v3864
    %v3866 = vrot.slane %v3852, %v3865
    %v3867 = vcombine.high %v3859, %v3859
    %v3868 = vcombine.high %v3866, %v3866
    %v3870 = vunpack.c.l.s4 1966171168
    %v3871 = vunpack.c.0.s8 %v3870
    %v3872 = vlaneseq
    %v3873 = vshrl.u32 %v3872, 7
    %v3874 = vsub.s32 %v3871, %v3873
    %v3875 = vrot.slane %v3859, %v3874
    %v3877 = vunpack.c.l.s4 1966171168
    %v3878 = vunpack.c.0.s8 %v3877
    %v3879 = vlaneseq
    %v3880 = vshrl.u32 %v3879, 7
    %v3881 = vsub.s32 %v3878, %v3880
    %v3882 = vrot.slane %v3866, %v3881
    %v3884 = vunpack.c.l.s4 1966171168
    %v3885 = vunpack.c.0.s8 %v3884
    %v3886 = vlaneseq
    %v3887 = vshrl.u32 %v3886, 7
    %v3888 = vsub.s32 %v3885, %v3887
    %v3889 = vrot.slane %v3867, %v3888
    %v3891 = vunpack.c.l.s4 1966171168
    %v3892 = vunpack.c.0.s8 %v3891
    %v3893 = vlaneseq
    %v3894 = vshrl.u32 %v3893, 7
    %v3895 = vsub.s32 %v3892, %v3894
    %v3896 = vrot.slane %v3868, %v3895
    %v3897 = vcombine.high %v3875, %v3875
    %v3898 = vcombine.high %v3882, %v3882
    %v3899 = vcombine.high %v3889, %v3889
    %v3900 = vcombine.high %v3896, %v3896
    %v3901 = vcombine.high %v3797, %v3797
    %v3903 = vunpack.c.l.s4 1966171168
    %v3904 = vunpack.c.0.s8 %v3903
    %v3905 = vlaneseq
    %v3906 = vshrl.u32 %v3905, 7
    %v3907 = vsub.s32 %v3904, %v3906
    %v3908 = vrot.slane %v3797, %v3907
    %v3910 = vunpack.c.l.s4 1966171168
    %v3911 = vunpack.c.0.s8 %v3910
    %v3912 = vlaneseq
    %v3913 = vshrl.u32 %v3912, 7
    %v3914 = vsub.s32 %v3911, %v3913
    %v3915 = vrot.slane %v3901, %v3914
    %v3916 = vcombine.high %v3908, %v3908
    %v3917 = vcombine.high %v3915, %v3915
    %v3919 = vunpack.c.l.s4 1966171168
    %v3920 = vunpack.c.0.s8 %v3919
    %v3921 = vlaneseq
    %v3922 = vshrl.u32 %v3921, 7
    %v3923 = vsub.s32 %v3920, %v3922
    %v3924 = vrot.slane %v3908, %v3923
    %v3926 = vunpack.c.l.s4 1966171168
    %v3927 = vunpack.c.0.s8 %v3926
    %v3928 = vlaneseq
    %v3929 = vshrl.u32 %v3928, 7
    %v3930 = vsub.s32 %v3927, %v3929
    %v3931 = vrot.slane %v3915, %v3930
    %v3933 = vunpack.c.l.s4 1966171168
    %v3934 = vunpack.c.0.s8 %v3933
    %v3935 = vlaneseq
    %v3936 = vshrl.u32 %v3935, 7
    %v3937 = vsub.s32 %v3934, %v3936
    %v3938 = vrot.slane %v3916, %v3937
    %v3940 = vunpack.c.l.s4 1966171168
    %v3941 = vunpack.c.0.s8 %v3940
    %v3942 = vlaneseq
    %v3943 = vshrl.u32 %v3942, 7
    %v3944 = vsub.s32 %v3941, %v3943
    %v3945 = vrot.slane %v3917, %v3944
    %v3946 = vcombine.high %v3924, %v3924
    %v3947 = vcombine.high %v3931, %v3931
    %v3948 = vcombine.high %v3938, %v3938
    %v3949 = vcombine.high %v3945, %v3945
    %v3950 = vcombine.high %v3798, %v3798
    %v3952 = vunpack.c.l.s4 1966171168
    %v3953 = vunpack.c.0.s8 %v3952
    %v3954 = vlaneseq
    %v3955 = vshrl.u32 %v3954, 7
    %v3956 = vsub.s32 %v3953, %v3955
    %v3957 = vrot.slane %v3798, %v3956
    %v3959 = vunpack.c.l.s4 1966171168
    %v3960 = vunpack.c.0.s8 %v3959
    %v3961 = vlaneseq
    %v3962 = vshrl.u32 %v3961, 7
    %v3963 = vsub.s32 %v3960, %v3962
    %v3964 = vrot.slane %v3950, %v3963
    %v3965 = vcombine.high %v3957, %v3957
    %v3966 = vcombine.high %v3964, %v3964
    %v3968 = vunpack.c.l.s4 1966171168
    %v3969 = vunpack.c.0.s8 %v3968
    %v3970 = vlaneseq
    %v3971 = vshrl.u32 %v3970, 7
    %v3972 = vsub.s32 %v3969, %v3971
    %v3973 = vrot.slane %v3957, %v3972
    %v3975 = vunpack.c.l.s4 1966171168
    %v3976 = vunpack.c.0.s8 %v3975
    %v3977 = vlaneseq
    %v3978 = vshrl.u32 %v3977, 7
    %v3979 = vsub.s32 %v3976, %v3978
    %v3980 = vrot.slane %v3964, %v3979
    %v3982 = vunpack.c.l.s4 1966171168
    %v3983 = vunpack.c.0.s8 %v3982
    %v3984 = vlaneseq
    %v3985 = vshrl.u32 %v3984, 7
    %v3986 = vsub.s32 %v3983, %v3985
    %v3987 = vrot.slane %v3965, %v3986
    %v3989 = vunpack.c.l.s4 1966171168
    %v3990 = vunpack.c.0.s8 %v3989
    %v3991 = vlaneseq
    %v3992 = vshrl.u32 %v3991, 7
    %v3993 = vsub.s32 %v3990, %v3992
    %v3994 = vrot.slane %v3966, %v3993
    %v3995 = vcombine.high %v3973, %v3973
    %v3996 = vcombine.high %v3980, %v3980
    %v3997 = vcombine.high %v3987, %v3987
    %v3998 = vcombine.high %v3994, %v3994
    %4031 = vst [vmem:[%s9 + $0x6] sm:$0x1] %v3826
    %4032 = vst [vmem:[%s9 + $0x16] sm:$0x1] %v3840
    %4033 = vst [vmem:[%s9 + $0x26] sm:$0x1] %v3848
    %4034 = vst [vmem:[%s9 + $0x36] sm:$0x1] %v3850
    %4035 = vst [vmem:[%s9 + $0x46] sm:$0x1] %v3833
    %4036 = vst [vmem:[%s9 + $0x56] sm:$0x1] %v3847
    %4037 = vst [vmem:[%s9 + $0x66] sm:$0x1] %v3849
    %4038 = vst [vmem:[%s9 + $0x76] sm:$0x1] %v3851
    %4039 = vst [vmem:[%s9 + $0x86] sm:$0x1] %v3875
    %4040 = vst [vmem:[%s9 + $0x96] sm:$0x1] %v3889
    %4041 = vst [vmem:[%s9 + $0xa6] sm:$0x1] %v3897
    %4042 = vst [vmem:[%s9 + $0xb6] sm:$0x1] %v3899
    %4043 = vst [vmem:[%s9 + $0xc6] sm:$0x1] %v3882
    %4044 = vst [vmem:[%s9 + $0xd6] sm:$0x1] %v3896
    %4045 = vst [vmem:[%s9 + $0xe6] sm:$0x1] %v3898
    %4046 = vst [vmem:[%s9 + $0xf6] sm:$0x1] %v3900
    %4047 = vst [vmem:[%s9 + $0x106] sm:$0x1] %v3924
    %4048 = vst [vmem:[%s9 + $0x116] sm:$0x1] %v3938
    %4049 = vst [vmem:[%s9 + $0x126] sm:$0x1] %v3946
    %4050 = vst [vmem:[%s9 + $0x136] sm:$0x1] %v3948
    %4051 = vst [vmem:[%s9 + $0x146] sm:$0x1] %v3931
    %4052 = vst [vmem:[%s9 + $0x156] sm:$0x1] %v3945
    %4053 = vst [vmem:[%s9 + $0x166] sm:$0x1] %v3947
    %4054 = vst [vmem:[%s9 + $0x176] sm:$0x1] %v3949
    %4055 = vst [vmem:[%s9 + $0x186] sm:$0x1] %v3973
    %4056 = vst [vmem:[%s9 + $0x196] sm:$0x1] %v3987
    %4057 = vst [vmem:[%s9 + $0x1a6] sm:$0x1] %v3995
    %4058 = vst [vmem:[%s9 + $0x1b6] sm:$0x1] %v3997
    %4059 = vst [vmem:[%s9 + $0x1c6] sm:$0x1] %v3980
    %4060 = vst [vmem:[%s9 + $0x1d6] sm:$0x1] %v3994
    %4061 = vst [vmem:[%s9 + $0x1e6] sm:$0x1] %v3996
    %4062 = vst [vmem:[%s9 + $0x1f6] sm:$0x1] %v3998
    %s4063 = scalar_lea.vmem [#allocation2], 224
    %v4064 = vld [vmem:[%s4063] sm:$0xff]
    %v4065 = vld [vmem:[%s4063 + $0x8] sm:$0xff]
    %v4066 = vld [vmem:[%s4063 + $0x10] sm:$0xff]
    %v4067 = vld [vmem:[%s4063 + $0x18] sm:$0xff]
    %v4072 = vcombine.high %v4064, %v4064
    %v4074 = vunpack.c.l.s4 1966171168
    %v4075 = vunpack.c.0.s8 %v4074
    %v4076 = vlaneseq
    %v4077 = vshrl.u32 %v4076, 7
    %v4078 = vsub.s32 %v4075, %v4077
    %v4079 = vrot.slane %v4064, %v4078
    %v4081 = vunpack.c.l.s4 1966171168
    %v4082 = vunpack.c.0.s8 %v4081
    %v4083 = vlaneseq
    %v4084 = vshrl.u32 %v4083, 7
    %v4085 = vsub.s32 %v4082, %v4084
    %v4086 = vrot.slane %v4072, %v4085
    %v4087 = vcombine.high %v4079, %v4079
    %v4088 = vcombine.high %v4086, %v4086
    %v4090 = vunpack.c.l.s4 1966171168
    %v4091 = vunpack.c.0.s8 %v4090
    %v4092 = vlaneseq
    %v4093 = vshrl.u32 %v4092, 7
    %v4094 = vsub.s32 %v4091, %v4093
    %v4095 = vrot.slane %v4079, %v4094
    %v4097 = vunpack.c.l.s4 1966171168
    %v4098 = vunpack.c.0.s8 %v4097
    %v4099 = vlaneseq
    %v4100 = vshrl.u32 %v4099, 7
    %v4101 = vsub.s32 %v4098, %v4100
    %v4102 = vrot.slane %v4086, %v4101
    %v4104 = vunpack.c.l.s4 1966171168
    %v4105 = vunpack.c.0.s8 %v4104
    %v4106 = vlaneseq
    %v4107 = vshrl.u32 %v4106, 7
    %v4108 = vsub.s32 %v4105, %v4107
    %v4109 = vrot.slane %v4087, %v4108
    %v4111 = vunpack.c.l.s4 1966171168
    %v4112 = vunpack.c.0.s8 %v4111
    %v4113 = vlaneseq
    %v4114 = vshrl.u32 %v4113, 7
    %v4115 = vsub.s32 %v4112, %v4114
    %v4116 = vrot.slane %v4088, %v4115
    %v4117 = vcombine.high %v4095, %v4095
    %v4118 = vcombine.high %v4102, %v4102
    %v4119 = vcombine.high %v4109, %v4109
    %v4120 = vcombine.high %v4116, %v4116
    %v4121 = vcombine.high %v4065, %v4065
    %v4123 = vunpack.c.l.s4 1966171168
    %v4124 = vunpack.c.0.s8 %v4123
    %v4125 = vlaneseq
    %v4126 = vshrl.u32 %v4125, 7
    %v4127 = vsub.s32 %v4124, %v4126
    %v4128 = vrot.slane %v4065, %v4127
    %v4130 = vunpack.c.l.s4 1966171168
    %v4131 = vunpack.c.0.s8 %v4130
    %v4132 = vlaneseq
    %v4133 = vshrl.u32 %v4132, 7
    %v4134 = vsub.s32 %v4131, %v4133
    %v4135 = vrot.slane %v4121, %v4134
    %v4136 = vcombine.high %v4128, %v4128
    %v4137 = vcombine.high %v4135, %v4135
    %v4139 = vunpack.c.l.s4 1966171168
    %v4140 = vunpack.c.0.s8 %v4139
    %v4141 = vlaneseq
    %v4142 = vshrl.u32 %v4141, 7
    %v4143 = vsub.s32 %v4140, %v4142
    %v4144 = vrot.slane %v4128, %v4143
    %v4146 = vunpack.c.l.s4 1966171168
    %v4147 = vunpack.c.0.s8 %v4146
    %v4148 = vlaneseq
    %v4149 = vshrl.u32 %v4148, 7
    %v4150 = vsub.s32 %v4147, %v4149
    %v4151 = vrot.slane %v4135, %v4150
    %v4153 = vunpack.c.l.s4 1966171168
    %v4154 = vunpack.c.0.s8 %v4153
    %v4155 = vlaneseq
    %v4156 = vshrl.u32 %v4155, 7
    %v4157 = vsub.s32 %v4154, %v4156
    %v4158 = vrot.slane %v4136, %v4157
    %v4160 = vunpack.c.l.s4 1966171168
    %v4161 = vunpack.c.0.s8 %v4160
    %v4162 = vlaneseq
    %v4163 = vshrl.u32 %v4162, 7
    %v4164 = vsub.s32 %v4161, %v4163
    %v4165 = vrot.slane %v4137, %v4164
    %v4166 = vcombine.high %v4144, %v4144
    %v4167 = vcombine.high %v4151, %v4151
    %v4168 = vcombine.high %v4158, %v4158
    %v4169 = vcombine.high %v4165, %v4165
    %v4170 = vcombine.high %v4066, %v4066
    %v4172 = vunpack.c.l.s4 1966171168
    %v4173 = vunpack.c.0.s8 %v4172
    %v4174 = vlaneseq
    %v4175 = vshrl.u32 %v4174, 7
    %v4176 = vsub.s32 %v4173, %v4175
    %v4177 = vrot.slane %v4066, %v4176
    %v4179 = vunpack.c.l.s4 1966171168
    %v4180 = vunpack.c.0.s8 %v4179
    %v4181 = vlaneseq
    %v4182 = vshrl.u32 %v4181, 7
    %v4183 = vsub.s32 %v4180, %v4182
    %v4184 = vrot.slane %v4170, %v4183
    %v4185 = vcombine.high %v4177, %v4177
    %v4186 = vcombine.high %v4184, %v4184
    %v4188 = vunpack.c.l.s4 1966171168
    %v4189 = vunpack.c.0.s8 %v4188
    %v4190 = vlaneseq
    %v4191 = vshrl.u32 %v4190, 7
    %v4192 = vsub.s32 %v4189, %v4191
    %v4193 = vrot.slane %v4177, %v4192
    %v4195 = vunpack.c.l.s4 1966171168
    %v4196 = vunpack.c.0.s8 %v4195
    %v4197 = vlaneseq
    %v4198 = vshrl.u32 %v4197, 7
    %v4199 = vsub.s32 %v4196, %v4198
    %v4200 = vrot.slane %v4184, %v4199
    %v4202 = vunpack.c.l.s4 1966171168
    %v4203 = vunpack.c.0.s8 %v4202
    %v4204 = vlaneseq
    %v4205 = vshrl.u32 %v4204, 7
    %v4206 = vsub.s32 %v4203, %v4205
    %v4207 = vrot.slane %v4185, %v4206
    %v4209 = vunpack.c.l.s4 1966171168
    %v4210 = vunpack.c.0.s8 %v4209
    %v4211 = vlaneseq
    %v4212 = vshrl.u32 %v4211, 7
    %v4213 = vsub.s32 %v4210, %v4212
    %v4214 = vrot.slane %v4186, %v4213
    %v4215 = vcombine.high %v4193, %v4193
    %v4216 = vcombine.high %v4200, %v4200
    %v4217 = vcombine.high %v4207, %v4207
    %v4218 = vcombine.high %v4214, %v4214
    %v4219 = vcombine.high %v4067, %v4067
    %v4221 = vunpack.c.l.s4 1966171168
    %v4222 = vunpack.c.0.s8 %v4221
    %v4223 = vlaneseq
    %v4224 = vshrl.u32 %v4223, 7
    %v4225 = vsub.s32 %v4222, %v4224
    %v4226 = vrot.slane %v4067, %v4225
    %v4228 = vunpack.c.l.s4 1966171168
    %v4229 = vunpack.c.0.s8 %v4228
    %v4230 = vlaneseq
    %v4231 = vshrl.u32 %v4230, 7
    %v4232 = vsub.s32 %v4229, %v4231
    %v4233 = vrot.slane %v4219, %v4232
    %v4234 = vcombine.high %v4226, %v4226
    %v4235 = vcombine.high %v4233, %v4233
    %v4237 = vunpack.c.l.s4 1966171168
    %v4238 = vunpack.c.0.s8 %v4237
    %v4239 = vlaneseq
    %v4240 = vshrl.u32 %v4239, 7
    %v4241 = vsub.s32 %v4238, %v4240
    %v4242 = vrot.slane %v4226, %v4241
    %v4244 = vunpack.c.l.s4 1966171168
    %v4245 = vunpack.c.0.s8 %v4244
    %v4246 = vlaneseq
    %v4247 = vshrl.u32 %v4246, 7
    %v4248 = vsub.s32 %v4245, %v4247
    %v4249 = vrot.slane %v4233, %v4248
    %v4251 = vunpack.c.l.s4 1966171168
    %v4252 = vunpack.c.0.s8 %v4251
    %v4253 = vlaneseq
    %v4254 = vshrl.u32 %v4253, 7
    %v4255 = vsub.s32 %v4252, %v4254
    %v4256 = vrot.slane %v4234, %v4255
    %v4258 = vunpack.c.l.s4 1966171168
    %v4259 = vunpack.c.0.s8 %v4258
    %v4260 = vlaneseq
    %v4261 = vshrl.u32 %v4260, 7
    %v4262 = vsub.s32 %v4259, %v4261
    %v4263 = vrot.slane %v4235, %v4262
    %v4264 = vcombine.high %v4242, %v4242
    %v4265 = vcombine.high %v4249, %v4249
    %v4266 = vcombine.high %v4256, %v4256
    %v4267 = vcombine.high %v4263, %v4263
    %4300 = vst [vmem:[%s9 + $0x7] sm:$0x1] %v4095
    %4301 = vst [vmem:[%s9 + $0x17] sm:$0x1] %v4109
    %4302 = vst [vmem:[%s9 + $0x27] sm:$0x1] %v4117
    %4303 = vst [vmem:[%s9 + $0x37] sm:$0x1] %v4119
    %4304 = vst [vmem:[%s9 + $0x47] sm:$0x1] %v4102
    %4305 = vst [vmem:[%s9 + $0x57] sm:$0x1] %v4116
    %4306 = vst [vmem:[%s9 + $0x67] sm:$0x1] %v4118
    %4307 = vst [vmem:[%s9 + $0x77] sm:$0x1] %v4120
    %4308 = vst [vmem:[%s9 + $0x87] sm:$0x1] %v4144
    %4309 = vst [vmem:[%s9 + $0x97] sm:$0x1] %v4158
    %4310 = vst [vmem:[%s9 + $0xa7] sm:$0x1] %v4166
    %4311 = vst [vmem:[%s9 + $0xb7] sm:$0x1] %v4168
    %4312 = vst [vmem:[%s9 + $0xc7] sm:$0x1] %v4151
    %4313 = vst [vmem:[%s9 + $0xd7] sm:$0x1] %v4165
    %4314 = vst [vmem:[%s9 + $0xe7] sm:$0x1] %v4167
    %4315 = vst [vmem:[%s9 + $0xf7] sm:$0x1] %v4169
    %4316 = vst [vmem:[%s9 + $0x107] sm:$0x1] %v4193
    %4317 = vst [vmem:[%s9 + $0x117] sm:$0x1] %v4207
    %4318 = vst [vmem:[%s9 + $0x127] sm:$0x1] %v4215
    %4319 = vst [vmem:[%s9 + $0x137] sm:$0x1] %v4217
    %4320 = vst [vmem:[%s9 + $0x147] sm:$0x1] %v4200
    %4321 = vst [vmem:[%s9 + $0x157] sm:$0x1] %v4214
    %4322 = vst [vmem:[%s9 + $0x167] sm:$0x1] %v4216
    %4323 = vst [vmem:[%s9 + $0x177] sm:$0x1] %v4218
    %4324 = vst [vmem:[%s9 + $0x187] sm:$0x1] %v4242
    %4325 = vst [vmem:[%s9 + $0x197] sm:$0x1] %v4256
    %4326 = vst [vmem:[%s9 + $0x1a7] sm:$0x1] %v4264
    %4327 = vst [vmem:[%s9 + $0x1b7] sm:$0x1] %v4266
    %4328 = vst [vmem:[%s9 + $0x1c7] sm:$0x1] %v4249
    %4329 = vst [vmem:[%s9 + $0x1d7] sm:$0x1] %v4263
    %4330 = vst [vmem:[%s9 + $0x1e7] sm:$0x1] %v4265
    %4331 = vst [vmem:[%s9 + $0x1f7] sm:$0x1] %v4267
    %s4332 = scalar_lea.vmem [#allocation2], 256
    %v4333 = vld [vmem:[%s4332] sm:$0xff]
    %v4334 = vld [vmem:[%s4332 + $0x8] sm:$0xff]
    %v4335 = vld [vmem:[%s4332 + $0x10] sm:$0xff]
    %v4336 = vld [vmem:[%s4332 + $0x18] sm:$0xff]
    %v4341 = vcombine.high %v4333, %v4333
    %v4343 = vunpack.c.l.s4 1966171168
    %v4344 = vunpack.c.0.s8 %v4343
    %v4345 = vlaneseq
    %v4346 = vshrl.u32 %v4345, 7
    %v4347 = vsub.s32 %v4344, %v4346
    %v4348 = vrot.slane %v4333, %v4347
    %v4350 = vunpack.c.l.s4 1966171168
    %v4351 = vunpack.c.0.s8 %v4350
    %v4352 = vlaneseq
    %v4353 = vshrl.u32 %v4352, 7
    %v4354 = vsub.s32 %v4351, %v4353
    %v4355 = vrot.slane %v4341, %v4354
    %v4356 = vcombine.high %v4348, %v4348
    %v4357 = vcombine.high %v4355, %v4355
    %v4359 = vunpack.c.l.s4 1966171168
    %v4360 = vunpack.c.0.s8 %v4359
    %v4361 = vlaneseq
    %v4362 = vshrl.u32 %v4361, 7
    %v4363 = vsub.s32 %v4360, %v4362
    %v4364 = vrot.slane %v4348, %v4363
    %v4366 = vunpack.c.l.s4 1966171168
    %v4367 = vunpack.c.0.s8 %v4366
    %v4368 = vlaneseq
    %v4369 = vshrl.u32 %v4368, 7
    %v4370 = vsub.s32 %v4367, %v4369
    %v4371 = vrot.slane %v4355, %v4370
    %v4373 = vunpack.c.l.s4 1966171168
    %v4374 = vunpack.c.0.s8 %v4373
    %v4375 = vlaneseq
    %v4376 = vshrl.u32 %v4375, 7
    %v4377 = vsub.s32 %v4374, %v4376
    %v4378 = vrot.slane %v4356, %v4377
    %v4380 = vunpack.c.l.s4 1966171168
    %v4381 = vunpack.c.0.s8 %v4380
    %v4382 = vlaneseq
    %v4383 = vshrl.u32 %v4382, 7
    %v4384 = vsub.s32 %v4381, %v4383
    %v4385 = vrot.slane %v4357, %v4384
    %v4386 = vcombine.high %v4364, %v4364
    %v4387 = vcombine.high %v4371, %v4371
    %v4388 = vcombine.high %v4378, %v4378
    %v4389 = vcombine.high %v4385, %v4385
    %v4390 = vcombine.high %v4334, %v4334
    %v4392 = vunpack.c.l.s4 1966171168
    %v4393 = vunpack.c.0.s8 %v4392
    %v4394 = vlaneseq
    %v4395 = vshrl.u32 %v4394, 7
    %v4396 = vsub.s32 %v4393, %v4395
    %v4397 = vrot.slane %v4334, %v4396
    %v4399 = vunpack.c.l.s4 1966171168
    %v4400 = vunpack.c.0.s8 %v4399
    %v4401 = vlaneseq
    %v4402 = vshrl.u32 %v4401, 7
    %v4403 = vsub.s32 %v4400, %v4402
    %v4404 = vrot.slane %v4390, %v4403
    %v4405 = vcombine.high %v4397, %v4397
    %v4406 = vcombine.high %v4404, %v4404
    %v4408 = vunpack.c.l.s4 1966171168
    %v4409 = vunpack.c.0.s8 %v4408
    %v4410 = vlaneseq
    %v4411 = vshrl.u32 %v4410, 7
    %v4412 = vsub.s32 %v4409, %v4411
    %v4413 = vrot.slane %v4397, %v4412
    %v4415 = vunpack.c.l.s4 1966171168
    %v4416 = vunpack.c.0.s8 %v4415
    %v4417 = vlaneseq
    %v4418 = vshrl.u32 %v4417, 7
    %v4419 = vsub.s32 %v4416, %v4418
    %v4420 = vrot.slane %v4404, %v4419
    %v4422 = vunpack.c.l.s4 1966171168
    %v4423 = vunpack.c.0.s8 %v4422
    %v4424 = vlaneseq
    %v4425 = vshrl.u32 %v4424, 7
    %v4426 = vsub.s32 %v4423, %v4425
    %v4427 = vrot.slane %v4405, %v4426
    %v4429 = vunpack.c.l.s4 1966171168
    %v4430 = vunpack.c.0.s8 %v4429
    %v4431 = vlaneseq
    %v4432 = vshrl.u32 %v4431, 7
    %v4433 = vsub.s32 %v4430, %v4432
    %v4434 = vrot.slane %v4406, %v4433
    %v4435 = vcombine.high %v4413, %v4413
    %v4436 = vcombine.high %v4420, %v4420
    %v4437 = vcombine.high %v4427, %v4427
    %v4438 = vcombine.high %v4434, %v4434
    %v4439 = vcombine.high %v4335, %v4335
    %v4441 = vunpack.c.l.s4 1966171168
    %v4442 = vunpack.c.0.s8 %v4441
    %v4443 = vlaneseq
    %v4444 = vshrl.u32 %v4443, 7
    %v4445 = vsub.s32 %v4442, %v4444
    %v4446 = vrot.slane %v4335, %v4445
    %v4448 = vunpack.c.l.s4 1966171168
    %v4449 = vunpack.c.0.s8 %v4448
    %v4450 = vlaneseq
    %v4451 = vshrl.u32 %v4450, 7
    %v4452 = vsub.s32 %v4449, %v4451
    %v4453 = vrot.slane %v4439, %v4452
    %v4454 = vcombine.high %v4446, %v4446
    %v4455 = vcombine.high %v4453, %v4453
    %v4457 = vunpack.c.l.s4 1966171168
    %v4458 = vunpack.c.0.s8 %v4457
    %v4459 = vlaneseq
    %v4460 = vshrl.u32 %v4459, 7
    %v4461 = vsub.s32 %v4458, %v4460
    %v4462 = vrot.slane %v4446, %v4461
    %v4464 = vunpack.c.l.s4 1966171168
    %v4465 = vunpack.c.0.s8 %v4464
    %v4466 = vlaneseq
    %v4467 = vshrl.u32 %v4466, 7
    %v4468 = vsub.s32 %v4465, %v4467
    %v4469 = vrot.slane %v4453, %v4468
    %v4471 = vunpack.c.l.s4 1966171168
    %v4472 = vunpack.c.0.s8 %v4471
    %v4473 = vlaneseq
    %v4474 = vshrl.u32 %v4473, 7
    %v4475 = vsub.s32 %v4472, %v4474
    %v4476 = vrot.slane %v4454, %v4475
    %v4478 = vunpack.c.l.s4 1966171168
    %v4479 = vunpack.c.0.s8 %v4478
    %v4480 = vlaneseq
    %v4481 = vshrl.u32 %v4480, 7
    %v4482 = vsub.s32 %v4479, %v4481
    %v4483 = vrot.slane %v4455, %v4482
    %v4484 = vcombine.high %v4462, %v4462
    %v4485 = vcombine.high %v4469, %v4469
    %v4486 = vcombine.high %v4476, %v4476
    %v4487 = vcombine.high %v4483, %v4483
    %v4488 = vcombine.high %v4336, %v4336
    %v4490 = vunpack.c.l.s4 1966171168
    %v4491 = vunpack.c.0.s8 %v4490
    %v4492 = vlaneseq
    %v4493 = vshrl.u32 %v4492, 7
    %v4494 = vsub.s32 %v4491, %v4493
    %v4495 = vrot.slane %v4336, %v4494
    %v4497 = vunpack.c.l.s4 1966171168
    %v4498 = vunpack.c.0.s8 %v4497
    %v4499 = vlaneseq
    %v4500 = vshrl.u32 %v4499, 7
    %v4501 = vsub.s32 %v4498, %v4500
    %v4502 = vrot.slane %v4488, %v4501
    %v4503 = vcombine.high %v4495, %v4495
    %v4504 = vcombine.high %v4502, %v4502
    %v4506 = vunpack.c.l.s4 1966171168
    %v4507 = vunpack.c.0.s8 %v4506
    %v4508 = vlaneseq
    %v4509 = vshrl.u32 %v4508, 7
    %v4510 = vsub.s32 %v4507, %v4509
    %v4511 = vrot.slane %v4495, %v4510
    %v4513 = vunpack.c.l.s4 1966171168
    %v4514 = vunpack.c.0.s8 %v4513
    %v4515 = vlaneseq
    %v4516 = vshrl.u32 %v4515, 7
    %v4517 = vsub.s32 %v4514, %v4516
    %v4518 = vrot.slane %v4502, %v4517
    %v4520 = vunpack.c.l.s4 1966171168
    %v4521 = vunpack.c.0.s8 %v4520
    %v4522 = vlaneseq
    %v4523 = vshrl.u32 %v4522, 7
    %v4524 = vsub.s32 %v4521, %v4523
    %v4525 = vrot.slane %v4503, %v4524
    %v4527 = vunpack.c.l.s4 1966171168
    %v4528 = vunpack.c.0.s8 %v4527
    %v4529 = vlaneseq
    %v4530 = vshrl.u32 %v4529, 7
    %v4531 = vsub.s32 %v4528, %v4530
    %v4532 = vrot.slane %v4504, %v4531
    %v4533 = vcombine.high %v4511, %v4511
    %v4534 = vcombine.high %v4518, %v4518
    %v4535 = vcombine.high %v4525, %v4525
    %v4536 = vcombine.high %v4532, %v4532
    %4569 = vst [vmem:[%s9 + $0x8] sm:$0x1] %v4364
    %4570 = vst [vmem:[%s9 + $0x18] sm:$0x1] %v4378
    %4571 = vst [vmem:[%s9 + $0x28] sm:$0x1] %v4386
    %4572 = vst [vmem:[%s9 + $0x38] sm:$0x1] %v4388
    %4573 = vst [vmem:[%s9 + $0x48] sm:$0x1] %v4371
    %4574 = vst [vmem:[%s9 + $0x58] sm:$0x1] %v4385
    %4575 = vst [vmem:[%s9 + $0x68] sm:$0x1] %v4387
    %4576 = vst [vmem:[%s9 + $0x78] sm:$0x1] %v4389
    %4577 = vst [vmem:[%s9 + $0x88] sm:$0x1] %v4413
    %4578 = vst [vmem:[%s9 + $0x98] sm:$0x1] %v4427
    %4579 = vst [vmem:[%s9 + $0xa8] sm:$0x1] %v4435
    %4580 = vst [vmem:[%s9 + $0xb8] sm:$0x1] %v4437
    %4581 = vst [vmem:[%s9 + $0xc8] sm:$0x1] %v4420
    %4582 = vst [vmem:[%s9 + $0xd8] sm:$0x1] %v4434
    %4583 = vst [vmem:[%s9 + $0xe8] sm:$0x1] %v4436
    %4584 = vst [vmem:[%s9 + $0xf8] sm:$0x1] %v4438
    %4585 = vst [vmem:[%s9 + $0x108] sm:$0x1] %v4462
    %4586 = vst [vmem:[%s9 + $0x118] sm:$0x1] %v4476
    %4587 = vst [vmem:[%s9 + $0x128] sm:$0x1] %v4484
    %4588 = vst [vmem:[%s9 + $0x138] sm:$0x1] %v4486
    %4589 = vst [vmem:[%s9 + $0x148] sm:$0x1] %v4469
    %4590 = vst [vmem:[%s9 + $0x158] sm:$0x1] %v4483
    %4591 = vst [vmem:[%s9 + $0x168] sm:$0x1] %v4485
    %4592 = vst [vmem:[%s9 + $0x178] sm:$0x1] %v4487
    %4593 = vst [vmem:[%s9 + $0x188] sm:$0x1] %v4511
    %4594 = vst [vmem:[%s9 + $0x198] sm:$0x1] %v4525
    %4595 = vst [vmem:[%s9 + $0x1a8] sm:$0x1] %v4533
    %4596 = vst [vmem:[%s9 + $0x1b8] sm:$0x1] %v4535
    %4597 = vst [vmem:[%s9 + $0x1c8] sm:$0x1] %v4518
    %4598 = vst [vmem:[%s9 + $0x1d8] sm:$0x1] %v4532
    %4599 = vst [vmem:[%s9 + $0x1e8] sm:$0x1] %v4534
    %4600 = vst [vmem:[%s9 + $0x1f8] sm:$0x1] %v4536
    %s4601 = scalar_lea.vmem [#allocation2], 288
    %v4602 = vld [vmem:[%s4601] sm:$0xff]
    %v4603 = vld [vmem:[%s4601 + $0x8] sm:$0xff]
    %v4604 = vld [vmem:[%s4601 + $0x10] sm:$0xff]
    %v4605 = vld [vmem:[%s4601 + $0x18] sm:$0xff]
    %v4610 = vcombine.high %v4602, %v4602
    %v4612 = vunpack.c.l.s4 1966171168
    %v4613 = vunpack.c.0.s8 %v4612
    %v4614 = vlaneseq
    %v4615 = vshrl.u32 %v4614, 7
    %v4616 = vsub.s32 %v4613, %v4615
    %v4617 = vrot.slane %v4602, %v4616
    %v4619 = vunpack.c.l.s4 1966171168
    %v4620 = vunpack.c.0.s8 %v4619
    %v4621 = vlaneseq
    %v4622 = vshrl.u32 %v4621, 7
    %v4623 = vsub.s32 %v4620, %v4622
    %v4624 = vrot.slane %v4610, %v4623
    %v4625 = vcombine.high %v4617, %v4617
    %v4626 = vcombine.high %v4624, %v4624
    %v4628 = vunpack.c.l.s4 1966171168
    %v4629 = vunpack.c.0.s8 %v4628
    %v4630 = vlaneseq
    %v4631 = vshrl.u32 %v4630, 7
    %v4632 = vsub.s32 %v4629, %v4631
    %v4633 = vrot.slane %v4617, %v4632
    %v4635 = vunpack.c.l.s4 1966171168
    %v4636 = vunpack.c.0.s8 %v4635
    %v4637 = vlaneseq
    %v4638 = vshrl.u32 %v4637, 7
    %v4639 = vsub.s32 %v4636, %v4638
    %v4640 = vrot.slane %v4624, %v4639
    %v4642 = vunpack.c.l.s4 1966171168
    %v4643 = vunpack.c.0.s8 %v4642
    %v4644 = vlaneseq
    %v4645 = vshrl.u32 %v4644, 7
    %v4646 = vsub.s32 %v4643, %v4645
    %v4647 = vrot.slane %v4625, %v4646
    %v4649 = vunpack.c.l.s4 1966171168
    %v4650 = vunpack.c.0.s8 %v4649
    %v4651 = vlaneseq
    %v4652 = vshrl.u32 %v4651, 7
    %v4653 = vsub.s32 %v4650, %v4652
    %v4654 = vrot.slane %v4626, %v4653
    %v4655 = vcombine.high %v4633, %v4633
    %v4656 = vcombine.high %v4640, %v4640
    %v4657 = vcombine.high %v4647, %v4647
    %v4658 = vcombine.high %v4654, %v4654
    %v4659 = vcombine.high %v4603, %v4603
    %v4661 = vunpack.c.l.s4 1966171168
    %v4662 = vunpack.c.0.s8 %v4661
    %v4663 = vlaneseq
    %v4664 = vshrl.u32 %v4663, 7
    %v4665 = vsub.s32 %v4662, %v4664
    %v4666 = vrot.slane %v4603, %v4665
    %v4668 = vunpack.c.l.s4 1966171168
    %v4669 = vunpack.c.0.s8 %v4668
    %v4670 = vlaneseq
    %v4671 = vshrl.u32 %v4670, 7
    %v4672 = vsub.s32 %v4669, %v4671
    %v4673 = vrot.slane %v4659, %v4672
    %v4674 = vcombine.high %v4666, %v4666
    %v4675 = vcombine.high %v4673, %v4673
    %v4677 = vunpack.c.l.s4 1966171168
    %v4678 = vunpack.c.0.s8 %v4677
    %v4679 = vlaneseq
    %v4680 = vshrl.u32 %v4679, 7
    %v4681 = vsub.s32 %v4678, %v4680
    %v4682 = vrot.slane %v4666, %v4681
    %v4684 = vunpack.c.l.s4 1966171168
    %v4685 = vunpack.c.0.s8 %v4684
    %v4686 = vlaneseq
    %v4687 = vshrl.u32 %v4686, 7
    %v4688 = vsub.s32 %v4685, %v4687
    %v4689 = vrot.slane %v4673, %v4688
    %v4691 = vunpack.c.l.s4 1966171168
    %v4692 = vunpack.c.0.s8 %v4691
    %v4693 = vlaneseq
    %v4694 = vshrl.u32 %v4693, 7
    %v4695 = vsub.s32 %v4692, %v4694
    %v4696 = vrot.slane %v4674, %v4695
    %v4698 = vunpack.c.l.s4 1966171168
    %v4699 = vunpack.c.0.s8 %v4698
    %v4700 = vlaneseq
    %v4701 = vshrl.u32 %v4700, 7
    %v4702 = vsub.s32 %v4699, %v4701
    %v4703 = vrot.slane %v4675, %v4702
    %v4704 = vcombine.high %v4682, %v4682
    %v4705 = vcombine.high %v4689, %v4689
    %v4706 = vcombine.high %v4696, %v4696
    %v4707 = vcombine.high %v4703, %v4703
    %v4708 = vcombine.high %v4604, %v4604
    %v4710 = vunpack.c.l.s4 1966171168
    %v4711 = vunpack.c.0.s8 %v4710
    %v4712 = vlaneseq
    %v4713 = vshrl.u32 %v4712, 7
    %v4714 = vsub.s32 %v4711, %v4713
    %v4715 = vrot.slane %v4604, %v4714
    %v4717 = vunpack.c.l.s4 1966171168
    %v4718 = vunpack.c.0.s8 %v4717
    %v4719 = vlaneseq
    %v4720 = vshrl.u32 %v4719, 7
    %v4721 = vsub.s32 %v4718, %v4720
    %v4722 = vrot.slane %v4708, %v4721
    %v4723 = vcombine.high %v4715, %v4715
    %v4724 = vcombine.high %v4722, %v4722
    %v4726 = vunpack.c.l.s4 1966171168
    %v4727 = vunpack.c.0.s8 %v4726
    %v4728 = vlaneseq
    %v4729 = vshrl.u32 %v4728, 7
    %v4730 = vsub.s32 %v4727, %v4729
    %v4731 = vrot.slane %v4715, %v4730
    %v4733 = vunpack.c.l.s4 1966171168
    %v4734 = vunpack.c.0.s8 %v4733
    %v4735 = vlaneseq
    %v4736 = vshrl.u32 %v4735, 7
    %v4737 = vsub.s32 %v4734, %v4736
    %v4738 = vrot.slane %v4722, %v4737
    %v4740 = vunpack.c.l.s4 1966171168
    %v4741 = vunpack.c.0.s8 %v4740
    %v4742 = vlaneseq
    %v4743 = vshrl.u32 %v4742, 7
    %v4744 = vsub.s32 %v4741, %v4743
    %v4745 = vrot.slane %v4723, %v4744
    %v4747 = vunpack.c.l.s4 1966171168
    %v4748 = vunpack.c.0.s8 %v4747
    %v4749 = vlaneseq
    %v4750 = vshrl.u32 %v4749, 7
    %v4751 = vsub.s32 %v4748, %v4750
    %v4752 = vrot.slane %v4724, %v4751
    %v4753 = vcombine.high %v4731, %v4731
    %v4754 = vcombine.high %v4738, %v4738
    %v4755 = vcombine.high %v4745, %v4745
    %v4756 = vcombine.high %v4752, %v4752
    %v4757 = vcombine.high %v4605, %v4605
    %v4759 = vunpack.c.l.s4 1966171168
    %v4760 = vunpack.c.0.s8 %v4759
    %v4761 = vlaneseq
    %v4762 = vshrl.u32 %v4761, 7
    %v4763 = vsub.s32 %v4760, %v4762
    %v4764 = vrot.slane %v4605, %v4763
    %v4766 = vunpack.c.l.s4 1966171168
    %v4767 = vunpack.c.0.s8 %v4766
    %v4768 = vlaneseq
    %v4769 = vshrl.u32 %v4768, 7
    %v4770 = vsub.s32 %v4767, %v4769
    %v4771 = vrot.slane %v4757, %v4770
    %v4772 = vcombine.high %v4764, %v4764
    %v4773 = vcombine.high %v4771, %v4771
    %v4775 = vunpack.c.l.s4 1966171168
    %v4776 = vunpack.c.0.s8 %v4775
    %v4777 = vlaneseq
    %v4778 = vshrl.u32 %v4777, 7
    %v4779 = vsub.s32 %v4776, %v4778
    %v4780 = vrot.slane %v4764, %v4779
    %v4782 = vunpack.c.l.s4 1966171168
    %v4783 = vunpack.c.0.s8 %v4782
    %v4784 = vlaneseq
    %v4785 = vshrl.u32 %v4784, 7
    %v4786 = vsub.s32 %v4783, %v4785
    %v4787 = vrot.slane %v4771, %v4786
    %v4789 = vunpack.c.l.s4 1966171168
    %v4790 = vunpack.c.0.s8 %v4789
    %v4791 = vlaneseq
    %v4792 = vshrl.u32 %v4791, 7
    %v4793 = vsub.s32 %v4790, %v4792
    %v4794 = vrot.slane %v4772, %v4793
    %v4796 = vunpack.c.l.s4 1966171168
    %v4797 = vunpack.c.0.s8 %v4796
    %v4798 = vlaneseq
    %v4799 = vshrl.u32 %v4798, 7
    %v4800 = vsub.s32 %v4797, %v4799
    %v4801 = vrot.slane %v4773, %v4800
    %v4802 = vcombine.high %v4780, %v4780
    %v4803 = vcombine.high %v4787, %v4787
    %v4804 = vcombine.high %v4794, %v4794
    %v4805 = vcombine.high %v4801, %v4801
    %4838 = vst [vmem:[%s9 + $0x9] sm:$0x1] %v4633
    %4839 = vst [vmem:[%s9 + $0x19] sm:$0x1] %v4647
    %4840 = vst [vmem:[%s9 + $0x29] sm:$0x1] %v4655
    %4841 = vst [vmem:[%s9 + $0x39] sm:$0x1] %v4657
    %4842 = vst [vmem:[%s9 + $0x49] sm:$0x1] %v4640
    %4843 = vst [vmem:[%s9 + $0x59] sm:$0x1] %v4654
    %4844 = vst [vmem:[%s9 + $0x69] sm:$0x1] %v4656
    %4845 = vst [vmem:[%s9 + $0x79] sm:$0x1] %v4658
    %4846 = vst [vmem:[%s9 + $0x89] sm:$0x1] %v4682
    %4847 = vst [vmem:[%s9 + $0x99] sm:$0x1] %v4696
    %4848 = vst [vmem:[%s9 + $0xa9] sm:$0x1] %v4704
    %4849 = vst [vmem:[%s9 + $0xb9] sm:$0x1] %v4706
    %4850 = vst [vmem:[%s9 + $0xc9] sm:$0x1] %v4689
    %4851 = vst [vmem:[%s9 + $0xd9] sm:$0x1] %v4703
    %4852 = vst [vmem:[%s9 + $0xe9] sm:$0x1] %v4705
    %4853 = vst [vmem:[%s9 + $0xf9] sm:$0x1] %v4707
    %4854 = vst [vmem:[%s9 + $0x109] sm:$0x1] %v4731
    %4855 = vst [vmem:[%s9 + $0x119] sm:$0x1] %v4745
    %4856 = vst [vmem:[%s9 + $0x129] sm:$0x1] %v4753
    %4857 = vst [vmem:[%s9 + $0x139] sm:$0x1] %v4755
    %4858 = vst [vmem:[%s9 + $0x149] sm:$0x1] %v4738
    %4859 = vst [vmem:[%s9 + $0x159] sm:$0x1] %v4752
    %4860 = vst [vmem:[%s9 + $0x169] sm:$0x1] %v4754
    %4861 = vst [vmem:[%s9 + $0x179] sm:$0x1] %v4756
    %4862 = vst [vmem:[%s9 + $0x189] sm:$0x1] %v4780
    %4863 = vst [vmem:[%s9 + $0x199] sm:$0x1] %v4794
    %4864 = vst [vmem:[%s9 + $0x1a9] sm:$0x1] %v4802
    %4865 = vst [vmem:[%s9 + $0x1b9] sm:$0x1] %v4804
    %4866 = vst [vmem:[%s9 + $0x1c9] sm:$0x1] %v4787
    %4867 = vst [vmem:[%s9 + $0x1d9] sm:$0x1] %v4801
    %4868 = vst [vmem:[%s9 + $0x1e9] sm:$0x1] %v4803
    %4869 = vst [vmem:[%s9 + $0x1f9] sm:$0x1] %v4805
    %s4870 = scalar_lea.vmem [#allocation2], 320
    %v4871 = vld [vmem:[%s4870] sm:$0xff]
    %v4872 = vld [vmem:[%s4870 + $0x8] sm:$0xff]
    %v4873 = vld [vmem:[%s4870 + $0x10] sm:$0xff]
    %v4874 = vld [vmem:[%s4870 + $0x18] sm:$0xff]
    %v4879 = vcombine.high %v4871, %v4871
    %v4881 = vunpack.c.l.s4 1966171168
    %v4882 = vunpack.c.0.s8 %v4881
    %v4883 = vlaneseq
    %v4884 = vshrl.u32 %v4883, 7
    %v4885 = vsub.s32 %v4882, %v4884
    %v4886 = vrot.slane %v4871, %v4885
    %v4888 = vunpack.c.l.s4 1966171168
    %v4889 = vunpack.c.0.s8 %v4888
    %v4890 = vlaneseq
    %v4891 = vshrl.u32 %v4890, 7
    %v4892 = vsub.s32 %v4889, %v4891
    %v4893 = vrot.slane %v4879, %v4892
    %v4894 = vcombine.high %v4886, %v4886
    %v4895 = vcombine.high %v4893, %v4893
    %v4897 = vunpack.c.l.s4 1966171168
    %v4898 = vunpack.c.0.s8 %v4897
    %v4899 = vlaneseq
    %v4900 = vshrl.u32 %v4899, 7
    %v4901 = vsub.s32 %v4898, %v4900
    %v4902 = vrot.slane %v4886, %v4901
    %v4904 = vunpack.c.l.s4 1966171168
    %v4905 = vunpack.c.0.s8 %v4904
    %v4906 = vlaneseq
    %v4907 = vshrl.u32 %v4906, 7
    %v4908 = vsub.s32 %v4905, %v4907
    %v4909 = vrot.slane %v4893, %v4908
    %v4911 = vunpack.c.l.s4 1966171168
    %v4912 = vunpack.c.0.s8 %v4911
    %v4913 = vlaneseq
    %v4914 = vshrl.u32 %v4913, 7
    %v4915 = vsub.s32 %v4912, %v4914
    %v4916 = vrot.slane %v4894, %v4915
    %v4918 = vunpack.c.l.s4 1966171168
    %v4919 = vunpack.c.0.s8 %v4918
    %v4920 = vlaneseq
    %v4921 = vshrl.u32 %v4920, 7
    %v4922 = vsub.s32 %v4919, %v4921
    %v4923 = vrot.slane %v4895, %v4922
    %v4924 = vcombine.high %v4902, %v4902
    %v4925 = vcombine.high %v4909, %v4909
    %v4926 = vcombine.high %v4916, %v4916
    %v4927 = vcombine.high %v4923, %v4923
    %v4928 = vcombine.high %v4872, %v4872
    %v4930 = vunpack.c.l.s4 1966171168
    %v4931 = vunpack.c.0.s8 %v4930
    %v4932 = vlaneseq
    %v4933 = vshrl.u32 %v4932, 7
    %v4934 = vsub.s32 %v4931, %v4933
    %v4935 = vrot.slane %v4872, %v4934
    %v4937 = vunpack.c.l.s4 1966171168
    %v4938 = vunpack.c.0.s8 %v4937
    %v4939 = vlaneseq
    %v4940 = vshrl.u32 %v4939, 7
    %v4941 = vsub.s32 %v4938, %v4940
    %v4942 = vrot.slane %v4928, %v4941
    %v4943 = vcombine.high %v4935, %v4935
    %v4944 = vcombine.high %v4942, %v4942
    %v4946 = vunpack.c.l.s4 1966171168
    %v4947 = vunpack.c.0.s8 %v4946
    %v4948 = vlaneseq
    %v4949 = vshrl.u32 %v4948, 7
    %v4950 = vsub.s32 %v4947, %v4949
    %v4951 = vrot.slane %v4935, %v4950
    %v4953 = vunpack.c.l.s4 1966171168
    %v4954 = vunpack.c.0.s8 %v4953
    %v4955 = vlaneseq
    %v4956 = vshrl.u32 %v4955, 7
    %v4957 = vsub.s32 %v4954, %v4956
    %v4958 = vrot.slane %v4942, %v4957
    %v4960 = vunpack.c.l.s4 1966171168
    %v4961 = vunpack.c.0.s8 %v4960
    %v4962 = vlaneseq
    %v4963 = vshrl.u32 %v4962, 7
    %v4964 = vsub.s32 %v4961, %v4963
    %v4965 = vrot.slane %v4943, %v4964
    %v4967 = vunpack.c.l.s4 1966171168
    %v4968 = vunpack.c.0.s8 %v4967
    %v4969 = vlaneseq
    %v4970 = vshrl.u32 %v4969, 7
    %v4971 = vsub.s32 %v4968, %v4970
    %v4972 = vrot.slane %v4944, %v4971
    %v4973 = vcombine.high %v4951, %v4951
    %v4974 = vcombine.high %v4958, %v4958
    %v4975 = vcombine.high %v4965, %v4965
    %v4976 = vcombine.high %v4972, %v4972
    %v4977 = vcombine.high %v4873, %v4873
    %v4979 = vunpack.c.l.s4 1966171168
    %v4980 = vunpack.c.0.s8 %v4979
    %v4981 = vlaneseq
    %v4982 = vshrl.u32 %v4981, 7
    %v4983 = vsub.s32 %v4980, %v4982
    %v4984 = vrot.slane %v4873, %v4983
    %v4986 = vunpack.c.l.s4 1966171168
    %v4987 = vunpack.c.0.s8 %v4986
    %v4988 = vlaneseq
    %v4989 = vshrl.u32 %v4988, 7
    %v4990 = vsub.s32 %v4987, %v4989
    %v4991 = vrot.slane %v4977, %v4990
    %v4992 = vcombine.high %v4984, %v4984
    %v4993 = vcombine.high %v4991, %v4991
    %v4995 = vunpack.c.l.s4 1966171168
    %v4996 = vunpack.c.0.s8 %v4995
    %v4997 = vlaneseq
    %v4998 = vshrl.u32 %v4997, 7
    %v4999 = vsub.s32 %v4996, %v4998
    %v5000 = vrot.slane %v4984, %v4999
    %v5002 = vunpack.c.l.s4 1966171168
    %v5003 = vunpack.c.0.s8 %v5002
    %v5004 = vlaneseq
    %v5005 = vshrl.u32 %v5004, 7
    %v5006 = vsub.s32 %v5003, %v5005
    %v5007 = vrot.slane %v4991, %v5006
    %v5009 = vunpack.c.l.s4 1966171168
    %v5010 = vunpack.c.0.s8 %v5009
    %v5011 = vlaneseq
    %v5012 = vshrl.u32 %v5011, 7
    %v5013 = vsub.s32 %v5010, %v5012
    %v5014 = vrot.slane %v4992, %v5013
    %v5016 = vunpack.c.l.s4 1966171168
    %v5017 = vunpack.c.0.s8 %v5016
    %v5018 = vlaneseq
    %v5019 = vshrl.u32 %v5018, 7
    %v5020 = vsub.s32 %v5017, %v5019
    %v5021 = vrot.slane %v4993, %v5020
    %v5022 = vcombine.high %v5000, %v5000
    %v5023 = vcombine.high %v5007, %v5007
    %v5024 = vcombine.high %v5014, %v5014
    %v5025 = vcombine.high %v5021, %v5021
    %v5026 = vcombine.high %v4874, %v4874
    %v5028 = vunpack.c.l.s4 1966171168
    %v5029 = vunpack.c.0.s8 %v5028
    %v5030 = vlaneseq
    %v5031 = vshrl.u32 %v5030, 7
    %v5032 = vsub.s32 %v5029, %v5031
    %v5033 = vrot.slane %v4874, %v5032
    %v5035 = vunpack.c.l.s4 1966171168
    %v5036 = vunpack.c.0.s8 %v5035
    %v5037 = vlaneseq
    %v5038 = vshrl.u32 %v5037, 7
    %v5039 = vsub.s32 %v5036, %v5038
    %v5040 = vrot.slane %v5026, %v5039
    %v5041 = vcombine.high %v5033, %v5033
    %v5042 = vcombine.high %v5040, %v5040
    %v5044 = vunpack.c.l.s4 1966171168
    %v5045 = vunpack.c.0.s8 %v5044
    %v5046 = vlaneseq
    %v5047 = vshrl.u32 %v5046, 7
    %v5048 = vsub.s32 %v5045, %v5047
    %v5049 = vrot.slane %v5033, %v5048
    %v5051 = vunpack.c.l.s4 1966171168
    %v5052 = vunpack.c.0.s8 %v5051
    %v5053 = vlaneseq
    %v5054 = vshrl.u32 %v5053, 7
    %v5055 = vsub.s32 %v5052, %v5054
    %v5056 = vrot.slane %v5040, %v5055
    %v5058 = vunpack.c.l.s4 1966171168
    %v5059 = vunpack.c.0.s8 %v5058
    %v5060 = vlaneseq
    %v5061 = vshrl.u32 %v5060, 7
    %v5062 = vsub.s32 %v5059, %v5061
    %v5063 = vrot.slane %v5041, %v5062
    %v5065 = vunpack.c.l.s4 1966171168
    %v5066 = vunpack.c.0.s8 %v5065
    %v5067 = vlaneseq
    %v5068 = vshrl.u32 %v5067, 7
    %v5069 = vsub.s32 %v5066, %v5068
    %v5070 = vrot.slane %v5042, %v5069
    %v5071 = vcombine.high %v5049, %v5049
    %v5072 = vcombine.high %v5056, %v5056
    %v5073 = vcombine.high %v5063, %v5063
    %v5074 = vcombine.high %v5070, %v5070
    %5107 = vst [vmem:[%s9 + $0xa] sm:$0x1] %v4902
    %5108 = vst [vmem:[%s9 + $0x1a] sm:$0x1] %v4916
    %5109 = vst [vmem:[%s9 + $0x2a] sm:$0x1] %v4924
    %5110 = vst [vmem:[%s9 + $0x3a] sm:$0x1] %v4926
    %5111 = vst [vmem:[%s9 + $0x4a] sm:$0x1] %v4909
    %5112 = vst [vmem:[%s9 + $0x5a] sm:$0x1] %v4923
    %5113 = vst [vmem:[%s9 + $0x6a] sm:$0x1] %v4925
    %5114 = vst [vmem:[%s9 + $0x7a] sm:$0x1] %v4927
    %5115 = vst [vmem:[%s9 + $0x8a] sm:$0x1] %v4951
    %5116 = vst [vmem:[%s9 + $0x9a] sm:$0x1] %v4965
    %5117 = vst [vmem:[%s9 + $0xaa] sm:$0x1] %v4973
    %5118 = vst [vmem:[%s9 + $0xba] sm:$0x1] %v4975
    %5119 = vst [vmem:[%s9 + $0xca] sm:$0x1] %v4958
    %5120 = vst [vmem:[%s9 + $0xda] sm:$0x1] %v4972
    %5121 = vst [vmem:[%s9 + $0xea] sm:$0x1] %v4974
    %5122 = vst [vmem:[%s9 + $0xfa] sm:$0x1] %v4976
    %5123 = vst [vmem:[%s9 + $0x10a] sm:$0x1] %v5000
    %5124 = vst [vmem:[%s9 + $0x11a] sm:$0x1] %v5014
    %5125 = vst [vmem:[%s9 + $0x12a] sm:$0x1] %v5022
    %5126 = vst [vmem:[%s9 + $0x13a] sm:$0x1] %v5024
    %5127 = vst [vmem:[%s9 + $0x14a] sm:$0x1] %v5007
    %5128 = vst [vmem:[%s9 + $0x15a] sm:$0x1] %v5021
    %5129 = vst [vmem:[%s9 + $0x16a] sm:$0x1] %v5023
    %5130 = vst [vmem:[%s9 + $0x17a] sm:$0x1] %v5025
    %5131 = vst [vmem:[%s9 + $0x18a] sm:$0x1] %v5049
    %5132 = vst [vmem:[%s9 + $0x19a] sm:$0x1] %v5063
    %5133 = vst [vmem:[%s9 + $0x1aa] sm:$0x1] %v5071
    %5134 = vst [vmem:[%s9 + $0x1ba] sm:$0x1] %v5073
    %5135 = vst [vmem:[%s9 + $0x1ca] sm:$0x1] %v5056
    %5136 = vst [vmem:[%s9 + $0x1da] sm:$0x1] %v5070
    %5137 = vst [vmem:[%s9 + $0x1ea] sm:$0x1] %v5072
    %5138 = vst [vmem:[%s9 + $0x1fa] sm:$0x1] %v5074
    %s5139 = scalar_lea.vmem [#allocation2], 352
    %v5140 = vld [vmem:[%s5139] sm:$0xff]
    %v5141 = vld [vmem:[%s5139 + $0x8] sm:$0xff]
    %v5142 = vld [vmem:[%s5139 + $0x10] sm:$0xff]
    %v5143 = vld [vmem:[%s5139 + $0x18] sm:$0xff]
    %v5148 = vcombine.high %v5140, %v5140
    %v5150 = vunpack.c.l.s4 1966171168
    %v5151 = vunpack.c.0.s8 %v5150
    %v5152 = vlaneseq
    %v5153 = vshrl.u32 %v5152, 7
    %v5154 = vsub.s32 %v5151, %v5153
    %v5155 = vrot.slane %v5140, %v5154
    %v5157 = vunpack.c.l.s4 1966171168
    %v5158 = vunpack.c.0.s8 %v5157
    %v5159 = vlaneseq
    %v5160 = vshrl.u32 %v5159, 7
    %v5161 = vsub.s32 %v5158, %v5160
    %v5162 = vrot.slane %v5148, %v5161
    %v5163 = vcombine.high %v5155, %v5155
    %v5164 = vcombine.high %v5162, %v5162
    %v5166 = vunpack.c.l.s4 1966171168
    %v5167 = vunpack.c.0.s8 %v5166
    %v5168 = vlaneseq
    %v5169 = vshrl.u32 %v5168, 7
    %v5170 = vsub.s32 %v5167, %v5169
    %v5171 = vrot.slane %v5155, %v5170
    %v5173 = vunpack.c.l.s4 1966171168
    %v5174 = vunpack.c.0.s8 %v5173
    %v5175 = vlaneseq
    %v5176 = vshrl.u32 %v5175, 7
    %v5177 = vsub.s32 %v5174, %v5176
    %v5178 = vrot.slane %v5162, %v5177
    %v5180 = vunpack.c.l.s4 1966171168
    %v5181 = vunpack.c.0.s8 %v5180
    %v5182 = vlaneseq
    %v5183 = vshrl.u32 %v5182, 7
    %v5184 = vsub.s32 %v5181, %v5183
    %v5185 = vrot.slane %v5163, %v5184
    %v5187 = vunpack.c.l.s4 1966171168
    %v5188 = vunpack.c.0.s8 %v5187
    %v5189 = vlaneseq
    %v5190 = vshrl.u32 %v5189, 7
    %v5191 = vsub.s32 %v5188, %v5190
    %v5192 = vrot.slane %v5164, %v5191
    %v5193 = vcombine.high %v5171, %v5171
    %v5194 = vcombine.high %v5178, %v5178
    %v5195 = vcombine.high %v5185, %v5185
    %v5196 = vcombine.high %v5192, %v5192
    %v5197 = vcombine.high %v5141, %v5141
    %v5199 = vunpack.c.l.s4 1966171168
    %v5200 = vunpack.c.0.s8 %v5199
    %v5201 = vlaneseq
    %v5202 = vshrl.u32 %v5201, 7
    %v5203 = vsub.s32 %v5200, %v5202
    %v5204 = vrot.slane %v5141, %v5203
    %v5206 = vunpack.c.l.s4 1966171168
    %v5207 = vunpack.c.0.s8 %v5206
    %v5208 = vlaneseq
    %v5209 = vshrl.u32 %v5208, 7
    %v5210 = vsub.s32 %v5207, %v5209
    %v5211 = vrot.slane %v5197, %v5210
    %v5212 = vcombine.high %v5204, %v5204
    %v5213 = vcombine.high %v5211, %v5211
    %v5215 = vunpack.c.l.s4 1966171168
    %v5216 = vunpack.c.0.s8 %v5215
    %v5217 = vlaneseq
    %v5218 = vshrl.u32 %v5217, 7
    %v5219 = vsub.s32 %v5216, %v5218
    %v5220 = vrot.slane %v5204, %v5219
    %v5222 = vunpack.c.l.s4 1966171168
    %v5223 = vunpack.c.0.s8 %v5222
    %v5224 = vlaneseq
    %v5225 = vshrl.u32 %v5224, 7
    %v5226 = vsub.s32 %v5223, %v5225
    %v5227 = vrot.slane %v5211, %v5226
    %v5229 = vunpack.c.l.s4 1966171168
    %v5230 = vunpack.c.0.s8 %v5229
    %v5231 = vlaneseq
    %v5232 = vshrl.u32 %v5231, 7
    %v5233 = vsub.s32 %v5230, %v5232
    %v5234 = vrot.slane %v5212, %v5233
    %v5236 = vunpack.c.l.s4 1966171168
    %v5237 = vunpack.c.0.s8 %v5236
    %v5238 = vlaneseq
    %v5239 = vshrl.u32 %v5238, 7
    %v5240 = vsub.s32 %v5237, %v5239
    %v5241 = vrot.slane %v5213, %v5240
    %v5242 = vcombine.high %v5220, %v5220
    %v5243 = vcombine.high %v5227, %v5227
    %v5244 = vcombine.high %v5234, %v5234
    %v5245 = vcombine.high %v5241, %v5241
    %v5246 = vcombine.high %v5142, %v5142
    %v5248 = vunpack.c.l.s4 1966171168
    %v5249 = vunpack.c.0.s8 %v5248
    %v5250 = vlaneseq
    %v5251 = vshrl.u32 %v5250, 7
    %v5252 = vsub.s32 %v5249, %v5251
    %v5253 = vrot.slane %v5142, %v5252
    %v5255 = vunpack.c.l.s4 1966171168
    %v5256 = vunpack.c.0.s8 %v5255
    %v5257 = vlaneseq
    %v5258 = vshrl.u32 %v5257, 7
    %v5259 = vsub.s32 %v5256, %v5258
    %v5260 = vrot.slane %v5246, %v5259
    %v5261 = vcombine.high %v5253, %v5253
    %v5262 = vcombine.high %v5260, %v5260
    %v5264 = vunpack.c.l.s4 1966171168
    %v5265 = vunpack.c.0.s8 %v5264
    %v5266 = vlaneseq
    %v5267 = vshrl.u32 %v5266, 7
    %v5268 = vsub.s32 %v5265, %v5267
    %v5269 = vrot.slane %v5253, %v5268
    %v5271 = vunpack.c.l.s4 1966171168
    %v5272 = vunpack.c.0.s8 %v5271
    %v5273 = vlaneseq
    %v5274 = vshrl.u32 %v5273, 7
    %v5275 = vsub.s32 %v5272, %v5274
    %v5276 = vrot.slane %v5260, %v5275
    %v5278 = vunpack.c.l.s4 1966171168
    %v5279 = vunpack.c.0.s8 %v5278
    %v5280 = vlaneseq
    %v5281 = vshrl.u32 %v5280, 7
    %v5282 = vsub.s32 %v5279, %v5281
    %v5283 = vrot.slane %v5261, %v5282
    %v5285 = vunpack.c.l.s4 1966171168
    %v5286 = vunpack.c.0.s8 %v5285
    %v5287 = vlaneseq
    %v5288 = vshrl.u32 %v5287, 7
    %v5289 = vsub.s32 %v5286, %v5288
    %v5290 = vrot.slane %v5262, %v5289
    %v5291 = vcombine.high %v5269, %v5269
    %v5292 = vcombine.high %v5276, %v5276
    %v5293 = vcombine.high %v5283, %v5283
    %v5294 = vcombine.high %v5290, %v5290
    %v5295 = vcombine.high %v5143, %v5143
    %v5297 = vunpack.c.l.s4 1966171168
    %v5298 = vunpack.c.0.s8 %v5297
    %v5299 = vlaneseq
    %v5300 = vshrl.u32 %v5299, 7
    %v5301 = vsub.s32 %v5298, %v5300
    %v5302 = vrot.slane %v5143, %v5301
    %v5304 = vunpack.c.l.s4 1966171168
    %v5305 = vunpack.c.0.s8 %v5304
    %v5306 = vlaneseq
    %v5307 = vshrl.u32 %v5306, 7
    %v5308 = vsub.s32 %v5305, %v5307
    %v5309 = vrot.slane %v5295, %v5308
    %v5310 = vcombine.high %v5302, %v5302
    %v5311 = vcombine.high %v5309, %v5309
    %v5313 = vunpack.c.l.s4 1966171168
    %v5314 = vunpack.c.0.s8 %v5313
    %v5315 = vlaneseq
    %v5316 = vshrl.u32 %v5315, 7
    %v5317 = vsub.s32 %v5314, %v5316
    %v5318 = vrot.slane %v5302, %v5317
    %v5320 = vunpack.c.l.s4 1966171168
    %v5321 = vunpack.c.0.s8 %v5320
    %v5322 = vlaneseq
    %v5323 = vshrl.u32 %v5322, 7
    %v5324 = vsub.s32 %v5321, %v5323
    %v5325 = vrot.slane %v5309, %v5324
    %v5327 = vunpack.c.l.s4 1966171168
    %v5328 = vunpack.c.0.s8 %v5327
    %v5329 = vlaneseq
    %v5330 = vshrl.u32 %v5329, 7
    %v5331 = vsub.s32 %v5328, %v5330
    %v5332 = vrot.slane %v5310, %v5331
    %v5334 = vunpack.c.l.s4 1966171168
    %v5335 = vunpack.c.0.s8 %v5334
    %v5336 = vlaneseq
    %v5337 = vshrl.u32 %v5336, 7
    %v5338 = vsub.s32 %v5335, %v5337
    %v5339 = vrot.slane %v5311, %v5338
    %v5340 = vcombine.high %v5318, %v5318
    %v5341 = vcombine.high %v5325, %v5325
    %v5342 = vcombine.high %v5332, %v5332
    %v5343 = vcombine.high %v5339, %v5339
    %5376 = vst [vmem:[%s9 + $0xb] sm:$0x1] %v5171
    %5377 = vst [vmem:[%s9 + $0x1b] sm:$0x1] %v5185
    %5378 = vst [vmem:[%s9 + $0x2b] sm:$0x1] %v5193
    %5379 = vst [vmem:[%s9 + $0x3b] sm:$0x1] %v5195
    %5380 = vst [vmem:[%s9 + $0x4b] sm:$0x1] %v5178
    %5381 = vst [vmem:[%s9 + $0x5b] sm:$0x1] %v5192
    %5382 = vst [vmem:[%s9 + $0x6b] sm:$0x1] %v5194
    %5383 = vst [vmem:[%s9 + $0x7b] sm:$0x1] %v5196
    %5384 = vst [vmem:[%s9 + $0x8b] sm:$0x1] %v5220
    %5385 = vst [vmem:[%s9 + $0x9b] sm:$0x1] %v5234
    %5386 = vst [vmem:[%s9 + $0xab] sm:$0x1] %v5242
    %5387 = vst [vmem:[%s9 + $0xbb] sm:$0x1] %v5244
    %5388 = vst [vmem:[%s9 + $0xcb] sm:$0x1] %v5227
    %5389 = vst [vmem:[%s9 + $0xdb] sm:$0x1] %v5241
    %5390 = vst [vmem:[%s9 + $0xeb] sm:$0x1] %v5243
    %5391 = vst [vmem:[%s9 + $0xfb] sm:$0x1] %v5245
    %5392 = vst [vmem:[%s9 + $0x10b] sm:$0x1] %v5269
    %5393 = vst [vmem:[%s9 + $0x11b] sm:$0x1] %v5283
    %5394 = vst [vmem:[%s9 + $0x12b] sm:$0x1] %v5291
    %5395 = vst [vmem:[%s9 + $0x13b] sm:$0x1] %v5293
    %5396 = vst [vmem:[%s9 + $0x14b] sm:$0x1] %v5276
    %5397 = vst [vmem:[%s9 + $0x15b] sm:$0x1] %v5290
    %5398 = vst [vmem:[%s9 + $0x16b] sm:$0x1] %v5292
    %5399 = vst [vmem:[%s9 + $0x17b] sm:$0x1] %v5294
    %5400 = vst [vmem:[%s9 + $0x18b] sm:$0x1] %v5318
    %5401 = vst [vmem:[%s9 + $0x19b] sm:$0x1] %v5332
    %5402 = vst [vmem:[%s9 + $0x1ab] sm:$0x1] %v5340
    %5403 = vst [vmem:[%s9 + $0x1bb] sm:$0x1] %v5342
    %5404 = vst [vmem:[%s9 + $0x1cb] sm:$0x1] %v5325
    %5405 = vst [vmem:[%s9 + $0x1db] sm:$0x1] %v5339
    %5406 = vst [vmem:[%s9 + $0x1eb] sm:$0x1] %v5341
    %5407 = vst [vmem:[%s9 + $0x1fb] sm:$0x1] %v5343
    %s5408 = scalar_lea.vmem [#allocation2], 384
    %v5409 = vld [vmem:[%s5408] sm:$0xff]
    %v5410 = vld [vmem:[%s5408 + $0x8] sm:$0xff]
    %v5411 = vld [vmem:[%s5408 + $0x10] sm:$0xff]
    %v5412 = vld [vmem:[%s5408 + $0x18] sm:$0xff]
    %v5417 = vcombine.high %v5409, %v5409
    %v5419 = vunpack.c.l.s4 1966171168
    %v5420 = vunpack.c.0.s8 %v5419
    %v5421 = vlaneseq
    %v5422 = vshrl.u32 %v5421, 7
    %v5423 = vsub.s32 %v5420, %v5422
    %v5424 = vrot.slane %v5409, %v5423
    %v5426 = vunpack.c.l.s4 1966171168
    %v5427 = vunpack.c.0.s8 %v5426
    %v5428 = vlaneseq
    %v5429 = vshrl.u32 %v5428, 7
    %v5430 = vsub.s32 %v5427, %v5429
    %v5431 = vrot.slane %v5417, %v5430
    %v5432 = vcombine.high %v5424, %v5424
    %v5433 = vcombine.high %v5431, %v5431
    %v5435 = vunpack.c.l.s4 1966171168
    %v5436 = vunpack.c.0.s8 %v5435
    %v5437 = vlaneseq
    %v5438 = vshrl.u32 %v5437, 7
    %v5439 = vsub.s32 %v5436, %v5438
    %v5440 = vrot.slane %v5424, %v5439
    %v5442 = vunpack.c.l.s4 1966171168
    %v5443 = vunpack.c.0.s8 %v5442
    %v5444 = vlaneseq
    %v5445 = vshrl.u32 %v5444, 7
    %v5446 = vsub.s32 %v5443, %v5445
    %v5447 = vrot.slane %v5431, %v5446
    %v5449 = vunpack.c.l.s4 1966171168
    %v5450 = vunpack.c.0.s8 %v5449
    %v5451 = vlaneseq
    %v5452 = vshrl.u32 %v5451, 7
    %v5453 = vsub.s32 %v5450, %v5452
    %v5454 = vrot.slane %v5432, %v5453
    %v5456 = vunpack.c.l.s4 1966171168
    %v5457 = vunpack.c.0.s8 %v5456
    %v5458 = vlaneseq
    %v5459 = vshrl.u32 %v5458, 7
    %v5460 = vsub.s32 %v5457, %v5459
    %v5461 = vrot.slane %v5433, %v5460
    %v5462 = vcombine.high %v5440, %v5440
    %v5463 = vcombine.high %v5447, %v5447
    %v5464 = vcombine.high %v5454, %v5454
    %v5465 = vcombine.high %v5461, %v5461
    %v5466 = vcombine.high %v5410, %v5410
    %v5468 = vunpack.c.l.s4 1966171168
    %v5469 = vunpack.c.0.s8 %v5468
    %v5470 = vlaneseq
    %v5471 = vshrl.u32 %v5470, 7
    %v5472 = vsub.s32 %v5469, %v5471
    %v5473 = vrot.slane %v5410, %v5472
    %v5475 = vunpack.c.l.s4 1966171168
    %v5476 = vunpack.c.0.s8 %v5475
    %v5477 = vlaneseq
    %v5478 = vshrl.u32 %v5477, 7
    %v5479 = vsub.s32 %v5476, %v5478
    %v5480 = vrot.slane %v5466, %v5479
    %v5481 = vcombine.high %v5473, %v5473
    %v5482 = vcombine.high %v5480, %v5480
    %v5484 = vunpack.c.l.s4 1966171168
    %v5485 = vunpack.c.0.s8 %v5484
    %v5486 = vlaneseq
    %v5487 = vshrl.u32 %v5486, 7
    %v5488 = vsub.s32 %v5485, %v5487
    %v5489 = vrot.slane %v5473, %v5488
    %v5491 = vunpack.c.l.s4 1966171168
    %v5492 = vunpack.c.0.s8 %v5491
    %v5493 = vlaneseq
    %v5494 = vshrl.u32 %v5493, 7
    %v5495 = vsub.s32 %v5492, %v5494
    %v5496 = vrot.slane %v5480, %v5495
    %v5498 = vunpack.c.l.s4 1966171168
    %v5499 = vunpack.c.0.s8 %v5498
    %v5500 = vlaneseq
    %v5501 = vshrl.u32 %v5500, 7
    %v5502 = vsub.s32 %v5499, %v5501
    %v5503 = vrot.slane %v5481, %v5502
    %v5505 = vunpack.c.l.s4 1966171168
    %v5506 = vunpack.c.0.s8 %v5505
    %v5507 = vlaneseq
    %v5508 = vshrl.u32 %v5507, 7
    %v5509 = vsub.s32 %v5506, %v5508
    %v5510 = vrot.slane %v5482, %v5509
    %v5511 = vcombine.high %v5489, %v5489
    %v5512 = vcombine.high %v5496, %v5496
    %v5513 = vcombine.high %v5503, %v5503
    %v5514 = vcombine.high %v5510, %v5510
    %v5515 = vcombine.high %v5411, %v5411
    %v5517 = vunpack.c.l.s4 1966171168
    %v5518 = vunpack.c.0.s8 %v5517
    %v5519 = vlaneseq
    %v5520 = vshrl.u32 %v5519, 7
    %v5521 = vsub.s32 %v5518, %v5520
    %v5522 = vrot.slane %v5411, %v5521
    %v5524 = vunpack.c.l.s4 1966171168
    %v5525 = vunpack.c.0.s8 %v5524
    %v5526 = vlaneseq
    %v5527 = vshrl.u32 %v5526, 7
    %v5528 = vsub.s32 %v5525, %v5527
    %v5529 = vrot.slane %v5515, %v5528
    %v5530 = vcombine.high %v5522, %v5522
    %v5531 = vcombine.high %v5529, %v5529
    %v5533 = vunpack.c.l.s4 1966171168
    %v5534 = vunpack.c.0.s8 %v5533
    %v5535 = vlaneseq
    %v5536 = vshrl.u32 %v5535, 7
    %v5537 = vsub.s32 %v5534, %v5536
    %v5538 = vrot.slane %v5522, %v5537
    %v5540 = vunpack.c.l.s4 1966171168
    %v5541 = vunpack.c.0.s8 %v5540
    %v5542 = vlaneseq
    %v5543 = vshrl.u32 %v5542, 7
    %v5544 = vsub.s32 %v5541, %v5543
    %v5545 = vrot.slane %v5529, %v5544
    %v5547 = vunpack.c.l.s4 1966171168
    %v5548 = vunpack.c.0.s8 %v5547
    %v5549 = vlaneseq
    %v5550 = vshrl.u32 %v5549, 7
    %v5551 = vsub.s32 %v5548, %v5550
    %v5552 = vrot.slane %v5530, %v5551
    %v5554 = vunpack.c.l.s4 1966171168
    %v5555 = vunpack.c.0.s8 %v5554
    %v5556 = vlaneseq
    %v5557 = vshrl.u32 %v5556, 7
    %v5558 = vsub.s32 %v5555, %v5557
    %v5559 = vrot.slane %v5531, %v5558
    %v5560 = vcombine.high %v5538, %v5538
    %v5561 = vcombine.high %v5545, %v5545
    %v5562 = vcombine.high %v5552, %v5552
    %v5563 = vcombine.high %v5559, %v5559
    %v5564 = vcombine.high %v5412, %v5412
    %v5566 = vunpack.c.l.s4 1966171168
    %v5567 = vunpack.c.0.s8 %v5566
    %v5568 = vlaneseq
    %v5569 = vshrl.u32 %v5568, 7
    %v5570 = vsub.s32 %v5567, %v5569
    %v5571 = vrot.slane %v5412, %v5570
    %v5573 = vunpack.c.l.s4 1966171168
    %v5574 = vunpack.c.0.s8 %v5573
    %v5575 = vlaneseq
    %v5576 = vshrl.u32 %v5575, 7
    %v5577 = vsub.s32 %v5574, %v5576
    %v5578 = vrot.slane %v5564, %v5577
    %v5579 = vcombine.high %v5571, %v5571
    %v5580 = vcombine.high %v5578, %v5578
    %v5582 = vunpack.c.l.s4 1966171168
    %v5583 = vunpack.c.0.s8 %v5582
    %v5584 = vlaneseq
    %v5585 = vshrl.u32 %v5584, 7
    %v5586 = vsub.s32 %v5583, %v5585
    %v5587 = vrot.slane %v5571, %v5586
    %v5589 = vunpack.c.l.s4 1966171168
    %v5590 = vunpack.c.0.s8 %v5589
    %v5591 = vlaneseq
    %v5592 = vshrl.u32 %v5591, 7
    %v5593 = vsub.s32 %v5590, %v5592
    %v5594 = vrot.slane %v5578, %v5593
    %v5596 = vunpack.c.l.s4 1966171168
    %v5597 = vunpack.c.0.s8 %v5596
    %v5598 = vlaneseq
    %v5599 = vshrl.u32 %v5598, 7
    %v5600 = vsub.s32 %v5597, %v5599
    %v5601 = vrot.slane %v5579, %v5600
    %v5603 = vunpack.c.l.s4 1966171168
    %v5604 = vunpack.c.0.s8 %v5603
    %v5605 = vlaneseq
    %v5606 = vshrl.u32 %v5605, 7
    %v5607 = vsub.s32 %v5604, %v5606
    %v5608 = vrot.slane %v5580, %v5607
    %v5609 = vcombine.high %v5587, %v5587
    %v5610 = vcombine.high %v5594, %v5594
    %v5611 = vcombine.high %v5601, %v5601
    %v5612 = vcombine.high %v5608, %v5608
    %5645 = vst [vmem:[%s9 + $0xc] sm:$0x1] %v5440
    %5646 = vst [vmem:[%s9 + $0x1c] sm:$0x1] %v5454
    %5647 = vst [vmem:[%s9 + $0x2c] sm:$0x1] %v5462
    %5648 = vst [vmem:[%s9 + $0x3c] sm:$0x1] %v5464
    %5649 = vst [vmem:[%s9 + $0x4c] sm:$0x1] %v5447
    %5650 = vst [vmem:[%s9 + $0x5c] sm:$0x1] %v5461
    %5651 = vst [vmem:[%s9 + $0x6c] sm:$0x1] %v5463
    %5652 = vst [vmem:[%s9 + $0x7c] sm:$0x1] %v5465
    %5653 = vst [vmem:[%s9 + $0x8c] sm:$0x1] %v5489
    %5654 = vst [vmem:[%s9 + $0x9c] sm:$0x1] %v5503
    %5655 = vst [vmem:[%s9 + $0xac] sm:$0x1] %v5511
    %5656 = vst [vmem:[%s9 + $0xbc] sm:$0x1] %v5513
    %5657 = vst [vmem:[%s9 + $0xcc] sm:$0x1] %v5496
    %5658 = vst [vmem:[%s9 + $0xdc] sm:$0x1] %v5510
    %5659 = vst [vmem:[%s9 + $0xec] sm:$0x1] %v5512
    %5660 = vst [vmem:[%s9 + $0xfc] sm:$0x1] %v5514
    %5661 = vst [vmem:[%s9 + $0x10c] sm:$0x1] %v5538
    %5662 = vst [vmem:[%s9 + $0x11c] sm:$0x1] %v5552
    %5663 = vst [vmem:[%s9 + $0x12c] sm:$0x1] %v5560
    %5664 = vst [vmem:[%s9 + $0x13c] sm:$0x1] %v5562
    %5665 = vst [vmem:[%s9 + $0x14c] sm:$0x1] %v5545
    %5666 = vst [vmem:[%s9 + $0x15c] sm:$0x1] %v5559
    %5667 = vst [vmem:[%s9 + $0x16c] sm:$0x1] %v5561
    %5668 = vst [vmem:[%s9 + $0x17c] sm:$0x1] %v5563
    %5669 = vst [vmem:[%s9 + $0x18c] sm:$0x1] %v5587
    %5670 = vst [vmem:[%s9 + $0x19c] sm:$0x1] %v5601
    %5671 = vst [vmem:[%s9 + $0x1ac] sm:$0x1] %v5609
    %5672 = vst [vmem:[%s9 + $0x1bc] sm:$0x1] %v5611
    %5673 = vst [vmem:[%s9 + $0x1cc] sm:$0x1] %v5594
    %5674 = vst [vmem:[%s9 + $0x1dc] sm:$0x1] %v5608
    %5675 = vst [vmem:[%s9 + $0x1ec] sm:$0x1] %v5610
    %5676 = vst [vmem:[%s9 + $0x1fc] sm:$0x1] %v5612
    %s5677 = scalar_lea.vmem [#allocation2], 416
    %v5678 = vld [vmem:[%s5677] sm:$0xff]
    %v5679 = vld [vmem:[%s5677 + $0x8] sm:$0xff]
    %v5680 = vld [vmem:[%s5677 + $0x10] sm:$0xff]
    %v5681 = vld [vmem:[%s5677 + $0x18] sm:$0xff]
    %v5686 = vcombine.high %v5678, %v5678
    %v5688 = vunpack.c.l.s4 1966171168
    %v5689 = vunpack.c.0.s8 %v5688
    %v5690 = vlaneseq
    %v5691 = vshrl.u32 %v5690, 7
    %v5692 = vsub.s32 %v5689, %v5691
    %v5693 = vrot.slane %v5678, %v5692
    %v5695 = vunpack.c.l.s4 1966171168
    %v5696 = vunpack.c.0.s8 %v5695
    %v5697 = vlaneseq
    %v5698 = vshrl.u32 %v5697, 7
    %v5699 = vsub.s32 %v5696, %v5698
    %v5700 = vrot.slane %v5686, %v5699
    %v5701 = vcombine.high %v5693, %v5693
    %v5702 = vcombine.high %v5700, %v5700
    %v5704 = vunpack.c.l.s4 1966171168
    %v5705 = vunpack.c.0.s8 %v5704
    %v5706 = vlaneseq
    %v5707 = vshrl.u32 %v5706, 7
    %v5708 = vsub.s32 %v5705, %v5707
    %v5709 = vrot.slane %v5693, %v5708
    %v5711 = vunpack.c.l.s4 1966171168
    %v5712 = vunpack.c.0.s8 %v5711
    %v5713 = vlaneseq
    %v5714 = vshrl.u32 %v5713, 7
    %v5715 = vsub.s32 %v5712, %v5714
    %v5716 = vrot.slane %v5700, %v5715
    %v5718 = vunpack.c.l.s4 1966171168
    %v5719 = vunpack.c.0.s8 %v5718
    %v5720 = vlaneseq
    %v5721 = vshrl.u32 %v5720, 7
    %v5722 = vsub.s32 %v5719, %v5721
    %v5723 = vrot.slane %v5701, %v5722
    %v5725 = vunpack.c.l.s4 1966171168
    %v5726 = vunpack.c.0.s8 %v5725
    %v5727 = vlaneseq
    %v5728 = vshrl.u32 %v5727, 7
    %v5729 = vsub.s32 %v5726, %v5728
    %v5730 = vrot.slane %v5702, %v5729
    %v5731 = vcombine.high %v5709, %v5709
    %v5732 = vcombine.high %v5716, %v5716
    %v5733 = vcombine.high %v5723, %v5723
    %v5734 = vcombine.high %v5730, %v5730
    %v5735 = vcombine.high %v5679, %v5679
    %v5737 = vunpack.c.l.s4 1966171168
    %v5738 = vunpack.c.0.s8 %v5737
    %v5739 = vlaneseq
    %v5740 = vshrl.u32 %v5739, 7
    %v5741 = vsub.s32 %v5738, %v5740
    %v5742 = vrot.slane %v5679, %v5741
    %v5744 = vunpack.c.l.s4 1966171168
    %v5745 = vunpack.c.0.s8 %v5744
    %v5746 = vlaneseq
    %v5747 = vshrl.u32 %v5746, 7
    %v5748 = vsub.s32 %v5745, %v5747
    %v5749 = vrot.slane %v5735, %v5748
    %v5750 = vcombine.high %v5742, %v5742
    %v5751 = vcombine.high %v5749, %v5749
    %v5753 = vunpack.c.l.s4 1966171168
    %v5754 = vunpack.c.0.s8 %v5753
    %v5755 = vlaneseq
    %v5756 = vshrl.u32 %v5755, 7
    %v5757 = vsub.s32 %v5754, %v5756
    %v5758 = vrot.slane %v5742, %v5757
    %v5760 = vunpack.c.l.s4 1966171168
    %v5761 = vunpack.c.0.s8 %v5760
    %v5762 = vlaneseq
    %v5763 = vshrl.u32 %v5762, 7
    %v5764 = vsub.s32 %v5761, %v5763
    %v5765 = vrot.slane %v5749, %v5764
    %v5767 = vunpack.c.l.s4 1966171168
    %v5768 = vunpack.c.0.s8 %v5767
    %v5769 = vlaneseq
    %v5770 = vshrl.u32 %v5769, 7
    %v5771 = vsub.s32 %v5768, %v5770
    %v5772 = vrot.slane %v5750, %v5771
    %v5774 = vunpack.c.l.s4 1966171168
    %v5775 = vunpack.c.0.s8 %v5774
    %v5776 = vlaneseq
    %v5777 = vshrl.u32 %v5776, 7
    %v5778 = vsub.s32 %v5775, %v5777
    %v5779 = vrot.slane %v5751, %v5778
    %v5780 = vcombine.high %v5758, %v5758
    %v5781 = vcombine.high %v5765, %v5765
    %v5782 = vcombine.high %v5772, %v5772
    %v5783 = vcombine.high %v5779, %v5779
    %v5784 = vcombine.high %v5680, %v5680
    %v5786 = vunpack.c.l.s4 1966171168
    %v5787 = vunpack.c.0.s8 %v5786
    %v5788 = vlaneseq
    %v5789 = vshrl.u32 %v5788, 7
    %v5790 = vsub.s32 %v5787, %v5789
    %v5791 = vrot.slane %v5680, %v5790
    %v5793 = vunpack.c.l.s4 1966171168
    %v5794 = vunpack.c.0.s8 %v5793
    %v5795 = vlaneseq
    %v5796 = vshrl.u32 %v5795, 7
    %v5797 = vsub.s32 %v5794, %v5796
    %v5798 = vrot.slane %v5784, %v5797
    %v5799 = vcombine.high %v5791, %v5791
    %v5800 = vcombine.high %v5798, %v5798
    %v5802 = vunpack.c.l.s4 1966171168
    %v5803 = vunpack.c.0.s8 %v5802
    %v5804 = vlaneseq
    %v5805 = vshrl.u32 %v5804, 7
    %v5806 = vsub.s32 %v5803, %v5805
    %v5807 = vrot.slane %v5791, %v5806
    %v5809 = vunpack.c.l.s4 1966171168
    %v5810 = vunpack.c.0.s8 %v5809
    %v5811 = vlaneseq
    %v5812 = vshrl.u32 %v5811, 7
    %v5813 = vsub.s32 %v5810, %v5812
    %v5814 = vrot.slane %v5798, %v5813
    %v5816 = vunpack.c.l.s4 1966171168
    %v5817 = vunpack.c.0.s8 %v5816
    %v5818 = vlaneseq
    %v5819 = vshrl.u32 %v5818, 7
    %v5820 = vsub.s32 %v5817, %v5819
    %v5821 = vrot.slane %v5799, %v5820
    %v5823 = vunpack.c.l.s4 1966171168
    %v5824 = vunpack.c.0.s8 %v5823
    %v5825 = vlaneseq
    %v5826 = vshrl.u32 %v5825, 7
    %v5827 = vsub.s32 %v5824, %v5826
    %v5828 = vrot.slane %v5800, %v5827
    %v5829 = vcombine.high %v5807, %v5807
    %v5830 = vcombine.high %v5814, %v5814
    %v5831 = vcombine.high %v5821, %v5821
    %v5832 = vcombine.high %v5828, %v5828
    %v5833 = vcombine.high %v5681, %v5681
    %v5835 = vunpack.c.l.s4 1966171168
    %v5836 = vunpack.c.0.s8 %v5835
    %v5837 = vlaneseq
    %v5838 = vshrl.u32 %v5837, 7
    %v5839 = vsub.s32 %v5836, %v5838
    %v5840 = vrot.slane %v5681, %v5839
    %v5842 = vunpack.c.l.s4 1966171168
    %v5843 = vunpack.c.0.s8 %v5842
    %v5844 = vlaneseq
    %v5845 = vshrl.u32 %v5844, 7
    %v5846 = vsub.s32 %v5843, %v5845
    %v5847 = vrot.slane %v5833, %v5846
    %v5848 = vcombine.high %v5840, %v5840
    %v5849 = vcombine.high %v5847, %v5847
    %v5851 = vunpack.c.l.s4 1966171168
    %v5852 = vunpack.c.0.s8 %v5851
    %v5853 = vlaneseq
    %v5854 = vshrl.u32 %v5853, 7
    %v5855 = vsub.s32 %v5852, %v5854
    %v5856 = vrot.slane %v5840, %v5855
    %v5858 = vunpack.c.l.s4 1966171168
    %v5859 = vunpack.c.0.s8 %v5858
    %v5860 = vlaneseq
    %v5861 = vshrl.u32 %v5860, 7
    %v5862 = vsub.s32 %v5859, %v5861
    %v5863 = vrot.slane %v5847, %v5862
    %v5865 = vunpack.c.l.s4 1966171168
    %v5866 = vunpack.c.0.s8 %v5865
    %v5867 = vlaneseq
    %v5868 = vshrl.u32 %v5867, 7
    %v5869 = vsub.s32 %v5866, %v5868
    %v5870 = vrot.slane %v5848, %v5869
    %v5872 = vunpack.c.l.s4 1966171168
    %v5873 = vunpack.c.0.s8 %v5872
    %v5874 = vlaneseq
    %v5875 = vshrl.u32 %v5874, 7
    %v5876 = vsub.s32 %v5873, %v5875
    %v5877 = vrot.slane %v5849, %v5876
    %v5878 = vcombine.high %v5856, %v5856
    %v5879 = vcombine.high %v5863, %v5863
    %v5880 = vcombine.high %v5870, %v5870
    %v5881 = vcombine.high %v5877, %v5877
    %5914 = vst [vmem:[%s9 + $0xd] sm:$0x1] %v5709
    %5915 = vst [vmem:[%s9 + $0x1d] sm:$0x1] %v5723
    %5916 = vst [vmem:[%s9 + $0x2d] sm:$0x1] %v5731
    %5917 = vst [vmem:[%s9 + $0x3d] sm:$0x1] %v5733
    %5918 = vst [vmem:[%s9 + $0x4d] sm:$0x1] %v5716
    %5919 = vst [vmem:[%s9 + $0x5d] sm:$0x1] %v5730
    %5920 = vst [vmem:[%s9 + $0x6d] sm:$0x1] %v5732
    %5921 = vst [vmem:[%s9 + $0x7d] sm:$0x1] %v5734
    %5922 = vst [vmem:[%s9 + $0x8d] sm:$0x1] %v5758
    %5923 = vst [vmem:[%s9 + $0x9d] sm:$0x1] %v5772
    %5924 = vst [vmem:[%s9 + $0xad] sm:$0x1] %v5780
    %5925 = vst [vmem:[%s9 + $0xbd] sm:$0x1] %v5782
    %5926 = vst [vmem:[%s9 + $0xcd] sm:$0x1] %v5765
    %5927 = vst [vmem:[%s9 + $0xdd] sm:$0x1] %v5779
    %5928 = vst [vmem:[%s9 + $0xed] sm:$0x1] %v5781
    %5929 = vst [vmem:[%s9 + $0xfd] sm:$0x1] %v5783
    %5930 = vst [vmem:[%s9 + $0x10d] sm:$0x1] %v5807
    %5931 = vst [vmem:[%s9 + $0x11d] sm:$0x1] %v5821
    %5932 = vst [vmem:[%s9 + $0x12d] sm:$0x1] %v5829
    %5933 = vst [vmem:[%s9 + $0x13d] sm:$0x1] %v5831
    %5934 = vst [vmem:[%s9 + $0x14d] sm:$0x1] %v5814
    %5935 = vst [vmem:[%s9 + $0x15d] sm:$0x1] %v5828
    %5936 = vst [vmem:[%s9 + $0x16d] sm:$0x1] %v5830
    %5937 = vst [vmem:[%s9 + $0x17d] sm:$0x1] %v5832
    %5938 = vst [vmem:[%s9 + $0x18d] sm:$0x1] %v5856
    %5939 = vst [vmem:[%s9 + $0x19d] sm:$0x1] %v5870
    %5940 = vst [vmem:[%s9 + $0x1ad] sm:$0x1] %v5878
    %5941 = vst [vmem:[%s9 + $0x1bd] sm:$0x1] %v5880
    %5942 = vst [vmem:[%s9 + $0x1cd] sm:$0x1] %v5863
    %5943 = vst [vmem:[%s9 + $0x1dd] sm:$0x1] %v5877
    %5944 = vst [vmem:[%s9 + $0x1ed] sm:$0x1] %v5879
    %5945 = vst [vmem:[%s9 + $0x1fd] sm:$0x1] %v5881
    %s5946 = scalar_lea.vmem [#allocation2], 448
    %v5947 = vld [vmem:[%s5946] sm:$0xff]
    %v5948 = vld [vmem:[%s5946 + $0x8] sm:$0xff]
    %v5949 = vld [vmem:[%s5946 + $0x10] sm:$0xff]
    %v5950 = vld [vmem:[%s5946 + $0x18] sm:$0xff]
    %v5955 = vcombine.high %v5947, %v5947
    %v5957 = vunpack.c.l.s4 1966171168
    %v5958 = vunpack.c.0.s8 %v5957
    %v5959 = vlaneseq
    %v5960 = vshrl.u32 %v5959, 7
    %v5961 = vsub.s32 %v5958, %v5960
    %v5962 = vrot.slane %v5947, %v5961
    %v5964 = vunpack.c.l.s4 1966171168
    %v5965 = vunpack.c.0.s8 %v5964
    %v5966 = vlaneseq
    %v5967 = vshrl.u32 %v5966, 7
    %v5968 = vsub.s32 %v5965, %v5967
    %v5969 = vrot.slane %v5955, %v5968
    %v5970 = vcombine.high %v5962, %v5962
    %v5971 = vcombine.high %v5969, %v5969
    %v5973 = vunpack.c.l.s4 1966171168
    %v5974 = vunpack.c.0.s8 %v5973
    %v5975 = vlaneseq
    %v5976 = vshrl.u32 %v5975, 7
    %v5977 = vsub.s32 %v5974, %v5976
    %v5978 = vrot.slane %v5962, %v5977
    %v5980 = vunpack.c.l.s4 1966171168
    %v5981 = vunpack.c.0.s8 %v5980
    %v5982 = vlaneseq
    %v5983 = vshrl.u32 %v5982, 7
    %v5984 = vsub.s32 %v5981, %v5983
    %v5985 = vrot.slane %v5969, %v5984
    %v5987 = vunpack.c.l.s4 1966171168
    %v5988 = vunpack.c.0.s8 %v5987
    %v5989 = vlaneseq
    %v5990 = vshrl.u32 %v5989, 7
    %v5991 = vsub.s32 %v5988, %v5990
    %v5992 = vrot.slane %v5970, %v5991
    %v5994 = vunpack.c.l.s4 1966171168
    %v5995 = vunpack.c.0.s8 %v5994
    %v5996 = vlaneseq
    %v5997 = vshrl.u32 %v5996, 7
    %v5998 = vsub.s32 %v5995, %v5997
    %v5999 = vrot.slane %v5971, %v5998
    %v6000 = vcombine.high %v5978, %v5978
    %v6001 = vcombine.high %v5985, %v5985
    %v6002 = vcombine.high %v5992, %v5992
    %v6003 = vcombine.high %v5999, %v5999
    %v6004 = vcombine.high %v5948, %v5948
    %v6006 = vunpack.c.l.s4 1966171168
    %v6007 = vunpack.c.0.s8 %v6006
    %v6008 = vlaneseq
    %v6009 = vshrl.u32 %v6008, 7
    %v6010 = vsub.s32 %v6007, %v6009
    %v6011 = vrot.slane %v5948, %v6010
    %v6013 = vunpack.c.l.s4 1966171168
    %v6014 = vunpack.c.0.s8 %v6013
    %v6015 = vlaneseq
    %v6016 = vshrl.u32 %v6015, 7
    %v6017 = vsub.s32 %v6014, %v6016
    %v6018 = vrot.slane %v6004, %v6017
    %v6019 = vcombine.high %v6011, %v6011
    %v6020 = vcombine.high %v6018, %v6018
    %v6022 = vunpack.c.l.s4 1966171168
    %v6023 = vunpack.c.0.s8 %v6022
    %v6024 = vlaneseq
    %v6025 = vshrl.u32 %v6024, 7
    %v6026 = vsub.s32 %v6023, %v6025
    %v6027 = vrot.slane %v6011, %v6026
    %v6029 = vunpack.c.l.s4 1966171168
    %v6030 = vunpack.c.0.s8 %v6029
    %v6031 = vlaneseq
    %v6032 = vshrl.u32 %v6031, 7
    %v6033 = vsub.s32 %v6030, %v6032
    %v6034 = vrot.slane %v6018, %v6033
    %v6036 = vunpack.c.l.s4 1966171168
    %v6037 = vunpack.c.0.s8 %v6036
    %v6038 = vlaneseq
    %v6039 = vshrl.u32 %v6038, 7
    %v6040 = vsub.s32 %v6037, %v6039
    %v6041 = vrot.slane %v6019, %v6040
    %v6043 = vunpack.c.l.s4 1966171168
    %v6044 = vunpack.c.0.s8 %v6043
    %v6045 = vlaneseq
    %v6046 = vshrl.u32 %v6045, 7
    %v6047 = vsub.s32 %v6044, %v6046
    %v6048 = vrot.slane %v6020, %v6047
    %v6049 = vcombine.high %v6027, %v6027
    %v6050 = vcombine.high %v6034, %v6034
    %v6051 = vcombine.high %v6041, %v6041
    %v6052 = vcombine.high %v6048, %v6048
    %v6053 = vcombine.high %v5949, %v5949
    %v6055 = vunpack.c.l.s4 1966171168
    %v6056 = vunpack.c.0.s8 %v6055
    %v6057 = vlaneseq
    %v6058 = vshrl.u32 %v6057, 7
    %v6059 = vsub.s32 %v6056, %v6058
    %v6060 = vrot.slane %v5949, %v6059
    %v6062 = vunpack.c.l.s4 1966171168
    %v6063 = vunpack.c.0.s8 %v6062
    %v6064 = vlaneseq
    %v6065 = vshrl.u32 %v6064, 7
    %v6066 = vsub.s32 %v6063, %v6065
    %v6067 = vrot.slane %v6053, %v6066
    %v6068 = vcombine.high %v6060, %v6060
    %v6069 = vcombine.high %v6067, %v6067
    %v6071 = vunpack.c.l.s4 1966171168
    %v6072 = vunpack.c.0.s8 %v6071
    %v6073 = vlaneseq
    %v6074 = vshrl.u32 %v6073, 7
    %v6075 = vsub.s32 %v6072, %v6074
    %v6076 = vrot.slane %v6060, %v6075
    %v6078 = vunpack.c.l.s4 1966171168
    %v6079 = vunpack.c.0.s8 %v6078
    %v6080 = vlaneseq
    %v6081 = vshrl.u32 %v6080, 7
    %v6082 = vsub.s32 %v6079, %v6081
    %v6083 = vrot.slane %v6067, %v6082
    %v6085 = vunpack.c.l.s4 1966171168
    %v6086 = vunpack.c.0.s8 %v6085
    %v6087 = vlaneseq
    %v6088 = vshrl.u32 %v6087, 7
    %v6089 = vsub.s32 %v6086, %v6088
    %v6090 = vrot.slane %v6068, %v6089
    %v6092 = vunpack.c.l.s4 1966171168
    %v6093 = vunpack.c.0.s8 %v6092
    %v6094 = vlaneseq
    %v6095 = vshrl.u32 %v6094, 7
    %v6096 = vsub.s32 %v6093, %v6095
    %v6097 = vrot.slane %v6069, %v6096
    %v6098 = vcombine.high %v6076, %v6076
    %v6099 = vcombine.high %v6083, %v6083
    %v6100 = vcombine.high %v6090, %v6090
    %v6101 = vcombine.high %v6097, %v6097
    %v6102 = vcombine.high %v5950, %v5950
    %v6104 = vunpack.c.l.s4 1966171168
    %v6105 = vunpack.c.0.s8 %v6104
    %v6106 = vlaneseq
    %v6107 = vshrl.u32 %v6106, 7
    %v6108 = vsub.s32 %v6105, %v6107
    %v6109 = vrot.slane %v5950, %v6108
    %v6111 = vunpack.c.l.s4 1966171168
    %v6112 = vunpack.c.0.s8 %v6111
    %v6113 = vlaneseq
    %v6114 = vshrl.u32 %v6113, 7
    %v6115 = vsub.s32 %v6112, %v6114
    %v6116 = vrot.slane %v6102, %v6115
    %v6117 = vcombine.high %v6109, %v6109
    %v6118 = vcombine.high %v6116, %v6116
    %v6120 = vunpack.c.l.s4 1966171168
    %v6121 = vunpack.c.0.s8 %v6120
    %v6122 = vlaneseq
    %v6123 = vshrl.u32 %v6122, 7
    %v6124 = vsub.s32 %v6121, %v6123
    %v6125 = vrot.slane %v6109, %v6124
    %v6127 = vunpack.c.l.s4 1966171168
    %v6128 = vunpack.c.0.s8 %v6127
    %v6129 = vlaneseq
    %v6130 = vshrl.u32 %v6129, 7
    %v6131 = vsub.s32 %v6128, %v6130
    %v6132 = vrot.slane %v6116, %v6131
    %v6134 = vunpack.c.l.s4 1966171168
    %v6135 = vunpack.c.0.s8 %v6134
    %v6136 = vlaneseq
    %v6137 = vshrl.u32 %v6136, 7
    %v6138 = vsub.s32 %v6135, %v6137
    %v6139 = vrot.slane %v6117, %v6138
    %v6141 = vunpack.c.l.s4 1966171168
    %v6142 = vunpack.c.0.s8 %v6141
    %v6143 = vlaneseq
    %v6144 = vshrl.u32 %v6143, 7
    %v6145 = vsub.s32 %v6142, %v6144
    %v6146 = vrot.slane %v6118, %v6145
    %v6147 = vcombine.high %v6125, %v6125
    %v6148 = vcombine.high %v6132, %v6132
    %v6149 = vcombine.high %v6139, %v6139
    %v6150 = vcombine.high %v6146, %v6146
    %6183 = vst [vmem:[%s9 + $0xe] sm:$0x1] %v5978
    %6184 = vst [vmem:[%s9 + $0x1e] sm:$0x1] %v5992
    %6185 = vst [vmem:[%s9 + $0x2e] sm:$0x1] %v6000
    %6186 = vst [vmem:[%s9 + $0x3e] sm:$0x1] %v6002
    %6187 = vst [vmem:[%s9 + $0x4e] sm:$0x1] %v5985
    %6188 = vst [vmem:[%s9 + $0x5e] sm:$0x1] %v5999
    %6189 = vst [vmem:[%s9 + $0x6e] sm:$0x1] %v6001
    %6190 = vst [vmem:[%s9 + $0x7e] sm:$0x1] %v6003
    %6191 = vst [vmem:[%s9 + $0x8e] sm:$0x1] %v6027
    %6192 = vst [vmem:[%s9 + $0x9e] sm:$0x1] %v6041
    %6193 = vst [vmem:[%s9 + $0xae] sm:$0x1] %v6049
    %6194 = vst [vmem:[%s9 + $0xbe] sm:$0x1] %v6051
    %6195 = vst [vmem:[%s9 + $0xce] sm:$0x1] %v6034
    %6196 = vst [vmem:[%s9 + $0xde] sm:$0x1] %v6048
    %6197 = vst [vmem:[%s9 + $0xee] sm:$0x1] %v6050
    %6198 = vst [vmem:[%s9 + $0xfe] sm:$0x1] %v6052
    %6199 = vst [vmem:[%s9 + $0x10e] sm:$0x1] %v6076
    %6200 = vst [vmem:[%s9 + $0x11e] sm:$0x1] %v6090
    %6201 = vst [vmem:[%s9 + $0x12e] sm:$0x1] %v6098
    %6202 = vst [vmem:[%s9 + $0x13e] sm:$0x1] %v6100
    %6203 = vst [vmem:[%s9 + $0x14e] sm:$0x1] %v6083
    %6204 = vst [vmem:[%s9 + $0x15e] sm:$0x1] %v6097
    %6205 = vst [vmem:[%s9 + $0x16e] sm:$0x1] %v6099
    %6206 = vst [vmem:[%s9 + $0x17e] sm:$0x1] %v6101
    %6207 = vst [vmem:[%s9 + $0x18e] sm:$0x1] %v6125
    %6208 = vst [vmem:[%s9 + $0x19e] sm:$0x1] %v6139
    %6209 = vst [vmem:[%s9 + $0x1ae] sm:$0x1] %v6147
    %6210 = vst [vmem:[%s9 + $0x1be] sm:$0x1] %v6149
    %6211 = vst [vmem:[%s9 + $0x1ce] sm:$0x1] %v6132
    %6212 = vst [vmem:[%s9 + $0x1de] sm:$0x1] %v6146
    %6213 = vst [vmem:[%s9 + $0x1ee] sm:$0x1] %v6148
    %6214 = vst [vmem:[%s9 + $0x1fe] sm:$0x1] %v6150
    %s6215 = scalar_lea.vmem [#allocation2], 480
    %v6216 = vld [vmem:[%s6215] sm:$0xff]
    %v6217 = vld [vmem:[%s6215 + $0x8] sm:$0xff]
    %v6218 = vld [vmem:[%s6215 + $0x10] sm:$0xff]
    %v6219 = vld [vmem:[%s6215 + $0x18] sm:$0xff]
    %v6224 = vcombine.high %v6216, %v6216
    %v6226 = vunpack.c.l.s4 1966171168
    %v6227 = vunpack.c.0.s8 %v6226
    %v6228 = vlaneseq
    %v6229 = vshrl.u32 %v6228, 7
    %v6230 = vsub.s32 %v6227, %v6229
    %v6231 = vrot.slane %v6216, %v6230
    %v6233 = vunpack.c.l.s4 1966171168
    %v6234 = vunpack.c.0.s8 %v6233
    %v6235 = vlaneseq
    %v6236 = vshrl.u32 %v6235, 7
    %v6237 = vsub.s32 %v6234, %v6236
    %v6238 = vrot.slane %v6224, %v6237
    %v6239 = vcombine.high %v6231, %v6231
    %v6240 = vcombine.high %v6238, %v6238
    %v6242 = vunpack.c.l.s4 1966171168
    %v6243 = vunpack.c.0.s8 %v6242
    %v6244 = vlaneseq
    %v6245 = vshrl.u32 %v6244, 7
    %v6246 = vsub.s32 %v6243, %v6245
    %v6247 = vrot.slane %v6231, %v6246
    %v6249 = vunpack.c.l.s4 1966171168
    %v6250 = vunpack.c.0.s8 %v6249
    %v6251 = vlaneseq
    %v6252 = vshrl.u32 %v6251, 7
    %v6253 = vsub.s32 %v6250, %v6252
    %v6254 = vrot.slane %v6238, %v6253
    %v6256 = vunpack.c.l.s4 1966171168
    %v6257 = vunpack.c.0.s8 %v6256
    %v6258 = vlaneseq
    %v6259 = vshrl.u32 %v6258, 7
    %v6260 = vsub.s32 %v6257, %v6259
    %v6261 = vrot.slane %v6239, %v6260
    %v6263 = vunpack.c.l.s4 1966171168
    %v6264 = vunpack.c.0.s8 %v6263
    %v6265 = vlaneseq
    %v6266 = vshrl.u32 %v6265, 7
    %v6267 = vsub.s32 %v6264, %v6266
    %v6268 = vrot.slane %v6240, %v6267
    %v6269 = vcombine.high %v6247, %v6247
    %v6270 = vcombine.high %v6254, %v6254
    %v6271 = vcombine.high %v6261, %v6261
    %v6272 = vcombine.high %v6268, %v6268
    %v6273 = vcombine.high %v6217, %v6217
    %v6275 = vunpack.c.l.s4 1966171168
    %v6276 = vunpack.c.0.s8 %v6275
    %v6277 = vlaneseq
    %v6278 = vshrl.u32 %v6277, 7
    %v6279 = vsub.s32 %v6276, %v6278
    %v6280 = vrot.slane %v6217, %v6279
    %v6282 = vunpack.c.l.s4 1966171168
    %v6283 = vunpack.c.0.s8 %v6282
    %v6284 = vlaneseq
    %v6285 = vshrl.u32 %v6284, 7
    %v6286 = vsub.s32 %v6283, %v6285
    %v6287 = vrot.slane %v6273, %v6286
    %v6288 = vcombine.high %v6280, %v6280
    %v6289 = vcombine.high %v6287, %v6287
    %v6291 = vunpack.c.l.s4 1966171168
    %v6292 = vunpack.c.0.s8 %v6291
    %v6293 = vlaneseq
    %v6294 = vshrl.u32 %v6293, 7
    %v6295 = vsub.s32 %v6292, %v6294
    %v6296 = vrot.slane %v6280, %v6295
    %v6298 = vunpack.c.l.s4 1966171168
    %v6299 = vunpack.c.0.s8 %v6298
    %v6300 = vlaneseq
    %v6301 = vshrl.u32 %v6300, 7
    %v6302 = vsub.s32 %v6299, %v6301
    %v6303 = vrot.slane %v6287, %v6302
    %v6305 = vunpack.c.l.s4 1966171168
    %v6306 = vunpack.c.0.s8 %v6305
    %v6307 = vlaneseq
    %v6308 = vshrl.u32 %v6307, 7
    %v6309 = vsub.s32 %v6306, %v6308
    %v6310 = vrot.slane %v6288, %v6309
    %v6312 = vunpack.c.l.s4 1966171168
    %v6313 = vunpack.c.0.s8 %v6312
    %v6314 = vlaneseq
    %v6315 = vshrl.u32 %v6314, 7
    %v6316 = vsub.s32 %v6313, %v6315
    %v6317 = vrot.slane %v6289, %v6316
    %v6318 = vcombine.high %v6296, %v6296
    %v6319 = vcombine.high %v6303, %v6303
    %v6320 = vcombine.high %v6310, %v6310
    %v6321 = vcombine.high %v6317, %v6317
    %v6322 = vcombine.high %v6218, %v6218
    %v6324 = vunpack.c.l.s4 1966171168
    %v6325 = vunpack.c.0.s8 %v6324
    %v6326 = vlaneseq
    %v6327 = vshrl.u32 %v6326, 7
    %v6328 = vsub.s32 %v6325, %v6327
    %v6329 = vrot.slane %v6218, %v6328
    %v6331 = vunpack.c.l.s4 1966171168
    %v6332 = vunpack.c.0.s8 %v6331
    %v6333 = vlaneseq
    %v6334 = vshrl.u32 %v6333, 7
    %v6335 = vsub.s32 %v6332, %v6334
    %v6336 = vrot.slane %v6322, %v6335
    %v6337 = vcombine.high %v6329, %v6329
    %v6338 = vcombine.high %v6336, %v6336
    %v6340 = vunpack.c.l.s4 1966171168
    %v6341 = vunpack.c.0.s8 %v6340
    %v6342 = vlaneseq
    %v6343 = vshrl.u32 %v6342, 7
    %v6344 = vsub.s32 %v6341, %v6343
    %v6345 = vrot.slane %v6329, %v6344
    %v6347 = vunpack.c.l.s4 1966171168
    %v6348 = vunpack.c.0.s8 %v6347
    %v6349 = vlaneseq
    %v6350 = vshrl.u32 %v6349, 7
    %v6351 = vsub.s32 %v6348, %v6350
    %v6352 = vrot.slane %v6336, %v6351
    %v6354 = vunpack.c.l.s4 1966171168
    %v6355 = vunpack.c.0.s8 %v6354
    %v6356 = vlaneseq
    %v6357 = vshrl.u32 %v6356, 7
    %v6358 = vsub.s32 %v6355, %v6357
    %v6359 = vrot.slane %v6337, %v6358
    %v6361 = vunpack.c.l.s4 1966171168
    %v6362 = vunpack.c.0.s8 %v6361
    %v6363 = vlaneseq
    %v6364 = vshrl.u32 %v6363, 7
    %v6365 = vsub.s32 %v6362, %v6364
    %v6366 = vrot.slane %v6338, %v6365
    %v6367 = vcombine.high %v6345, %v6345
    %v6368 = vcombine.high %v6352, %v6352
    %v6369 = vcombine.high %v6359, %v6359
    %v6370 = vcombine.high %v6366, %v6366
    %v6371 = vcombine.high %v6219, %v6219
    %v6373 = vunpack.c.l.s4 1966171168
    %v6374 = vunpack.c.0.s8 %v6373
    %v6375 = vlaneseq
    %v6376 = vshrl.u32 %v6375, 7
    %v6377 = vsub.s32 %v6374, %v6376
    %v6378 = vrot.slane %v6219, %v6377
    %v6380 = vunpack.c.l.s4 1966171168
    %v6381 = vunpack.c.0.s8 %v6380
    %v6382 = vlaneseq
    %v6383 = vshrl.u32 %v6382, 7
    %v6384 = vsub.s32 %v6381, %v6383
    %v6385 = vrot.slane %v6371, %v6384
    %v6386 = vcombine.high %v6378, %v6378
    %v6387 = vcombine.high %v6385, %v6385
    %v6389 = vunpack.c.l.s4 1966171168
    %v6390 = vunpack.c.0.s8 %v6389
    %v6391 = vlaneseq
    %v6392 = vshrl.u32 %v6391, 7
    %v6393 = vsub.s32 %v6390, %v6392
    %v6394 = vrot.slane %v6378, %v6393
    %v6396 = vunpack.c.l.s4 1966171168
    %v6397 = vunpack.c.0.s8 %v6396
    %v6398 = vlaneseq
    %v6399 = vshrl.u32 %v6398, 7
    %v6400 = vsub.s32 %v6397, %v6399
    %v6401 = vrot.slane %v6385, %v6400
    %v6403 = vunpack.c.l.s4 1966171168
    %v6404 = vunpack.c.0.s8 %v6403
    %v6405 = vlaneseq
    %v6406 = vshrl.u32 %v6405, 7
    %v6407 = vsub.s32 %v6404, %v6406
    %v6408 = vrot.slane %v6386, %v6407
    %v6410 = vunpack.c.l.s4 1966171168
    %v6411 = vunpack.c.0.s8 %v6410
    %v6412 = vlaneseq
    %v6413 = vshrl.u32 %v6412, 7
    %v6414 = vsub.s32 %v6411, %v6413
    %v6415 = vrot.slane %v6387, %v6414
    %v6416 = vcombine.high %v6394, %v6394
    %v6417 = vcombine.high %v6401, %v6401
    %v6418 = vcombine.high %v6408, %v6408
    %v6419 = vcombine.high %v6415, %v6415
    %6452 = vst [vmem:[%s9 + $0xf] sm:$0x1] %v6247
    %6453 = vst [vmem:[%s9 + $0x1f] sm:$0x1] %v6261
    %6454 = vst [vmem:[%s9 + $0x2f] sm:$0x1] %v6269
    %6455 = vst [vmem:[%s9 + $0x3f] sm:$0x1] %v6271
    %6456 = vst [vmem:[%s9 + $0x4f] sm:$0x1] %v6254
    %6457 = vst [vmem:[%s9 + $0x5f] sm:$0x1] %v6268
    %6458 = vst [vmem:[%s9 + $0x6f] sm:$0x1] %v6270
    %6459 = vst [vmem:[%s9 + $0x7f] sm:$0x1] %v6272
    %6460 = vst [vmem:[%s9 + $0x8f] sm:$0x1] %v6296
    %6461 = vst [vmem:[%s9 + $0x9f] sm:$0x1] %v6310
    %6462 = vst [vmem:[%s9 + $0xaf] sm:$0x1] %v6318
    %6463 = vst [vmem:[%s9 + $0xbf] sm:$0x1] %v6320
    %6464 = vst [vmem:[%s9 + $0xcf] sm:$0x1] %v6303
    %6465 = vst [vmem:[%s9 + $0xdf] sm:$0x1] %v6317
    %6466 = vst [vmem:[%s9 + $0xef] sm:$0x1] %v6319
    %6467 = vst [vmem:[%s9 + $0xff] sm:$0x1] %v6321
    %6468 = vst [vmem:[%s9 + $0x10f] sm:$0x1] %v6345
    %6469 = vst [vmem:[%s9 + $0x11f] sm:$0x1] %v6359
    %6470 = vst [vmem:[%s9 + $0x12f] sm:$0x1] %v6367
    %6471 = vst [vmem:[%s9 + $0x13f] sm:$0x1] %v6369
    %6472 = vst [vmem:[%s9 + $0x14f] sm:$0x1] %v6352
    %6473 = vst [vmem:[%s9 + $0x15f] sm:$0x1] %v6366
    %6474 = vst [vmem:[%s9 + $0x16f] sm:$0x1] %v6368
    %6475 = vst [vmem:[%s9 + $0x17f] sm:$0x1] %v6370
    %6476 = vst [vmem:[%s9 + $0x18f] sm:$0x1] %v6394
    %6477 = vst [vmem:[%s9 + $0x19f] sm:$0x1] %v6408
    %6478 = vst [vmem:[%s9 + $0x1af] sm:$0x1] %v6416
    %6479 = vst [vmem:[%s9 + $0x1bf] sm:$0x1] %v6418
    %6480 = vst [vmem:[%s9 + $0x1cf] sm:$0x1] %v6401
    %6481 = vst [vmem:[%s9 + $0x1df] sm:$0x1] %v6415
    %6482 = vst [vmem:[%s9 + $0x1ef] sm:$0x1] %v6417
    %6483 = vst [vmem:[%s9 + $0x1ff] sm:$0x1] %v6419
    %v6484 = vld [vmem:[%s9] sm:$0xff]
    %v6485 = vld [vmem:[%s9 + $0x8] sm:$0xff]
    %v6486 = vld [vmem:[%s9 + $0x100] sm:$0xff]
    %v6487 = vld [vmem:[%s9 + $0x108] sm:$0xff]
    loop: start=1, step=1, limit=16
    $region72: #{spatial_conv_forward.1} parent=1 // loop_pre_header
      _
    $region73: #{spatial_conv_forward.1} parent=1 // loop_header
      %s6489 = sphi 1, %s6493
      %p6490 = scmp.ge.s32.totalorder %s6489, 16
      %v6494 = vphi %v6484, %v7474
      %v6495 = vphi %v6485, %v7475
      %v6496 = vphi %v6486, %v7476
      %v6497 = vphi %v6487, %v7477
    $region74: #{spatial_conv_forward.1} parent=1 // loop_header_branch
      %6492 = sbr.rel (%p6490) target = $region78
    $region75: #{spatial_conv_forward.1} parent=1 // loop_body
      %s6498 = smul.u32 %s6489, 16
      %s6499 = scalar_lea.vmem %s9, %s6498
      %v6500 = vld [vmem:[%s6499] sm:$0xff]
      %v6501 = vld [vmem:[%s6499 + $0x8] sm:$0xff]
      %v6502 = vld [vmem:[%s6499 + $0x100] sm:$0xff]
      %v6503 = vld [vmem:[%s6499 + $0x108] sm:$0xff]
      %v6504 = vrot.slane %v6494, 4
      %v6505 = vrot.slane %v6495, 4
      %v6506 = vrot.slane %v6496, 4
      %v6507 = vrot.slane %v6497, 4
      %vm6508 = vcmp.lt.s32.totalorder %v102, 4
      %v6509 = vsel %vm6508, %v6506, %v6507
      %v6510 = vsel %vm6508, %v6505, %v6506
      %v6511 = vsel %vm6508, %v6504, %v6505
      %v6512 = vsel %vm6508, %v6507, %v6504
      %vm6513 = vcmp.ge.s32.totalorder %v150, 4
      %vm6514 = vcmp.ge.s32.totalorder %v151, 4
      %vm6515 = vcmp.ge.s32.totalorder %v152, 4
      %vm6516 = vcmp.ge.s32.totalorder %v153, 4
      %v6517 = vsel %vm6513, %v6512, 0.0
      %v6518 = vsel %vm6514, %v6511, 0.0
      %v6519 = vsel %vm6515, %v6510, 0.0
      %v6520 = vsel %vm6516, %v6509, 0.0
      %v6521 = vrot.slane %v6494, 5
      %v6522 = vrot.slane %v6495, 5
      %v6523 = vrot.slane %v6496, 5
      %v6524 = vrot.slane %v6497, 5
      %vm6525 = vcmp.lt.s32.totalorder %v102, 3
      %v6526 = vsel %vm6525, %v6523, %v6524
      %v6527 = vsel %vm6525, %v6522, %v6523
      %v6528 = vsel %vm6525, %v6521, %v6522
      %v6529 = vsel %vm6525, %v6524, %v6521
      %vm6530 = vcmp.ge.s32.totalorder %v150, 3
      %vm6531 = vcmp.ge.s32.totalorder %v151, 3
      %vm6532 = vcmp.ge.s32.totalorder %v152, 3
      %vm6533 = vcmp.ge.s32.totalorder %v153, 3
      %v6534 = vsel %vm6530, %v6529, 0.0
      %v6535 = vsel %vm6531, %v6528, 0.0
      %v6536 = vsel %vm6532, %v6527, 0.0
      %v6537 = vsel %vm6533, %v6526, 0.0
      %v6538 = vrot.slane %v6494, 6
      %v6539 = vrot.slane %v6495, 6
      %v6540 = vrot.slane %v6496, 6
      %v6541 = vrot.slane %v6497, 6
      %vm6542 = vcmp.lt.s32.totalorder %v102, 2
      %v6543 = vsel %vm6542, %v6540, %v6541
      %v6544 = vsel %vm6542, %v6539, %v6540
      %v6545 = vsel %vm6542, %v6538, %v6539
      %v6546 = vsel %vm6542, %v6541, %v6538
      %vm6547 = vcmp.ge.s32.totalorder %v150, 2
      %vm6548 = vcmp.ge.s32.totalorder %v151, 2
      %vm6549 = vcmp.ge.s32.totalorder %v152, 2
      %vm6550 = vcmp.ge.s32.totalorder %v153, 2
      %v6551 = vsel %vm6547, %v6546, 0.0
      %v6552 = vsel %vm6548, %v6545, 0.0
      %v6553 = vsel %vm6549, %v6544, 0.0
      %v6554 = vsel %vm6550, %v6543, 0.0
      %v6555 = vrot.slane %v6494, 7
      %v6556 = vrot.slane %v6495, 7
      %v6557 = vrot.slane %v6496, 7
      %v6558 = vrot.slane %v6497, 7
      %vm6559 = vcmp.lt.s32.totalorder %v102, 1
      %v6560 = vsel %vm6559, %v6557, %v6558
      %v6561 = vsel %vm6559, %v6556, %v6557
      %v6562 = vsel %vm6559, %v6555, %v6556
      %v6563 = vsel %vm6559, %v6558, %v6555
      %vm6564 = vcmp.ge.s32.totalorder %v150, 1
      %vm6565 = vcmp.ge.s32.totalorder %v151, 1
      %vm6566 = vcmp.ge.s32.totalorder %v152, 1
      %vm6567 = vcmp.ge.s32.totalorder %v153, 1
      %v6568 = vsel %vm6564, %v6563, 0.0
      %v6569 = vsel %vm6565, %v6562, 0.0
      %v6570 = vsel %vm6566, %v6561, 0.0
      %v6571 = vsel %vm6567, %v6560, 0.0
      %v6572 = vrot.slane %v6494, 1
      %v6573 = vrot.slane %v6495, 1
      %v6574 = vrot.slane %v6496, 1
      %v6575 = vrot.slane %v6497, 1
      %vm6576 = vcmp.lt.s32.totalorder %v102, 7
      %v6577 = vsel %vm6576, %v6574, %v6575
      %v6578 = vsel %vm6576, %v6573, %v6574
      %v6579 = vsel %vm6576, %v6572, %v6573
      %v6580 = vsel %vm6576, %v6575, %v6572
      %vm6581 = vcmp.lt.s32.totalorder %v150, 15
      %vm6582 = vcmp.lt.s32.totalorder %v151, 15
      %vm6583 = vcmp.lt.s32.totalorder %v152, 15
      %vm6584 = vcmp.lt.s32.totalorder %v153, 15
      %v6585 = vsel %vm6581, %v6579, 0.0
      %v6586 = vsel %vm6582, %v6578, 0.0
      %v6587 = vsel %vm6583, %v6577, 0.0
      %v6588 = vsel %vm6584, %v6580, 0.0
      %v6589 = vrot.slane %v6494, 2
      %v6590 = vrot.slane %v6495, 2
      %v6591 = vrot.slane %v6496, 2
      %v6592 = vrot.slane %v6497, 2
      %vm6593 = vcmp.lt.s32.totalorder %v102, 6
      %v6594 = vsel %vm6593, %v6591, %v6592
      %v6595 = vsel %vm6593, %v6590, %v6591
      %v6596 = vsel %vm6593, %v6589, %v6590
      %v6597 = vsel %vm6593, %v6592, %v6589
      %vm6598 = vcmp.lt.s32.totalorder %v150, 14
      %vm6599 = vcmp.lt.s32.totalorder %v151, 14
      %vm6600 = vcmp.lt.s32.totalorder %v152, 14
      %vm6601 = vcmp.lt.s32.totalorder %v153, 14
      %v6602 = vsel %vm6598, %v6596, 0.0
      %v6603 = vsel %vm6599, %v6595, 0.0
      %v6604 = vsel %vm6600, %v6594, 0.0
      %v6605 = vsel %vm6601, %v6597, 0.0
      %v6606 = vrot.slane %v6494, 3
      %v6607 = vrot.slane %v6495, 3
      %v6608 = vrot.slane %v6496, 3
      %v6609 = vrot.slane %v6497, 3
      %vm6610 = vcmp.lt.s32.totalorder %v102, 5
      %v6611 = vsel %vm6610, %v6608, %v6609
      %v6612 = vsel %vm6610, %v6607, %v6608
      %v6613 = vsel %vm6610, %v6606, %v6607
      %v6614 = vsel %vm6610, %v6609, %v6606
      %vm6615 = vcmp.lt.s32.totalorder %v150, 13
      %vm6616 = vcmp.lt.s32.totalorder %v151, 13
      %vm6617 = vcmp.lt.s32.totalorder %v152, 13
      %vm6618 = vcmp.lt.s32.totalorder %v153, 13
      %v6619 = vsel %vm6615, %v6613, 0.0
      %v6620 = vsel %vm6616, %v6612, 0.0
      %v6621 = vsel %vm6617, %v6611, 0.0
      %v6622 = vsel %vm6618, %v6614, 0.0
      %vm6623 = vcmp.lt.s32.totalorder %v150, 12
      %vm6624 = vcmp.lt.s32.totalorder %v151, 12
      %vm6625 = vcmp.lt.s32.totalorder %v152, 12
      %vm6626 = vcmp.lt.s32.totalorder %v153, 12
      %v6627 = vsel %vm6623, %v6511, 0.0
      %v6628 = vsel %vm6624, %v6510, 0.0
      %v6629 = vsel %vm6625, %v6509, 0.0
      %v6630 = vsel %vm6626, %v6512, 0.0
      %v6631 = vpack.c.bf16 %v6518, %v6517
      %v6632 = vpack.c.bf16 %v6535, %v6534
      %v6633 = vpack.c.bf16 %v6552, %v6551
      %v6634 = vpack.c.bf16 %v6569, %v6568
      %v6635 = vpack.c.bf16 %v6495, %v6494
      %v6636 = vpack.c.bf16 %v6586, %v6585
      %v6637 = vpack.c.bf16 %v6603, %v6602
      %v6638 = vpack.c.bf16 %v6620, %v6619
      %v6639 = vpack.c.bf16 %v6628, %v6627
      %v6640 = vpack.c.bf16 %v6520, %v6519
      %v6641 = vpack.c.bf16 %v6537, %v6536
      %v6642 = vpack.c.bf16 %v6554, %v6553
      %v6643 = vpack.c.bf16 %v6571, %v6570
      %v6644 = vpack.c.bf16 %v6497, %v6496
      %v6645 = vpack.c.bf16 %v6588, %v6587
      %v6646 = vpack.c.bf16 %v6605, %v6604
      %v6647 = vpack.c.bf16 %v6622, %v6621
      %v6648 = vpack.c.bf16 %v6630, %v6629
      %v6649 = vld [vmem:[#allocation8] sm:$0xf]
      %v6650 = vld [vmem:[#allocation8 + $0x4] sm:$0xf]
      %v6651 = vld [vmem:[#allocation8 + $0x8] sm:$0xf]
      %v6652 = vld [vmem:[#allocation8 + $0xc] sm:$0xf]
      %v6653 = vld [vmem:[#allocation8 + $0x10] sm:$0xf]
      %v6654 = vld [vmem:[#allocation8 + $0x14] sm:$0xf]
      %v6655 = vld [vmem:[#allocation8 + $0x18] sm:$0xf]
      %v6656 = vld [vmem:[#allocation8 + $0x1c] sm:$0xf]
      %v6657 = vld [vmem:[#allocation8 + $0x20] sm:$0xf]
      %v6658 = vld [vmem:[#allocation8 + $0x24] sm:$0xf]
      %v6659 = vld [vmem:[#allocation8 + $0x28] sm:$0xf]
      %v6660 = vld [vmem:[#allocation8 + $0x2c] sm:$0xf]
      %v6661 = vld [vmem:[#allocation8 + $0x30] sm:$0xf]
      %v6662 = vld [vmem:[#allocation8 + $0x34] sm:$0xf]
      %v6663 = vld [vmem:[#allocation8 + $0x38] sm:$0xf]
      %v6664 = vld [vmem:[#allocation8 + $0x3c] sm:$0xf]
      %v6665 = vld [vmem:[#allocation8 + $0x40] sm:$0xf]
      %v6666 = vld [vmem:[#allocation8 + $0x44] sm:$0xf]
      %v6667 = vld [vmem:[#allocation8 + $0x48] sm:$0xf]
      %v6668 = vld [vmem:[#allocation8 + $0x4c] sm:$0xf]
      %v6669 = vld [vmem:[#allocation8 + $0x50] sm:$0xf]
      %v6670 = vld [vmem:[#allocation8 + $0x54] sm:$0xf]
      %v6671 = vld [vmem:[#allocation8 + $0x58] sm:$0xf]
      %v6672 = vld [vmem:[#allocation8 + $0x5c] sm:$0xf]
      %v6673 = vld [vmem:[#allocation8 + $0x60] sm:$0xf]
      %v6674 = vld [vmem:[#allocation8 + $0x64] sm:$0xf]
      %v6675 = vld [vmem:[#allocation8 + $0x68] sm:$0xf]
      %v6676 = vld [vmem:[#allocation8 + $0x6c] sm:$0xf]
      %v6677 = vld [vmem:[#allocation8 + $0x70] sm:$0xf]
      %v6678 = vld [vmem:[#allocation8 + $0x74] sm:$0xf]
      %v6679 = vld [vmem:[#allocation8 + $0x78] sm:$0xf]
      %v6680 = vld [vmem:[#allocation8 + $0x7c] sm:$0xf]
      %v6681 = vld [vmem:[#allocation8 + $0x80] sm:$0xf]
      %v6682 = vld [vmem:[#allocation8 + $0x84] sm:$0xf]
      %v6683 = vld [vmem:[#allocation8 + $0x88] sm:$0xf]
      %v6684 = vld [vmem:[#allocation8 + $0x8c] sm:$0xf]
      %v6685 = vld [vmem:[#allocation8 + $0x90] sm:$0xf]
      %v6686 = vld [vmem:[#allocation8 + $0x94] sm:$0xf]
      %v6687 = vld [vmem:[#allocation8 + $0x98] sm:$0xf]
      %v6688 = vld [vmem:[#allocation8 + $0x9c] sm:$0xf]
      %v6689 = vld [vmem:[#allocation8 + $0xa0] sm:$0xf]
      %v6690 = vld [vmem:[#allocation8 + $0xa4] sm:$0xf]
      %v6691 = vld [vmem:[#allocation8 + $0xa8] sm:$0xf]
      %v6692 = vld [vmem:[#allocation8 + $0xac] sm:$0xf]
      %v6693 = vld [vmem:[#allocation8 + $0xb0] sm:$0xf]
      %v6694 = vld [vmem:[#allocation8 + $0xb4] sm:$0xf]
      %v6695 = vld [vmem:[#allocation8 + $0xb8] sm:$0xf]
      %v6696 = vld [vmem:[#allocation8 + $0xbc] sm:$0xf]
      %v6697 = vld [vmem:[#allocation8 + $0xc0] sm:$0xf]
      %v6698 = vld [vmem:[#allocation8 + $0xc4] sm:$0xf]
      %v6699 = vld [vmem:[#allocation8 + $0xc8] sm:$0xf]
      %v6700 = vld [vmem:[#allocation8 + $0xcc] sm:$0xf]
      %v6701 = vld [vmem:[#allocation8 + $0xd0] sm:$0xf]
      %v6702 = vld [vmem:[#allocation8 + $0xd4] sm:$0xf]
      %v6703 = vld [vmem:[#allocation8 + $0xd8] sm:$0xf]
      %v6704 = vld [vmem:[#allocation8 + $0xdc] sm:$0xf]
      %v6705 = vld [vmem:[#allocation8 + $0xe0] sm:$0xf]
      %v6706 = vld [vmem:[#allocation8 + $0xe4] sm:$0xf]
      %v6707 = vld [vmem:[#allocation8 + $0xe8] sm:$0xf]
      %v6708 = vld [vmem:[#allocation8 + $0xec] sm:$0xf]
      %v6709 = vld [vmem:[#allocation8 + $0xf0] sm:$0xf]
      %v6710 = vld [vmem:[#allocation8 + $0xf4] sm:$0xf]
      %v6711 = vld [vmem:[#allocation8 + $0xf8] sm:$0xf]
      %v6712 = vld [vmem:[#allocation8 + $0xfc] sm:$0xf]
      %v6713 = vld [vmem:[#allocation8 + $0x100] sm:$0xf]
      %v6714 = vld [vmem:[#allocation8 + $0x104] sm:$0xf]
      %v6715 = vld [vmem:[#allocation8 + $0x108] sm:$0xf]
      %v6716 = vld [vmem:[#allocation8 + $0x10c] sm:$0xf]
      %v6717 = vld [vmem:[#allocation8 + $0x110] sm:$0xf]
      %v6718 = vld [vmem:[#allocation8 + $0x114] sm:$0xf]
      %v6719 = vld [vmem:[#allocation8 + $0x118] sm:$0xf]
      %v6720 = vld [vmem:[#allocation8 + $0x11c] sm:$0xf]
      %v6721 = vld [vmem:[#allocation8 + $0x120] sm:$0xf]
      %v6722 = vld [vmem:[#allocation8 + $0x124] sm:$0xf]
      %v6723 = vld [vmem:[#allocation8 + $0x128] sm:$0xf]
      %v6724 = vld [vmem:[#allocation8 + $0x12c] sm:$0xf]
      %v6725 = vld [vmem:[#allocation8 + $0x130] sm:$0xf]
      %v6726 = vld [vmem:[#allocation8 + $0x134] sm:$0xf]
      %v6727 = vld [vmem:[#allocation8 + $0x138] sm:$0xf]
      %v6728 = vld [vmem:[#allocation8 + $0x13c] sm:$0xf]
      %v6729 = vld [vmem:[#allocation8 + $0x140] sm:$0xf]
      %v6730 = vld [vmem:[#allocation8 + $0x144] sm:$0xf]
      %v6731 = vld [vmem:[#allocation8 + $0x148] sm:$0xf]
      %v6732 = vld [vmem:[#allocation8 + $0x14c] sm:$0xf]
      %v6733 = vld [vmem:[#allocation8 + $0x150] sm:$0xf]
      %v6734 = vld [vmem:[#allocation8 + $0x154] sm:$0xf]
      %v6735 = vld [vmem:[#allocation8 + $0x158] sm:$0xf]
      %v6736 = vld [vmem:[#allocation8 + $0x15c] sm:$0xf]
      %v6737 = vld [vmem:[#allocation8 + $0x160] sm:$0xf]
      %v6738 = vld [vmem:[#allocation8 + $0x164] sm:$0xf]
      %v6739 = vld [vmem:[#allocation8 + $0x168] sm:$0xf]
      %v6740 = vld [vmem:[#allocation8 + $0x16c] sm:$0xf]
      %v6741 = vld [vmem:[#allocation8 + $0x170] sm:$0xf]
      %v6742 = vld [vmem:[#allocation8 + $0x174] sm:$0xf]
      %v6743 = vld [vmem:[#allocation8 + $0x178] sm:$0xf]
      %v6744 = vld [vmem:[#allocation8 + $0x17c] sm:$0xf]
      %v6745 = vld [vmem:[#allocation8 + $0x180] sm:$0xf]
      %v6746 = vld [vmem:[#allocation8 + $0x184] sm:$0xf]
      %v6747 = vld [vmem:[#allocation8 + $0x188] sm:$0xf]
      %v6748 = vld [vmem:[#allocation8 + $0x18c] sm:$0xf]
      %v6749 = vld [vmem:[#allocation8 + $0x190] sm:$0xf]
      %v6750 = vld [vmem:[#allocation8 + $0x194] sm:$0xf]
      %v6751 = vld [vmem:[#allocation8 + $0x198] sm:$0xf]
      %v6752 = vld [vmem:[#allocation8 + $0x19c] sm:$0xf]
      %v6753 = vld [vmem:[#allocation8 + $0x1a0] sm:$0xf]
      %v6754 = vld [vmem:[#allocation8 + $0x1a4] sm:$0xf]
      %v6755 = vld [vmem:[#allocation8 + $0x1a8] sm:$0xf]
      %v6756 = vld [vmem:[#allocation8 + $0x1ac] sm:$0xf]
      %v6757 = vld [vmem:[#allocation8 + $0x1b0] sm:$0xf]
      %v6758 = vld [vmem:[#allocation8 + $0x1b4] sm:$0xf]
      %v6759 = vld [vmem:[#allocation8 + $0x1b8] sm:$0xf]
      %v6760 = vld [vmem:[#allocation8 + $0x1bc] sm:$0xf]
      %v6761 = vld [vmem:[#allocation8 + $0x1c0] sm:$0xf]
      %v6762 = vld [vmem:[#allocation8 + $0x1c4] sm:$0xf]
      %v6763 = vld [vmem:[#allocation8 + $0x1c8] sm:$0xf]
      %v6764 = vld [vmem:[#allocation8 + $0x1cc] sm:$0xf]
      %v6765 = vld [vmem:[#allocation8 + $0x1d0] sm:$0xf]
      %v6766 = vld [vmem:[#allocation8 + $0x1d4] sm:$0xf]
      %v6767 = vld [vmem:[#allocation8 + $0x1d8] sm:$0xf]
      %v6768 = vld [vmem:[#allocation8 + $0x1dc] sm:$0xf]
      %v6769 = vld [vmem:[#allocation8 + $0x1e0] sm:$0xf]
      %v6770 = vld [vmem:[#allocation8 + $0x1e4] sm:$0xf]
      %v6771 = vld [vmem:[#allocation8 + $0x1e8] sm:$0xf]
      %v6772 = vld [vmem:[#allocation8 + $0x1ec] sm:$0xf]
      %v6773 = vld [vmem:[#allocation8 + $0x1f0] sm:$0xf]
      %v6774 = vld [vmem:[#allocation8 + $0x1f4] sm:$0xf]
      %v6775 = vld [vmem:[#allocation8 + $0x1f8] sm:$0xf]
      %v6776 = vld [vmem:[#allocation8 + $0x1fc] sm:$0xf]
      %v6777 = vld [vmem:[#allocation8 + $0x200] sm:$0xf]
      %v6778 = vld [vmem:[#allocation8 + $0x204] sm:$0xf]
      %v6779 = vld [vmem:[#allocation8 + $0x208] sm:$0xf]
      %v6780 = vld [vmem:[#allocation8 + $0x20c] sm:$0xf]
      %v6781 = vld [vmem:[#allocation8 + $0x210] sm:$0xf]
      %v6782 = vld [vmem:[#allocation8 + $0x214] sm:$0xf]
      %v6783 = vld [vmem:[#allocation8 + $0x218] sm:$0xf]
      %v6784 = vld [vmem:[#allocation8 + $0x21c] sm:$0xf]
      %v6785 = vld [vmem:[#allocation8 + $0x220] sm:$0xf]
      %v6786 = vld [vmem:[#allocation8 + $0x224] sm:$0xf]
      %v6787 = vld [vmem:[#allocation8 + $0x228] sm:$0xf]
      %v6788 = vld [vmem:[#allocation8 + $0x22c] sm:$0xf]
      %v6789 = vld [vmem:[#allocation8 + $0x230] sm:$0xf]
      %v6790 = vld [vmem:[#allocation8 + $0x234] sm:$0xf]
      %v6791 = vld [vmem:[#allocation8 + $0x238] sm:$0xf]
      %v6792 = vld [vmem:[#allocation8 + $0x23c] sm:$0xf]
      %v6937 = vunpack.c.l.b16 %v6649
      %v6938 = vunpack.c.l.b16 %v6650
      %v6939 = vunpack.c.l.b16 %v6651
      %v6940 = vunpack.c.l.b16 %v6652
      %v6941 = vunpack.c.l.b16 %v6653
      %v6942 = vunpack.c.l.b16 %v6654
      %v6943 = vunpack.c.l.b16 %v6655
      %v6944 = vunpack.c.l.b16 %v6656
      %v6945 = vunpack.c.l.b16 %v6657
      %v6946 = vunpack.c.l.b16 %v6658
      %v6947 = vunpack.c.l.b16 %v6659
      %v6948 = vunpack.c.l.b16 %v6660
      %v6949 = vunpack.c.l.b16 %v6661
      %v6950 = vunpack.c.l.b16 %v6662
      %v6951 = vunpack.c.l.b16 %v6663
      %v6952 = vunpack.c.l.b16 %v6664
      %v6953 = vunpack.c.l.b16 %v6665
      %v6954 = vunpack.c.l.b16 %v6666
      %v6955 = vunpack.c.l.b16 %v6667
      %v6956 = vunpack.c.l.b16 %v6668
      %v6957 = vunpack.c.l.b16 %v6669
      %v6958 = vunpack.c.l.b16 %v6670
      %v6959 = vunpack.c.l.b16 %v6671
      %v6960 = vunpack.c.l.b16 %v6672
      %v6961 = vunpack.c.l.b16 %v6673
      %v6962 = vunpack.c.l.b16 %v6674
      %v6963 = vunpack.c.l.b16 %v6675
      %v6964 = vunpack.c.l.b16 %v6676
      %v6965 = vunpack.c.l.b16 %v6677
      %v6966 = vunpack.c.l.b16 %v6678
      %v6967 = vunpack.c.l.b16 %v6679
      %v6968 = vunpack.c.l.b16 %v6680
      %v6969 = vunpack.c.l.b16 %v6681
      %v6970 = vunpack.c.l.b16 %v6682
      %v6971 = vunpack.c.l.b16 %v6683
      %v6972 = vunpack.c.l.b16 %v6684
      %v6973 = vunpack.c.l.b16 %v6685
      %v6974 = vunpack.c.l.b16 %v6686
      %v6975 = vunpack.c.l.b16 %v6687
      %v6976 = vunpack.c.l.b16 %v6688
      %v6977 = vunpack.c.l.b16 %v6689
      %v6978 = vunpack.c.l.b16 %v6690
      %v6979 = vunpack.c.l.b16 %v6691
      %v6980 = vunpack.c.l.b16 %v6692
      %v6981 = vunpack.c.l.b16 %v6693
      %v6982 = vunpack.c.l.b16 %v6694
      %v6983 = vunpack.c.l.b16 %v6695
      %v6984 = vunpack.c.l.b16 %v6696
      %v6985 = vunpack.c.l.b16 %v6697
      %v6986 = vunpack.c.l.b16 %v6698
      %v6987 = vunpack.c.l.b16 %v6699
      %v6988 = vunpack.c.l.b16 %v6700
      %v6989 = vunpack.c.l.b16 %v6701
      %v6990 = vunpack.c.l.b16 %v6702
      %v6991 = vunpack.c.l.b16 %v6703
      %v6992 = vunpack.c.l.b16 %v6704
      %v6993 = vunpack.c.l.b16 %v6705
      %v6994 = vunpack.c.l.b16 %v6706
      %v6995 = vunpack.c.l.b16 %v6707
      %v6996 = vunpack.c.l.b16 %v6708
      %v6997 = vunpack.c.l.b16 %v6709
      %v6998 = vunpack.c.l.b16 %v6710
      %v6999 = vunpack.c.l.b16 %v6711
      %v7000 = vunpack.c.l.b16 %v6712
      %v7001 = vunpack.c.l.b16 %v6713
      %v7002 = vunpack.c.l.b16 %v6714
      %v7003 = vunpack.c.l.b16 %v6715
      %v7004 = vunpack.c.l.b16 %v6716
      %v7005 = vunpack.c.l.b16 %v6717
      %v7006 = vunpack.c.l.b16 %v6718
      %v7007 = vunpack.c.l.b16 %v6719
      %v7008 = vunpack.c.l.b16 %v6720
      %v7009 = vunpack.c.l.b16 %v6721
      %v7010 = vunpack.c.l.b16 %v6722
      %v7011 = vunpack.c.l.b16 %v6723
      %v7012 = vunpack.c.l.b16 %v6724
      %v7013 = vunpack.c.l.b16 %v6725
      %v7014 = vunpack.c.l.b16 %v6726
      %v7015 = vunpack.c.l.b16 %v6727
      %v7016 = vunpack.c.l.b16 %v6728
      %v7017 = vunpack.c.l.b16 %v6729
      %v7018 = vunpack.c.l.b16 %v6730
      %v7019 = vunpack.c.l.b16 %v6731
      %v7020 = vunpack.c.l.b16 %v6732
      %v7021 = vunpack.c.l.b16 %v6733
      %v7022 = vunpack.c.l.b16 %v6734
      %v7023 = vunpack.c.l.b16 %v6735
      %v7024 = vunpack.c.l.b16 %v6736
      %v7025 = vunpack.c.l.b16 %v6737
      %v7026 = vunpack.c.l.b16 %v6738
      %v7027 = vunpack.c.l.b16 %v6739
      %v7028 = vunpack.c.l.b16 %v6740
      %v7029 = vunpack.c.l.b16 %v6741
      %v7030 = vunpack.c.l.b16 %v6742
      %v7031 = vunpack.c.l.b16 %v6743
      %v7032 = vunpack.c.l.b16 %v6744
      %v7033 = vunpack.c.l.b16 %v6745
      %v7034 = vunpack.c.l.b16 %v6746
      %v7035 = vunpack.c.l.b16 %v6747
      %v7036 = vunpack.c.l.b16 %v6748
      %v7037 = vunpack.c.l.b16 %v6749
      %v7038 = vunpack.c.l.b16 %v6750
      %v7039 = vunpack.c.l.b16 %v6751
      %v7040 = vunpack.c.l.b16 %v6752
      %v7041 = vunpack.c.l.b16 %v6753
      %v7042 = vunpack.c.l.b16 %v6754
      %v7043 = vunpack.c.l.b16 %v6755
      %v7044 = vunpack.c.l.b16 %v6756
      %v7045 = vunpack.c.l.b16 %v6757
      %v7046 = vunpack.c.l.b16 %v6758
      %v7047 = vunpack.c.l.b16 %v6759
      %v7048 = vunpack.c.l.b16 %v6760
      %v7049 = vunpack.c.l.b16 %v6761
      %v7050 = vunpack.c.l.b16 %v6762
      %v7051 = vunpack.c.l.b16 %v6763
      %v7052 = vunpack.c.l.b16 %v6764
      %v7053 = vunpack.c.l.b16 %v6765
      %v7054 = vunpack.c.l.b16 %v6766
      %v7055 = vunpack.c.l.b16 %v6767
      %v7056 = vunpack.c.l.b16 %v6768
      %v7057 = vunpack.c.l.b16 %v6769
      %v7058 = vunpack.c.l.b16 %v6770
      %v7059 = vunpack.c.l.b16 %v6771
      %v7060 = vunpack.c.l.b16 %v6772
      %v7061 = vunpack.c.l.b16 %v6773
      %v7062 = vunpack.c.l.b16 %v6774
      %v7063 = vunpack.c.l.b16 %v6775
      %v7064 = vunpack.c.l.b16 %v6776
      %v7065 = vunpack.c.l.b16 %v6777
      %v7066 = vunpack.c.l.b16 %v6778
      %v7067 = vunpack.c.l.b16 %v6779
      %v7068 = vunpack.c.l.b16 %v6780
      %v7069 = vunpack.c.l.b16 %v6781
      %v7070 = vunpack.c.l.b16 %v6782
      %v7071 = vunpack.c.l.b16 %v6783
      %v7072 = vunpack.c.l.b16 %v6784
      %v7073 = vunpack.c.l.b16 %v6785
      %v7074 = vunpack.c.l.b16 %v6786
      %v7075 = vunpack.c.l.b16 %v6787
      %v7076 = vunpack.c.l.b16 %v6788
      %v7077 = vunpack.c.l.b16 %v6789
      %v7078 = vunpack.c.l.b16 %v6790
      %v7079 = vunpack.c.l.b16 %v6791
      %v7080 = vunpack.c.l.b16 %v6792
      %v7081 = vpack.c.b16 %v6938, %v6937
      %v7082 = vpack.c.b16 %v6940, %v6939
      %v7083 = vpack.c.b16 %v6942, %v6941
      %v7084 = vpack.c.b16 %v6944, %v6943
      %v7085 = vpack.c.b16 %v6946, %v6945
      %v7086 = vpack.c.b16 %v6948, %v6947
      %v7087 = vpack.c.b16 %v6950, %v6949
      %v7088 = vpack.c.b16 %v6952, %v6951
      %v7089 = vpack.c.b16 %v6954, %v6953
      %v7090 = vpack.c.b16 %v6956, %v6955
      %v7091 = vpack.c.b16 %v6958, %v6957
      %v7092 = vpack.c.b16 %v6960, %v6959
      %v7093 = vpack.c.b16 %v6962, %v6961
      %v7094 = vpack.c.b16 %v6964, %v6963
      %v7095 = vpack.c.b16 %v6966, %v6965
      %v7096 = vpack.c.b16 %v6968, %v6967
      %v7097 = vpack.c.b16 %v6970, %v6969
      %v7098 = vpack.c.b16 %v6972, %v6971
      %v7099 = vpack.c.b16 %v6974, %v6973
      %v7100 = vpack.c.b16 %v6976, %v6975
      %v7101 = vpack.c.b16 %v6978, %v6977
      %v7102 = vpack.c.b16 %v6980, %v6979
      %v7103 = vpack.c.b16 %v6982, %v6981
      %v7104 = vpack.c.b16 %v6984, %v6983
      %v7105 = vpack.c.b16 %v6986, %v6985
      %v7106 = vpack.c.b16 %v6988, %v6987
      %v7107 = vpack.c.b16 %v6990, %v6989
      %v7108 = vpack.c.b16 %v6992, %v6991
      %v7109 = vpack.c.b16 %v6994, %v6993
      %v7110 = vpack.c.b16 %v6996, %v6995
      %v7111 = vpack.c.b16 %v6998, %v6997
      %v7112 = vpack.c.b16 %v7000, %v6999
      %v7113 = vpack.c.b16 %v7002, %v7001
      %v7114 = vpack.c.b16 %v7004, %v7003
      %v7115 = vpack.c.b16 %v7006, %v7005
      %v7116 = vpack.c.b16 %v7008, %v7007
      %v7117 = vpack.c.b16 %v7010, %v7009
      %v7118 = vpack.c.b16 %v7012, %v7011
      %v7119 = vpack.c.b16 %v7014, %v7013
      %v7120 = vpack.c.b16 %v7016, %v7015
      %v7121 = vpack.c.b16 %v7018, %v7017
      %v7122 = vpack.c.b16 %v7020, %v7019
      %v7123 = vpack.c.b16 %v7022, %v7021
      %v7124 = vpack.c.b16 %v7024, %v7023
      %v7125 = vpack.c.b16 %v7026, %v7025
      %v7126 = vpack.c.b16 %v7028, %v7027
      %v7127 = vpack.c.b16 %v7030, %v7029
      %v7128 = vpack.c.b16 %v7032, %v7031
      %v7129 = vpack.c.b16 %v7034, %v7033
      %v7130 = vpack.c.b16 %v7036, %v7035
      %v7131 = vpack.c.b16 %v7038, %v7037
      %v7132 = vpack.c.b16 %v7040, %v7039
      %v7133 = vpack.c.b16 %v7042, %v7041
      %v7134 = vpack.c.b16 %v7044, %v7043
      %v7135 = vpack.c.b16 %v7046, %v7045
      %v7136 = vpack.c.b16 %v7048, %v7047
      %v7137 = vpack.c.b16 %v7050, %v7049
      %v7138 = vpack.c.b16 %v7052, %v7051
      %v7139 = vpack.c.b16 %v7054, %v7053
      %v7140 = vpack.c.b16 %v7056, %v7055
      %v7141 = vpack.c.b16 %v7058, %v7057
      %v7142 = vpack.c.b16 %v7060, %v7059
      %v7143 = vpack.c.b16 %v7062, %v7061
      %v7144 = vpack.c.b16 %v7064, %v7063
      %v7145 = vpack.c.b16 %v7066, %v7065
      %v7146 = vpack.c.b16 %v7068, %v7067
      %v7147 = vpack.c.b16 %v7070, %v7069
      %v7148 = vpack.c.b16 %v7072, %v7071
      %v7149 = vpack.c.b16 %v7074, %v7073
      %v7150 = vpack.c.b16 %v7076, %v7075
      %v7151 = vpack.c.b16 %v7078, %v7077
      %v7152 = vpack.c.b16 %v7080, %v7079
      %7225 = vmatprep.subr.bf16.mxu0 0
      %7226 = vmatpush1.bf16.msra.mxu0 %v7081
      %7227 = vmatprep.subr.bf16.mxu0 0
      %7228 = vmatpush1.bf16.msra.mxu0 %v7082
      %7229 = vmatprep.subr.bf16.mxu0 0
      %7230 = vmatpush1.bf16.msra.mxu0 %v7083
      %7231 = vmatprep.subr.bf16.mxu0 0
      %7232 = vmatpush1.bf16.msra.mxu0 %v7084
      %7233 = vmatprep.subr.bf16.mxu0 0
      %7234 = vmatpush1.bf16.msra.mxu0 %v7085
      %7235 = vmatprep.subr.bf16.mxu0 0
      %7236 = vmatpush1.bf16.msra.mxu0 %v7086
      %7237 = vmatprep.subr.bf16.mxu0 0
      %7238 = vmatpush1.bf16.msra.mxu0 %v7087
      %7239 = vmatprep.subr.bf16.mxu0 0
      %7240 = vmatpush1.bf16.msra.mxu0 %v7088
      %7241 = vmatprep.subr.bf16.mxu0 0
      %7242 = vmatpush1.bf16.msra.mxu0 %v7089
      %7243 = vmatprep.subr.bf16.mxu0 0
      %7244 = vmatpush1.bf16.msra.mxu0 %v7090
      %7245 = vmatprep.subr.bf16.mxu0 0
      %7246 = vmatpush1.bf16.msra.mxu0 %v7091
      %7247 = vmatprep.subr.bf16.mxu0 0
      %7248 = vmatpush1.bf16.msra.mxu0 %v7092
      %7249 = vmatprep.subr.bf16.mxu0 0
      %7250 = vmatpush1.bf16.msra.mxu0 %v7093
      %7251 = vmatprep.subr.bf16.mxu0 0
      %7252 = vmatpush1.bf16.msra.mxu0 %v7094
      %7253 = vmatprep.subr.bf16.mxu0 0
      %7254 = vmatpush1.bf16.msra.mxu0 %v7095
      %7255 = vmatprep.subr.bf16.mxu0 0
      %7256 = vmatpush1.bf16.msra.mxu0 %v7096
      %7257 = vmatprep.mubr.bf16.mxu0 %v6632
      %7258 = vmatmul.mubr.bf16.gmra.mrb[0].mxu0 %v6631
      %v7259 = vpop.f32.mrb[0].mxu0
      %v7260 = vadd.f32 %v173, %v7259
      %v7261 = vpop.f32.mrb[0].mxu0
      %v7262 = vpop.f32.mrb[0].mxu0
      %v7263 = vadd.f32 %v173, %v7262
      %v7264 = vpop.f32.mrb[0].mxu0
      %7265 = vmatprep.mubr.bf16.mxu0 %v6641
      %7266 = vmatmul.mubr.bf16.gmra.mrb[0].mxu0 %v6640
      %v7267 = vpop.f32.mrb[0].mxu0
      %v7268 = vadd.f32 %v173, %v7267
      %v7269 = vpop.f32.mrb[0].mxu0
      %v7270 = vpop.f32.mrb[0].mxu0
      %v7271 = vadd.f32 %v173, %v7270
      %v7272 = vpop.f32.mrb[0].mxu0
      %7273 = vdwg.mxu0
      %7274 = vmatprep.subr.bf16.mxu0 0
      %7275 = vmatpush1.bf16.msra.mxu0 %v7097
      %7276 = vmatprep.subr.bf16.mxu0 0
      %7277 = vmatpush1.bf16.msra.mxu0 %v7098
      %7278 = vmatprep.subr.bf16.mxu0 0
      %7279 = vmatpush1.bf16.msra.mxu0 %v7099
      %7280 = vmatprep.subr.bf16.mxu0 0
      %7281 = vmatpush1.bf16.msra.mxu0 %v7100
      %7282 = vmatprep.subr.bf16.mxu0 0
      %7283 = vmatpush1.bf16.msra.mxu0 %v7101
      %7284 = vmatprep.subr.bf16.mxu0 0
      %7285 = vmatpush1.bf16.msra.mxu0 %v7102
      %7286 = vmatprep.subr.bf16.mxu0 0
      %7287 = vmatpush1.bf16.msra.mxu0 %v7103
      %7288 = vmatprep.subr.bf16.mxu0 0
      %7289 = vmatpush1.bf16.msra.mxu0 %v7104
      %7290 = vmatprep.subr.bf16.mxu0 0
      %7291 = vmatpush1.bf16.msra.mxu0 %v7105
      %7292 = vmatprep.subr.bf16.mxu0 0
      %7293 = vmatpush1.bf16.msra.mxu0 %v7106
      %7294 = vmatprep.subr.bf16.mxu0 0
      %7295 = vmatpush1.bf16.msra.mxu0 %v7107
      %7296 = vmatprep.subr.bf16.mxu0 0
      %7297 = vmatpush1.bf16.msra.mxu0 %v7108
      %7298 = vmatprep.subr.bf16.mxu0 0
      %7299 = vmatpush1.bf16.msra.mxu0 %v7109
      %7300 = vmatprep.subr.bf16.mxu0 0
      %7301 = vmatpush1.bf16.msra.mxu0 %v7110
      %7302 = vmatprep.subr.bf16.mxu0 0
      %7303 = vmatpush1.bf16.msra.mxu0 %v7111
      %7304 = vmatprep.subr.bf16.mxu0 0
      %7305 = vmatpush1.bf16.msra.mxu0 %v7112
      %7306 = vmatprep.mubr.bf16.mxu0 %v6634
      %7307 = vmatmul.mubr.bf16.gmra.mrb[0].mxu0 %v6633
      %v7308 = vpop.f32.mrb[0].mxu0
      %v7309 = vadd.f32 %v7260, %v7308
      %v7310 = vpop.f32.mrb[0].mxu0
      %v7311 = vpop.f32.mrb[0].mxu0
      %v7312 = vadd.f32 %v7263, %v7311
      %v7313 = vpop.f32.mrb[0].mxu0
      %7314 = vmatprep.mubr.bf16.mxu0 %v6643
      %7315 = vmatmul.mubr.bf16.gmra.mrb[0].mxu0 %v6642
      %v7316 = vpop.f32.mrb[0].mxu0
      %v7317 = vadd.f32 %v7268, %v7316
      %v7318 = vpop.f32.mrb[0].mxu0
      %v7319 = vpop.f32.mrb[0].mxu0
      %v7320 = vadd.f32 %v7271, %v7319
      %v7321 = vpop.f32.mrb[0].mxu0
      %7322 = vdwg.mxu0
      %7323 = vmatprep.subr.bf16.mxu0 0
      %7324 = vmatpush1.bf16.msra.mxu0 %v7113
      %7325 = vmatprep.subr.bf16.mxu0 0
      %7326 = vmatpush1.bf16.msra.mxu0 %v7114
      %7327 = vmatprep.subr.bf16.mxu0 0
      %7328 = vmatpush1.bf16.msra.mxu0 %v7115
      %7329 = vmatprep.subr.bf16.mxu0 0
      %7330 = vmatpush1.bf16.msra.mxu0 %v7116
      %7331 = vmatprep.subr.bf16.mxu0 0
      %7332 = vmatpush1.bf16.msra.mxu0 %v7117
      %7333 = vmatprep.subr.bf16.mxu0 0
      %7334 = vmatpush1.bf16.msra.mxu0 %v7118
      %7335 = vmatprep.subr.bf16.mxu0 0
      %7336 = vmatpush1.bf16.msra.mxu0 %v7119
      %7337 = vmatprep.subr.bf16.mxu0 0
      %7338 = vmatpush1.bf16.msra.mxu0 %v7120
      %7339 = vmatprep.subr.bf16.mxu0 0
      %7340 = vmatpush1.bf16.msra.mxu0 %v7121
      %7341 = vmatprep.subr.bf16.mxu0 0
      %7342 = vmatpush1.bf16.msra.mxu0 %v7122
      %7343 = vmatprep.subr.bf16.mxu0 0
      %7344 = vmatpush1.bf16.msra.mxu0 %v7123
      %7345 = vmatprep.subr.bf16.mxu0 0
      %7346 = vmatpush1.bf16.msra.mxu0 %v7124
      %7347 = vmatprep.subr.bf16.mxu0 0
      %7348 = vmatpush1.bf16.msra.mxu0 %v7125
      %7349 = vmatprep.subr.bf16.mxu0 0
      %7350 = vmatpush1.bf16.msra.mxu0 %v7126
      %7351 = vmatprep.subr.bf16.mxu0 0
      %7352 = vmatpush1.bf16.msra.mxu0 %v7127
      %7353 = vmatprep.subr.bf16.mxu0 0
      %7354 = vmatpush1.bf16.msra.mxu0 %v7128
      %7355 = vmatprep.mubr.bf16.mxu0 %v6636
      %7356 = vmatmul.mubr.bf16.gmra.mrb[0].mxu0 %v6635
      %v7357 = vpop.f32.mrb[0].mxu0
      %v7358 = vadd.f32 %v7309, %v7357
      %v7359 = vpop.f32.mrb[0].mxu0
      %v7360 = vpop.f32.mrb[0].mxu0
      %v7361 = vadd.f32 %v7312, %v7360
      %v7362 = vpop.f32.mrb[0].mxu0
      %7363 = vmatprep.mubr.bf16.mxu0 %v6645
      %7364 = vmatmul.mubr.bf16.gmra.mrb[0].mxu0 %v6644
      %v7365 = vpop.f32.mrb[0].mxu0
      %v7366 = vadd.f32 %v7317, %v7365
      %v7367 = vpop.f32.mrb[0].mxu0
      %v7368 = vpop.f32.mrb[0].mxu0
      %v7369 = vadd.f32 %v7320, %v7368
      %v7370 = vpop.f32.mrb[0].mxu0
      %7371 = vdwg.mxu0
      %7372 = vmatprep.subr.bf16.mxu0 0
      %7373 = vmatpush1.bf16.msra.mxu0 %v7129
      %7374 = vmatprep.subr.bf16.mxu0 0
      %7375 = vmatpush1.bf16.msra.mxu0 %v7130
      %7376 = vmatprep.subr.bf16.mxu0 0
      %7377 = vmatpush1.bf16.msra.mxu0 %v7131
      %7378 = vmatprep.subr.bf16.mxu0 0
      %7379 = vmatpush1.bf16.msra.mxu0 %v7132
      %7380 = vmatprep.subr.bf16.mxu0 0
      %7381 = vmatpush1.bf16.msra.mxu0 %v7133
      %7382 = vmatprep.subr.bf16.mxu0 0
      %7383 = vmatpush1.bf16.msra.mxu0 %v7134
      %7384 = vmatprep.subr.bf16.mxu0 0
      %7385 = vmatpush1.bf16.msra.mxu0 %v7135
      %7386 = vmatprep.subr.bf16.mxu0 0
      %7387 = vmatpush1.bf16.msra.mxu0 %v7136
      %7388 = vmatprep.subr.bf16.mxu0 0
      %7389 = vmatpush1.bf16.msra.mxu0 %v7137
      %7390 = vmatprep.subr.bf16.mxu0 0
      %7391 = vmatpush1.bf16.msra.mxu0 %v7138
      %7392 = vmatprep.subr.bf16.mxu0 0
      %7393 = vmatpush1.bf16.msra.mxu0 %v7139
      %7394 = vmatprep.subr.bf16.mxu0 0
      %7395 = vmatpush1.bf16.msra.mxu0 %v7140
      %7396 = vmatprep.subr.bf16.mxu0 0
      %7397 = vmatpush1.bf16.msra.mxu0 %v7141
      %7398 = vmatprep.subr.bf16.mxu0 0
      %7399 = vmatpush1.bf16.msra.mxu0 %v7142
      %7400 = vmatprep.subr.bf16.mxu0 0
      %7401 = vmatpush1.bf16.msra.mxu0 %v7143
      %7402 = vmatprep.subr.bf16.mxu0 0
      %7403 = vmatpush1.bf16.msra.mxu0 %v7144
      %7404 = vmatprep.mubr.bf16.mxu0 %v6638
      %7405 = vmatmul.mubr.bf16.gmra.mrb[0].mxu0 %v6637
      %v7406 = vpop.f32.mrb[0].mxu0
      %v7407 = vadd.f32 %v7358, %v7406
      %v7408 = vpop.f32.mrb[0].mxu0
      %v7409 = vpop.f32.mrb[0].mxu0
      %v7410 = vadd.f32 %v7361, %v7409
      %v7411 = vpop.f32.mrb[0].mxu0
      %7412 = vmatprep.mubr.bf16.mxu0 %v6647
      %7413 = vmatmul.mubr.bf16.gmra.mrb[0].mxu0 %v6646
      %v7414 = vpop.f32.mrb[0].mxu0
      %v7415 = vadd.f32 %v7366, %v7414
      %v7416 = vpop.f32.mrb[0].mxu0
      %v7417 = vpop.f32.mrb[0].mxu0
      %v7418 = vadd.f32 %v7369, %v7417
      %v7419 = vpop.f32.mrb[0].mxu0
      %7420 = vdwg.mxu0
      %7421 = vmatprep.subr.bf16.mxu0 0
      %7422 = vmatpush1.bf16.msra.mxu0 %v7145
      %7423 = vmatprep.subr.bf16.mxu0 0
      %7424 = vmatpush1.bf16.msra.mxu0 %v7146
      %7425 = vmatprep.subr.bf16.mxu0 0
      %7426 = vmatpush1.bf16.msra.mxu0 %v7147
      %7427 = vmatprep.subr.bf16.mxu0 0
      %7428 = vmatpush1.bf16.msra.mxu0 %v7148
      %7429 = vmatprep.subr.bf16.mxu0 0
      %7430 = vmatpush1.bf16.msra.mxu0 %v7149
      %7431 = vmatprep.subr.bf16.mxu0 0
      %7432 = vmatpush1.bf16.msra.mxu0 %v7150
      %7433 = vmatprep.subr.bf16.mxu0 0
      %7434 = vmatpush1.bf16.msra.mxu0 %v7151
      %7435 = vmatprep.subr.bf16.mxu0 0
      %7436 = vmatpush1.bf16.msra.mxu0 %v7152
      %7437 = vmatprep.subr.bf16.mxu0 0
      %7438 = vmatpush1.bf16.msra.mxu0 0
      %7439 = vmatprep.subr.bf16.mxu0 0
      %7440 = vmatpush1.bf16.msra.mxu0 0
      %7441 = vmatprep.subr.bf16.mxu0 0
      %7442 = vmatpush1.bf16.msra.mxu0 0
      %7443 = vmatprep.subr.bf16.mxu0 0
      %7444 = vmatpush1.bf16.msra.mxu0 0
      %7445 = vmatprep.subr.bf16.mxu0 0
      %7446 = vmatpush1.bf16.msra.mxu0 0
      %7447 = vmatprep.subr.bf16.mxu0 0
      %7448 = vmatpush1.bf16.msra.mxu0 0
      %7449 = vmatprep.subr.bf16.mxu0 0
      %7450 = vmatpush1.bf16.msra.mxu0 0
      %7451 = vmatprep.subr.bf16.mxu0 0
      %7452 = vmatpush1.bf16.msra.mxu0 0
      %7453 = vmatprep.mubr.bf16.mxu0 0
      %7454 = vmatmul.mubr.bf16.gmra.mrb[0].mxu0 %v6639
      %v7455 = vpop.f32.mrb[0].mxu0
      %v7456 = vadd.f32 %v7407, %v7455
      %v7457 = vpop.f32.mrb[0].mxu0
      %v7458 = vpop.f32.mrb[0].mxu0
      %v7459 = vadd.f32 %v7410, %v7458
      %v7460 = vpop.f32.mrb[0].mxu0
      %7461 = vmatprep.mubr.bf16.mxu0 0
      %7462 = vmatmul.mubr.bf16.gmra.mrb[0].mxu0 %v6648
      %v7463 = vpop.f32.mrb[0].mxu0
      %v7464 = vadd.f32 %v7415, %v7463
      %v7465 = vpop.f32.mrb[0].mxu0
      %v7466 = vpop.f32.mrb[0].mxu0
      %v7467 = vadd.f32 %v7418, %v7466
      %v7468 = vpop.f32.mrb[0].mxu0
      %7469 = vdwg.mxu0
      %v7470 = vmax.f32 %v7456, 0.0
      %v7471 = vmax.f32 %v7459, 0.0
      %v7472 = vmax.f32 %v7464, 0.0
      %v7473 = vmax.f32 %v7467, 0.0
      %v7474 = vadd.f32 %v6500, %v7470
      %v7475 = vadd.f32 %v6501, %v7471
      %v7476 = vadd.f32 %v6502, %v7472
      %v7477 = vadd.f32 %v6503, %v7473
      %7478 = vst [vmem:[%s6499] sm:$0xff] %v7474
      %7479 = vst [vmem:[%s6499 + $0x8] sm:$0xff] %v7475
      %7480 = vst [vmem:[%s6499 + $0x100] sm:$0xff] %v7476
      %7481 = vst [vmem:[%s6499 + $0x108] sm:$0xff] %v7477
    $region76: #{spatial_conv_forward.1} parent=1 // loop_footer
      %s6493 = sadd.s32 1, %s6489
    $region77: #{spatial_conv_forward.1} parent=1 // loop_footer_branch
      %6488 = sbr.rel target = $region73
    $region78: #{spatial_conv_forward.1} parent=1 // loop_exit
      _
    loop: start=0, step=1, limit=14
    $region79: #{spatial_conv_forward.1} parent=1 // loop_pre_header
      _
    $region80: #{spatial_conv_forward.1} parent=1 // loop_header
      %s7483 = sphi 0, %s7487
      %p7484 = scmp.ge.s32.totalorder %s7483, 14
      %v7488 = vphi %v6494, %v8469
      %v7489 = vphi %v6495, %v8470
      %v7490 = vphi %v6496, %v8471
      %v7491 = vphi %v6497, %v8472
    $region81: #{spatial_conv_forward.1} parent=1 // loop_header_branch
      %7486 = sbr.rel (%p7484) target = $region85
    $region82: #{spatial_conv_forward.1} parent=1 // loop_body
      %s7492 = ssub.s32 14, %s7483
      %s7493 = smul.u32 %s7492, 16
      %s7494 = scalar_lea.vmem %s9, %s7493
      %v7495 = vld [vmem:[%s7494] sm:$0xff]
      %v7496 = vld [vmem:[%s7494 + $0x8] sm:$0xff]
      %v7497 = vld [vmem:[%s7494 + $0x100] sm:$0xff]
      %v7498 = vld [vmem:[%s7494 + $0x108] sm:$0xff]
      %v7499 = vrot.slane %v7488, 4
      %v7500 = vrot.slane %v7489, 4
      %v7501 = vrot.slane %v7490, 4
      %v7502 = vrot.slane %v7491, 4
      %vm7503 = vcmp.lt.s32.totalorder %v102, 4
      %v7504 = vsel %vm7503, %v7501, %v7502
      %v7505 = vsel %vm7503, %v7500, %v7501
      %v7506 = vsel %vm7503, %v7499, %v7500
      %v7507 = vsel %vm7503, %v7502, %v7499
      %vm7508 = vcmp.ge.s32.totalorder %v150, 4
      %vm7509 = vcmp.ge.s32.totalorder %v151, 4
      %vm7510 = vcmp.ge.s32.totalorder %v152, 4
      %vm7511 = vcmp.ge.s32.totalorder %v153, 4
      %v7512 = vsel %vm7508, %v7507, 0.0
      %v7513 = vsel %vm7509, %v7506, 0.0
      %v7514 = vsel %vm7510, %v7505, 0.0
      %v7515 = vsel %vm7511, %v7504, 0.0
      %v7516 = vrot.slane %v7488, 5
      %v7517 = vrot.slane %v7489, 5
      %v7518 = vrot.slane %v7490, 5
      %v7519 = vrot.slane %v7491, 5
      %vm7520 = vcmp.lt.s32.totalorder %v102, 3
      %v7521 = vsel %vm7520, %v7518, %v7519
      %v7522 = vsel %vm7520, %v7517, %v7518
      %v7523 = vsel %vm7520, %v7516, %v7517
      %v7524 = vsel %vm7520, %v7519, %v7516
      %vm7525 = vcmp.ge.s32.totalorder %v150, 3
      %vm7526 = vcmp.ge.s32.totalorder %v151, 3
      %vm7527 = vcmp.ge.s32.totalorder %v152, 3
      %vm7528 = vcmp.ge.s32.totalorder %v153, 3
      %v7529 = vsel %vm7525, %v7524, 0.0
      %v7530 = vsel %vm7526, %v7523, 0.0
      %v7531 = vsel %vm7527, %v7522, 0.0
      %v7532 = vsel %vm7528, %v7521, 0.0
      %v7533 = vrot.slane %v7488, 6
      %v7534 = vrot.slane %v7489, 6
      %v7535 = vrot.slane %v7490, 6
      %v7536 = vrot.slane %v7491, 6
      %vm7537 = vcmp.lt.s32.totalorder %v102, 2
      %v7538 = vsel %vm7537, %v7535, %v7536
      %v7539 = vsel %vm7537, %v7534, %v7535
      %v7540 = vsel %vm7537, %v7533, %v7534
      %v7541 = vsel %vm7537, %v7536, %v7533
      %vm7542 = vcmp.ge.s32.totalorder %v150, 2
      %vm7543 = vcmp.ge.s32.totalorder %v151, 2
      %vm7544 = vcmp.ge.s32.totalorder %v152, 2
      %vm7545 = vcmp.ge.s32.totalorder %v153, 2
      %v7546 = vsel %vm7542, %v7541, 0.0
      %v7547 = vsel %vm7543, %v7540, 0.0
      %v7548 = vsel %vm7544, %v7539, 0.0
      %v7549 = vsel %vm7545, %v7538, 0.0
      %v7550 = vrot.slane %v7488, 7
      %v7551 = vrot.slane %v7489, 7
      %v7552 = vrot.slane %v7490, 7
      %v7553 = vrot.slane %v7491, 7
      %vm7554 = vcmp.lt.s32.totalorder %v102, 1
      %v7555 = vsel %vm7554, %v7552, %v7553
      %v7556 = vsel %vm7554, %v7551, %v7552
      %v7557 = vsel %vm7554, %v7550, %v7551
      %v7558 = vsel %vm7554, %v7553, %v7550
      %vm7559 = vcmp.ge.s32.totalorder %v150, 1
      %vm7560 = vcmp.ge.s32.totalorder %v151, 1
      %vm7561 = vcmp.ge.s32.totalorder %v152, 1
      %vm7562 = vcmp.ge.s32.totalorder %v153, 1
      %v7563 = vsel %vm7559, %v7558, 0.0
      %v7564 = vsel %vm7560, %v7557, 0.0
      %v7565 = vsel %vm7561, %v7556, 0.0
      %v7566 = vsel %vm7562, %v7555, 0.0
      %v7567 = vrot.slane %v7488, 1
      %v7568 = vrot.slane %v7489, 1
      %v7569 = vrot.slane %v7490, 1
      %v7570 = vrot.slane %v7491, 1
      %vm7571 = vcmp.lt.s32.totalorder %v102, 7
      %v7572 = vsel %vm7571, %v7569, %v7570
      %v7573 = vsel %vm7571, %v7568, %v7569
      %v7574 = vsel %vm7571, %v7567, %v7568
      %v7575 = vsel %vm7571, %v7570, %v7567
      %vm7576 = vcmp.lt.s32.totalorder %v150, 15
      %vm7577 = vcmp.lt.s32.totalorder %v151, 15
      %vm7578 = vcmp.lt.s32.totalorder %v152, 15
      %vm7579 = vcmp.lt.s32.totalorder %v153, 15
      %v7580 = vsel %vm7576, %v7574, 0.0
      %v7581 = vsel %vm7577, %v7573, 0.0
      %v7582 = vsel %vm7578, %v7572, 0.0
      %v7583 = vsel %vm7579, %v7575, 0.0
      %v7584 = vrot.slane %v7488, 2
      %v7585 = vrot.slane %v7489, 2
      %v7586 = vrot.slane %v7490, 2
      %v7587 = vrot.slane %v7491, 2
      %vm7588 = vcmp.lt.s32.totalorder %v102, 6
      %v7589 = vsel %vm7588, %v7586, %v7587
      %v7590 = vsel %vm7588, %v7585, %v7586
      %v7591 = vsel %vm7588, %v7584, %v7585
      %v7592 = vsel %vm7588, %v7587, %v7584
      %vm7593 = vcmp.lt.s32.totalorder %v150, 14
      %vm7594 = vcmp.lt.s32.totalorder %v151, 14
      %vm7595 = vcmp.lt.s32.totalorder %v152, 14
      %vm7596 = vcmp.lt.s32.totalorder %v153, 14
      %v7597 = vsel %vm7593, %v7591, 0.0
      %v7598 = vsel %vm7594, %v7590, 0.0
      %v7599 = vsel %vm7595, %v7589, 0.0
      %v7600 = vsel %vm7596, %v7592, 0.0
      %v7601 = vrot.slane %v7488, 3
      %v7602 = vrot.slane %v7489, 3
      %v7603 = vrot.slane %v7490, 3
      %v7604 = vrot.slane %v7491, 3
      %vm7605 = vcmp.lt.s32.totalorder %v102, 5
      %v7606 = vsel %vm7605, %v7603, %v7604
      %v7607 = vsel %vm7605, %v7602, %v7603
      %v7608 = vsel %vm7605, %v7601, %v7602
      %v7609 = vsel %vm7605, %v7604, %v7601
      %vm7610 = vcmp.lt.s32.totalorder %v150, 13
      %vm7611 = vcmp.lt.s32.totalorder %v151, 13
      %vm7612 = vcmp.lt.s32.totalorder %v152, 13
      %vm7613 = vcmp.lt.s32.totalorder %v153, 13
      %v7614 = vsel %vm7610, %v7608, 0.0
      %v7615 = vsel %vm7611, %v7607, 0.0
      %v7616 = vsel %vm7612, %v7606, 0.0
      %v7617 = vsel %vm7613, %v7609, 0.0
      %vm7618 = vcmp.lt.s32.totalorder %v150, 12
      %vm7619 = vcmp.lt.s32.totalorder %v151, 12
      %vm7620 = vcmp.lt.s32.totalorder %v152, 12
      %vm7621 = vcmp.lt.s32.totalorder %v153, 12
      %v7622 = vsel %vm7618, %v7506, 0.0
      %v7623 = vsel %vm7619, %v7505, 0.0
      %v7624 = vsel %vm7620, %v7504, 0.0
      %v7625 = vsel %vm7621, %v7507, 0.0
      %v7626 = vpack.c.bf16 %v7513, %v7512
      %v7627 = vpack.c.bf16 %v7530, %v7529
      %v7628 = vpack.c.bf16 %v7547, %v7546
      %v7629 = vpack.c.bf16 %v7564, %v7563
      %v7630 = vpack.c.bf16 %v7489, %v7488
      %v7631 = vpack.c.bf16 %v7581, %v7580
      %v7632 = vpack.c.bf16 %v7598, %v7597
      %v7633 = vpack.c.bf16 %v7615, %v7614
      %v7634 = vpack.c.bf16 %v7623, %v7622
      %v7635 = vpack.c.bf16 %v7515, %v7514
      %v7636 = vpack.c.bf16 %v7532, %v7531
      %v7637 = vpack.c.bf16 %v7549, %v7548
      %v7638 = vpack.c.bf16 %v7566, %v7565
      %v7639 = vpack.c.bf16 %v7491, %v7490
      %v7640 = vpack.c.bf16 %v7583, %v7582
      %v7641 = vpack.c.bf16 %v7600, %v7599
      %v7642 = vpack.c.bf16 %v7617, %v7616
      %v7643 = vpack.c.bf16 %v7625, %v7624
      %v7644 = vld [vmem:[#allocation10] sm:$0xf]
      %v7645 = vld [vmem:[#allocation10 + $0x4] sm:$0xf]
      %v7646 = vld [vmem:[#allocation10 + $0x8] sm:$0xf]
      %v7647 = vld [vmem:[#allocation10 + $0xc] sm:$0xf]
      %v7648 = vld [vmem:[#allocation10 + $0x10] sm:$0xf]
      %v7649 = vld [vmem:[#allocation10 + $0x14] sm:$0xf]
      %v7650 = vld [vmem:[#allocation10 + $0x18] sm:$0xf]
      %v7651 = vld [vmem:[#allocation10 + $0x1c] sm:$0xf]
      %v7652 = vld [vmem:[#allocation10 + $0x20] sm:$0xf]
      %v7653 = vld [vmem:[#allocation10 + $0x24] sm:$0xf]
      %v7654 = vld [vmem:[#allocation10 + $0x28] sm:$0xf]
      %v7655 = vld [vmem:[#allocation10 + $0x2c] sm:$0xf]
      %v7656 = vld [vmem:[#allocation10 + $0x30] sm:$0xf]
      %v7657 = vld [vmem:[#allocation10 + $0x34] sm:$0xf]
      %v7658 = vld [vmem:[#allocation10 + $0x38] sm:$0xf]
      %v7659 = vld [vmem:[#allocation10 + $0x3c] sm:$0xf]
      %v7660 = vld [vmem:[#allocation10 + $0x40] sm:$0xf]
      %v7661 = vld [vmem:[#allocation10 + $0x44] sm:$0xf]
      %v7662 = vld [vmem:[#allocation10 + $0x48] sm:$0xf]
      %v7663 = vld [vmem:[#allocation10 + $0x4c] sm:$0xf]
      %v7664 = vld [vmem:[#allocation10 + $0x50] sm:$0xf]
      %v7665 = vld [vmem:[#allocation10 + $0x54] sm:$0xf]
      %v7666 = vld [vmem:[#allocation10 + $0x58] sm:$0xf]
      %v7667 = vld [vmem:[#allocation10 + $0x5c] sm:$0xf]
      %v7668 = vld [vmem:[#allocation10 + $0x60] sm:$0xf]
      %v7669 = vld [vmem:[#allocation10 + $0x64] sm:$0xf]
      %v7670 = vld [vmem:[#allocation10 + $0x68] sm:$0xf]
      %v7671 = vld [vmem:[#allocation10 + $0x6c] sm:$0xf]
      %v7672 = vld [vmem:[#allocation10 + $0x70] sm:$0xf]
      %v7673 = vld [vmem:[#allocation10 + $0x74] sm:$0xf]
      %v7674 = vld [vmem:[#allocation10 + $0x78] sm:$0xf]
      %v7675 = vld [vmem:[#allocation10 + $0x7c] sm:$0xf]
      %v7676 = vld [vmem:[#allocation10 + $0x80] sm:$0xf]
      %v7677 = vld [vmem:[#allocation10 + $0x84] sm:$0xf]
      %v7678 = vld [vmem:[#allocation10 + $0x88] sm:$0xf]
      %v7679 = vld [vmem:[#allocation10 + $0x8c] sm:$0xf]
      %v7680 = vld [vmem:[#allocation10 + $0x90] sm:$0xf]
      %v7681 = vld [vmem:[#allocation10 + $0x94] sm:$0xf]
      %v7682 = vld [vmem:[#allocation10 + $0x98] sm:$0xf]
      %v7683 = vld [vmem:[#allocation10 + $0x9c] sm:$0xf]
      %v7684 = vld [vmem:[#allocation10 + $0xa0] sm:$0xf]
      %v7685 = vld [vmem:[#allocation10 + $0xa4] sm:$0xf]
      %v7686 = vld [vmem:[#allocation10 + $0xa8] sm:$0xf]
      %v7687 = vld [vmem:[#allocation10 + $0xac] sm:$0xf]
      %v7688 = vld [vmem:[#allocation10 + $0xb0] sm:$0xf]
      %v7689 = vld [vmem:[#allocation10 + $0xb4] sm:$0xf]
      %v7690 = vld [vmem:[#allocation10 + $0xb8] sm:$0xf]
      %v7691 = vld [vmem:[#allocation10 + $0xbc] sm:$0xf]
      %v7692 = vld [vmem:[#allocation10 + $0xc0] sm:$0xf]
      %v7693 = vld [vmem:[#allocation10 + $0xc4] sm:$0xf]
      %v7694 = vld [vmem:[#allocation10 + $0xc8] sm:$0xf]
      %v7695 = vld [vmem:[#allocation10 + $0xcc] sm:$0xf]
      %v7696 = vld [vmem:[#allocation10 + $0xd0] sm:$0xf]
      %v7697 = vld [vmem:[#allocation10 + $0xd4] sm:$0xf]
      %v7698 = vld [vmem:[#allocation10 + $0xd8] sm:$0xf]
      %v7699 = vld [vmem:[#allocation10 + $0xdc] sm:$0xf]
      %v7700 = vld [vmem:[#allocation10 + $0xe0] sm:$0xf]
      %v7701 = vld [vmem:[#allocation10 + $0xe4] sm:$0xf]
      %v7702 = vld [vmem:[#allocation10 + $0xe8] sm:$0xf]
      %v7703 = vld [vmem:[#allocation10 + $0xec] sm:$0xf]
      %v7704 = vld [vmem:[#allocation10 + $0xf0] sm:$0xf]
      %v7705 = vld [vmem:[#allocation10 + $0xf4] sm:$0xf]
      %v7706 = vld [vmem:[#allocation10 + $0xf8] sm:$0xf]
      %v7707 = vld [vmem:[#allocation10 + $0xfc] sm:$0xf]
      %v7708 = vld [vmem:[#allocation10 + $0x100] sm:$0xf]
      %v7709 = vld [vmem:[#allocation10 + $0x104] sm:$0xf]
      %v7710 = vld [vmem:[#allocation10 + $0x108] sm:$0xf]
      %v7711 = vld [vmem:[#allocation10 + $0x10c] sm:$0xf]
      %v7712 = vld [vmem:[#allocation10 + $0x110] sm:$0xf]
      %v7713 = vld [vmem:[#allocation10 + $0x114] sm:$0xf]
      %v7714 = vld [vmem:[#allocation10 + $0x118] sm:$0xf]
      %v7715 = vld [vmem:[#allocation10 + $0x11c] sm:$0xf]
      %v7716 = vld [vmem:[#allocation10 + $0x120] sm:$0xf]
      %v7717 = vld [vmem:[#allocation10 + $0x124] sm:$0xf]
      %v7718 = vld [vmem:[#allocation10 + $0x128] sm:$0xf]
      %v7719 = vld [vmem:[#allocation10 + $0x12c] sm:$0xf]
      %v7720 = vld [vmem:[#allocation10 + $0x130] sm:$0xf]
      %v7721 = vld [vmem:[#allocation10 + $0x134] sm:$0xf]
      %v7722 = vld [vmem:[#allocation10 + $0x138] sm:$0xf]
      %v7723 = vld [vmem:[#allocation10 + $0x13c] sm:$0xf]
      %v7724 = vld [vmem:[#allocation10 + $0x140] sm:$0xf]
      %v7725 = vld [vmem:[#allocation10 + $0x144] sm:$0xf]
      %v7726 = vld [vmem:[#allocation10 + $0x148] sm:$0xf]
      %v7727 = vld [vmem:[#allocation10 + $0x14c] sm:$0xf]
      %v7728 = vld [vmem:[#allocation10 + $0x150] sm:$0xf]
      %v7729 = vld [vmem:[#allocation10 + $0x154] sm:$0xf]
      %v7730 = vld [vmem:[#allocation10 + $0x158] sm:$0xf]
      %v7731 = vld [vmem:[#allocation10 + $0x15c] sm:$0xf]
      %v7732 = vld [vmem:[#allocation10 + $0x160] sm:$0xf]
      %v7733 = vld [vmem:[#allocation10 + $0x164] sm:$0xf]
      %v7734 = vld [vmem:[#allocation10 + $0x168] sm:$0xf]
      %v7735 = vld [vmem:[#allocation10 + $0x16c] sm:$0xf]
      %v7736 = vld [vmem:[#allocation10 + $0x170] sm:$0xf]
      %v7737 = vld [vmem:[#allocation10 + $0x174] sm:$0xf]
      %v7738 = vld [vmem:[#allocation10 + $0x178] sm:$0xf]
      %v7739 = vld [vmem:[#allocation10 + $0x17c] sm:$0xf]
      %v7740 = vld [vmem:[#allocation10 + $0x180] sm:$0xf]
      %v7741 = vld [vmem:[#allocation10 + $0x184] sm:$0xf]
      %v7742 = vld [vmem:[#allocation10 + $0x188] sm:$0xf]
      %v7743 = vld [vmem:[#allocation10 + $0x18c] sm:$0xf]
      %v7744 = vld [vmem:[#allocation10 + $0x190] sm:$0xf]
      %v7745 = vld [vmem:[#allocation10 + $0x194] sm:$0xf]
      %v7746 = vld [vmem:[#allocation10 + $0x198] sm:$0xf]
      %v7747 = vld [vmem:[#allocation10 + $0x19c] sm:$0xf]
      %v7748 = vld [vmem:[#allocation10 + $0x1a0] sm:$0xf]
      %v7749 = vld [vmem:[#allocation10 + $0x1a4] sm:$0xf]
      %v7750 = vld [vmem:[#allocation10 + $0x1a8] sm:$0xf]
      %v7751 = vld [vmem:[#allocation10 + $0x1ac] sm:$0xf]
      %v7752 = vld [vmem:[#allocation10 + $0x1b0] sm:$0xf]
      %v7753 = vld [vmem:[#allocation10 + $0x1b4] sm:$0xf]
      %v7754 = vld [vmem:[#allocation10 + $0x1b8] sm:$0xf]
      %v7755 = vld [vmem:[#allocation10 + $0x1bc] sm:$0xf]
      %v7756 = vld [vmem:[#allocation10 + $0x1c0] sm:$0xf]
      %v7757 = vld [vmem:[#allocation10 + $0x1c4] sm:$0xf]
      %v7758 = vld [vmem:[#allocation10 + $0x1c8] sm:$0xf]
      %v7759 = vld [vmem:[#allocation10 + $0x1cc] sm:$0xf]
      %v7760 = vld [vmem:[#allocation10 + $0x1d0] sm:$0xf]
      %v7761 = vld [vmem:[#allocation10 + $0x1d4] sm:$0xf]
      %v7762 = vld [vmem:[#allocation10 + $0x1d8] sm:$0xf]
      %v7763 = vld [vmem:[#allocation10 + $0x1dc] sm:$0xf]
      %v7764 = vld [vmem:[#allocation10 + $0x1e0] sm:$0xf]
      %v7765 = vld [vmem:[#allocation10 + $0x1e4] sm:$0xf]
      %v7766 = vld [vmem:[#allocation10 + $0x1e8] sm:$0xf]
      %v7767 = vld [vmem:[#allocation10 + $0x1ec] sm:$0xf]
      %v7768 = vld [vmem:[#allocation10 + $0x1f0] sm:$0xf]
      %v7769 = vld [vmem:[#allocation10 + $0x1f4] sm:$0xf]
      %v7770 = vld [vmem:[#allocation10 + $0x1f8] sm:$0xf]
      %v7771 = vld [vmem:[#allocation10 + $0x1fc] sm:$0xf]
      %v7772 = vld [vmem:[#allocation10 + $0x200] sm:$0xf]
      %v7773 = vld [vmem:[#allocation10 + $0x204] sm:$0xf]
      %v7774 = vld [vmem:[#allocation10 + $0x208] sm:$0xf]
      %v7775 = vld [vmem:[#allocation10 + $0x20c] sm:$0xf]
      %v7776 = vld [vmem:[#allocation10 + $0x210] sm:$0xf]
      %v7777 = vld [vmem:[#allocation10 + $0x214] sm:$0xf]
      %v7778 = vld [vmem:[#allocation10 + $0x218] sm:$0xf]
      %v7779 = vld [vmem:[#allocation10 + $0x21c] sm:$0xf]
      %v7780 = vld [vmem:[#allocation10 + $0x220] sm:$0xf]
      %v7781 = vld [vmem:[#allocation10 + $0x224] sm:$0xf]
      %v7782 = vld [vmem:[#allocation10 + $0x228] sm:$0xf]
      %v7783 = vld [vmem:[#allocation10 + $0x22c] sm:$0xf]
      %v7784 = vld [vmem:[#allocation10 + $0x230] sm:$0xf]
      %v7785 = vld [vmem:[#allocation10 + $0x234] sm:$0xf]
      %v7786 = vld [vmem:[#allocation10 + $0x238] sm:$0xf]
      %v7787 = vld [vmem:[#allocation10 + $0x23c] sm:$0xf]
      %v7932 = vunpack.c.l.b16 %v7644
      %v7933 = vunpack.c.l.b16 %v7645
      %v7934 = vunpack.c.l.b16 %v7646
      %v7935 = vunpack.c.l.b16 %v7647
      %v7936 = vunpack.c.l.b16 %v7648
      %v7937 = vunpack.c.l.b16 %v7649
      %v7938 = vunpack.c.l.b16 %v7650
      %v7939 = vunpack.c.l.b16 %v7651
      %v7940 = vunpack.c.l.b16 %v7652
      %v7941 = vunpack.c.l.b16 %v7653
      %v7942 = vunpack.c.l.b16 %v7654
      %v7943 = vunpack.c.l.b16 %v7655
      %v7944 = vunpack.c.l.b16 %v7656
      %v7945 = vunpack.c.l.b16 %v7657
      %v7946 = vunpack.c.l.b16 %v7658
      %v7947 = vunpack.c.l.b16 %v7659
      %v7948 = vunpack.c.l.b16 %v7660
      %v7949 = vunpack.c.l.b16 %v7661
      %v7950 = vunpack.c.l.b16 %v7662
      %v7951 = vunpack.c.l.b16 %v7663
      %v7952 = vunpack.c.l.b16 %v7664
      %v7953 = vunpack.c.l.b16 %v7665
      %v7954 = vunpack.c.l.b16 %v7666
      %v7955 = vunpack.c.l.b16 %v7667
      %v7956 = vunpack.c.l.b16 %v7668
      %v7957 = vunpack.c.l.b16 %v7669
      %v7958 = vunpack.c.l.b16 %v7670
      %v7959 = vunpack.c.l.b16 %v7671
      %v7960 = vunpack.c.l.b16 %v7672
      %v7961 = vunpack.c.l.b16 %v7673
      %v7962 = vunpack.c.l.b16 %v7674
      %v7963 = vunpack.c.l.b16 %v7675
      %v7964 = vunpack.c.l.b16 %v7676
      %v7965 = vunpack.c.l.b16 %v7677
      %v7966 = vunpack.c.l.b16 %v7678
      %v7967 = vunpack.c.l.b16 %v7679
      %v7968 = vunpack.c.l.b16 %v7680
      %v7969 = vunpack.c.l.b16 %v7681
      %v7970 = vunpack.c.l.b16 %v7682
      %v7971 = vunpack.c.l.b16 %v7683
      %v7972 = vunpack.c.l.b16 %v7684
      %v7973 = vunpack.c.l.b16 %v7685
      %v7974 = vunpack.c.l.b16 %v7686
      %v7975 = vunpack.c.l.b16 %v7687
      %v7976 = vunpack.c.l.b16 %v7688
      %v7977 = vunpack.c.l.b16 %v7689
      %v7978 = vunpack.c.l.b16 %v7690
      %v7979 = vunpack.c.l.b16 %v7691
      %v7980 = vunpack.c.l.b16 %v7692
      %v7981 = vunpack.c.l.b16 %v7693
      %v7982 = vunpack.c.l.b16 %v7694
      %v7983 = vunpack.c.l.b16 %v7695
      %v7984 = vunpack.c.l.b16 %v7696
      %v7985 = vunpack.c.l.b16 %v7697
      %v7986 = vunpack.c.l.b16 %v7698
      %v7987 = vunpack.c.l.b16 %v7699
      %v7988 = vunpack.c.l.b16 %v7700
      %v7989 = vunpack.c.l.b16 %v7701
      %v7990 = vunpack.c.l.b16 %v7702
      %v7991 = vunpack.c.l.b16 %v7703
      %v7992 = vunpack.c.l.b16 %v7704
      %v7993 = vunpack.c.l.b16 %v7705
      %v7994 = vunpack.c.l.b16 %v7706
      %v7995 = vunpack.c.l.b16 %v7707
      %v7996 = vunpack.c.l.b16 %v7708
      %v7997 = vunpack.c.l.b16 %v7709
      %v7998 = vunpack.c.l.b16 %v7710
      %v7999 = vunpack.c.l.b16 %v7711
      %v8000 = vunpack.c.l.b16 %v7712
      %v8001 = vunpack.c.l.b16 %v7713
      %v8002 = vunpack.c.l.b16 %v7714
      %v8003 = vunpack.c.l.b16 %v7715
      %v8004 = vunpack.c.l.b16 %v7716
      %v8005 = vunpack.c.l.b16 %v7717
      %v8006 = vunpack.c.l.b16 %v7718
      %v8007 = vunpack.c.l.b16 %v7719
      %v8008 = vunpack.c.l.b16 %v7720
      %v8009 = vunpack.c.l.b16 %v7721
      %v8010 = vunpack.c.l.b16 %v7722
      %v8011 = vunpack.c.l.b16 %v7723
      %v8012 = vunpack.c.l.b16 %v7724
      %v8013 = vunpack.c.l.b16 %v7725
      %v8014 = vunpack.c.l.b16 %v7726
      %v8015 = vunpack.c.l.b16 %v7727
      %v8016 = vunpack.c.l.b16 %v7728
      %v8017 = vunpack.c.l.b16 %v7729
      %v8018 = vunpack.c.l.b16 %v7730
      %v8019 = vunpack.c.l.b16 %v7731
      %v8020 = vunpack.c.l.b16 %v7732
      %v8021 = vunpack.c.l.b16 %v7733
      %v8022 = vunpack.c.l.b16 %v7734
      %v8023 = vunpack.c.l.b16 %v7735
      %v8024 = vunpack.c.l.b16 %v7736
      %v8025 = vunpack.c.l.b16 %v7737
      %v8026 = vunpack.c.l.b16 %v7738
      %v8027 = vunpack.c.l.b16 %v7739
      %v8028 = vunpack.c.l.b16 %v7740
      %v8029 = vunpack.c.l.b16 %v7741
      %v8030 = vunpack.c.l.b16 %v7742
      %v8031 = vunpack.c.l.b16 %v7743
      %v8032 = vunpack.c.l.b16 %v7744
      %v8033 = vunpack.c.l.b16 %v7745
      %v8034 = vunpack.c.l.b16 %v7746
      %v8035 = vunpack.c.l.b16 %v7747
      %v8036 = vunpack.c.l.b16 %v7748
      %v8037 = vunpack.c.l.b16 %v7749
      %v8038 = vunpack.c.l.b16 %v7750
      %v8039 = vunpack.c.l.b16 %v7751
      %v8040 = vunpack.c.l.b16 %v7752
      %v8041 = vunpack.c.l.b16 %v7753
      %v8042 = vunpack.c.l.b16 %v7754
      %v8043 = vunpack.c.l.b16 %v7755
      %v8044 = vunpack.c.l.b16 %v7756
      %v8045 = vunpack.c.l.b16 %v7757
      %v8046 = vunpack.c.l.b16 %v7758
      %v8047 = vunpack.c.l.b16 %v7759
      %v8048 = vunpack.c.l.b16 %v7760
      %v8049 = vunpack.c.l.b16 %v7761
      %v8050 = vunpack.c.l.b16 %v7762
      %v8051 = vunpack.c.l.b16 %v7763
      %v8052 = vunpack.c.l.b16 %v7764
      %v8053 = vunpack.c.l.b16 %v7765
      %v8054 = vunpack.c.l.b16 %v7766
      %v8055 = vunpack.c.l.b16 %v7767
      %v8056 = vunpack.c.l.b16 %v7768
      %v8057 = vunpack.c.l.b16 %v7769
      %v8058 = vunpack.c.l.b16 %v7770
      %v8059 = vunpack.c.l.b16 %v7771
      %v8060 = vunpack.c.l.b16 %v7772
      %v8061 = vunpack.c.l.b16 %v7773
      %v8062 = vunpack.c.l.b16 %v7774
      %v8063 = vunpack.c.l.b16 %v7775
      %v8064 = vunpack.c.l.b16 %v7776
      %v8065 = vunpack.c.l.b16 %v7777
      %v8066 = vunpack.c.l.b16 %v7778
      %v8067 = vunpack.c.l.b16 %v7779
      %v8068 = vunpack.c.l.b16 %v7780
      %v8069 = vunpack.c.l.b16 %v7781
      %v8070 = vunpack.c.l.b16 %v7782
      %v8071 = vunpack.c.l.b16 %v7783
      %v8072 = vunpack.c.l.b16 %v7784
      %v8073 = vunpack.c.l.b16 %v7785
      %v8074 = vunpack.c.l.b16 %v7786
      %v8075 = vunpack.c.l.b16 %v7787
      %v8076 = vpack.c.b16 %v7933, %v7932
      %v8077 = vpack.c.b16 %v7935, %v7934
      %v8078 = vpack.c.b16 %v7937, %v7936
      %v8079 = vpack.c.b16 %v7939, %v7938
      %v8080 = vpack.c.b16 %v7941, %v7940
      %v8081 = vpack.c.b16 %v7943, %v7942
      %v8082 = vpack.c.b16 %v7945, %v7944
      %v8083 = vpack.c.b16 %v7947, %v7946
      %v8084 = vpack.c.b16 %v7949, %v7948
      %v8085 = vpack.c.b16 %v7951, %v7950
      %v8086 = vpack.c.b16 %v7953, %v7952
      %v8087 = vpack.c.b16 %v7955, %v7954
      %v8088 = vpack.c.b16 %v7957, %v7956
      %v8089 = vpack.c.b16 %v7959, %v7958
      %v8090 = vpack.c.b16 %v7961, %v7960
      %v8091 = vpack.c.b16 %v7963, %v7962
      %v8092 = vpack.c.b16 %v7965, %v7964
      %v8093 = vpack.c.b16 %v7967, %v7966
      %v8094 = vpack.c.b16 %v7969, %v7968
      %v8095 = vpack.c.b16 %v7971, %v7970
      %v8096 = vpack.c.b16 %v7973, %v7972
      %v8097 = vpack.c.b16 %v7975, %v7974
      %v8098 = vpack.c.b16 %v7977, %v7976
      %v8099 = vpack.c.b16 %v7979, %v7978
      %v8100 = vpack.c.b16 %v7981, %v7980
      %v8101 = vpack.c.b16 %v7983, %v7982
      %v8102 = vpack.c.b16 %v7985, %v7984
      %v8103 = vpack.c.b16 %v7987, %v7986
      %v8104 = vpack.c.b16 %v7989, %v7988
      %v8105 = vpack.c.b16 %v7991, %v7990
      %v8106 = vpack.c.b16 %v7993, %v7992
      %v8107 = vpack.c.b16 %v7995, %v7994
      %v8108 = vpack.c.b16 %v7997, %v7996
      %v8109 = vpack.c.b16 %v7999, %v7998
      %v8110 = vpack.c.b16 %v8001, %v8000
      %v8111 = vpack.c.b16 %v8003, %v8002
      %v8112 = vpack.c.b16 %v8005, %v8004
      %v8113 = vpack.c.b16 %v8007, %v8006
      %v8114 = vpack.c.b16 %v8009, %v8008
      %v8115 = vpack.c.b16 %v8011, %v8010
      %v8116 = vpack.c.b16 %v8013, %v8012
      %v8117 = vpack.c.b16 %v8015, %v8014
      %v8118 = vpack.c.b16 %v8017, %v8016
      %v8119 = vpack.c.b16 %v8019, %v8018
      %v8120 = vpack.c.b16 %v8021, %v8020
      %v8121 = vpack.c.b16 %v8023, %v8022
      %v8122 = vpack.c.b16 %v8025, %v8024
      %v8123 = vpack.c.b16 %v8027, %v8026
      %v8124 = vpack.c.b16 %v8029, %v8028
      %v8125 = vpack.c.b16 %v8031, %v8030
      %v8126 = vpack.c.b16 %v8033, %v8032
      %v8127 = vpack.c.b16 %v8035, %v8034
      %v8128 = vpack.c.b16 %v8037, %v8036
      %v8129 = vpack.c.b16 %v8039, %v8038
      %v8130 = vpack.c.b16 %v8041, %v8040
      %v8131 = vpack.c.b16 %v8043, %v8042
      %v8132 = vpack.c.b16 %v8045, %v8044
      %v8133 = vpack.c.b16 %v8047, %v8046
      %v8134 = vpack.c.b16 %v8049, %v8048
      %v8135 = vpack.c.b16 %v8051, %v8050
      %v8136 = vpack.c.b16 %v8053, %v8052
      %v8137 = vpack.c.b16 %v8055, %v8054
      %v8138 = vpack.c.b16 %v8057, %v8056
      %v8139 = vpack.c.b16 %v8059, %v8058
      %v8140 = vpack.c.b16 %v8061, %v8060
      %v8141 = vpack.c.b16 %v8063, %v8062
      %v8142 = vpack.c.b16 %v8065, %v8064
      %v8143 = vpack.c.b16 %v8067, %v8066
      %v8144 = vpack.c.b16 %v8069, %v8068
      %v8145 = vpack.c.b16 %v8071, %v8070
      %v8146 = vpack.c.b16 %v8073, %v8072
      %v8147 = vpack.c.b16 %v8075, %v8074
      %8220 = vmatprep.subr.bf16.mxu0 0
      %8221 = vmatpush1.bf16.msra.mxu0 %v8076
      %8222 = vmatprep.subr.bf16.mxu0 0
      %8223 = vmatpush1.bf16.msra.mxu0 %v8077
      %8224 = vmatprep.subr.bf16.mxu0 0
      %8225 = vmatpush1.bf16.msra.mxu0 %v8078
      %8226 = vmatprep.subr.bf16.mxu0 0
      %8227 = vmatpush1.bf16.msra.mxu0 %v8079
      %8228 = vmatprep.subr.bf16.mxu0 0
      %8229 = vmatpush1.bf16.msra.mxu0 %v8080
      %8230 = vmatprep.subr.bf16.mxu0 0
      %8231 = vmatpush1.bf16.msra.mxu0 %v8081
      %8232 = vmatprep.subr.bf16.mxu0 0
      %8233 = vmatpush1.bf16.msra.mxu0 %v8082
      %8234 = vmatprep.subr.bf16.mxu0 0
      %8235 = vmatpush1.bf16.msra.mxu0 %v8083
      %8236 = vmatprep.subr.bf16.mxu0 0
      %8237 = vmatpush1.bf16.msra.mxu0 %v8084
      %8238 = vmatprep.subr.bf16.mxu0 0
      %8239 = vmatpush1.bf16.msra.mxu0 %v8085
      %8240 = vmatprep.subr.bf16.mxu0 0
      %8241 = vmatpush1.bf16.msra.mxu0 %v8086
      %8242 = vmatprep.subr.bf16.mxu0 0
      %8243 = vmatpush1.bf16.msra.mxu0 %v8087
      %8244 = vmatprep.subr.bf16.mxu0 0
      %8245 = vmatpush1.bf16.msra.mxu0 %v8088
      %8246 = vmatprep.subr.bf16.mxu0 0
      %8247 = vmatpush1.bf16.msra.mxu0 %v8089
      %8248 = vmatprep.subr.bf16.mxu0 0
      %8249 = vmatpush1.bf16.msra.mxu0 %v8090
      %8250 = vmatprep.subr.bf16.mxu0 0
      %8251 = vmatpush1.bf16.msra.mxu0 %v8091
      %8252 = vmatprep.mubr.bf16.mxu0 %v7627
      %8253 = vmatmul.mubr.bf16.gmra.mrb[0].mxu0 %v7626
      %v8254 = vpop.f32.mrb[0].mxu0
      %v8255 = vadd.f32 %v180, %v8254
      %v8256 = vpop.f32.mrb[0].mxu0
      %v8257 = vpop.f32.mrb[0].mxu0
      %v8258 = vadd.f32 %v180, %v8257
      %v8259 = vpop.f32.mrb[0].mxu0
      %8260 = vmatprep.mubr.bf16.mxu0 %v7636
      %8261 = vmatmul.mubr.bf16.gmra.mrb[0].mxu0 %v7635
      %v8262 = vpop.f32.mrb[0].mxu0
      %v8263 = vadd.f32 %v180, %v8262
      %v8264 = vpop.f32.mrb[0].mxu0
      %v8265 = vpop.f32.mrb[0].mxu0
      %v8266 = vadd.f32 %v180, %v8265
      %v8267 = vpop.f32.mrb[0].mxu0
      %8268 = vdwg.mxu0
      %8269 = vmatprep.subr.bf16.mxu0 0
      %8270 = vmatpush1.bf16.msra.mxu0 %v8092
      %8271 = vmatprep.subr.bf16.mxu0 0
      %8272 = vmatpush1.bf16.msra.mxu0 %v8093
      %8273 = vmatprep.subr.bf16.mxu0 0
      %8274 = vmatpush1.bf16.msra.mxu0 %v8094
      %8275 = vmatprep.subr.bf16.mxu0 0
      %8276 = vmatpush1.bf16.msra.mxu0 %v8095
      %8277 = vmatprep.subr.bf16.mxu0 0
      %8278 = vmatpush1.bf16.msra.mxu0 %v8096
      %8279 = vmatprep.subr.bf16.mxu0 0
      %8280 = vmatpush1.bf16.msra.mxu0 %v8097
      %8281 = vmatprep.subr.bf16.mxu0 0
      %8282 = vmatpush1.bf16.msra.mxu0 %v8098
      %8283 = vmatprep.subr.bf16.mxu0 0
      %8284 = vmatpush1.bf16.msra.mxu0 %v8099
      %8285 = vmatprep.subr.bf16.mxu0 0
      %8286 = vmatpush1.bf16.msra.mxu0 %v8100
      %8287 = vmatprep.subr.bf16.mxu0 0
      %8288 = vmatpush1.bf16.msra.mxu0 %v8101
      %8289 = vmatprep.subr.bf16.mxu0 0
      %8290 = vmatpush1.bf16.msra.mxu0 %v8102
      %8291 = vmatprep.subr.bf16.mxu0 0
      %8292 = vmatpush1.bf16.msra.mxu0 %v8103
      %8293 = vmatprep.subr.bf16.mxu0 0
      %8294 = vmatpush1.bf16.msra.mxu0 %v8104
      %8295 = vmatprep.subr.bf16.mxu0 0
      %8296 = vmatpush1.bf16.msra.mxu0 %v8105
      %8297 = vmatprep.subr.bf16.mxu0 0
      %8298 = vmatpush1.bf16.msra.mxu0 %v8106
      %8299 = vmatprep.subr.bf16.mxu0 0
      %8300 = vmatpush1.bf16.msra.mxu0 %v8107
      %8301 = vmatprep.mubr.bf16.mxu0 %v7629
      %8302 = vmatmul.mubr.bf16.gmra.mrb[0].mxu0 %v7628
      %v8303 = vpop.f32.mrb[0].mxu0
      %v8304 = vadd.f32 %v8255, %v8303
      %v8305 = vpop.f32.mrb[0].mxu0
      %v8306 = vpop.f32.mrb[0].mxu0
      %v8307 = vadd.f32 %v8258, %v8306
      %v8308 = vpop.f32.mrb[0].mxu0
      %8309 = vmatprep.mubr.bf16.mxu0 %v7638
      %8310 = vmatmul.mubr.bf16.gmra.mrb[0].mxu0 %v7637
      %v8311 = vpop.f32.mrb[0].mxu0
      %v8312 = vadd.f32 %v8263, %v8311
      %v8313 = vpop.f32.mrb[0].mxu0
      %v8314 = vpop.f32.mrb[0].mxu0
      %v8315 = vadd.f32 %v8266, %v8314
      %v8316 = vpop.f32.mrb[0].mxu0
      %8317 = vdwg.mxu0
      %8318 = vmatprep.subr.bf16.mxu0 0
      %8319 = vmatpush1.bf16.msra.mxu0 %v8108
      %8320 = vmatprep.subr.bf16.mxu0 0
      %8321 = vmatpush1.bf16.msra.mxu0 %v8109
      %8322 = vmatprep.subr.bf16.mxu0 0
      %8323 = vmatpush1.bf16.msra.mxu0 %v8110
      %8324 = vmatprep.subr.bf16.mxu0 0
      %8325 = vmatpush1.bf16.msra.mxu0 %v8111
      %8326 = vmatprep.subr.bf16.mxu0 0
      %8327 = vmatpush1.bf16.msra.mxu0 %v8112
      %8328 = vmatprep.subr.bf16.mxu0 0
      %8329 = vmatpush1.bf16.msra.mxu0 %v8113
      %8330 = vmatprep.subr.bf16.mxu0 0
      %8331 = vmatpush1.bf16.msra.mxu0 %v8114
      %8332 = vmatprep.subr.bf16.mxu0 0
      %8333 = vmatpush1.bf16.msra.mxu0 %v8115
      %8334 = vmatprep.subr.bf16.mxu0 0
      %8335 = vmatpush1.bf16.msra.mxu0 %v8116
      %8336 = vmatprep.subr.bf16.mxu0 0
      %8337 = vmatpush1.bf16.msra.mxu0 %v8117
      %8338 = vmatprep.subr.bf16.mxu0 0
      %8339 = vmatpush1.bf16.msra.mxu0 %v8118
      %8340 = vmatprep.subr.bf16.mxu0 0
      %8341 = vmatpush1.bf16.msra.mxu0 %v8119
      %8342 = vmatprep.subr.bf16.mxu0 0
      %8343 = vmatpush1.bf16.msra.mxu0 %v8120
      %8344 = vmatprep.subr.bf16.mxu0 0
      %8345 = vmatpush1.bf16.msra.mxu0 %v8121
      %8346 = vmatprep.subr.bf16.mxu0 0
      %8347 = vmatpush1.bf16.msra.mxu0 %v8122
      %8348 = vmatprep.subr.bf16.mxu0 0
      %8349 = vmatpush1.bf16.msra.mxu0 %v8123
      %8350 = vmatprep.mubr.bf16.mxu0 %v7631
      %8351 = vmatmul.mubr.bf16.gmra.mrb[0].mxu0 %v7630
      %v8352 = vpop.f32.mrb[0].mxu0
      %v8353 = vadd.f32 %v8304, %v8352
      %v8354 = vpop.f32.mrb[0].mxu0
      %v8355 = vpop.f32.mrb[0].mxu0
      %v8356 = vadd.f32 %v8307, %v8355
      %v8357 = vpop.f32.mrb[0].mxu0
      %8358 = vmatprep.mubr.bf16.mxu0 %v7640
      %8359 = vmatmul.mubr.bf16.gmra.mrb[0].mxu0 %v7639
      %v8360 = vpop.f32.mrb[0].mxu0
      %v8361 = vadd.f32 %v8312, %v8360
      %v8362 = vpop.f32.mrb[0].mxu0
      %v8363 = vpop.f32.mrb[0].mxu0
      %v8364 = vadd.f32 %v8315, %v8363
      %v8365 = vpop.f32.mrb[0].mxu0
      %8366 = vdwg.mxu0
      %8367 = vmatprep.subr.bf16.mxu0 0
      %8368 = vmatpush1.bf16.msra.mxu0 %v8124
      %8369 = vmatprep.subr.bf16.mxu0 0
      %8370 = vmatpush1.bf16.msra.mxu0 %v8125
      %8371 = vmatprep.subr.bf16.mxu0 0
      %8372 = vmatpush1.bf16.msra.mxu0 %v8126
      %8373 = vmatprep.subr.bf16.mxu0 0
      %8374 = vmatpush1.bf16.msra.mxu0 %v8127
      %8375 = vmatprep.subr.bf16.mxu0 0
      %8376 = vmatpush1.bf16.msra.mxu0 %v8128
      %8377 = vmatprep.subr.bf16.mxu0 0
      %8378 = vmatpush1.bf16.msra.mxu0 %v8129
      %8379 = vmatprep.subr.bf16.mxu0 0
      %8380 = vmatpush1.bf16.msra.mxu0 %v8130
      %8381 = vmatprep.subr.bf16.mxu0 0
      %8382 = vmatpush1.bf16.msra.mxu0 %v8131
      %8383 = vmatprep.subr.bf16.mxu0 0
      %8384 = vmatpush1.bf16.msra.mxu0 %v8132
      %8385 = vmatprep.subr.bf16.mxu0 0
      %8386 = vmatpush1.bf16.msra.mxu0 %v8133
      %8387 = vmatprep.subr.bf16.mxu0 0
      %8388 = vmatpush1.bf16.msra.mxu0 %v8134
      %8389 = vmatprep.subr.bf16.mxu0 0
      %8390 = vmatpush1.bf16.msra.mxu0 %v8135
      %8391 = vmatprep.subr.bf16.mxu0 0
      %8392 = vmatpush1.bf16.msra.mxu0 %v8136
      %8393 = vmatprep.subr.bf16.mxu0 0
      %8394 = vmatpush1.bf16.msra.mxu0 %v8137
      %8395 = vmatprep.subr.bf16.mxu0 0
      %8396 = vmatpush1.bf16.msra.mxu0 %v8138
      %8397 = vmatprep.subr.bf16.mxu0 0
      %8398 = vmatpush1.bf16.msra.mxu0 %v8139
      %8399 = vmatprep.mubr.bf16.mxu0 %v7633
      %8400 = vmatmul.mubr.bf16.gmra.mrb[0].mxu0 %v7632
      %v8401 = vpop.f32.mrb[0].mxu0
      %v8402 = vadd.f32 %v8353, %v8401
      %v8403 = vpop.f32.mrb[0].mxu0
      %v8404 = vpop.f32.mrb[0].mxu0
      %v8405 = vadd.f32 %v8356, %v8404
      %v8406 = vpop.f32.mrb[0].mxu0
      %8407 = vmatprep.mubr.bf16.mxu0 %v7642
      %8408 = vmatmul.mubr.bf16.gmra.mrb[0].mxu0 %v7641
      %v8409 = vpop.f32.mrb[0].mxu0
      %v8410 = vadd.f32 %v8361, %v8409
      %v8411 = vpop.f32.mrb[0].mxu0
      %v8412 = vpop.f32.mrb[0].mxu0
      %v8413 = vadd.f32 %v8364, %v8412
      %v8414 = vpop.f32.mrb[0].mxu0
      %8415 = vdwg.mxu0
      %8416 = vmatprep.subr.bf16.mxu0 0
      %8417 = vmatpush1.bf16.msra.mxu0 %v8140
      %8418 = vmatprep.subr.bf16.mxu0 0
      %8419 = vmatpush1.bf16.msra.mxu0 %v8141
      %8420 = vmatprep.subr.bf16.mxu0 0
      %8421 = vmatpush1.bf16.msra.mxu0 %v8142
      %8422 = vmatprep.subr.bf16.mxu0 0
      %8423 = vmatpush1.bf16.msra.mxu0 %v8143
      %8424 = vmatprep.subr.bf16.mxu0 0
      %8425 = vmatpush1.bf16.msra.mxu0 %v8144
      %8426 = vmatprep.subr.bf16.mxu0 0
      %8427 = vmatpush1.bf16.msra.mxu0 %v8145
      %8428 = vmatprep.subr.bf16.mxu0 0
      %8429 = vmatpush1.bf16.msra.mxu0 %v8146
      %8430 = vmatprep.subr.bf16.mxu0 0
      %8431 = vmatpush1.bf16.msra.mxu0 %v8147
      %8432 = vmatprep.subr.bf16.mxu0 0
      %8433 = vmatpush1.bf16.msra.mxu0 0
      %8434 = vmatprep.subr.bf16.mxu0 0
      %8435 = vmatpush1.bf16.msra.mxu0 0
      %8436 = vmatprep.subr.bf16.mxu0 0
      %8437 = vmatpush1.bf16.msra.mxu0 0
      %8438 = vmatprep.subr.bf16.mxu0 0
      %8439 = vmatpush1.bf16.msra.mxu0 0
      %8440 = vmatprep.subr.bf16.mxu0 0
      %8441 = vmatpush1.bf16.msra.mxu0 0
      %8442 = vmatprep.subr.bf16.mxu0 0
      %8443 = vmatpush1.bf16.msra.mxu0 0
      %8444 = vmatprep.subr.bf16.mxu0 0
      %8445 = vmatpush1.bf16.msra.mxu0 0
      %8446 = vmatprep.subr.bf16.mxu0 0
      %8447 = vmatpush1.bf16.msra.mxu0 0
      %8448 = vmatprep.mubr.bf16.mxu0 0
      %8449 = vmatmul.mubr.bf16.gmra.mrb[0].mxu0 %v7634
      %v8450 = vpop.f32.mrb[0].mxu0
      %v8451 = vadd.f32 %v8402, %v8450
      %v8452 = vpop.f32.mrb[0].mxu0
      %v8453 = vpop.f32.mrb[0].mxu0
      %v8454 = vadd.f32 %v8405, %v8453
      %v8455 = vpop.f32.mrb[0].mxu0
      %8456 = vmatprep.mubr.bf16.mxu0 0
      %8457 = vmatmul.mubr.bf16.gmra.mrb[0].mxu0 %v7643
      %v8458 = vpop.f32.mrb[0].mxu0
      %v8459 = vadd.f32 %v8410, %v8458
      %v8460 = vpop.f32.mrb[0].mxu0
      %v8461 = vpop.f32.mrb[0].mxu0
      %v8462 = vadd.f32 %v8413, %v8461
      %v8463 = vpop.f32.mrb[0].mxu0
      %8464 = vdwg.mxu0
      %v8465 = vmax.f32 %v8451, 0.0
      %v8466 = vmax.f32 %v8454, 0.0
      %v8467 = vmax.f32 %v8459, 0.0
      %v8468 = vmax.f32 %v8462, 0.0
      %v8469 = vadd.f32 %v7495, %v8465
      %v8470 = vadd.f32 %v7496, %v8466
      %v8471 = vadd.f32 %v7497, %v8467
      %v8472 = vadd.f32 %v7498, %v8468
      %8473 = vst [vmem:[%s7494] sm:$0xff] %v8469
      %8474 = vst [vmem:[%s7494 + $0x8] sm:$0xff] %v8470
      %8475 = vst [vmem:[%s7494 + $0x100] sm:$0xff] %v8471
      %8476 = vst [vmem:[%s7494 + $0x108] sm:$0xff] %v8472
    $region83: #{spatial_conv_forward.1} parent=1 // loop_footer
      %s7487 = sadd.s32 1, %s7483
    $region84: #{spatial_conv_forward.1} parent=1 // loop_footer_branch
      %7482 = sbr.rel target = $region80
    $region85: #{spatial_conv_forward.1} parent=1 // loop_exit
      _
    // Predicated region
    $region86: #{spatial_conv_forward.1} parent=1 // pred_check
      _
    $region87: #{spatial_conv_forward.1} parent=1 // pred_check_branch
      %8478 = sbr.rel (0) target = $region89
    $region88: #{spatial_conv_forward.1} parent=1 // pred_region
      _
    $region89: #{spatial_conv_forward.1} parent=1 // pred_fallthru
      _
    // Predicated region
    $region90: #{spatial_conv_forward.1} parent=1 // pred_check
      _
    $region91: #{spatial_conv_forward.1} parent=1 // pred_check_branch
      %8480 = sbr.rel (0) target = $region93
    $region92: #{spatial_conv_forward.1} parent=1 // pred_region
      _
    $region93: #{spatial_conv_forward.1} parent=1 // pred_fallthru
      _
    %8481 = vsyncpa [#allocation4], 1
    %8482 = vsyncpa [#allocation6], 1
    %8483 = vsyncpa [#allocation9], 1

</llo_original>
